<compile_context>
chip_gen: v7x
topology: tpu7x:2x2x1
jax: 0.10.0
libtpu: 0.0.40
codegen_flags: <defaults>
</compile_context>

<pallas_src>
import functools
import math

import jax
import jax.numpy as jnp
import numpy as np
from jax.experimental import pallas as pl
from jax.experimental.pallas import tpu as pltpu


# ---------------------------------------------------------------------------
# In-kernel helpers (operate on values, not refs)
# ---------------------------------------------------------------------------
def _ln(x, g, b, eps=1e-5):
    """LayerNorm over last dim, f32, eps=1e-5 like nn.LayerNorm."""
    mean = jnp.mean(x, axis=-1, keepdims=True)
    var = jnp.mean((x - mean) ** 2, axis=-1, keepdims=True)
    return (x - mean) * jax.lax.rsqrt(var + eps) * g + b


def _mha_out(q, k, v, w_out, *, nhead, B, Tq, Tk):
    """Multi-head attention + output projection, batch-major, no mask.

    q: (B*Tq, D)  (already scaled by 1/sqrt(dh) via folded weights)
    k, v: (B*Tk, D);  w_out: (D, D) f32
    Returns (B*Tq, D) = sum_h softmax(Q_h K_h^T) V_h @ W_out[h]  (no concat).
    """
    D = w_out.shape[0]
    dh = D // nhead
    q3 = q.reshape(B, Tq, D)
    k3 = k.reshape(B, Tk, D)
    v3 = v.reshape(B, Tk, D)
    acc = jnp.zeros((B * Tq, D), jnp.float32)
    for h in range(nhead):  # unrolled; tiny VMEM-resident batched matmuls
        sl = slice(h * dh, (h + 1) * dh)
        s = jnp.einsum("bqd,bkd->bqk", q3[..., sl], k3[..., sl],
                       preferred_element_type=jnp.float32)
        s = s - jnp.max(s, axis=-1, keepdims=True)
        p = jnp.exp(s)
        p = p * pl.reciprocal(jnp.sum(p, axis=-1, keepdims=True), approx=True)
        o = jnp.einsum("bqk,bkd->bqd", p, v3[..., sl],
                       preferred_element_type=jnp.float32)
        acc = acc + jnp.dot(o.reshape(B * Tq, dh), w_out[sl, :],
                            preferred_element_type=jnp.float32)
    return acc


# ---------------------------------------------------------------------------
# Fully fused kernel:
#   grid step 0 -> water encoder (stash last-time-step rows in VMEM scratch)
#   grid step 1 -> rain encoder + cross-attention (q-len 1) + decoder head
# ---------------------------------------------------------------------------
def _fused_kernel(x_ref, pe_ref,
                  pw_ref, pb_ref,
                  inw_ref, inb_ref, outw_ref, outb_ref,
                  n1w_ref, n1b_ref,
                  f1w_ref, f1b_ref, f2w_ref, f2b_ref,
                  n2w_ref, n2b_ref,
                  cinw_ref, cinb_ref, coutw_ref, coutb_ref,
                  dw_ref, db_ref,
                  o_ref, q_last,
                  *, nhead, B, T):
    e = pl.program_id(0)
    D = pw_ref.shape[-1]

    # ---- encoder branch e (0 = water, 1 = rain) ------------------------------
    # input projection + positional encoding (fused epilogue)
    x = jnp.dot(x_ref[...], pw_ref[...], preferred_element_type=jnp.float32)
    x = x + pb_ref[...] + pe_ref[...]

    # self-attention: single bf16 QKV matmul, batch-major, no mask
    qkv = jnp.dot(x.astype(jnp.bfloat16), inw_ref[...],
                  preferred_element_type=jnp.float32) + inb_ref[...]
    attn = _mha_out(qkv[:, :D], qkv[:, D:2 * D], qkv[:, 2 * D:],
                    outw_ref[...], nhead=nhead, B=B, Tq=T, Tk=T)
    attn = attn + outb_ref[...]
    x = _ln(x + attn, n1w_ref[...], n1b_ref[...])

    # feed-forward: (rows, 2048) hidden never leaves VMEM; bf16 weights, f32 acc
    h = jnp.dot(x.astype(jnp.bfloat16), f1w_ref[...],
                preferred_element_type=jnp.float32) + f1b_ref[...]
    h = jnp.maximum(h, 0.0)
    h = jnp.dot(h.astype(jnp.bfloat16), f2w_ref[...],
                preferred_element_type=jnp.float32) + f2b_ref[...]
    x = _ln(x + h, n2w_ref[...], n2b_ref[...])

    # ---- step 0: stash water's last-time-step rows (the only rows cross reads)
    @pl.when(e == 0)
    def _():
        q_last[...] = x.reshape(B, T, D)[:, T - 1, :]
        o_ref[...] = jnp.zeros_like(o_ref)

    # ---- step 1: cross-attention (query length 1) + decoder, all in VMEM -----
    @pl.when(e == pl.num_programs(0) - 1)
    def _():
        cinw = cinw_ref[...]
        cinb = cinb_ref[...]
        q = jnp.dot(q_last[...], cinw[:, :D],
                    preferred_element_type=jnp.float32) + cinb[:, :D]
        kv = jnp.dot(x, cinw[:, D:],
                     preferred_element_type=jnp.float32) + cinb[:, D:]
        cattn = _mha_out(q, kv[:, :D], kv[:, D:], coutw_ref[...],
                         nhead=nhead, B=B, Tq=1, Tk=T)
        cattn = cattn + coutb_ref[...]
        pred = jnp.dot(cattn, dw_ref[...],
                       preferred_element_type=jnp.float32) + db_ref[...]
        o_ref[...] = pred.astype(o_ref.dtype)


# ---------------------------------------------------------------------------
# Host-side positional encoding / parameter preparation (done once)
# ---------------------------------------------------------------------------
def _sinusoidal_pe(T, D):
    pos = np.arange(T, dtype=np.float32)[:, None]
    div = np.exp(np.arange(0, D, 2, dtype=np.float32) * (-math.log(10000.0) / D))
    pe = np.zeros((T, D), dtype=np.float32)
    pe[:, 0::2] = np.sin(pos * div)
    pe[:, 1::2] = np.cos(pos * div)
    return pe


def prepare_params(params, *, d_model, nhead, T, B):
    """Fold q-scale into in-proj, cast big weights to bf16, pad/stack per-branch
    params over a leading branch axis, expand the positional encoding to
    batch-major rows (row b*T + t gets pe[t])."""
    dh = d_model // nhead
    scale = 1.0 / math.sqrt(dh)

    K_wl = params["proj_w_w"].shape[0]
    K_rf = params["proj_r_w"].shape[0]
    K_pad = max(8, ((max(K_wl, K_rf) + 7) // 8) * 8)

    def fold_q_scale(w, b):
        w = w.at[:, :d_model].multiply(scale)
        b = b.at[:d_model].multiply(scale)
        return w, b

    def pad_proj(w):
        return jnp.pad(w, ((0, K_pad - w.shape[0]), (0, 0)))

    def prep_encoder(p, proj_w, proj_b):
        in_w, in_b = fold_q_scale(p["attn_in_w"], p["attn_in_b"])
        return [
            pad_proj(proj_w), proj_b.reshape(1, -1),
            in_w.astype(jnp.bfloat16), in_b.reshape(1, -1),
            p["attn_out_w"], p["attn_out_b"].reshape(1, -1),
            p["norm1_w"].reshape(1, -1), p["norm1_b"].reshape(1, -1),
            p["ff1_w"].astype(jnp.bfloat16), p["ff1_b"].reshape(1, -1),
            p["ff2_w"].astype(jnp.bfloat16), p["ff2_b"].reshape(1, -1),
            p["norm2_w"].reshape(1, -1), p["norm2_b"].reshape(1, -1),
        ]

    enc_w = prep_encoder(params["enc_water"], params["proj_w_w"], params["proj_w_b"])
    enc_r = prep_encoder(params["enc_rain"], params["proj_r_w"], params["proj_r_b"])
    enc_stacked = [jnp.stack([a, b], axis=0) for a, b in zip(enc_w, enc_r)]

    cin_w, cin_b = fold_q_scale(params["cross_in_w"], params["cross_in_b"])

    # batch-major PE rows: (B*T, D), row b*T + t = pe[t]
    pe_rows = jnp.asarray(np.tile(_sinusoidal_pe(T, d_model), (B, 1)))

    return dict(
        enc_stacked=enc_stacked,
        pe=pe_rows,
        cross_in_w=cin_w, cross_in_b=cin_b.reshape(1, -1),
        cross_out_w=params["cross_out_w"],
        cross_out_b=params["cross_out_b"].reshape(1, -1),
        dec_w=params["dec_w"], dec_b=params["dec_b"].reshape(1, 1),
    )


# ---------------------------------------------------------------------------
# Forward pass: ONE pallas_call
# ---------------------------------------------------------------------------
def double_encoder_transformer(water, rain, prep, *, nhead):
    B, _, T = water.shape
    BT = B * T
    proj_stacked = prep["enc_stacked"][0]            # (2, K_pad, D)
    K_pad, D = proj_stacked.shape[1], proj_stacked.shape[2]

    def to_rows(x):
        # (B, K, T) -> batch-major rows (B*T, K_pad); row b*T + t
        r = jnp.transpose(x, (0, 2, 1)).reshape(BT, x.shape[1])
        return jnp.pad(r, ((0, 0), (0, K_pad - x.shape[1])))

    x_stacked = jnp.stack([to_rows(water), to_rows(rain)], axis=0)   # (2, BT, K_pad)

    stacked_specs = [pl.BlockSpec((None,) + tuple(p.shape[1:]), lambda e: (e, 0, 0))
                     for p in prep["enc_stacked"]]
    shared = [prep["cross_in_w"], prep["cross_in_b"],
              prep["cross_out_w"], prep["cross_out_b"],
              prep["dec_w"], prep["dec_b"]]
    shared_specs = [pl.BlockSpec(tuple(p.shape), lambda e: (0, 0)) for p in shared]

    in_specs = ([pl.BlockSpec((None, BT, K_pad), lambda e: (e, 0, 0)),
                 pl.BlockSpec((BT, D), lambda e: (0, 0))]
                + stacked_specs + shared_specs)

    return pl.pallas_call(
        functools.partial(_fused_kernel, nhead=nhead, B=B, T=T),
        out_shape=jax.ShapeDtypeStruct((B, 1), jnp.float32),
        grid=(2,),
        in_specs=in_specs,
        out_specs=pl.BlockSpec((B, 1), lambda e: (0, 0)),
        scratch_shapes=[pltpu.VMEM((B, D), jnp.float32)],   # water[-1] rows
        compiler_params=pltpu.CompilerParams(
            dimension_semantics=("arbitrary",),   # step 1 consumes step-0 scratch
            vmem_limit_bytes=32 * 1024 * 1024,
        ),
    )(x_stacked, prep["pe"], *prep["enc_stacked"], *shared)


# ---------------------------------------------------------------------------
# Deterministic parameter init (weights stored transposed: (in, out))
# ---------------------------------------------------------------------------
def init_params(key, d_model, K_wl, K_rf, d_ff=2048):
    keys = jax.random.split(key, 32)
    it = iter(keys)

    def w(shape, scale=0.05):
        return jax.random.normal(next(it), shape, jnp.float32) * scale

    def zeros(shape):
        return jnp.zeros(shape, jnp.float32)

    def enc():
        return dict(
            attn_in_w=w((d_model, 3 * d_model)), attn_in_b=zeros((3 * d_model,)),
            attn_out_w=w((d_model, d_model)), attn_out_b=zeros((d_model,)),
            norm1_w=jnp.ones((d_model,), jnp.float32), norm1_b=zeros((d_model,)),
            ff1_w=w((d_model, d_ff)), ff1_b=zeros((d_ff,)),
            ff2_w=w((d_ff, d_model)), ff2_b=zeros((d_model,)),
            norm2_w=jnp.ones((d_model,), jnp.float32), norm2_b=zeros((d_model,)),
        )

    return dict(
        proj_w_w=w((K_wl, d_model)), proj_w_b=zeros((d_model,)),
        proj_r_w=w((K_rf, d_model)), proj_r_b=zeros((d_model,)),
        enc_water=enc(),
        enc_rain=enc(),
        cross_in_w=w((d_model, 3 * d_model)), cross_in_b=zeros((3 * d_model,)),
        cross_out_w=w((d_model, d_model)), cross_out_b=zeros((d_model,)),
        dec_w=w((d_model, 1)), dec_b=zeros((1,)),
    )


if __name__ == "__main__":
    d_model, nhead, K_wl, K_rf = 32, 4, 5, 3
    B, T = 2, 8

    key = jax.random.PRNGKey(0)
    k1, k2, k3 = jax.random.split(key, 3)
    water = jax.random.normal(k1, (B, K_wl, T), jnp.float32)
    rain = jax.random.normal(k2, (B, K_rf, T), jnp.float32)
    params = init_params(k3, d_model, K_wl, K_rf)
    prep = prepare_params(params, d_model=d_model, nhead=nhead, T=T, B=B)

    fwd = jax.jit(functools.partial(double_encoder_transformer, nhead=nhead))
    out = fwd(water, rain, prep)
    jax.block_until_ready(out)

    assert out.shape == (B, 1), out.shape
    assert out.dtype == jnp.float32
    assert bool(jnp.all(jnp.isfinite(out)))
    print("KERNEL_OK")
</pallas_src>

<mosaic_0001>
module attributes {stable_mosaic.version = 11 : i64} {
  func.func @_fused_kernel(%arg0: i32, %arg1: memref<1x16x8xf32, #tpu.memory_space<vmem>>, %arg2: memref<16x32xf32, #tpu.memory_space<vmem>>, %arg3: memref<1x8x32xf32, #tpu.memory_space<vmem>>, %arg4: memref<1x1x32xf32, #tpu.memory_space<vmem>>, %arg5: memref<1x32x96xbf16, #tpu.memory_space<vmem>>, %arg6: memref<1x1x96xf32, #tpu.memory_space<vmem>>, %arg7: memref<1x32x32xf32, #tpu.memory_space<vmem>>, %arg8: memref<1x1x32xf32, #tpu.memory_space<vmem>>, %arg9: memref<1x1x32xf32, #tpu.memory_space<vmem>>, %arg10: memref<1x1x32xf32, #tpu.memory_space<vmem>>, %arg11: memref<1x32x2048xbf16, #tpu.memory_space<vmem>>, %arg12: memref<1x1x2048xf32, #tpu.memory_space<vmem>>, %arg13: memref<1x2048x32xbf16, #tpu.memory_space<vmem>>, %arg14: memref<1x1x32xf32, #tpu.memory_space<vmem>>, %arg15: memref<1x1x32xf32, #tpu.memory_space<vmem>>, %arg16: memref<1x1x32xf32, #tpu.memory_space<vmem>>, %arg17: memref<32x96xf32, #tpu.memory_space<vmem>>, %arg18: memref<1x96xf32, #tpu.memory_space<vmem>>, %arg19: memref<32x32xf32, #tpu.memory_space<vmem>>, %arg20: memref<1x32xf32, #tpu.memory_space<vmem>>, %arg21: memref<32x1xf32, #tpu.memory_space<vmem>>, %arg22: memref<1x1xf32, #tpu.memory_space<vmem>>, %arg23: memref<2x1xf32, #tpu.memory_space<vmem>>, %arg24: memref<2x32xf32, #tpu.memory_space<vmem>>) attributes {dimension_semantics = [#tpu.dimension_semantics<arbitrary>], iteration_bounds = array<i64: 2>, scalar_prefetch = 0 : i64, scratch_operands = 1 : i64, tpu.core_type = #tpu.core_type<tc>, window_params = [{transform_indices = @transform_0, window_bounds = array<i64: 1, 16, 8>}, {pipeline_mode = #tpu.pipeline_mode<synchronous>, transform_indices = @transform_1, window_bounds = array<i64: 16, 32>}, {transform_indices = @transform_2, window_bounds = array<i64: 1, 8, 32>}, {transform_indices = @transform_3, window_bounds = array<i64: 1, 1, 32>}, {transform_indices = @transform_4, window_bounds = array<i64: 1, 32, 96>}, {transform_indices = @transform_5, window_bounds = array<i64: 1, 1, 96>}, {transform_indices = @transform_6, window_bounds = array<i64: 1, 32, 32>}, {transform_indices = @transform_7, window_bounds = array<i64: 1, 1, 32>}, {transform_indices = @transform_8, window_bounds = array<i64: 1, 1, 32>}, {transform_indices = @transform_9, window_bounds = array<i64: 1, 1, 32>}, {transform_indices = @transform_10, window_bounds = array<i64: 1, 32, 2048>}, {transform_indices = @transform_11, window_bounds = array<i64: 1, 1, 2048>}, {transform_indices = @transform_12, window_bounds = array<i64: 1, 2048, 32>}, {transform_indices = @transform_13, window_bounds = array<i64: 1, 1, 32>}, {transform_indices = @transform_14, window_bounds = array<i64: 1, 1, 32>}, {transform_indices = @transform_15, window_bounds = array<i64: 1, 1, 32>}, {pipeline_mode = #tpu.pipeline_mode<synchronous>, transform_indices = @transform_16, window_bounds = array<i64: 32, 96>}, {pipeline_mode = #tpu.pipeline_mode<synchronous>, transform_indices = @transform_17, window_bounds = array<i64: 1, 96>}, {pipeline_mode = #tpu.pipeline_mode<synchronous>, transform_indices = @transform_18, window_bounds = array<i64: 32, 32>}, {pipeline_mode = #tpu.pipeline_mode<synchronous>, transform_indices = @transform_19, window_bounds = array<i64: 1, 32>}, {pipeline_mode = #tpu.pipeline_mode<synchronous>, transform_indices = @transform_20, window_bounds = array<i64: 32, 1>}, {pipeline_mode = #tpu.pipeline_mode<synchronous>, transform_indices = @transform_21, window_bounds = array<i64: 1, 1>}, {pipeline_mode = #tpu.pipeline_mode<synchronous>, transform_indices = @transform_22, window_bounds = array<i64: 2, 1>}]} {
    %c0 = arith.constant 0 : index
    %c0_0 = arith.constant 0 : index
    %c0_1 = arith.constant 0 : index
    %0 = vector.load %arg1[%c0, %c0_0, %c0_1] : memref<1x16x8xf32, #tpu.memory_space<vmem>>, vector<1x16x8xf32>
    %1 = vector.shape_cast %0 : vector<1x16x8xf32> to vector<16x8xf32>
    %c0_2 = arith.constant 0 : index
    %c0_3 = arith.constant 0 : index
    %c0_4 = arith.constant 0 : index
    %2 = vector.load %arg3[%c0_2, %c0_3, %c0_4] : memref<1x8x32xf32, #tpu.memory_space<vmem>>, vector<1x8x32xf32>
    %3 = vector.shape_cast %2 : vector<1x8x32xf32> to vector<8x32xf32>
    %cst = arith.constant dense<0.000000e+00> : vector<16x32xf32>
    %4 = tpu.matmul %1, %3, %cst {dimension_numbers = #tpu.dot_dimension_numbers<[1], [0], [0], [1], [0, 0, 1, 1], [], []>} : vector<16x8xf32>, vector<8x32xf32>, vector<16x32xf32> -> vector<16x32xf32>
    %c0_5 = arith.constant 0 : index
    %c0_6 = arith.constant 0 : index
    %c0_7 = arith.constant 0 : index
    %5 = vector.load %arg4[%c0_5, %c0_6, %c0_7] : memref<1x1x32xf32, #tpu.memory_space<vmem>>, vector<1x1x32xf32>
    %6 = vector.shape_cast %5 : vector<1x1x32xf32> to vector<1x32xf32>
    %7 = vector.broadcast %6 : vector<1x32xf32> to vector<16x32xf32>
    %8 = arith.addf %4, %7 : vector<16x32xf32>
    %c0_8 = arith.constant 0 : index
    %c0_9 = arith.constant 0 : index
    %9 = vector.load %arg2[%c0_8, %c0_9] : memref<16x32xf32, #tpu.memory_space<vmem>>, vector<16x32xf32>
    %10 = arith.addf %8, %9 : vector<16x32xf32>
    %11 = arith.truncf %10 : vector<16x32xf32> to vector<16x32xbf16>
    %c0_10 = arith.constant 0 : index
    %c0_11 = arith.constant 0 : index
    %c0_12 = arith.constant 0 : index
    %12 = vector.load %arg5[%c0_10, %c0_11, %c0_12] : memref<1x32x96xbf16, #tpu.memory_space<vmem>>, vector<1x32x96xbf16>
    %13 = vector.shape_cast %12 : vector<1x32x96xbf16> to vector<32x96xbf16>
    %cst_13 = arith.constant dense<0.000000e+00> : vector<16x96xf32>
    %14 = tpu.matmul %11, %13, %cst_13 {dimension_numbers = #tpu.dot_dimension_numbers<[1], [0], [0], [1], [0, 0, 1, 1], [], []>} : vector<16x32xbf16>, vector<32x96xbf16>, vector<16x96xf32> -> vector<16x96xf32>
    %c0_14 = arith.constant 0 : index
    %c0_15 = arith.constant 0 : index
    %c0_16 = arith.constant 0 : index
    %15 = vector.load %arg6[%c0_14, %c0_15, %c0_16] : memref<1x1x96xf32, #tpu.memory_space<vmem>>, vector<1x1x96xf32>
    %16 = vector.shape_cast %15 : vector<1x1x96xf32> to vector<1x96xf32>
    %17 = vector.broadcast %16 : vector<1x96xf32> to vector<16x96xf32>
    %18 = arith.addf %14, %17 : vector<16x96xf32>
    %19 = vector.extract_strided_slice %18 {offsets = [0, 0], sizes = [16, 32], strides = [1, 1]} : vector<16x96xf32> to vector<16x32xf32>
    %20 = vector.extract_strided_slice %18 {offsets = [0, 32], sizes = [16, 32], strides = [1, 1]} : vector<16x96xf32> to vector<16x32xf32>
    %21 = vector.extract_strided_slice %18 {offsets = [0, 64], sizes = [16, 32], strides = [1, 1]} : vector<16x96xf32> to vector<16x32xf32>
    %c0_17 = arith.constant 0 : index
    %c0_18 = arith.constant 0 : index
    %c0_19 = arith.constant 0 : index
    %22 = vector.load %arg7[%c0_17, %c0_18, %c0_19] : memref<1x32x32xf32, #tpu.memory_space<vmem>>, vector<1x32x32xf32>
    %23 = vector.shape_cast %22 : vector<1x32x32xf32> to vector<32x32xf32>
    %24 = vector.shape_cast %19 : vector<16x32xf32> to vector<2x8x32xf32>
    %25 = vector.shape_cast %20 : vector<16x32xf32> to vector<2x8x32xf32>
    %26 = vector.shape_cast %21 : vector<16x32xf32> to vector<2x8x32xf32>
    %cst_20 = arith.constant 0.000000e+00 : f32
    %27 = vector.broadcast %cst_20 : f32 to vector<16x32xf32>
    %28 = vector.extract_strided_slice %24 {offsets = [0, 0, 0], sizes = [2, 8, 8], strides = [1, 1, 1]} : vector<2x8x32xf32> to vector<2x8x8xf32>
    %29 = vector.extract_strided_slice %25 {offsets = [0, 0, 0], sizes = [2, 8, 8], strides = [1, 1, 1]} : vector<2x8x32xf32> to vector<2x8x8xf32>
    "tpu.trace_start"() <{level = 10 : i32, message = "bqd,bkd->bqk"}> : () -> ()
    %cst_21 = arith.constant dense<0.000000e+00> : vector<2x8x8xf32>
    %30 = tpu.matmul %28, %29, %cst_21 {dimension_numbers = #tpu.dot_dimension_numbers<[2], [2], [1], [1], [0, 0, 0, 1, 1, 1], [0], [0]>} : vector<2x8x8xf32>, vector<2x8x8xf32>, vector<2x8x8xf32> -> vector<2x8x8xf32>
    "tpu.trace_stop"() : () -> ()
    %cst_22 = arith.constant dense<0xFF800000> : vector<2x8xf32>
    %31 = vector.multi_reduction <maximumf>, %30, %cst_22 [2] : vector<2x8x8xf32> to vector<2x8xf32>
    %32 = vector.shape_cast %31 : vector<2x8xf32> to vector<2x8x1xf32>
    %33 = vector.broadcast %32 : vector<2x8x1xf32> to vector<2x8x8xf32>
    %34 = arith.subf %30, %33 : vector<2x8x8xf32>
    %35 = math.exp %34 : vector<2x8x8xf32>
    %cst_23 = arith.constant dense<0.000000e+00> : vector<2x8xf32>
    %36 = vector.multi_reduction <add>, %35, %cst_23 [2] : vector<2x8x8xf32> to vector<2x8xf32>
    %37 = vector.shape_cast %36 : vector<2x8xf32> to vector<2x8x1xf32>
    %38 = tpu.reciprocal %37 {approx = true} : vector<2x8x1xf32> -> vector<2x8x1xf32>
    %39 = vector.broadcast %38 : vector<2x8x1xf32> to vector<2x8x8xf32>
    %40 = arith.mulf %35, %39 : vector<2x8x8xf32>
    %41 = vector.extract_strided_slice %26 {offsets = [0, 0, 0], sizes = [2, 8, 8], strides = [1, 1, 1]} : vector<2x8x32xf32> to vector<2x8x8xf32>
    "tpu.trace_start"() <{level = 10 : i32, message = "bqk,bkd->bqd"}> : () -> ()
    %cst_24 = arith.constant dense<0.000000e+00> : vector<2x8x8xf32>
    %42 = tpu.matmul %40, %41, %cst_24 {dimension_numbers = #tpu.dot_dimension_numbers<[2], [1], [1], [2], [0, 0, 0, 1, 1, 2], [0], [0]>} : vector<2x8x8xf32>, vector<2x8x8xf32>, vector<2x8x8xf32> -> vector<2x8x8xf32>
    "tpu.trace_stop"() : () -> ()
    %43 = vector.shape_cast %42 : vector<2x8x8xf32> to vector<16x8xf32>
    %44 = vector.extract_strided_slice %23 {offsets = [0, 0], sizes = [8, 32], strides = [1, 1]} : vector<32x32xf32> to vector<8x32xf32>
    %cst_25 = arith.constant dense<0.000000e+00> : vector<16x32xf32>
    %45 = tpu.matmul %43, %44, %cst_25 {dimension_numbers = #tpu.dot_dimension_numbers<[1], [0], [0], [1], [0, 0, 1, 1], [], []>} : vector<16x8xf32>, vector<8x32xf32>, vector<16x32xf32> -> vector<16x32xf32>
    %46 = arith.addf %27, %45 : vector<16x32xf32>
    %47 = vector.extract_strided_slice %24 {offsets = [0, 0, 8], sizes = [2, 8, 8], strides = [1, 1, 1]} : vector<2x8x32xf32> to vector<2x8x8xf32>
    %48 = vector.extract_strided_slice %25 {offsets = [0, 0, 8], sizes = [2, 8, 8], strides = [1, 1, 1]} : vector<2x8x32xf32> to vector<2x8x8xf32>
    "tpu.trace_start"() <{level = 10 : i32, message = "bqd,bkd->bqk"}> : () -> ()
    %cst_26 = arith.constant dense<0.000000e+00> : vector<2x8x8xf32>
    %49 = tpu.matmul %47, %48, %cst_26 {dimension_numbers = #tpu.dot_dimension_numbers<[2], [2], [1], [1], [0, 0, 0, 1, 1, 1], [0], [0]>} : vector<2x8x8xf32>, vector<2x8x8xf32>, vector<2x8x8xf32> -> vector<2x8x8xf32>
    "tpu.trace_stop"() : () -> ()
    %cst_27 = arith.constant dense<0xFF800000> : vector<2x8xf32>
    %50 = vector.multi_reduction <maximumf>, %49, %cst_27 [2] : vector<2x8x8xf32> to vector<2x8xf32>
    %51 = vector.shape_cast %50 : vector<2x8xf32> to vector<2x8x1xf32>
    %52 = vector.broadcast %51 : vector<2x8x1xf32> to vector<2x8x8xf32>
    %53 = arith.subf %49, %52 : vector<2x8x8xf32>
    %54 = math.exp %53 : vector<2x8x8xf32>
    %cst_28 = arith.constant dense<0.000000e+00> : vector<2x8xf32>
    %55 = vector.multi_reduction <add>, %54, %cst_28 [2] : vector<2x8x8xf32> to vector<2x8xf32>
    %56 = vector.shape_cast %55 : vector<2x8xf32> to vector<2x8x1xf32>
    %57 = tpu.reciprocal %56 {approx = true} : vector<2x8x1xf32> -> vector<2x8x1xf32>
    %58 = vector.broadcast %57 : vector<2x8x1xf32> to vector<2x8x8xf32>
    %59 = arith.mulf %54, %58 : vector<2x8x8xf32>
    %60 = vector.extract_strided_slice %26 {offsets = [0, 0, 8], sizes = [2, 8, 8], strides = [1, 1, 1]} : vector<2x8x32xf32> to vector<2x8x8xf32>
    "tpu.trace_start"() <{level = 10 : i32, message = "bqk,bkd->bqd"}> : () -> ()
    %cst_29 = arith.constant dense<0.000000e+00> : vector<2x8x8xf32>
    %61 = tpu.matmul %59, %60, %cst_29 {dimension_numbers = #tpu.dot_dimension_numbers<[2], [1], [1], [2], [0, 0, 0, 1, 1, 2], [0], [0]>} : vector<2x8x8xf32>, vector<2x8x8xf32>, vector<2x8x8xf32> -> vector<2x8x8xf32>
    "tpu.trace_stop"() : () -> ()
    %62 = vector.shape_cast %61 : vector<2x8x8xf32> to vector<16x8xf32>
    %63 = vector.extract_strided_slice %23 {offsets = [8, 0], sizes = [8, 32], strides = [1, 1]} : vector<32x32xf32> to vector<8x32xf32>
    %cst_30 = arith.constant dense<0.000000e+00> : vector<16x32xf32>
    %64 = tpu.matmul %62, %63, %cst_30 {dimension_numbers = #tpu.dot_dimension_numbers<[1], [0], [0], [1], [0, 0, 1, 1], [], []>} : vector<16x8xf32>, vector<8x32xf32>, vector<16x32xf32> -> vector<16x32xf32>
    %65 = arith.addf %46, %64 : vector<16x32xf32>
    %66 = vector.extract_strided_slice %24 {offsets = [0, 0, 16], sizes = [2, 8, 8], strides = [1, 1, 1]} : vector<2x8x32xf32> to vector<2x8x8xf32>
    %67 = vector.extract_strided_slice %25 {offsets = [0, 0, 16], sizes = [2, 8, 8], strides = [1, 1, 1]} : vector<2x8x32xf32> to vector<2x8x8xf32>
    "tpu.trace_start"() <{level = 10 : i32, message = "bqd,bkd->bqk"}> : () -> ()
    %cst_31 = arith.constant dense<0.000000e+00> : vector<2x8x8xf32>
    %68 = tpu.matmul %66, %67, %cst_31 {dimension_numbers = #tpu.dot_dimension_numbers<[2], [2], [1], [1], [0, 0, 0, 1, 1, 1], [0], [0]>} : vector<2x8x8xf32>, vector<2x8x8xf32>, vector<2x8x8xf32> -> vector<2x8x8xf32>
    "tpu.trace_stop"() : () -> ()
    %cst_32 = arith.constant dense<0xFF800000> : vector<2x8xf32>
    %69 = vector.multi_reduction <maximumf>, %68, %cst_32 [2] : vector<2x8x8xf32> to vector<2x8xf32>
    %70 = vector.shape_cast %69 : vector<2x8xf32> to vector<2x8x1xf32>
    %71 = vector.broadcast %70 : vector<2x8x1xf32> to vector<2x8x8xf32>
    %72 = arith.subf %68, %71 : vector<2x8x8xf32>
    %73 = math.exp %72 : vector<2x8x8xf32>
    %cst_33 = arith.constant dense<0.000000e+00> : vector<2x8xf32>
    %74 = vector.multi_reduction <add>, %73, %cst_33 [2] : vector<2x8x8xf32> to vector<2x8xf32>
    %75 = vector.shape_cast %74 : vector<2x8xf32> to vector<2x8x1xf32>
    %76 = tpu.reciprocal %75 {approx = true} : vector<2x8x1xf32> -> vector<2x8x1xf32>
    %77 = vector.broadcast %76 : vector<2x8x1xf32> to vector<2x8x8xf32>
    %78 = arith.mulf %73, %77 : vector<2x8x8xf32>
    %79 = vector.extract_strided_slice %26 {offsets = [0, 0, 16], sizes = [2, 8, 8], strides = [1, 1, 1]} : vector<2x8x32xf32> to vector<2x8x8xf32>
    "tpu.trace_start"() <{level = 10 : i32, message = "bqk,bkd->bqd"}> : () -> ()
    %cst_34 = arith.constant dense<0.000000e+00> : vector<2x8x8xf32>
    %80 = tpu.matmul %78, %79, %cst_34 {dimension_numbers = #tpu.dot_dimension_numbers<[2], [1], [1], [2], [0, 0, 0, 1, 1, 2], [0], [0]>} : vector<2x8x8xf32>, vector<2x8x8xf32>, vector<2x8x8xf32> -> vector<2x8x8xf32>
    "tpu.trace_stop"() : () -> ()
    %81 = vector.shape_cast %80 : vector<2x8x8xf32> to vector<16x8xf32>
    %82 = vector.extract_strided_slice %23 {offsets = [16, 0], sizes = [8, 32], strides = [1, 1]} : vector<32x32xf32> to vector<8x32xf32>
    %cst_35 = arith.constant dense<0.000000e+00> : vector<16x32xf32>
    %83 = tpu.matmul %81, %82, %cst_35 {dimension_numbers = #tpu.dot_dimension_numbers<[1], [0], [0], [1], [0, 0, 1, 1], [], []>} : vector<16x8xf32>, vector<8x32xf32>, vector<16x32xf32> -> vector<16x32xf32>
    %84 = arith.addf %65, %83 : vector<16x32xf32>
    %85 = vector.extract_strided_slice %24 {offsets = [0, 0, 24], sizes = [2, 8, 8], strides = [1, 1, 1]} : vector<2x8x32xf32> to vector<2x8x8xf32>
    %86 = vector.extract_strided_slice %25 {offsets = [0, 0, 24], sizes = [2, 8, 8], strides = [1, 1, 1]} : vector<2x8x32xf32> to vector<2x8x8xf32>
    "tpu.trace_start"() <{level = 10 : i32, message = "bqd,bkd->bqk"}> : () -> ()
    %cst_36 = arith.constant dense<0.000000e+00> : vector<2x8x8xf32>
    %87 = tpu.matmul %85, %86, %cst_36 {dimension_numbers = #tpu.dot_dimension_numbers<[2], [2], [1], [1], [0, 0, 0, 1, 1, 1], [0], [0]>} : vector<2x8x8xf32>, vector<2x8x8xf32>, vector<2x8x8xf32> -> vector<2x8x8xf32>
    "tpu.trace_stop"() : () -> ()
    %cst_37 = arith.constant dense<0xFF800000> : vector<2x8xf32>
    %88 = vector.multi_reduction <maximumf>, %87, %cst_37 [2] : vector<2x8x8xf32> to vector<2x8xf32>
    %89 = vector.shape_cast %88 : vector<2x8xf32> to vector<2x8x1xf32>
    %90 = vector.broadcast %89 : vector<2x8x1xf32> to vector<2x8x8xf32>
    %91 = arith.subf %87, %90 : vector<2x8x8xf32>
    %92 = math.exp %91 : vector<2x8x8xf32>
    %cst_38 = arith.constant dense<0.000000e+00> : vector<2x8xf32>
    %93 = vector.multi_reduction <add>, %92, %cst_38 [2] : vector<2x8x8xf32> to vector<2x8xf32>
    %94 = vector.shape_cast %93 : vector<2x8xf32> to vector<2x8x1xf32>
    %95 = tpu.reciprocal %94 {approx = true} : vector<2x8x1xf32> -> vector<2x8x1xf32>
    %96 = vector.broadcast %95 : vector<2x8x1xf32> to vector<2x8x8xf32>
    %97 = arith.mulf %92, %96 : vector<2x8x8xf32>
    %98 = vector.extract_strided_slice %26 {offsets = [0, 0, 24], sizes = [2, 8, 8], strides = [1, 1, 1]} : vector<2x8x32xf32> to vector<2x8x8xf32>
    "tpu.trace_start"() <{level = 10 : i32, message = "bqk,bkd->bqd"}> : () -> ()
    %cst_39 = arith.constant dense<0.000000e+00> : vector<2x8x8xf32>
    %99 = tpu.matmul %97, %98, %cst_39 {dimension_numbers = #tpu.dot_dimension_numbers<[2], [1], [1], [2], [0, 0, 0, 1, 1, 2], [0], [0]>} : vector<2x8x8xf32>, vector<2x8x8xf32>, vector<2x8x8xf32> -> vector<2x8x8xf32>
    "tpu.trace_stop"() : () -> ()
    %100 = vector.shape_cast %99 : vector<2x8x8xf32> to vector<16x8xf32>
    %101 = vector.extract_strided_slice %23 {offsets = [24, 0], sizes = [8, 32], strides = [1, 1]} : vector<32x32xf32> to vector<8x32xf32>
    %cst_40 = arith.constant dense<0.000000e+00> : vector<16x32xf32>
    %102 = tpu.matmul %100, %101, %cst_40 {dimension_numbers = #tpu.dot_dimension_numbers<[1], [0], [0], [1], [0, 0, 1, 1], [], []>} : vector<16x8xf32>, vector<8x32xf32>, vector<16x32xf32> -> vector<16x32xf32>
    %103 = arith.addf %84, %102 : vector<16x32xf32>
    %c0_41 = arith.constant 0 : index
    %c0_42 = arith.constant 0 : index
    %c0_43 = arith.constant 0 : index
    %104 = vector.load %arg8[%c0_41, %c0_42, %c0_43] : memref<1x1x32xf32, #tpu.memory_space<vmem>>, vector<1x1x32xf32>
    %105 = vector.shape_cast %104 : vector<1x1x32xf32> to vector<1x32xf32>
    %106 = vector.broadcast %105 : vector<1x32xf32> to vector<16x32xf32>
    %107 = arith.addf %103, %106 : vector<16x32xf32>
    %108 = arith.addf %10, %107 : vector<16x32xf32>
    %c0_44 = arith.constant 0 : index
    %c0_45 = arith.constant 0 : index
    %c0_46 = arith.constant 0 : index
    %109 = vector.load %arg9[%c0_44, %c0_45, %c0_46] : memref<1x1x32xf32, #tpu.memory_space<vmem>>, vector<1x1x32xf32>
    %110 = vector.shape_cast %109 : vector<1x1x32xf32> to vector<1x32xf32>
    %c0_47 = arith.constant 0 : index
    %c0_48 = arith.constant 0 : index
    %c0_49 = arith.constant 0 : index
    %111 = vector.load %arg10[%c0_47, %c0_48, %c0_49] : memref<1x1x32xf32, #tpu.memory_space<vmem>>, vector<1x1x32xf32>
    %112 = vector.shape_cast %111 : vector<1x1x32xf32> to vector<1x32xf32>
    %cst_50 = arith.constant dense<0.000000e+00> : vector<16xf32>
    %113 = vector.multi_reduction <add>, %108, %cst_50 [1] : vector<16x32xf32> to vector<16xf32>
    %114 = vector.shape_cast %113 : vector<16xf32> to vector<16x1xf32>
    %cst_51 = arith.constant 3.200000e+01 : f32
    %115 = vector.broadcast %cst_51 : f32 to vector<16x1xf32>
    %116 = arith.divf %114, %115 : vector<16x1xf32>
    %117 = vector.broadcast %116 : vector<16x1xf32> to vector<16x32xf32>
    %118 = arith.subf %108, %117 : vector<16x32xf32>
    %119 = arith.mulf %118, %118 : vector<16x32xf32>
    %cst_52 = arith.constant dense<0.000000e+00> : vector<16xf32>
    %120 = vector.multi_reduction <add>, %119, %cst_52 [1] : vector<16x32xf32> to vector<16xf32>
    %121 = vector.shape_cast %120 : vector<16xf32> to vector<16x1xf32>
    %cst_53 = arith.constant 3.200000e+01 : f32
    %122 = vector.broadcast %cst_53 : f32 to vector<16x1xf32>
    %123 = arith.divf %121, %122 : vector<16x1xf32>
    %124 = vector.broadcast %116 : vector<16x1xf32> to vector<16x32xf32>
    %125 = arith.subf %108, %124 : vector<16x32xf32>
    %cst_54 = arith.constant 9.99999974E-6 : f32
    %126 = vector.broadcast %cst_54 : f32 to vector<16x1xf32>
    %127 = arith.addf %123, %126 : vector<16x1xf32>
    %128 = math.rsqrt %127 : vector<16x1xf32>
    %129 = vector.broadcast %128 : vector<16x1xf32> to vector<16x32xf32>
    %130 = arith.mulf %125, %129 : vector<16x32xf32>
    %131 = vector.broadcast %110 : vector<1x32xf32> to vector<16x32xf32>
    %132 = arith.mulf %130, %131 : vector<16x32xf32>
    %133 = vector.broadcast %112 : vector<1x32xf32> to vector<16x32xf32>
    %134 = arith.addf %132, %133 : vector<16x32xf32>
    %135 = arith.truncf %134 : vector<16x32xf32> to vector<16x32xbf16>
    %c0_55 = arith.constant 0 : index
    %c0_56 = arith.constant 0 : index
    %c0_57 = arith.constant 0 : index
    %136 = vector.load %arg11[%c0_55, %c0_56, %c0_57] : memref<1x32x2048xbf16, #tpu.memory_space<vmem>>, vector<1x32x2048xbf16>
    %137 = vector.shape_cast %136 : vector<1x32x2048xbf16> to vector<32x2048xbf16>
    %cst_58 = arith.constant dense<0.000000e+00> : vector<16x2048xf32>
    %138 = tpu.matmul %135, %137, %cst_58 {dimension_numbers = #tpu.dot_dimension_numbers<[1], [0], [0], [1], [0, 0, 1, 1], [], []>} : vector<16x32xbf16>, vector<32x2048xbf16>, vector<16x2048xf32> -> vector<16x2048xf32>
    %c0_59 = arith.constant 0 : index
    %c0_60 = arith.constant 0 : index
    %c0_61 = arith.constant 0 : index
    %139 = vector.load %arg12[%c0_59, %c0_60, %c0_61] : memref<1x1x2048xf32, #tpu.memory_space<vmem>>, vector<1x1x2048xf32>
    %140 = vector.shape_cast %139 : vector<1x1x2048xf32> to vector<1x2048xf32>
    %141 = vector.broadcast %140 : vector<1x2048xf32> to vector<16x2048xf32>
    %142 = arith.addf %138, %141 : vector<16x2048xf32>
    %cst_62 = arith.constant 0.000000e+00 : f32
    %143 = vector.broadcast %cst_62 : f32 to vector<16x2048xf32>
    %144 = arith.maximumf %142, %143 : vector<16x2048xf32>
    %145 = arith.truncf %144 : vector<16x2048xf32> to vector<16x2048xbf16>
    %c0_63 = arith.constant 0 : index
    %c0_64 = arith.constant 0 : index
    %c0_65 = arith.constant 0 : index
    %146 = vector.load %arg13[%c0_63, %c0_64, %c0_65] : memref<1x2048x32xbf16, #tpu.memory_space<vmem>>, vector<1x2048x32xbf16>
    %147 = vector.shape_cast %146 : vector<1x2048x32xbf16> to vector<2048x32xbf16>
    %cst_66 = arith.constant dense<0.000000e+00> : vector<16x32xf32>
    %148 = tpu.matmul %145, %147, %cst_66 {dimension_numbers = #tpu.dot_dimension_numbers<[1], [0], [0], [1], [0, 0, 1, 1], [], []>} : vector<16x2048xbf16>, vector<2048x32xbf16>, vector<16x32xf32> -> vector<16x32xf32>
    %c0_67 = arith.constant 0 : index
    %c0_68 = arith.constant 0 : index
    %c0_69 = arith.constant 0 : index
    %149 = vector.load %arg14[%c0_67, %c0_68, %c0_69] : memref<1x1x32xf32, #tpu.memory_space<vmem>>, vector<1x1x32xf32>
    %150 = vector.shape_cast %149 : vector<1x1x32xf32> to vector<1x32xf32>
    %151 = vector.broadcast %150 : vector<1x32xf32> to vector<16x32xf32>
    %152 = arith.addf %148, %151 : vector<16x32xf32>
    %153 = arith.addf %134, %152 : vector<16x32xf32>
    %c0_70 = arith.constant 0 : index
    %c0_71 = arith.constant 0 : index
    %c0_72 = arith.constant 0 : index
    %154 = vector.load %arg15[%c0_70, %c0_71, %c0_72] : memref<1x1x32xf32, #tpu.memory_space<vmem>>, vector<1x1x32xf32>
    %155 = vector.shape_cast %154 : vector<1x1x32xf32> to vector<1x32xf32>
    %c0_73 = arith.constant 0 : index
    %c0_74 = arith.constant 0 : index
    %c0_75 = arith.constant 0 : index
    %156 = vector.load %arg16[%c0_73, %c0_74, %c0_75] : memref<1x1x32xf32, #tpu.memory_space<vmem>>, vector<1x1x32xf32>
    %157 = vector.shape_cast %156 : vector<1x1x32xf32> to vector<1x32xf32>
    %cst_76 = arith.constant dense<0.000000e+00> : vector<16xf32>
    %158 = vector.multi_reduction <add>, %153, %cst_76 [1] : vector<16x32xf32> to vector<16xf32>
    %159 = vector.shape_cast %158 : vector<16xf32> to vector<16x1xf32>
    %cst_77 = arith.constant 3.200000e+01 : f32
    %160 = vector.broadcast %cst_77 : f32 to vector<16x1xf32>
    %161 = arith.divf %159, %160 : vector<16x1xf32>
    %162 = vector.broadcast %161 : vector<16x1xf32> to vector<16x32xf32>
    %163 = arith.subf %153, %162 : vector<16x32xf32>
    %164 = arith.mulf %163, %163 : vector<16x32xf32>
    %cst_78 = arith.constant dense<0.000000e+00> : vector<16xf32>
    %165 = vector.multi_reduction <add>, %164, %cst_78 [1] : vector<16x32xf32> to vector<16xf32>
    %166 = vector.shape_cast %165 : vector<16xf32> to vector<16x1xf32>
    %cst_79 = arith.constant 3.200000e+01 : f32
    %167 = vector.broadcast %cst_79 : f32 to vector<16x1xf32>
    %168 = arith.divf %166, %167 : vector<16x1xf32>
    %169 = vector.broadcast %161 : vector<16x1xf32> to vector<16x32xf32>
    %170 = arith.subf %153, %169 : vector<16x32xf32>
    %cst_80 = arith.constant 9.99999974E-6 : f32
    %171 = vector.broadcast %cst_80 : f32 to vector<16x1xf32>
    %172 = arith.addf %168, %171 : vector<16x1xf32>
    %173 = math.rsqrt %172 : vector<16x1xf32>
    %174 = vector.broadcast %173 : vector<16x1xf32> to vector<16x32xf32>
    %175 = arith.mulf %170, %174 : vector<16x32xf32>
    %176 = vector.broadcast %155 : vector<1x32xf32> to vector<16x32xf32>
    %177 = arith.mulf %175, %176 : vector<16x32xf32>
    %178 = vector.broadcast %157 : vector<1x32xf32> to vector<16x32xf32>
    %179 = arith.addf %177, %178 : vector<16x32xf32>
    %c0_i32 = arith.constant 0 : i32
    %180 = arith.cmpi eq, %arg0, %c0_i32 : i32
    %181 = arith.extui %180 : i1 to i32
    %c0_i32_81 = arith.constant 0 : i32
    %182 = arith.cmpi ne, %181, %c0_i32_81 : i32
    scf.if %182 {
      %186 = vector.shape_cast %179 : vector<16x32xf32> to vector<2x8x32xf32>
      %187 = vector.extract_strided_slice %186 {offsets = [0, 7, 0], sizes = [2, 1, 32], strides = [1, 1, 1]} : vector<2x8x32xf32> to vector<2x1x32xf32>
      %188 = vector.shape_cast %187 : vector<2x1x32xf32> to vector<2x32xf32>
      %c0_83 = arith.constant 0 : index
      %c0_84 = arith.constant 0 : index
      %189 = vector.load %arg24[%c0_83, %c0_84] : memref<2x32xf32, #tpu.memory_space<vmem>>, vector<2x32xf32>
      tpu.vector_store %arg24[%c0_83, %c0_84], %188 {strides = array<i32>} : memref<2x32xf32, #tpu.memory_space<vmem>>, vector<2x32xf32>,
      %cst_85 = arith.constant 0.000000e+00 : f32
      %190 = vector.broadcast %cst_85 : f32 to vector<2x1xf32>
      %c0_86 = arith.constant 0 : index
      %c0_87 = arith.constant 0 : index
      %191 = vector.load %arg23[%c0_86, %c0_87] : memref<2x1xf32, #tpu.memory_space<vmem>>, vector<2x1xf32>
      tpu.vector_store %arg23[%c0_86, %c0_87], %190 {strides = array<i32>} : memref<2x1xf32, #tpu.memory_space<vmem>>, vector<2x1xf32>,
    } else {
    }
    %c1_i32 = arith.constant 1 : i32
    %183 = arith.cmpi eq, %arg0, %c1_i32 : i32
    %184 = arith.extui %183 : i1 to i32
    %c0_i32_82 = arith.constant 0 : i32
    %185 = arith.cmpi ne, %184, %c0_i32_82 : i32
    scf.if %185 {
      %c0_83 = arith.constant 0 : index
      %c0_84 = arith.constant 0 : index
      %186 = vector.load %arg17[%c0_83, %c0_84] : memref<32x96xf32, #tpu.memory_space<vmem>>, vector<32x96xf32>
      %c0_85 = arith.constant 0 : index
      %c0_86 = arith.constant 0 : index
      %187 = vector.load %arg18[%c0_85, %c0_86] : memref<1x96xf32, #tpu.memory_space<vmem>>, vector<1x96xf32>
      %c0_87 = arith.constant 0 : index
      %c0_88 = arith.constant 0 : index
      %188 = vector.load %arg24[%c0_87, %c0_88] : memref<2x32xf32, #tpu.memory_space<vmem>>, vector<2x32xf32>
      %189 = vector.extract_strided_slice %186 {offsets = [0, 0], sizes = [32, 32], strides = [1, 1]} : vector<32x96xf32> to vector<32x32xf32>
      %cst_89 = arith.constant dense<0.000000e+00> : vector<2x32xf32>
      %190 = tpu.matmul %188, %189, %cst_89 {dimension_numbers = #tpu.dot_dimension_numbers<[1], [0], [0], [1], [0, 0, 1, 1], [], []>} : vector<2x32xf32>, vector<32x32xf32>, vector<2x32xf32> -> vector<2x32xf32>
      %191 = vector.extract_strided_slice %187 {offsets = [0, 0], sizes = [1, 32], strides = [1, 1]} : vector<1x96xf32> to vector<1x32xf32>
      %192 = vector.broadcast %191 : vector<1x32xf32> to vector<2x32xf32>
      %193 = arith.addf %190, %192 : vector<2x32xf32>
      %194 = vector.extract_strided_slice %186 {offsets = [0, 32], sizes = [32, 64], strides = [1, 1]} : vector<32x96xf32> to vector<32x64xf32>
      %cst_90 = arith.constant dense<0.000000e+00> : vector<16x64xf32>
      %195 = tpu.matmul %179, %194, %cst_90 {dimension_numbers = #tpu.dot_dimension_numbers<[1], [0], [0], [1], [0, 0, 1, 1], [], []>} : vector<16x32xf32>, vector<32x64xf32>, vector<16x64xf32> -> vector<16x64xf32>
      %196 = vector.extract_strided_slice %187 {offsets = [0, 32], sizes = [1, 64], strides = [1, 1]} : vector<1x96xf32> to vector<1x64xf32>
      %197 = vector.broadcast %196 : vector<1x64xf32> to vector<16x64xf32>
      %198 = arith.addf %195, %197 : vector<16x64xf32>
      %199 = vector.extract_strided_slice %198 {offsets = [0, 0], sizes = [16, 32], strides = [1, 1]} : vector<16x64xf32> to vector<16x32xf32>
      %200 = vector.extract_strided_slice %198 {offsets = [0, 32], sizes = [16, 32], strides = [1, 1]} : vector<16x64xf32> to vector<16x32xf32>
      %c0_91 = arith.constant 0 : index
      %c0_92 = arith.constant 0 : index
      %201 = vector.load %arg19[%c0_91, %c0_92] : memref<32x32xf32, #tpu.memory_space<vmem>>, vector<32x32xf32>
      %202 = vector.shape_cast %193 : vector<2x32xf32> to vector<2x1x32xf32>
      %203 = vector.shape_cast %199 : vector<16x32xf32> to vector<2x8x32xf32>
      %204 = vector.shape_cast %200 : vector<16x32xf32> to vector<2x8x32xf32>
      %cst_93 = arith.constant 0.000000e+00 : f32
      %205 = vector.broadcast %cst_93 : f32 to vector<2x32xf32>
      %206 = vector.extract_strided_slice %202 {offsets = [0, 0, 0], sizes = [2, 1, 8], strides = [1, 1, 1]} : vector<2x1x32xf32> to vector<2x1x8xf32>
      %207 = vector.extract_strided_slice %203 {offsets = [0, 0, 0], sizes = [2, 8, 8], strides = [1, 1, 1]} : vector<2x8x32xf32> to vector<2x8x8xf32>
      "tpu.trace_start"() <{level = 10 : i32, message = "bqd,bkd->bqk"}> : () -> ()
      %cst_94 = arith.constant dense<0.000000e+00> : vector<2x1x8xf32>
      %208 = tpu.matmul %206, %207, %cst_94 {dimension_numbers = #tpu.dot_dimension_numbers<[2], [2], [1], [1], [0, 0, 0, 1, 1, 1], [0], [0]>} : vector<2x1x8xf32>, vector<2x8x8xf32>, vector<2x1x8xf32> -> vector<2x1x8xf32>
      "tpu.trace_stop"() : () -> ()
      %cst_95 = arith.constant dense<0xFF800000> : vector<2x1xf32>
      %209 = vector.multi_reduction <maximumf>, %208, %cst_95 [2] : vector<2x1x8xf32> to vector<2x1xf32>
      %210 = vector.shape_cast %209 : vector<2x1xf32> to vector<2x1x1xf32>
      %211 = vector.broadcast %210 : vector<2x1x1xf32> to vector<2x1x8xf32>
      %212 = arith.subf %208, %211 : vector<2x1x8xf32>
      %213 = math.exp %212 : vector<2x1x8xf32>
      %cst_96 = arith.constant dense<0.000000e+00> : vector<2x1xf32>
      %214 = vector.multi_reduction <add>, %213, %cst_96 [2] : vector<2x1x8xf32> to vector<2x1xf32>
      %215 = vector.shape_cast %214 : vector<2x1xf32> to vector<2x1x1xf32>
      %216 = tpu.reciprocal %215 {approx = true} : vector<2x1x1xf32> -> vector<2x1x1xf32>
      %217 = vector.broadcast %216 : vector<2x1x1xf32> to vector<2x1x8xf32>
      %218 = arith.mulf %213, %217 : vector<2x1x8xf32>
      %219 = vector.extract_strided_slice %204 {offsets = [0, 0, 0], sizes = [2, 8, 8], strides = [1, 1, 1]} : vector<2x8x32xf32> to vector<2x8x8xf32>
      "tpu.trace_start"() <{level = 10 : i32, message = "bqk,bkd->bqd"}> : () -> ()
      %cst_97 = arith.constant dense<0.000000e+00> : vector<2x1x8xf32>
      %220 = tpu.matmul %218, %219, %cst_97 {dimension_numbers = #tpu.dot_dimension_numbers<[2], [1], [1], [2], [0, 0, 0, 1, 1, 2], [0], [0]>} : vector<2x1x8xf32>, vector<2x8x8xf32>, vector<2x1x8xf32> -> vector<2x1x8xf32>
      "tpu.trace_stop"() : () -> ()
      %221 = vector.shape_cast %220 : vector<2x1x8xf32> to vector<2x8xf32>
      %222 = vector.extract_strided_slice %201 {offsets = [0, 0], sizes = [8, 32], strides = [1, 1]} : vector<32x32xf32> to vector<8x32xf32>
      %cst_98 = arith.constant dense<0.000000e+00> : vector<2x32xf32>
      %223 = tpu.matmul %221, %222, %cst_98 {dimension_numbers = #tpu.dot_dimension_numbers<[1], [0], [0], [1], [0, 0, 1, 1], [], []>} : vector<2x8xf32>, vector<8x32xf32>, vector<2x32xf32> -> vector<2x32xf32>
      %224 = arith.addf %205, %223 : vector<2x32xf32>
      %225 = vector.extract_strided_slice %202 {offsets = [0, 0, 8], sizes = [2, 1, 8], strides = [1, 1, 1]} : vector<2x1x32xf32> to vector<2x1x8xf32>
      %226 = vector.extract_strided_slice %203 {offsets = [0, 0, 8], sizes = [2, 8, 8], strides = [1, 1, 1]} : vector<2x8x32xf32> to vector<2x8x8xf32>
      "tpu.trace_start"() <{level = 10 : i32, message = "bqd,bkd->bqk"}> : () -> ()
      %cst_99 = arith.constant dense<0.000000e+00> : vector<2x1x8xf32>
      %227 = tpu.matmul %225, %226, %cst_99 {dimension_numbers = #tpu.dot_dimension_numbers<[2], [2], [1], [1], [0, 0, 0, 1, 1, 1], [0], [0]>} : vector<2x1x8xf32>, vector<2x8x8xf32>, vector<2x1x8xf32> -> vector<2x1x8xf32>
      "tpu.trace_stop"() : () -> ()
      %cst_100 = arith.constant dense<0xFF800000> : vector<2x1xf32>
      %228 = vector.multi_reduction <maximumf>, %227, %cst_100 [2] : vector<2x1x8xf32> to vector<2x1xf32>
      %229 = vector.shape_cast %228 : vector<2x1xf32> to vector<2x1x1xf32>
      %230 = vector.broadcast %229 : vector<2x1x1xf32> to vector<2x1x8xf32>
      %231 = arith.subf %227, %230 : vector<2x1x8xf32>
      %232 = math.exp %231 : vector<2x1x8xf32>
      %cst_101 = arith.constant dense<0.000000e+00> : vector<2x1xf32>
      %233 = vector.multi_reduction <add>, %232, %cst_101 [2] : vector<2x1x8xf32> to vector<2x1xf32>
      %234 = vector.shape_cast %233 : vector<2x1xf32> to vector<2x1x1xf32>
      %235 = tpu.reciprocal %234 {approx = true} : vector<2x1x1xf32> -> vector<2x1x1xf32>
      %236 = vector.broadcast %235 : vector<2x1x1xf32> to vector<2x1x8xf32>
      %237 = arith.mulf %232, %236 : vector<2x1x8xf32>
      %238 = vector.extract_strided_slice %204 {offsets = [0, 0, 8], sizes = [2, 8, 8], strides = [1, 1, 1]} : vector<2x8x32xf32> to vector<2x8x8xf32>
      "tpu.trace_start"() <{level = 10 : i32, message = "bqk,bkd->bqd"}> : () -> ()
      %cst_102 = arith.constant dense<0.000000e+00> : vector<2x1x8xf32>
      %239 = tpu.matmul %237, %238, %cst_102 {dimension_numbers = #tpu.dot_dimension_numbers<[2], [1], [1], [2], [0, 0, 0, 1, 1, 2], [0], [0]>} : vector<2x1x8xf32>, vector<2x8x8xf32>, vector<2x1x8xf32> -> vector<2x1x8xf32>
      "tpu.trace_stop"() : () -> ()
      %240 = vector.shape_cast %239 : vector<2x1x8xf32> to vector<2x8xf32>
      %241 = vector.extract_strided_slice %201 {offsets = [8, 0], sizes = [8, 32], strides = [1, 1]} : vector<32x32xf32> to vector<8x32xf32>
      %cst_103 = arith.constant dense<0.000000e+00> : vector<2x32xf32>
      %242 = tpu.matmul %240, %241, %cst_103 {dimension_numbers = #tpu.dot_dimension_numbers<[1], [0], [0], [1], [0, 0, 1, 1], [], []>} : vector<2x8xf32>, vector<8x32xf32>, vector<2x32xf32> -> vector<2x32xf32>
      %243 = arith.addf %224, %242 : vector<2x32xf32>
      %244 = vector.extract_strided_slice %202 {offsets = [0, 0, 16], sizes = [2, 1, 8], strides = [1, 1, 1]} : vector<2x1x32xf32> to vector<2x1x8xf32>
      %245 = vector.extract_strided_slice %203 {offsets = [0, 0, 16], sizes = [2, 8, 8], strides = [1, 1, 1]} : vector<2x8x32xf32> to vector<2x8x8xf32>
      "tpu.trace_start"() <{level = 10 : i32, message = "bqd,bkd->bqk"}> : () -> ()
      %cst_104 = arith.constant dense<0.000000e+00> : vector<2x1x8xf32>
      %246 = tpu.matmul %244, %245, %cst_104 {dimension_numbers = #tpu.dot_dimension_numbers<[2], [2], [1], [1], [0, 0, 0, 1, 1, 1], [0], [0]>} : vector<2x1x8xf32>, vector<2x8x8xf32>, vector<2x1x8xf32> -> vector<2x1x8xf32>
      "tpu.trace_stop"() : () -> ()
      %cst_105 = arith.constant dense<0xFF800000> : vector<2x1xf32>
      %247 = vector.multi_reduction <maximumf>, %246, %cst_105 [2] : vector<2x1x8xf32> to vector<2x1xf32>
      %248 = vector.shape_cast %247 : vector<2x1xf32> to vector<2x1x1xf32>
      %249 = vector.broadcast %248 : vector<2x1x1xf32> to vector<2x1x8xf32>
      %250 = arith.subf %246, %249 : vector<2x1x8xf32>
      %251 = math.exp %250 : vector<2x1x8xf32>
      %cst_106 = arith.constant dense<0.000000e+00> : vector<2x1xf32>
      %252 = vector.multi_reduction <add>, %251, %cst_106 [2] : vector<2x1x8xf32> to vector<2x1xf32>
      %253 = vector.shape_cast %252 : vector<2x1xf32> to vector<2x1x1xf32>
      %254 = tpu.reciprocal %253 {approx = true} : vector<2x1x1xf32> -> vector<2x1x1xf32>
      %255 = vector.broadcast %254 : vector<2x1x1xf32> to vector<2x1x8xf32>
      %256 = arith.mulf %251, %255 : vector<2x1x8xf32>
      %257 = vector.extract_strided_slice %204 {offsets = [0, 0, 16], sizes = [2, 8, 8], strides = [1, 1, 1]} : vector<2x8x32xf32> to vector<2x8x8xf32>
      "tpu.trace_start"() <{level = 10 : i32, message = "bqk,bkd->bqd"}> : () -> ()
      %cst_107 = arith.constant dense<0.000000e+00> : vector<2x1x8xf32>
      %258 = tpu.matmul %256, %257, %cst_107 {dimension_numbers = #tpu.dot_dimension_numbers<[2], [1], [1], [2], [0, 0, 0, 1, 1, 2], [0], [0]>} : vector<2x1x8xf32>, vector<2x8x8xf32>, vector<2x1x8xf32> -> vector<2x1x8xf32>
      "tpu.trace_stop"() : () -> ()
      %259 = vector.shape_cast %258 : vector<2x1x8xf32> to vector<2x8xf32>
      %260 = vector.extract_strided_slice %201 {offsets = [16, 0], sizes = [8, 32], strides = [1, 1]} : vector<32x32xf32> to vector<8x32xf32>
      %cst_108 = arith.constant dense<0.000000e+00> : vector<2x32xf32>
      %261 = tpu.matmul %259, %260, %cst_108 {dimension_numbers = #tpu.dot_dimension_numbers<[1], [0], [0], [1], [0, 0, 1, 1], [], []>} : vector<2x8xf32>, vector<8x32xf32>, vector<2x32xf32> -> vector<2x32xf32>
      %262 = arith.addf %243, %261 : vector<2x32xf32>
      %263 = vector.extract_strided_slice %202 {offsets = [0, 0, 24], sizes = [2, 1, 8], strides = [1, 1, 1]} : vector<2x1x32xf32> to vector<2x1x8xf32>
      %264 = vector.extract_strided_slice %203 {offsets = [0, 0, 24], sizes = [2, 8, 8], strides = [1, 1, 1]} : vector<2x8x32xf32> to vector<2x8x8xf32>
      "tpu.trace_start"() <{level = 10 : i32, message = "bqd,bkd->bqk"}> : () -> ()
      %cst_109 = arith.constant dense<0.000000e+00> : vector<2x1x8xf32>
      %265 = tpu.matmul %263, %264, %cst_109 {dimension_numbers = #tpu.dot_dimension_numbers<[2], [2], [1], [1], [0, 0, 0, 1, 1, 1], [0], [0]>} : vector<2x1x8xf32>, vector<2x8x8xf32>, vector<2x1x8xf32> -> vector<2x1x8xf32>
      "tpu.trace_stop"() : () -> ()
      %cst_110 = arith.constant dense<0xFF800000> : vector<2x1xf32>
      %266 = vector.multi_reduction <maximumf>, %265, %cst_110 [2] : vector<2x1x8xf32> to vector<2x1xf32>
      %267 = vector.shape_cast %266 : vector<2x1xf32> to vector<2x1x1xf32>
      %268 = vector.broadcast %267 : vector<2x1x1xf32> to vector<2x1x8xf32>
      %269 = arith.subf %265, %268 : vector<2x1x8xf32>
      %270 = math.exp %269 : vector<2x1x8xf32>
      %cst_111 = arith.constant dense<0.000000e+00> : vector<2x1xf32>
      %271 = vector.multi_reduction <add>, %270, %cst_111 [2] : vector<2x1x8xf32> to vector<2x1xf32>
      %272 = vector.shape_cast %271 : vector<2x1xf32> to vector<2x1x1xf32>
      %273 = tpu.reciprocal %272 {approx = true} : vector<2x1x1xf32> -> vector<2x1x1xf32>
      %274 = vector.broadcast %273 : vector<2x1x1xf32> to vector<2x1x8xf32>
      %275 = arith.mulf %270, %274 : vector<2x1x8xf32>
      %276 = vector.extract_strided_slice %204 {offsets = [0, 0, 24], sizes = [2, 8, 8], strides = [1, 1, 1]} : vector<2x8x32xf32> to vector<2x8x8xf32>
      "tpu.trace_start"() <{level = 10 : i32, message = "bqk,bkd->bqd"}> : () -> ()
      %cst_112 = arith.constant dense<0.000000e+00> : vector<2x1x8xf32>
      %277 = tpu.matmul %275, %276, %cst_112 {dimension_numbers = #tpu.dot_dimension_numbers<[2], [1], [1], [2], [0, 0, 0, 1, 1, 2], [0], [0]>} : vector<2x1x8xf32>, vector<2x8x8xf32>, vector<2x1x8xf32> -> vector<2x1x8xf32>
      "tpu.trace_stop"() : () -> ()
      %278 = vector.shape_cast %277 : vector<2x1x8xf32> to vector<2x8xf32>
      %279 = vector.extract_strided_slice %201 {offsets = [24, 0], sizes = [8, 32], strides = [1, 1]} : vector<32x32xf32> to vector<8x32xf32>
      %cst_113 = arith.constant dense<0.000000e+00> : vector<2x32xf32>
      %280 = tpu.matmul %278, %279, %cst_113 {dimension_numbers = #tpu.dot_dimension_numbers<[1], [0], [0], [1], [0, 0, 1, 1], [], []>} : vector<2x8xf32>, vector<8x32xf32>, vector<2x32xf32> -> vector<2x32xf32>
      %281 = arith.addf %262, %280 : vector<2x32xf32>
      %c0_114 = arith.constant 0 : index
      %c0_115 = arith.constant 0 : index
      %282 = vector.load %arg20[%c0_114, %c0_115] : memref<1x32xf32, #tpu.memory_space<vmem>>, vector<1x32xf32>
      %283 = vector.broadcast %282 : vector<1x32xf32> to vector<2x32xf32>
      %284 = arith.addf %281, %283 : vector<2x32xf32>
      %c0_116 = arith.constant 0 : index
      %c0_117 = arith.constant 0 : index
      %285 = vector.load %arg21[%c0_116, %c0_117] : memref<32x1xf32, #tpu.memory_space<vmem>>, vector<32x1xf32>
      %cst_118 = arith.constant dense<0.000000e+00> : vector<2x1xf32>
      %286 = tpu.matmul %284, %285, %cst_118 {dimension_numbers = #tpu.dot_dimension_numbers<[1], [0], [0], [1], [0, 0, 1, 1], [], []>} : vector<2x32xf32>, vector<32x1xf32>, vector<2x1xf32> -> vector<2x1xf32>
      %c0_119 = arith.constant 0 : index
      %c0_120 = arith.constant 0 : index
      %287 = vector.load %arg22[%c0_119, %c0_120] : memref<1x1xf32, #tpu.memory_space<vmem>>, vector<1x1xf32>
      %288 = vector.broadcast %287 : vector<1x1xf32> to vector<2x1xf32>
      %289 = arith.addf %286, %288 : vector<2x1xf32>
      %c0_121 = arith.constant 0 : index
      %c0_122 = arith.constant 0 : index
      %290 = vector.load %arg23[%c0_121, %c0_122] : memref<2x1xf32, #tpu.memory_space<vmem>>, vector<2x1xf32>
      tpu.vector_store %arg23[%c0_121, %c0_122], %289 {strides = array<i32>} : memref<2x1xf32, #tpu.memory_space<vmem>>, vector<2x1xf32>,
    } else {
    }
    return
  }
  func.func @transform_0(%arg0: i32) -> (i32, i32, i32) {
    %c0_i32 = arith.constant 0 : i32
    %c0_i32_0 = arith.constant 0 : i32
    %c0_i32_1 = arith.constant 0 : i32
    return %arg0, %c0_i32, %c0_i32_0 : i32, i32, i32
  }
  func.func @transform_1(%arg0: i32) -> (i32, i32) {
    %c0_i32 = arith.constant 0 : i32
    %c0_i32_0 = arith.constant 0 : i32
    %c0_i32_1 = arith.constant 0 : i32
    return %c0_i32, %c0_i32_0 : i32, i32
  }
  func.func @transform_2(%arg0: i32) -> (i32, i32, i32) {
    %c0_i32 = arith.constant 0 : i32
    %c0_i32_0 = arith.constant 0 : i32
    %c0_i32_1 = arith.constant 0 : i32
    return %arg0, %c0_i32, %c0_i32_0 : i32, i32, i32
  }
  func.func @transform_3(%arg0: i32) -> (i32, i32, i32) {
    %c0_i32 = arith.constant 0 : i32
    %c0_i32_0 = arith.constant 0 : i32
    %c0_i32_1 = arith.constant 0 : i32
    return %arg0, %c0_i32, %c0_i32_0 : i32, i32, i32
  }
  func.func @transform_4(%arg0: i32) -> (i32, i32, i32) {
    %c0_i32 = arith.constant 0 : i32
    %c0_i32_0 = arith.constant 0 : i32
    %c0_i32_1 = arith.constant 0 : i32
    return %arg0, %c0_i32, %c0_i32_0 : i32, i32, i32
  }
  func.func @transform_5(%arg0: i32) -> (i32, i32, i32) {
    %c0_i32 = arith.constant 0 : i32
    %c0_i32_0 = arith.constant 0 : i32
    %c0_i32_1 = arith.constant 0 : i32
    return %arg0, %c0_i32, %c0_i32_0 : i32, i32, i32
  }
  func.func @transform_6(%arg0: i32) -> (i32, i32, i32) {
    %c0_i32 = arith.constant 0 : i32
    %c0_i32_0 = arith.constant 0 : i32
    %c0_i32_1 = arith.constant 0 : i32
    return %arg0, %c0_i32, %c0_i32_0 : i32, i32, i32
  }
  func.func @transform_7(%arg0: i32) -> (i32, i32, i32) {
    %c0_i32 = arith.constant 0 : i32
    %c0_i32_0 = arith.constant 0 : i32
    %c0_i32_1 = arith.constant 0 : i32
    return %arg0, %c0_i32, %c0_i32_0 : i32, i32, i32
  }
  func.func @transform_8(%arg0: i32) -> (i32, i32, i32) {
    %c0_i32 = arith.constant 0 : i32
    %c0_i32_0 = arith.constant 0 : i32
    %c0_i32_1 = arith.constant 0 : i32
    return %arg0, %c0_i32, %c0_i32_0 : i32, i32, i32
  }
  func.func @transform_9(%arg0: i32) -> (i32, i32, i32) {
    %c0_i32 = arith.constant 0 : i32
    %c0_i32_0 = arith.constant 0 : i32
    %c0_i32_1 = arith.constant 0 : i32
    return %arg0, %c0_i32, %c0_i32_0 : i32, i32, i32
  }
  func.func @transform_10(%arg0: i32) -> (i32, i32, i32) {
    %c0_i32 = arith.constant 0 : i32
    %c0_i32_0 = arith.constant 0 : i32
    %c0_i32_1 = arith.constant 0 : i32
    return %arg0, %c0_i32, %c0_i32_0 : i32, i32, i32
  }
  func.func @transform_11(%arg0: i32) -> (i32, i32, i32) {
    %c0_i32 = arith.constant 0 : i32
    %c0_i32_0 = arith.constant 0 : i32
    %c0_i32_1 = arith.constant 0 : i32
    return %arg0, %c0_i32, %c0_i32_0 : i32, i32, i32
  }
  func.func @transform_12(%arg0: i32) -> (i32, i32, i32) {
    %c0_i32 = arith.constant 0 : i32
    %c0_i32_0 = arith.constant 0 : i32
    %c0_i32_1 = arith.constant 0 : i32
    return %arg0, %c0_i32, %c0_i32_0 : i32, i32, i32
  }
  func.func @transform_13(%arg0: i32) -> (i32, i32, i32) {
    %c0_i32 = arith.constant 0 : i32
    %c0_i32_0 = arith.constant 0 : i32
    %c0_i32_1 = arith.constant 0 : i32
    return %arg0, %c0_i32, %c0_i32_0 : i32, i32, i32
  }
  func.func @transform_14(%arg0: i32) -> (i32, i32, i32) {
    %c0_i32 = arith.constant 0 : i32
    %c0_i32_0 = arith.constant 0 : i32
    %c0_i32_1 = arith.constant 0 : i32
    return %arg0, %c0_i32, %c0_i32_0 : i32, i32, i32
  }
  func.func @transform_15(%arg0: i32) -> (i32, i32, i32) {
    %c0_i32 = arith.constant 0 : i32
    %c0_i32_0 = arith.constant 0 : i32
    %c0_i32_1 = arith.constant 0 : i32
    return %arg0, %c0_i32, %c0_i32_0 : i32, i32, i32
  }
  func.func @transform_16(%arg0: i32) -> (i32, i32) {
    %c0_i32 = arith.constant 0 : i32
    %c0_i32_0 = arith.constant 0 : i32
    %c0_i32_1 = arith.constant 0 : i32
    return %c0_i32, %c0_i32_0 : i32, i32
  }
  func.func @transform_17(%arg0: i32) -> (i32, i32) {
    %c0_i32 = arith.constant 0 : i32
    %c0_i32_0 = arith.constant 0 : i32
    %c0_i32_1 = arith.constant 0 : i32
    return %c0_i32, %c0_i32_0 : i32, i32
  }
  func.func @transform_18(%arg0: i32) -> (i32, i32) {
    %c0_i32 = arith.constant 0 : i32
    %c0_i32_0 = arith.constant 0 : i32
    %c0_i32_1 = arith.constant 0 : i32
    return %c0_i32, %c0_i32_0 : i32, i32
  }
  func.func @transform_19(%arg0: i32) -> (i32, i32) {
    %c0_i32 = arith.constant 0 : i32
    %c0_i32_0 = arith.constant 0 : i32
    %c0_i32_1 = arith.constant 0 : i32
    return %c0_i32, %c0_i32_0 : i32, i32
  }
  func.func @transform_20(%arg0: i32) -> (i32, i32) {
    %c0_i32 = arith.constant 0 : i32
    %c0_i32_0 = arith.constant 0 : i32
    %c0_i32_1 = arith.constant 0 : i32
    return %c0_i32, %c0_i32_0 : i32, i32
  }
  func.func @transform_21(%arg0: i32) -> (i32, i32) {
    %c0_i32 = arith.constant 0 : i32
    %c0_i32_0 = arith.constant 0 : i32
    %c0_i32_1 = arith.constant 0 : i32
    return %c0_i32, %c0_i32_0 : i32, i32
  }
  func.func @transform_22(%arg0: i32) -> (i32, i32) {
    %c0_i32 = arith.constant 0 : i32
    %c0_i32_0 = arith.constant 0 : i32
    %c0_i32_1 = arith.constant 0 : i32
    return %c0_i32, %c0_i32_0 : i32, i32
  }
}

</mosaic_0001>

<llo_original>
// kernel: double_encoder_transformer.1
$region0: #{double_encoder_transformer.1}
  #allocation0 [shape = 'u32[]', space=smem, size = 0x4, offset = 0x4, fixed_abs, tag = 'smem constant byte address 0x4 - core index']
  #allocation1 [shape = 'u32[144,128]{1,0:T(1,128)}', space=vmem, size = 0x12000, scoped, tag = 'internal scratch']
  #allocation2 [shape = 'f32[2,32]{1,0:T(2,128)}', space=vmem, size = 0x400, scoped, tag = 'scratch operand']
  #allocation3 [shape = 'f32[1,1]{1,0:T(1,128)S(1)}', space=vmem, size = 0x200, scoped, tag = 'scoped memory for double_encoder_transformer.1']
  %s0 = inlined_call_operand.vmem [shape: f32[2,16,8], index: 0, kind: input, shape index: {}]
  %s1 = inlined_call_operand.vmem [shape: f32[16,32], index: 1, kind: input, shape index: {}]
  %s2 = inlined_call_operand.vmem [shape: f32[2,8,32], index: 2, kind: input, shape index: {}]
  %s3 = inlined_call_operand.vmem [shape: f32[2,1,32], index: 3, kind: input, shape index: {}]
  %s4 = inlined_call_operand.vmem [shape: bf16[2,32,96], index: 4, kind: input, shape index: {}]
  %s5 = inlined_call_operand.vmem [shape: f32[2,1,96], index: 5, kind: input, shape index: {}]
  %s6 = inlined_call_operand.vmem [shape: f32[2,32,32], index: 6, kind: input, shape index: {}]
  %s7 = inlined_call_operand.vmem [shape: f32[2,1,32], index: 7, kind: input, shape index: {}]
  %s8 = inlined_call_operand.vmem [shape: f32[2,1,32], index: 8, kind: input, shape index: {}]
  %s9 = inlined_call_operand.vmem [shape: f32[2,1,32], index: 9, kind: input, shape index: {}]
  %s10 = inlined_call_operand.vmem [shape: bf16[2,32,2048], index: 10, kind: input, shape index: {}]
  %s11 = inlined_call_operand.vmem [shape: f32[2,1,2048], index: 11, kind: input, shape index: {}]
  %s12 = inlined_call_operand.vmem [shape: bf16[2,2048,32], index: 12, kind: input, shape index: {}]
  %s13 = inlined_call_operand.vmem [shape: f32[2,1,32], index: 13, kind: input, shape index: {}]
  %s14 = inlined_call_operand.vmem [shape: f32[2,1,32], index: 14, kind: input, shape index: {}]
  %s15 = inlined_call_operand.vmem [shape: f32[2,1,32], index: 15, kind: input, shape index: {}]
  %s16 = inlined_call_operand.vmem [shape: f32[32,96], index: 16, kind: input, shape index: {}]
  %s17 = inlined_call_operand.vmem [shape: f32[1,96], index: 17, kind: input, shape index: {}]
  %s18 = inlined_call_operand.vmem [shape: f32[32,32], index: 18, kind: input, shape index: {}]
  %s19 = inlined_call_operand.vmem [shape: f32[1,32], index: 19, kind: input, shape index: {}]
  %s20 = inlined_call_operand.vmem [shape: f32[32,1], index: 20, kind: input, shape index: {}]
  %s21 = inlined_call_operand.<no memory space> [shape: f32[1,1], index: 21, kind: input, shape index: {}]
  %s22 = inlined_call_operand.vmem [shape: f32[2,1], index: 22, kind: output, shape index: {}]
  %s23 = sld [smem:[#allocation0]]
  $region129: #{double_encoder_transformer.1} parent=0
    _
  %s25 = ssub.s32 1, %s23
  %s26 = scalar_select 0, %s25, %s23
  %v27 = vstv %s21
  %28 = vst [vmem:[#allocation3] sm:$0x1] %v27
  loop: start=0, step=1, limit=4
  $region2: #{double_encoder_transformer.1} parent=0 // loop_pre_header
    _
  $region3: #{double_encoder_transformer.1} parent=0 // loop_header
    %s30 = sphi 0, %s34
    %p31 = scmp.ge.s32.totalorder %s30, 4
    %s40 = sphi 0, %s42
    %s43 = sphi 0, %s40
    %s44 = sphi 0, %s43
    %s60 = sphi 0, %s44
    %s64 = sphi 0, %s64
    %s66 = sphi 0, %s64
    %s67 = sphi 0, %s66
    %s81 = sphi 0, %s67
    %s87 = sphi 0, %s89
    %s90 = sphi 0, %s87
    %s91 = sphi 0, %s90
    %s107 = sphi 0, %s91
    %s113 = sphi 0, %s115
    %s116 = sphi 0, %s113
    %s117 = sphi 0, %s116
    %s133 = sphi 0, %s117
    %s139 = sphi 0, %s141
    %s142 = sphi 0, %s139
    %s143 = sphi 0, %s142
    %s159 = sphi 0, %s143
    %s165 = sphi 0, %s167
    %s168 = sphi 0, %s165
    %s169 = sphi 0, %s168
    %s185 = sphi 0, %s169
    %s191 = sphi 0, %s193
    %s194 = sphi 0, %s191
    %s195 = sphi 0, %s194
    %s211 = sphi 0, %s195
    %s217 = sphi 0, %s219
    %s220 = sphi 0, %s217
    %s221 = sphi 0, %s220
    %s237 = sphi 0, %s221
    %s243 = sphi 0, %s245
    %s246 = sphi 0, %s243
    %s247 = sphi 0, %s246
    %s263 = sphi 0, %s247
    %s269 = sphi 0, %s271
    %s272 = sphi 0, %s269
    %s273 = sphi 0, %s272
    %s289 = sphi 0, %s273
    %s295 = sphi 0, %s297
    %s298 = sphi 0, %s295
    %s299 = sphi 0, %s298
    %s315 = sphi 0, %s299
    %s321 = sphi 0, %s323
    %s324 = sphi 0, %s321
    %s325 = sphi 0, %s324
    %s341 = sphi 0, %s325
    %s347 = sphi 0, %s349
    %s350 = sphi 0, %s347
    %s351 = sphi 0, %s350
    %s367 = sphi 0, %s351
    %s373 = sphi 0, %s375
    %s376 = sphi 0, %s373
    %s377 = sphi 0, %s376
    %s393 = sphi 0, %s377
    %s399 = sphi 0, %s401
    %s402 = sphi 0, %s399
    %s403 = sphi 0, %s402
    %s419 = sphi 0, %s403
    %s425 = sphi 0, %s427
    %s428 = sphi 0, %s425
    %s429 = sphi 0, %s428
    %s445 = sphi 0, %s429
    %s449 = sphi 0, %s449
    %s451 = sphi 0, %s449
    %s452 = sphi 0, %s451
    %s466 = sphi 0, %s452
    %s470 = sphi 0, %s470
    %s472 = sphi 0, %s470
    %s473 = sphi 0, %s472
    %s487 = sphi 0, %s473
    %s491 = sphi 0, %s491
    %s493 = sphi 0, %s491
    %s494 = sphi 0, %s493
    %s508 = sphi 0, %s494
    %s512 = sphi 0, %s512
    %s514 = sphi 0, %s512
    %s515 = sphi 0, %s514
    %s529 = sphi 0, %s515
    %s533 = sphi 0, %s533
    %s535 = sphi 0, %s533
    %s536 = sphi 0, %s535
    %s550 = sphi 0, %s536
    %s554 = sphi 0, %s554
    %s556 = sphi 0, %s554
    %s557 = sphi 0, %s556
    %s571 = sphi 0, %s557
    %s575 = sphi 0, %s575
    %s577 = sphi 0, %s575
    %s578 = sphi 0, %s577
    %s592 = sphi 0, %s578
  $region4: #{double_encoder_transformer.1} parent=0 // loop_header_branch
    %33 = sbr.rel (%p31) target = $region8
  $region5: #{double_encoder_transformer.1} parent=0 // loop_body
    %s35 = ssub.s32 %s30, 1
    %s36 = ssub.s32 %s30, 2
    %s37 = sadd.s32 %s30, 1
    %s38 = ssub.s32 %s30, %s37
    %p39 = scmp.eq.s32.totalorder %s38, 0
    %s41 = sadd.s32 %s40, 1
    %s42 = scalar_select %p39, %s40, %s41
    %p45 = pneg %p39
    %p46 = scmp.eq.s32.totalorder %s30, 1
    %p47 = por %p45, %p46
    %p48 = scmp.ne.s32.totalorder %s40, %s43
    %p49 = scmp.eq.s32.totalorder %s30, 0
    %p50 = por %p48, %p49
    %p51 = scmp.ne.s32.totalorder %s40, %s43
    %p52 = scmp.eq.s32.totalorder %s35, 1
    %p53 = por %p51, %p52
    %p54 = scmp.ne.s32.totalorder %s43, %s44
    %p55 = scmp.eq.s32.totalorder %s35, 0
    %p56 = por %p54, %p55
    %p57 = scmp.ne.s32.totalorder %s43, %s44
    %p58 = scmp.eq.s32.totalorder %s36, 1
    %p59 = por %p57, %p58
    %p61 = scmp.ne.s32.totalorder %s44, %s60
    %p62 = scmp.eq.s32.totalorder %s36, 0
    %p63 = por %p61, %p62
    %s65 = sadd.s32 %s64, 1
    %p68 = scmp.eq.s32.totalorder %s30, 1
    %p69 = scmp.ne.s32.totalorder %s64, %s66
    %p70 = scmp.eq.s32.totalorder %s30, 0
    %p71 = por %p69, %p70
    %p72 = scmp.ne.s32.totalorder %s64, %s66
    %p73 = scmp.eq.s32.totalorder %s35, 1
    %p74 = por %p72, %p73
    %p75 = scmp.ne.s32.totalorder %s66, %s67
    %p76 = scmp.eq.s32.totalorder %s35, 0
    %p77 = por %p75, %p76
    %p78 = scmp.ne.s32.totalorder %s66, %s67
    %p79 = scmp.eq.s32.totalorder %s36, 1
    %p80 = por %p78, %p79
    %p82 = scmp.ne.s32.totalorder %s67, %s81
    %p83 = scmp.eq.s32.totalorder %s36, 0
    %p84 = por %p82, %p83
    %s85 = ssub.s32 %s30, %s37
    %p86 = scmp.eq.s32.totalorder %s85, 0
    %s88 = sadd.s32 %s87, 1
    %s89 = scalar_select %p86, %s87, %s88
    %p92 = pneg %p86
    %p93 = scmp.eq.s32.totalorder %s30, 1
    %p94 = por %p92, %p93
    %p95 = scmp.ne.s32.totalorder %s87, %s90
    %p96 = scmp.eq.s32.totalorder %s30, 0
    %p97 = por %p95, %p96
    %p98 = scmp.ne.s32.totalorder %s87, %s90
    %p99 = scmp.eq.s32.totalorder %s35, 1
    %p100 = por %p98, %p99
    %p101 = scmp.ne.s32.totalorder %s90, %s91
    %p102 = scmp.eq.s32.totalorder %s35, 0
    %p103 = por %p101, %p102
    %p104 = scmp.ne.s32.totalorder %s90, %s91
    %p105 = scmp.eq.s32.totalorder %s36, 1
    %p106 = por %p104, %p105
    %p108 = scmp.ne.s32.totalorder %s91, %s107
    %p109 = scmp.eq.s32.totalorder %s36, 0
    %p110 = por %p108, %p109
    %s111 = ssub.s32 %s30, %s37
    %p112 = scmp.eq.s32.totalorder %s111, 0
    %s114 = sadd.s32 %s113, 1
    %s115 = scalar_select %p112, %s113, %s114
    %p118 = pneg %p112
    %p119 = scmp.eq.s32.totalorder %s30, 1
    %p120 = por %p118, %p119
    %p121 = scmp.ne.s32.totalorder %s113, %s116
    %p122 = scmp.eq.s32.totalorder %s30, 0
    %p123 = por %p121, %p122
    %p124 = scmp.ne.s32.totalorder %s113, %s116
    %p125 = scmp.eq.s32.totalorder %s35, 1
    %p126 = por %p124, %p125
    %p127 = scmp.ne.s32.totalorder %s116, %s117
    %p128 = scmp.eq.s32.totalorder %s35, 0
    %p129 = por %p127, %p128
    %p130 = scmp.ne.s32.totalorder %s116, %s117
    %p131 = scmp.eq.s32.totalorder %s36, 1
    %p132 = por %p130, %p131
    %p134 = scmp.ne.s32.totalorder %s117, %s133
    %p135 = scmp.eq.s32.totalorder %s36, 0
    %p136 = por %p134, %p135
    %s137 = ssub.s32 %s30, %s37
    %p138 = scmp.eq.s32.totalorder %s137, 0
    %s140 = sadd.s32 %s139, 1
    %s141 = scalar_select %p138, %s139, %s140
    %p144 = pneg %p138
    %p145 = scmp.eq.s32.totalorder %s30, 1
    %p146 = por %p144, %p145
    %p147 = scmp.ne.s32.totalorder %s139, %s142
    %p148 = scmp.eq.s32.totalorder %s30, 0
    %p149 = por %p147, %p148
    %p150 = scmp.ne.s32.totalorder %s139, %s142
    %p151 = scmp.eq.s32.totalorder %s35, 1
    %p152 = por %p150, %p151
    %p153 = scmp.ne.s32.totalorder %s142, %s143
    %p154 = scmp.eq.s32.totalorder %s35, 0
    %p155 = por %p153, %p154
    %p156 = scmp.ne.s32.totalorder %s142, %s143
    %p157 = scmp.eq.s32.totalorder %s36, 1
    %p158 = por %p156, %p157
    %p160 = scmp.ne.s32.totalorder %s143, %s159
    %p161 = scmp.eq.s32.totalorder %s36, 0
    %p162 = por %p160, %p161
    %s163 = ssub.s32 %s30, %s37
    %p164 = scmp.eq.s32.totalorder %s163, 0
    %s166 = sadd.s32 %s165, 1
    %s167 = scalar_select %p164, %s165, %s166
    %p170 = pneg %p164
    %p171 = scmp.eq.s32.totalorder %s30, 1
    %p172 = por %p170, %p171
    %p173 = scmp.ne.s32.totalorder %s165, %s168
    %p174 = scmp.eq.s32.totalorder %s30, 0
    %p175 = por %p173, %p174
    %p176 = scmp.ne.s32.totalorder %s165, %s168
    %p177 = scmp.eq.s32.totalorder %s35, 1
    %p178 = por %p176, %p177
    %p179 = scmp.ne.s32.totalorder %s168, %s169
    %p180 = scmp.eq.s32.totalorder %s35, 0
    %p181 = por %p179, %p180
    %p182 = scmp.ne.s32.totalorder %s168, %s169
    %p183 = scmp.eq.s32.totalorder %s36, 1
    %p184 = por %p182, %p183
    %p186 = scmp.ne.s32.totalorder %s169, %s185
    %p187 = scmp.eq.s32.totalorder %s36, 0
    %p188 = por %p186, %p187
    %s189 = ssub.s32 %s30, %s37
    %p190 = scmp.eq.s32.totalorder %s189, 0
    %s192 = sadd.s32 %s191, 1
    %s193 = scalar_select %p190, %s191, %s192
    %p196 = pneg %p190
    %p197 = scmp.eq.s32.totalorder %s30, 1
    %p198 = por %p196, %p197
    %p199 = scmp.ne.s32.totalorder %s191, %s194
    %p200 = scmp.eq.s32.totalorder %s30, 0
    %p201 = por %p199, %p200
    %p202 = scmp.ne.s32.totalorder %s191, %s194
    %p203 = scmp.eq.s32.totalorder %s35, 1
    %p204 = por %p202, %p203
    %p205 = scmp.ne.s32.totalorder %s194, %s195
    %p206 = scmp.eq.s32.totalorder %s35, 0
    %p207 = por %p205, %p206
    %p208 = scmp.ne.s32.totalorder %s194, %s195
    %p209 = scmp.eq.s32.totalorder %s36, 1
    %p210 = por %p208, %p209
    %p212 = scmp.ne.s32.totalorder %s195, %s211
    %p213 = scmp.eq.s32.totalorder %s36, 0
    %p214 = por %p212, %p213
    %s215 = ssub.s32 %s30, %s37
    %p216 = scmp.eq.s32.totalorder %s215, 0
    %s218 = sadd.s32 %s217, 1
    %s219 = scalar_select %p216, %s217, %s218
    %p222 = pneg %p216
    %p223 = scmp.eq.s32.totalorder %s30, 1
    %p224 = por %p222, %p223
    %p225 = scmp.ne.s32.totalorder %s217, %s220
    %p226 = scmp.eq.s32.totalorder %s30, 0
    %p227 = por %p225, %p226
    %p228 = scmp.ne.s32.totalorder %s217, %s220
    %p229 = scmp.eq.s32.totalorder %s35, 1
    %p230 = por %p228, %p229
    %p231 = scmp.ne.s32.totalorder %s220, %s221
    %p232 = scmp.eq.s32.totalorder %s35, 0
    %p233 = por %p231, %p232
    %p234 = scmp.ne.s32.totalorder %s220, %s221
    %p235 = scmp.eq.s32.totalorder %s36, 1
    %p236 = por %p234, %p235
    %p238 = scmp.ne.s32.totalorder %s221, %s237
    %p239 = scmp.eq.s32.totalorder %s36, 0
    %p240 = por %p238, %p239
    %s241 = ssub.s32 %s30, %s37
    %p242 = scmp.eq.s32.totalorder %s241, 0
    %s244 = sadd.s32 %s243, 1
    %s245 = scalar_select %p242, %s243, %s244
    %p248 = pneg %p242
    %p249 = scmp.eq.s32.totalorder %s30, 1
    %p250 = por %p248, %p249
    %p251 = scmp.ne.s32.totalorder %s243, %s246
    %p252 = scmp.eq.s32.totalorder %s30, 0
    %p253 = por %p251, %p252
    %p254 = scmp.ne.s32.totalorder %s243, %s246
    %p255 = scmp.eq.s32.totalorder %s35, 1
    %p256 = por %p254, %p255
    %p257 = scmp.ne.s32.totalorder %s246, %s247
    %p258 = scmp.eq.s32.totalorder %s35, 0
    %p259 = por %p257, %p258
    %p260 = scmp.ne.s32.totalorder %s246, %s247
    %p261 = scmp.eq.s32.totalorder %s36, 1
    %p262 = por %p260, %p261
    %p264 = scmp.ne.s32.totalorder %s247, %s263
    %p265 = scmp.eq.s32.totalorder %s36, 0
    %p266 = por %p264, %p265
    %s267 = ssub.s32 %s30, %s37
    %p268 = scmp.eq.s32.totalorder %s267, 0
    %s270 = sadd.s32 %s269, 1
    %s271 = scalar_select %p268, %s269, %s270
    %p274 = pneg %p268
    %p275 = scmp.eq.s32.totalorder %s30, 1
    %p276 = por %p274, %p275
    %p277 = scmp.ne.s32.totalorder %s269, %s272
    %p278 = scmp.eq.s32.totalorder %s30, 0
    %p279 = por %p277, %p278
    %p280 = scmp.ne.s32.totalorder %s269, %s272
    %p281 = scmp.eq.s32.totalorder %s35, 1
    %p282 = por %p280, %p281
    %p283 = scmp.ne.s32.totalorder %s272, %s273
    %p284 = scmp.eq.s32.totalorder %s35, 0
    %p285 = por %p283, %p284
    %p286 = scmp.ne.s32.totalorder %s272, %s273
    %p287 = scmp.eq.s32.totalorder %s36, 1
    %p288 = por %p286, %p287
    %p290 = scmp.ne.s32.totalorder %s273, %s289
    %p291 = scmp.eq.s32.totalorder %s36, 0
    %p292 = por %p290, %p291
    %s293 = ssub.s32 %s30, %s37
    %p294 = scmp.eq.s32.totalorder %s293, 0
    %s296 = sadd.s32 %s295, 1
    %s297 = scalar_select %p294, %s295, %s296
    %p300 = pneg %p294
    %p301 = scmp.eq.s32.totalorder %s30, 1
    %p302 = por %p300, %p301
    %p303 = scmp.ne.s32.totalorder %s295, %s298
    %p304 = scmp.eq.s32.totalorder %s30, 0
    %p305 = por %p303, %p304
    %p306 = scmp.ne.s32.totalorder %s295, %s298
    %p307 = scmp.eq.s32.totalorder %s35, 1
    %p308 = por %p306, %p307
    %p309 = scmp.ne.s32.totalorder %s298, %s299
    %p310 = scmp.eq.s32.totalorder %s35, 0
    %p311 = por %p309, %p310
    %p312 = scmp.ne.s32.totalorder %s298, %s299
    %p313 = scmp.eq.s32.totalorder %s36, 1
    %p314 = por %p312, %p313
    %p316 = scmp.ne.s32.totalorder %s299, %s315
    %p317 = scmp.eq.s32.totalorder %s36, 0
    %p318 = por %p316, %p317
    %s319 = ssub.s32 %s30, %s37
    %p320 = scmp.eq.s32.totalorder %s319, 0
    %s322 = sadd.s32 %s321, 1
    %s323 = scalar_select %p320, %s321, %s322
    %p326 = pneg %p320
    %p327 = scmp.eq.s32.totalorder %s30, 1
    %p328 = por %p326, %p327
    %p329 = scmp.ne.s32.totalorder %s321, %s324
    %p330 = scmp.eq.s32.totalorder %s30, 0
    %p331 = por %p329, %p330
    %p332 = scmp.ne.s32.totalorder %s321, %s324
    %p333 = scmp.eq.s32.totalorder %s35, 1
    %p334 = por %p332, %p333
    %p335 = scmp.ne.s32.totalorder %s324, %s325
    %p336 = scmp.eq.s32.totalorder %s35, 0
    %p337 = por %p335, %p336
    %p338 = scmp.ne.s32.totalorder %s324, %s325
    %p339 = scmp.eq.s32.totalorder %s36, 1
    %p340 = por %p338, %p339
    %p342 = scmp.ne.s32.totalorder %s325, %s341
    %p343 = scmp.eq.s32.totalorder %s36, 0
    %p344 = por %p342, %p343
    %s345 = ssub.s32 %s30, %s37
    %p346 = scmp.eq.s32.totalorder %s345, 0
    %s348 = sadd.s32 %s347, 1
    %s349 = scalar_select %p346, %s347, %s348
    %p352 = pneg %p346
    %p353 = scmp.eq.s32.totalorder %s30, 1
    %p354 = por %p352, %p353
    %p355 = scmp.ne.s32.totalorder %s347, %s350
    %p356 = scmp.eq.s32.totalorder %s30, 0
    %p357 = por %p355, %p356
    %p358 = scmp.ne.s32.totalorder %s347, %s350
    %p359 = scmp.eq.s32.totalorder %s35, 1
    %p360 = por %p358, %p359
    %p361 = scmp.ne.s32.totalorder %s350, %s351
    %p362 = scmp.eq.s32.totalorder %s35, 0
    %p363 = por %p361, %p362
    %p364 = scmp.ne.s32.totalorder %s350, %s351
    %p365 = scmp.eq.s32.totalorder %s36, 1
    %p366 = por %p364, %p365
    %p368 = scmp.ne.s32.totalorder %s351, %s367
    %p369 = scmp.eq.s32.totalorder %s36, 0
    %p370 = por %p368, %p369
    %s371 = ssub.s32 %s30, %s37
    %p372 = scmp.eq.s32.totalorder %s371, 0
    %s374 = sadd.s32 %s373, 1
    %s375 = scalar_select %p372, %s373, %s374
    %p378 = pneg %p372
    %p379 = scmp.eq.s32.totalorder %s30, 1
    %p380 = por %p378, %p379
    %p381 = scmp.ne.s32.totalorder %s373, %s376
    %p382 = scmp.eq.s32.totalorder %s30, 0
    %p383 = por %p381, %p382
    %p384 = scmp.ne.s32.totalorder %s373, %s376
    %p385 = scmp.eq.s32.totalorder %s35, 1
    %p386 = por %p384, %p385
    %p387 = scmp.ne.s32.totalorder %s376, %s377
    %p388 = scmp.eq.s32.totalorder %s35, 0
    %p389 = por %p387, %p388
    %p390 = scmp.ne.s32.totalorder %s376, %s377
    %p391 = scmp.eq.s32.totalorder %s36, 1
    %p392 = por %p390, %p391
    %p394 = scmp.ne.s32.totalorder %s377, %s393
    %p395 = scmp.eq.s32.totalorder %s36, 0
    %p396 = por %p394, %p395
    %s397 = ssub.s32 %s30, %s37
    %p398 = scmp.eq.s32.totalorder %s397, 0
    %s400 = sadd.s32 %s399, 1
    %s401 = scalar_select %p398, %s399, %s400
    %p404 = pneg %p398
    %p405 = scmp.eq.s32.totalorder %s30, 1
    %p406 = por %p404, %p405
    %p407 = scmp.ne.s32.totalorder %s399, %s402
    %p408 = scmp.eq.s32.totalorder %s30, 0
    %p409 = por %p407, %p408
    %p410 = scmp.ne.s32.totalorder %s399, %s402
    %p411 = scmp.eq.s32.totalorder %s35, 1
    %p412 = por %p410, %p411
    %p413 = scmp.ne.s32.totalorder %s402, %s403
    %p414 = scmp.eq.s32.totalorder %s35, 0
    %p415 = por %p413, %p414
    %p416 = scmp.ne.s32.totalorder %s402, %s403
    %p417 = scmp.eq.s32.totalorder %s36, 1
    %p418 = por %p416, %p417
    %p420 = scmp.ne.s32.totalorder %s403, %s419
    %p421 = scmp.eq.s32.totalorder %s36, 0
    %p422 = por %p420, %p421
    %s423 = ssub.s32 %s30, %s37
    %p424 = scmp.eq.s32.totalorder %s423, 0
    %s426 = sadd.s32 %s425, 1
    %s427 = scalar_select %p424, %s425, %s426
    %p430 = pneg %p424
    %p431 = scmp.eq.s32.totalorder %s30, 1
    %p432 = por %p430, %p431
    %p433 = scmp.ne.s32.totalorder %s425, %s428
    %p434 = scmp.eq.s32.totalorder %s30, 0
    %p435 = por %p433, %p434
    %p436 = scmp.ne.s32.totalorder %s425, %s428
    %p437 = scmp.eq.s32.totalorder %s35, 1
    %p438 = por %p436, %p437
    %p439 = scmp.ne.s32.totalorder %s428, %s429
    %p440 = scmp.eq.s32.totalorder %s35, 0
    %p441 = por %p439, %p440
    %p442 = scmp.ne.s32.totalorder %s428, %s429
    %p443 = scmp.eq.s32.totalorder %s36, 1
    %p444 = por %p442, %p443
    %p446 = scmp.ne.s32.totalorder %s429, %s445
    %p447 = scmp.eq.s32.totalorder %s36, 0
    %p448 = por %p446, %p447
    %s450 = sadd.s32 %s449, 1
    %p453 = scmp.eq.s32.totalorder %s30, 1
    %p454 = scmp.ne.s32.totalorder %s449, %s451
    %p455 = scmp.eq.s32.totalorder %s30, 0
    %p456 = por %p454, %p455
    %p457 = scmp.ne.s32.totalorder %s449, %s451
    %p458 = scmp.eq.s32.totalorder %s35, 1
    %p459 = por %p457, %p458
    %p460 = scmp.ne.s32.totalorder %s451, %s452
    %p461 = scmp.eq.s32.totalorder %s35, 0
    %p462 = por %p460, %p461
    %p463 = scmp.ne.s32.totalorder %s451, %s452
    %p464 = scmp.eq.s32.totalorder %s36, 1
    %p465 = por %p463, %p464
    %p467 = scmp.ne.s32.totalorder %s452, %s466
    %p468 = scmp.eq.s32.totalorder %s36, 0
    %p469 = por %p467, %p468
    %s471 = sadd.s32 %s470, 1
    %p474 = scmp.eq.s32.totalorder %s30, 1
    %p475 = scmp.ne.s32.totalorder %s470, %s472
    %p476 = scmp.eq.s32.totalorder %s30, 0
    %p477 = por %p475, %p476
    %p478 = scmp.ne.s32.totalorder %s470, %s472
    %p479 = scmp.eq.s32.totalorder %s35, 1
    %p480 = por %p478, %p479
    %p481 = scmp.ne.s32.totalorder %s472, %s473
    %p482 = scmp.eq.s32.totalorder %s35, 0
    %p483 = por %p481, %p482
    %p484 = scmp.ne.s32.totalorder %s472, %s473
    %p485 = scmp.eq.s32.totalorder %s36, 1
    %p486 = por %p484, %p485
    %p488 = scmp.ne.s32.totalorder %s473, %s487
    %p489 = scmp.eq.s32.totalorder %s36, 0
    %p490 = por %p488, %p489
    %s492 = sadd.s32 %s491, 1
    %p495 = scmp.eq.s32.totalorder %s30, 1
    %p496 = scmp.ne.s32.totalorder %s491, %s493
    %p497 = scmp.eq.s32.totalorder %s30, 0
    %p498 = por %p496, %p497
    %p499 = scmp.ne.s32.totalorder %s491, %s493
    %p500 = scmp.eq.s32.totalorder %s35, 1
    %p501 = por %p499, %p500
    %p502 = scmp.ne.s32.totalorder %s493, %s494
    %p503 = scmp.eq.s32.totalorder %s35, 0
    %p504 = por %p502, %p503
    %p505 = scmp.ne.s32.totalorder %s493, %s494
    %p506 = scmp.eq.s32.totalorder %s36, 1
    %p507 = por %p505, %p506
    %p509 = scmp.ne.s32.totalorder %s494, %s508
    %p510 = scmp.eq.s32.totalorder %s36, 0
    %p511 = por %p509, %p510
    %s513 = sadd.s32 %s512, 1
    %p516 = scmp.eq.s32.totalorder %s30, 1
    %p517 = scmp.ne.s32.totalorder %s512, %s514
    %p518 = scmp.eq.s32.totalorder %s30, 0
    %p519 = por %p517, %p518
    %p520 = scmp.ne.s32.totalorder %s512, %s514
    %p521 = scmp.eq.s32.totalorder %s35, 1
    %p522 = por %p520, %p521
    %p523 = scmp.ne.s32.totalorder %s514, %s515
    %p524 = scmp.eq.s32.totalorder %s35, 0
    %p525 = por %p523, %p524
    %p526 = scmp.ne.s32.totalorder %s514, %s515
    %p527 = scmp.eq.s32.totalorder %s36, 1
    %p528 = por %p526, %p527
    %p530 = scmp.ne.s32.totalorder %s515, %s529
    %p531 = scmp.eq.s32.totalorder %s36, 0
    %p532 = por %p530, %p531
    %s534 = sadd.s32 %s533, 1
    %p537 = scmp.eq.s32.totalorder %s30, 1
    %p538 = scmp.ne.s32.totalorder %s533, %s535
    %p539 = scmp.eq.s32.totalorder %s30, 0
    %p540 = por %p538, %p539
    %p541 = scmp.ne.s32.totalorder %s533, %s535
    %p542 = scmp.eq.s32.totalorder %s35, 1
    %p543 = por %p541, %p542
    %p544 = scmp.ne.s32.totalorder %s535, %s536
    %p545 = scmp.eq.s32.totalorder %s35, 0
    %p546 = por %p544, %p545
    %p547 = scmp.ne.s32.totalorder %s535, %s536
    %p548 = scmp.eq.s32.totalorder %s36, 1
    %p549 = por %p547, %p548
    %p551 = scmp.ne.s32.totalorder %s536, %s550
    %p552 = scmp.eq.s32.totalorder %s36, 0
    %p553 = por %p551, %p552
    %s555 = sadd.s32 %s554, 1
    %p558 = scmp.eq.s32.totalorder %s30, 1
    %p559 = scmp.ne.s32.totalorder %s554, %s556
    %p560 = scmp.eq.s32.totalorder %s30, 0
    %p561 = por %p559, %p560
    %p562 = scmp.ne.s32.totalorder %s554, %s556
    %p563 = scmp.eq.s32.totalorder %s35, 1
    %p564 = por %p562, %p563
    %p565 = scmp.ne.s32.totalorder %s556, %s557
    %p566 = scmp.eq.s32.totalorder %s35, 0
    %p567 = por %p565, %p566
    %p568 = scmp.ne.s32.totalorder %s556, %s557
    %p569 = scmp.eq.s32.totalorder %s36, 1
    %p570 = por %p568, %p569
    %p572 = scmp.ne.s32.totalorder %s557, %s571
    %p573 = scmp.eq.s32.totalorder %s36, 0
    %p574 = por %p572, %p573
    %s576 = sadd.s32 %s575, 1
    %p579 = scmp.eq.s32.totalorder %s30, 1
    %p580 = scmp.ne.s32.totalorder %s575, %s577
    %p581 = scmp.eq.s32.totalorder %s30, 0
    %p582 = por %p580, %p581
    %p583 = scmp.ne.s32.totalorder %s575, %s577
    %p584 = scmp.eq.s32.totalorder %s35, 1
    %p585 = por %p583, %p584
    %p586 = scmp.ne.s32.totalorder %s577, %s578
    %p587 = scmp.eq.s32.totalorder %s35, 0
    %p588 = por %p586, %p587
    %p589 = scmp.ne.s32.totalorder %s577, %s578
    %p590 = scmp.eq.s32.totalorder %s36, 1
    %p591 = por %p589, %p590
    %p593 = scmp.ne.s32.totalorder %s578, %s592
    %p594 = scmp.eq.s32.totalorder %s36, 0
    %p595 = por %p593, %p594
    %p596 = scmp.le.s32.totalorder 1, %s30
    %p597 = scmp.lt.s32.totalorder %s30, 3
    %p598 = pnand %p596, %p597
    %p599 = pneg %p598
    // Predicated region
    $region9: #{double_encoder_transformer.1} parent=5 // pred_check
      _
    $region10: #{double_encoder_transformer.1} parent=5 // pred_check_branch
      %601 = sbr.rel (%p598) target = $region12
    $region11: #{double_encoder_transformer.1} parent=5 // pred_region
      %s602 = ssub.s32 %s30, 1
      // Predicated region
      $region13: #{double_encoder_transformer.1} parent=11 // pred_check
        %p603 = pneg %p77
      $region14: #{double_encoder_transformer.1} parent=11 // pred_check_branch
        %605 = sbr.rel (%p603) target = $region16
      $region15: #{double_encoder_transformer.1} parent=11 // pred_region
        _
      $region16: #{double_encoder_transformer.1} parent=11 // pred_fallthru
        _
      // Predicated region
      $region17: #{double_encoder_transformer.1} parent=11 // pred_check
        %p606 = pneg %p462
      $region18: #{double_encoder_transformer.1} parent=11 // pred_check_branch
        %608 = sbr.rel (%p606) target = $region20
      $region19: #{double_encoder_transformer.1} parent=11 // pred_region
        _
      $region20: #{double_encoder_transformer.1} parent=11 // pred_fallthru
        _
      // Predicated region
      $region21: #{double_encoder_transformer.1} parent=11 // pred_check
        %p609 = pneg %p483
      $region22: #{double_encoder_transformer.1} parent=11 // pred_check_branch
        %611 = sbr.rel (%p609) target = $region24
      $region23: #{double_encoder_transformer.1} parent=11 // pred_region
        _
      $region24: #{double_encoder_transformer.1} parent=11 // pred_fallthru
        _
      // Predicated region
      $region25: #{double_encoder_transformer.1} parent=11 // pred_check
        %p612 = pneg %p504
      $region26: #{double_encoder_transformer.1} parent=11 // pred_check_branch
        %614 = sbr.rel (%p612) target = $region28
      $region27: #{double_encoder_transformer.1} parent=11 // pred_region
        _
      $region28: #{double_encoder_transformer.1} parent=11 // pred_fallthru
        _
      // Predicated region
      $region29: #{double_encoder_transformer.1} parent=11 // pred_check
        %p615 = pneg %p525
      $region30: #{double_encoder_transformer.1} parent=11 // pred_check_branch
        %617 = sbr.rel (%p615) target = $region32
      $region31: #{double_encoder_transformer.1} parent=11 // pred_region
        _
      $region32: #{double_encoder_transformer.1} parent=11 // pred_fallthru
        _
      // Predicated region
      $region33: #{double_encoder_transformer.1} parent=11 // pred_check
        %p618 = pneg %p546
      $region34: #{double_encoder_transformer.1} parent=11 // pred_check_branch
        %620 = sbr.rel (%p618) target = $region36
      $region35: #{double_encoder_transformer.1} parent=11 // pred_region
        _
      $region36: #{double_encoder_transformer.1} parent=11 // pred_fallthru
        _
      // Predicated region
      $region37: #{double_encoder_transformer.1} parent=11 // pred_check
        %p621 = pneg %p567
      $region38: #{double_encoder_transformer.1} parent=11 // pred_check_branch
        %623 = sbr.rel (%p621) target = $region40
      $region39: #{double_encoder_transformer.1} parent=11 // pred_region
        _
      $region40: #{double_encoder_transformer.1} parent=11 // pred_fallthru
        _
    $region12: #{double_encoder_transformer.1} parent=5 // pred_fallthru
      _
    %p624 = scmp.lt.s32.totalorder %s30, 2
    // Predicated region
    $region41: #{double_encoder_transformer.1} parent=5 // pred_check
      %p625 = pneg %p624
    $region42: #{double_encoder_transformer.1} parent=5 // pred_check_branch
      %627 = sbr.rel (%p625) target = $region44
    $region43: #{double_encoder_transformer.1} parent=5 // pred_region
      // Predicated region
      $region45: #{double_encoder_transformer.1} parent=43 // pred_check
        %p628 = pneg %p50
      $region46: #{double_encoder_transformer.1} parent=43 // pred_check_branch
        %630 = sbr.rel (%p628) target = $region48
      $region47: #{double_encoder_transformer.1} parent=43 // pred_region
        %p631 = scmp.lt.s32.totalorder %s30, 1
        %s632 = scalar_select %p631, %s30, 1
        %s633 = smul.addr %s632, 2
        %s634 = smul.addr %s633, 8
        %s635 = scalar_lea.vmem %s0, %s634
      $region48: #{double_encoder_transformer.1} parent=43 // pred_fallthru
        _
      // Predicated region
      $region49: #{double_encoder_transformer.1} parent=43 // pred_check
        %p636 = pneg %p97
      $region50: #{double_encoder_transformer.1} parent=43 // pred_check_branch
        %638 = sbr.rel (%p636) target = $region52
      $region51: #{double_encoder_transformer.1} parent=43 // pred_region
        %p639 = scmp.lt.s32.totalorder %s30, 1
        %s640 = scalar_select %p639, %s30, 1
        %s641 = smul.addr %s640, 8
        %s642 = scalar_lea.vmem %s2, %s641
      $region52: #{double_encoder_transformer.1} parent=43 // pred_fallthru
        _
      // Predicated region
      $region53: #{double_encoder_transformer.1} parent=43 // pred_check
        %p643 = pneg %p123
      $region54: #{double_encoder_transformer.1} parent=43 // pred_check_branch
        %645 = sbr.rel (%p643) target = $region56
      $region55: #{double_encoder_transformer.1} parent=43 // pred_region
        %p646 = scmp.lt.s32.totalorder %s30, 1
        %s647 = scalar_select %p646, %s30, 1
        %s648 = scalar_lea.vmem %s3, %s647
      $region56: #{double_encoder_transformer.1} parent=43 // pred_fallthru
        _
      // Predicated region
      $region57: #{double_encoder_transformer.1} parent=43 // pred_check
        %p649 = pneg %p149
      $region58: #{double_encoder_transformer.1} parent=43 // pred_check_branch
        %651 = sbr.rel (%p649) target = $region60
      $region59: #{double_encoder_transformer.1} parent=43 // pred_region
        %p652 = scmp.lt.s32.totalorder %s30, 1
        %s653 = scalar_select %p652, %s30, 1
        %s654 = smul.addr %s653, 4
        %s655 = smul.addr %s654, 4
        %s656 = scalar_lea.vmem %s4, %s655
      $region60: #{double_encoder_transformer.1} parent=43 // pred_fallthru
        _
      // Predicated region
      $region61: #{double_encoder_transformer.1} parent=43 // pred_check
        %p657 = pneg %p175
      $region62: #{double_encoder_transformer.1} parent=43 // pred_check_branch
        %659 = sbr.rel (%p657) target = $region64
      $region63: #{double_encoder_transformer.1} parent=43 // pred_region
        %p660 = scmp.lt.s32.totalorder %s30, 1
        %s661 = scalar_select %p660, %s30, 1
        %s662 = scalar_lea.vmem %s5, %s661
      $region64: #{double_encoder_transformer.1} parent=43 // pred_fallthru
        _
      // Predicated region
      $region65: #{double_encoder_transformer.1} parent=43 // pred_check
        %p663 = pneg %p201
      $region66: #{double_encoder_transformer.1} parent=43 // pred_check_branch
        %665 = sbr.rel (%p663) target = $region68
      $region67: #{double_encoder_transformer.1} parent=43 // pred_region
        %p666 = scmp.lt.s32.totalorder %s30, 1
        %s667 = scalar_select %p666, %s30, 1
        %s668 = smul.addr %s667, 4
        %s669 = smul.addr %s668, 8
        %s670 = scalar_lea.vmem %s6, %s669
      $region68: #{double_encoder_transformer.1} parent=43 // pred_fallthru
        _
      // Predicated region
      $region69: #{double_encoder_transformer.1} parent=43 // pred_check
        %p671 = pneg %p227
      $region70: #{double_encoder_transformer.1} parent=43 // pred_check_branch
        %673 = sbr.rel (%p671) target = $region72
      $region71: #{double_encoder_transformer.1} parent=43 // pred_region
        %p674 = scmp.lt.s32.totalorder %s30, 1
        %s675 = scalar_select %p674, %s30, 1
        %s676 = scalar_lea.vmem %s7, %s675
      $region72: #{double_encoder_transformer.1} parent=43 // pred_fallthru
        _
      // Predicated region
      $region73: #{double_encoder_transformer.1} parent=43 // pred_check
        %p677 = pneg %p253
      $region74: #{double_encoder_transformer.1} parent=43 // pred_check_branch
        %679 = sbr.rel (%p677) target = $region76
      $region75: #{double_encoder_transformer.1} parent=43 // pred_region
        %p680 = scmp.lt.s32.totalorder %s30, 1
        %s681 = scalar_select %p680, %s30, 1
        %s682 = scalar_lea.vmem %s8, %s681
      $region76: #{double_encoder_transformer.1} parent=43 // pred_fallthru
        _
      // Predicated region
      $region77: #{double_encoder_transformer.1} parent=43 // pred_check
        %p683 = pneg %p279
      $region78: #{double_encoder_transformer.1} parent=43 // pred_check_branch
        %685 = sbr.rel (%p683) target = $region80
      $region79: #{double_encoder_transformer.1} parent=43 // pred_region
        %p686 = scmp.lt.s32.totalorder %s30, 1
        %s687 = scalar_select %p686, %s30, 1
        %s688 = scalar_lea.vmem %s9, %s687
      $region80: #{double_encoder_transformer.1} parent=43 // pred_fallthru
        _
      // Predicated region
      $region81: #{double_encoder_transformer.1} parent=43 // pred_check
        %p689 = pneg %p305
      $region82: #{double_encoder_transformer.1} parent=43 // pred_check_branch
        %691 = sbr.rel (%p689) target = $region84
      $region83: #{double_encoder_transformer.1} parent=43 // pred_region
        %p692 = scmp.lt.s32.totalorder %s30, 1
        %s693 = scalar_select %p692, %s30, 1
        %s694 = smul.addr %s693, 64
        %s695 = smul.addr %s694, 4
        %s696 = scalar_lea.vmem %s10, %s695
      $region84: #{double_encoder_transformer.1} parent=43 // pred_fallthru
        _
      // Predicated region
      $region85: #{double_encoder_transformer.1} parent=43 // pred_check
        %p697 = pneg %p331
      $region86: #{double_encoder_transformer.1} parent=43 // pred_check_branch
        %699 = sbr.rel (%p697) target = $region88
      $region87: #{double_encoder_transformer.1} parent=43 // pred_region
        %p700 = scmp.lt.s32.totalorder %s30, 1
        %s701 = scalar_select %p700, %s30, 1
        %s702 = smul.addr %s701, 16
        %s703 = scalar_lea.vmem %s11, %s702
      $region88: #{double_encoder_transformer.1} parent=43 // pred_fallthru
        _
      // Predicated region
      $region89: #{double_encoder_transformer.1} parent=43 // pred_check
        %p704 = pneg %p357
      $region90: #{double_encoder_transformer.1} parent=43 // pred_check_branch
        %706 = sbr.rel (%p704) target = $region92
      $region91: #{double_encoder_transformer.1} parent=43 // pred_region
        %p707 = scmp.lt.s32.totalorder %s30, 1
        %s708 = scalar_select %p707, %s30, 1
        %s709 = smul.addr %s708, 256
        %s710 = smul.addr %s709, 4
        %s711 = scalar_lea.vmem %s12, %s710
      $region92: #{double_encoder_transformer.1} parent=43 // pred_fallthru
        _
      // Predicated region
      $region93: #{double_encoder_transformer.1} parent=43 // pred_check
        %p712 = pneg %p383
      $region94: #{double_encoder_transformer.1} parent=43 // pred_check_branch
        %714 = sbr.rel (%p712) target = $region96
      $region95: #{double_encoder_transformer.1} parent=43 // pred_region
        %p715 = scmp.lt.s32.totalorder %s30, 1
        %s716 = scalar_select %p715, %s30, 1
        %s717 = scalar_lea.vmem %s13, %s716
      $region96: #{double_encoder_transformer.1} parent=43 // pred_fallthru
        _
      // Predicated region
      $region97: #{double_encoder_transformer.1} parent=43 // pred_check
        %p718 = pneg %p409
      $region98: #{double_encoder_transformer.1} parent=43 // pred_check_branch
        %720 = sbr.rel (%p718) target = $region100
      $region99: #{double_encoder_transformer.1} parent=43 // pred_region
        %p721 = scmp.lt.s32.totalorder %s30, 1
        %s722 = scalar_select %p721, %s30, 1
        %s723 = scalar_lea.vmem %s14, %s722
      $region100: #{double_encoder_transformer.1} parent=43 // pred_fallthru
        _
      // Predicated region
      $region101: #{double_encoder_transformer.1} parent=43 // pred_check
        %p724 = pneg %p435
      $region102: #{double_encoder_transformer.1} parent=43 // pred_check_branch
        %726 = sbr.rel (%p724) target = $region104
      $region103: #{double_encoder_transformer.1} parent=43 // pred_region
        %p727 = scmp.lt.s32.totalorder %s30, 1
        %s728 = scalar_select %p727, %s30, 1
        %s729 = scalar_lea.vmem %s15, %s728
      $region104: #{double_encoder_transformer.1} parent=43 // pred_fallthru
        _
    $region44: #{double_encoder_transformer.1} parent=5 // pred_fallthru
      _
    %p730 = scmp.le.s32.totalorder 1, %s30
    %p731 = scmp.lt.s32.totalorder %s30, 3
    %p732 = pnand %p730, %p731
    %p733 = pneg %p732
    // Predicated region
    $region105: #{double_encoder_transformer.1} parent=5 // pred_check
      _
    $region106: #{double_encoder_transformer.1} parent=5 // pred_check_branch
      %735 = sbr.rel (%p732) target = $region108
    $region107: #{double_encoder_transformer.1} parent=5 // pred_region
      %s736 = ssub.s32 %s30, 1
      %p737 = scmp.lt.s32.totalorder %s35, 1
      %s738 = scalar_select %p737, %s35, 1
      %s739 = smul.addr %s738, 2
      %s740 = smul.addr %s739, 8
      %s741 = scalar_lea.vmem %s0, %s740
      %p742 = pneg %p56
      %p743 = pneg %p53
      %p744 = pneg %p77
      %p745 = pneg %p74
      %p746 = scmp.lt.s32.totalorder %s35, 1
      %s747 = scalar_select %p746, %s35, 1
      %s748 = smul.addr %s747, 8
      %s749 = scalar_lea.vmem %s2, %s748
      %p750 = pneg %p103
      %p751 = pneg %p100
      %p752 = scmp.lt.s32.totalorder %s35, 1
      %s753 = scalar_select %p752, %s35, 1
      %s754 = scalar_lea.vmem %s3, %s753
      %p755 = pneg %p129
      %p756 = pneg %p126
      %p757 = scmp.lt.s32.totalorder %s35, 1
      %s758 = scalar_select %p757, %s35, 1
      %s759 = smul.addr %s758, 4
      %s760 = smul.addr %s759, 4
      %s761 = scalar_lea.vmem %s4, %s760
      %p762 = pneg %p155
      %p763 = pneg %p152
      %p764 = scmp.lt.s32.totalorder %s35, 1
      %s765 = scalar_select %p764, %s35, 1
      %s766 = scalar_lea.vmem %s5, %s765
      %p767 = pneg %p181
      %p768 = pneg %p178
      %p769 = scmp.lt.s32.totalorder %s35, 1
      %s770 = scalar_select %p769, %s35, 1
      %s771 = smul.addr %s770, 4
      %s772 = smul.addr %s771, 8
      %s773 = scalar_lea.vmem %s6, %s772
      %p774 = pneg %p207
      %p775 = pneg %p204
      %p776 = scmp.lt.s32.totalorder %s35, 1
      %s777 = scalar_select %p776, %s35, 1
      %s778 = scalar_lea.vmem %s7, %s777
      %p779 = pneg %p233
      %p780 = pneg %p230
      %p781 = scmp.lt.s32.totalorder %s35, 1
      %s782 = scalar_select %p781, %s35, 1
      %s783 = scalar_lea.vmem %s8, %s782
      %p784 = pneg %p259
      %p785 = pneg %p256
      %p786 = scmp.lt.s32.totalorder %s35, 1
      %s787 = scalar_select %p786, %s35, 1
      %s788 = scalar_lea.vmem %s9, %s787
      %p789 = pneg %p285
      %p790 = pneg %p282
      %p791 = scmp.lt.s32.totalorder %s35, 1
      %s792 = scalar_select %p791, %s35, 1
      %s793 = smul.addr %s792, 64
      %s794 = smul.addr %s793, 4
      %s795 = scalar_lea.vmem %s10, %s794
      %p796 = pneg %p311
      %p797 = pneg %p308
      %p798 = scmp.lt.s32.totalorder %s35, 1
      %s799 = scalar_select %p798, %s35, 1
      %s800 = smul.addr %s799, 16
      %s801 = scalar_lea.vmem %s11, %s800
      %p802 = pneg %p337
      %p803 = pneg %p334
      %p804 = scmp.lt.s32.totalorder %s35, 1
      %s805 = scalar_select %p804, %s35, 1
      %s806 = smul.addr %s805, 256
      %s807 = smul.addr %s806, 4
      %s808 = scalar_lea.vmem %s12, %s807
      %p809 = pneg %p363
      %p810 = pneg %p360
      %p811 = scmp.lt.s32.totalorder %s35, 1
      %s812 = scalar_select %p811, %s35, 1
      %s813 = scalar_lea.vmem %s13, %s812
      %p814 = pneg %p389
      %p815 = pneg %p386
      %p816 = scmp.lt.s32.totalorder %s35, 1
      %s817 = scalar_select %p816, %s35, 1
      %s818 = scalar_lea.vmem %s14, %s817
      %p819 = pneg %p415
      %p820 = pneg %p412
      %p821 = scmp.lt.s32.totalorder %s35, 1
      %s822 = scalar_select %p821, %s35, 1
      %s823 = scalar_lea.vmem %s15, %s822
      %p824 = pneg %p441
      %p825 = pneg %p438
      %p826 = pneg %p462
      %p827 = pneg %p459
      %p828 = pneg %p483
      %p829 = pneg %p480
      %p830 = pneg %p504
      %p831 = pneg %p501
      %p832 = pneg %p525
      %p833 = pneg %p522
      %p834 = pneg %p546
      %p835 = pneg %p543
      %p836 = pneg %p567
      %p837 = pneg %p564
      %p838 = pneg %p588
      %p839 = pneg %p585
      %p840 = scmp.lt.s32.totalorder %s35, 1
      %s841 = scalar_select %p840, %s35, 1
      %s842 = smul.addr %s841, 2
      %s843 = smul.addr %s842, 8
      %s844 = scalar_lea.vmem %s0, %s843
      %p845 = scmp.lt.s32.totalorder %s35, 1
      %s846 = scalar_select %p845, %s35, 1
      %s847 = smul.addr %s846, 8
      %s848 = scalar_lea.vmem %s2, %s847
      %p849 = scmp.lt.s32.totalorder %s35, 1
      %s850 = scalar_select %p849, %s35, 1
      %s851 = scalar_lea.vmem %s3, %s850
      %p852 = scmp.lt.s32.totalorder %s35, 1
      %s853 = scalar_select %p852, %s35, 1
      %s854 = smul.addr %s853, 4
      %s855 = smul.addr %s854, 4
      %s856 = scalar_lea.vmem %s4, %s855
      %p857 = scmp.lt.s32.totalorder %s35, 1
      %s858 = scalar_select %p857, %s35, 1
      %s859 = scalar_lea.vmem %s5, %s858
      %p860 = scmp.lt.s32.totalorder %s35, 1
      %s861 = scalar_select %p860, %s35, 1
      %s862 = smul.addr %s861, 4
      %s863 = smul.addr %s862, 8
      %s864 = scalar_lea.vmem %s6, %s863
      %p865 = scmp.lt.s32.totalorder %s35, 1
      %s866 = scalar_select %p865, %s35, 1
      %s867 = scalar_lea.vmem %s7, %s866
      %p868 = scmp.lt.s32.totalorder %s35, 1
      %s869 = scalar_select %p868, %s35, 1
      %s870 = scalar_lea.vmem %s8, %s869
      %p871 = scmp.lt.s32.totalorder %s35, 1
      %s872 = scalar_select %p871, %s35, 1
      %s873 = scalar_lea.vmem %s9, %s872
      %p874 = scmp.lt.s32.totalorder %s35, 1
      %s875 = scalar_select %p874, %s35, 1
      %s876 = smul.addr %s875, 64
      %s877 = smul.addr %s876, 4
      %s878 = scalar_lea.vmem %s10, %s877
      %p879 = scmp.lt.s32.totalorder %s35, 1
      %s880 = scalar_select %p879, %s35, 1
      %s881 = smul.addr %s880, 16
      %s882 = scalar_lea.vmem %s11, %s881
      %p883 = scmp.lt.s32.totalorder %s35, 1
      %s884 = scalar_select %p883, %s35, 1
      %s885 = smul.addr %s884, 256
      %s886 = smul.addr %s885, 4
      %s887 = scalar_lea.vmem %s12, %s886
      %p888 = scmp.lt.s32.totalorder %s35, 1
      %s889 = scalar_select %p888, %s35, 1
      %s890 = scalar_lea.vmem %s13, %s889
      %p891 = scmp.lt.s32.totalorder %s35, 1
      %s892 = scalar_select %p891, %s35, 1
      %s893 = scalar_lea.vmem %s14, %s892
      %p894 = scmp.lt.s32.totalorder %s35, 1
      %s895 = scalar_select %p894, %s35, 1
      %s896 = scalar_lea.vmem %s15, %s895
      %v898 = vld [vmem:[%s844] sm:$0xff]
      %v899 = vld [vmem:[%s844 + $0x8] sm:$0xff]
      %v900 = vld [vmem:[%s848] sm:$0xff]
      %v901 = vld [vmem:[%s851] sm:$0x1]
      %v903 = vlaneseq
      %v904 = vshrl.u32 %v903, 7
      %v905 = vsub.s32 0, %v904
      %v906 = vrot.slane %v901, %v905
      %vm908 = vcmask 64512
      %v910 = vsel %vm908, %v898, 0
      %v913 = vsel %vm908, %v899, 0
      %915 = vmatprep.subr.mxu0 0.0
      %916 = vmatpush1.msra.mxu0 %v900
      %917 = vmatprep.subr.mxu0 0.0
      %918 = vmatpush1.msra.mxu0 0.0
      %919 = vmatprep.subr.mxu0 0.0
      %920 = vmatpush1.msra.mxu0 0.0
      %921 = vmatprep.subr.mxu0 0.0
      %922 = vmatpush1.msra.mxu0 0.0
      %923 = vmatprep.subr.mxu0 0.0
      %924 = vmatpush1.msra.mxu0 0.0
      %925 = vmatprep.subr.mxu0 0.0
      %926 = vmatpush1.msra.mxu0 0.0
      %927 = vmatprep.subr.mxu0 0.0
      %928 = vmatpush1.msra.mxu0 0.0
      %929 = vmatprep.subr.mxu0 0.0
      %930 = vmatpush1.msra.mxu0 0.0
      %931 = vmatprep.subr.mxu0 0.0
      %932 = vmatpush1.msra.mxu0 0.0
      %933 = vmatprep.subr.mxu0 0.0
      %934 = vmatpush1.msra.mxu0 0.0
      %935 = vmatprep.subr.mxu0 0.0
      %936 = vmatpush1.msra.mxu0 0.0
      %937 = vmatprep.subr.mxu0 0.0
      %938 = vmatpush1.msra.mxu0 0.0
      %939 = vmatprep.subr.mxu0 0.0
      %940 = vmatpush1.msra.mxu0 0.0
      %941 = vmatprep.subr.mxu0 0.0
      %942 = vmatpush1.msra.mxu0 0.0
      %943 = vmatprep.subr.mxu0 0.0
      %944 = vmatpush1.msra.mxu0 0.0
      %945 = vmatprep.subr.mxu0 0.0
      %946 = vmatpush1.msra.mxu0 0.0
      %947 = vmatprep.subr.mxu0 0.0
      %948 = vmatpush1.msra.mxu0 0.0
      %949 = vmatprep.subr.mxu0 0.0
      %950 = vmatpush1.msra.mxu0 0.0
      %951 = vmatprep.subr.mxu0 0.0
      %952 = vmatpush1.msra.mxu0 0.0
      %953 = vmatprep.subr.mxu0 0.0
      %954 = vmatpush1.msra.mxu0 0.0
      %955 = vmatprep.subr.mxu0 0.0
      %956 = vmatpush1.msra.mxu0 0.0
      %957 = vmatprep.subr.mxu0 0.0
      %958 = vmatpush1.msra.mxu0 0.0
      %959 = vmatprep.subr.mxu0 0.0
      %960 = vmatpush1.msra.mxu0 0.0
      %961 = vmatprep.subr.mxu0 0.0
      %962 = vmatpush1.msra.mxu0 0.0
      %963 = vmatprep.subr.mxu0 0.0
      %964 = vmatpush1.msra.mxu0 0.0
      %965 = vmatprep.subr.mxu0 0.0
      %966 = vmatpush1.msra.mxu0 0.0
      %967 = vmatprep.subr.mxu0 0.0
      %968 = vmatpush1.msra.mxu0 0.0
      %969 = vmatprep.subr.mxu0 0.0
      %970 = vmatpush1.msra.mxu0 0.0
      %971 = vmatprep.subr.mxu0 0.0
      %972 = vmatpush1.msra.mxu0 0.0
      %973 = vmatprep.subr.mxu0 0.0
      %974 = vmatpush1.msra.mxu0 0.0
      %975 = vmatprep.subr.mxu0 0.0
      %976 = vmatpush1.msra.mxu0 0.0
      %977 = vmatprep.subr.mxu0 0.0
      %978 = vmatpush1.msra.mxu0 0.0
      %979 = vmatprep.mubr.f32.mxu0 0.0
      %980 = vmatmul.mubr.f32.gmra.mrb[0].mxu0 %v910
      %v981 = vpop.f32.mrb[0].mxu0
      %v982 = vadd.f32 %v906, %v981
      %v983 = vpop.f32.mrb[0].mxu0
      %984 = vmatprep.mubr.f32.mxu0 0.0
      %985 = vmatmul.mubr.f32.gmra.mrb[0].mxu0 %v913
      %v986 = vpop.f32.mrb[0].mxu0
      %v987 = vadd.f32 %v906, %v986
      %v988 = vpop.f32.mrb[0].mxu0
      %989 = vdwg.mxu0
      %v990 = vld [vmem:[%s1] sm:$0xff]
      %v991 = vld [vmem:[%s1 + $0x8] sm:$0xff]
      %v992 = vadd.f32 %v982, %v990
      %v993 = vadd.f32 %v987, %v991
      %v994 = vpack.c.bf16 %v993, %v992
      %v995 = vld [vmem:[%s856] sm:$0xf]
      %v996 = vld [vmem:[%s856 + $0x4] sm:$0xf]
      %v997 = vld [vmem:[%s856 + $0x8] sm:$0xf]
      %v998 = vld [vmem:[%s856 + $0xc] sm:$0xf]
      %v999 = vld [vmem:[%s859] sm:$0x1]
      %v1001 = vlaneseq
      %v1002 = vshrl.u32 %v1001, 7
      %v1003 = vsub.s32 0, %v1002
      %v1004 = vrot.slane %v999, %v1003
      %v1010 = vunpack.c.l.b16 %v995
      %v1011 = vunpack.c.l.b16 %v996
      %v1012 = vunpack.c.l.b16 %v997
      %v1013 = vunpack.c.l.b16 %v998
      %v1014 = vpack.c.b16 %v1011, %v1010
      %v1015 = vpack.c.b16 %v1013, %v1012
      %vm1018 = vcmask 261120
      %v1020 = vsel %vm1018, %v994, 0
      %1022 = vmatprep.subr.bf16.mxu0 0
      %1023 = vmatpush1.bf16.msra.mxu0 %v1014
      %1024 = vmatprep.subr.bf16.mxu0 0
      %1025 = vmatpush1.bf16.msra.mxu0 %v1015
      %1026 = vmatprep.subr.bf16.mxu0 0
      %1027 = vmatpush1.bf16.msra.mxu0 0
      %1028 = vmatprep.subr.bf16.mxu0 0
      %1029 = vmatpush1.bf16.msra.mxu0 0
      %1030 = vmatprep.subr.bf16.mxu0 0
      %1031 = vmatpush1.bf16.msra.mxu0 0
      %1032 = vmatprep.subr.bf16.mxu0 0
      %1033 = vmatpush1.bf16.msra.mxu0 0
      %1034 = vmatprep.subr.bf16.mxu0 0
      %1035 = vmatpush1.bf16.msra.mxu0 0
      %1036 = vmatprep.subr.bf16.mxu0 0
      %1037 = vmatpush1.bf16.msra.mxu0 0
      %1038 = vmatprep.subr.bf16.mxu0 0
      %1039 = vmatpush1.bf16.msra.mxu0 0
      %1040 = vmatprep.subr.bf16.mxu0 0
      %1041 = vmatpush1.bf16.msra.mxu0 0
      %1042 = vmatprep.subr.bf16.mxu0 0
      %1043 = vmatpush1.bf16.msra.mxu0 0
      %1044 = vmatprep.subr.bf16.mxu0 0
      %1045 = vmatpush1.bf16.msra.mxu0 0
      %1046 = vmatprep.subr.bf16.mxu0 0
      %1047 = vmatpush1.bf16.msra.mxu0 0
      %1048 = vmatprep.subr.bf16.mxu0 0
      %1049 = vmatpush1.bf16.msra.mxu0 0
      %1050 = vmatprep.subr.bf16.mxu0 0
      %1051 = vmatpush1.bf16.msra.mxu0 0
      %1052 = vmatprep.subr.bf16.mxu0 0
      %1053 = vmatpush1.bf16.msra.mxu0 0
      %1054 = vmatprep.mubr.bf16.mxu0 0
      %1055 = vmatmul.mubr.bf16.gmra.mrb[0].mxu0 %v1020
      %v1056 = vpop.f32.mrb[0].mxu0
      %v1057 = vadd.f32 %v1004, %v1056
      %v1058 = vpop.f32.mrb[0].mxu0
      %v1059 = vpop.f32.mrb[0].mxu0
      %v1060 = vadd.f32 %v1004, %v1059
      %v1061 = vpop.f32.mrb[0].mxu0
      %1062 = vdwg.mxu0
      %v1063 = vld [vmem:[%s864] sm:$0xff]
      %v1064 = vld [vmem:[%s864 + $0x8] sm:$0xff]
      %v1065 = vld [vmem:[%s864 + $0x10] sm:$0xff]
      %v1066 = vld [vmem:[%s864 + $0x18] sm:$0xff]
      %1068 = vrot.lane.b32.xlu0 %v1057, 96
      %v1069 = vpop.permute.xlu0 %1068
      %v1070 = vsel %vm908, %v1057, 0
      %v1072 = vsel %vm908, %v1069, 0
      %1074 = vmatprep.subr.mxu0 0.0
      %1075 = vmatpush1.xpose.msra.mxu0 %v1072
      %1076 = vmatprep.subr.mxu0 0.0
      %1077 = vmatpush1.xpose.msra.mxu0 0.0
      %1078 = vmatprep.subr.mxu0 0.0
      %1079 = vmatpush1.xpose.msra.mxu0 0.0
      %1080 = vmatprep.subr.mxu0 0.0
      %1081 = vmatpush1.xpose.msra.mxu0 0.0
      %1082 = vmatprep.subr.mxu0 0.0
      %1083 = vmatpush1.xpose.msra.mxu0 0.0
      %1084 = vmatprep.subr.mxu0 0.0
      %1085 = vmatpush1.xpose.msra.mxu0 0.0
      %1086 = vmatprep.subr.mxu0 0.0
      %1087 = vmatpush1.xpose.msra.mxu0 0.0
      %1088 = vmatprep.subr.mxu0 0.0
      %1089 = vmatpush1.xpose.msra.mxu0 0.0
      %1090 = vmatprep.subr.mxu0 0.0
      %1091 = vmatpush1.xpose.msra.mxu0 0.0
      %1092 = vmatprep.subr.mxu0 0.0
      %1093 = vmatpush1.xpose.msra.mxu0 0.0
      %1094 = vmatprep.subr.mxu0 0.0
      %1095 = vmatpush1.xpose.msra.mxu0 0.0
      %1096 = vmatprep.subr.mxu0 0.0
      %1097 = vmatpush1.xpose.msra.mxu0 0.0
      %1098 = vmatprep.subr.mxu0 0.0
      %1099 = vmatpush1.xpose.msra.mxu0 0.0
      %1100 = vmatprep.subr.mxu0 0.0
      %1101 = vmatpush1.xpose.msra.mxu0 0.0
      %1102 = vmatprep.subr.mxu0 0.0
      %1103 = vmatpush1.xpose.msra.mxu0 0.0
      %1104 = vmatprep.subr.mxu0 0.0
      %1105 = vmatpush1.xpose.msra.mxu0 0.0
      %1106 = vmatprep.subr.mxu0 0.0
      %1107 = vmatpush1.xpose.msra.mxu0 0.0
      %1108 = vmatprep.subr.mxu0 0.0
      %1109 = vmatpush1.xpose.msra.mxu0 0.0
      %1110 = vmatprep.subr.mxu0 0.0
      %1111 = vmatpush1.xpose.msra.mxu0 0.0
      %1112 = vmatprep.subr.mxu0 0.0
      %1113 = vmatpush1.xpose.msra.mxu0 0.0
      %1114 = vmatprep.subr.mxu0 0.0
      %1115 = vmatpush1.xpose.msra.mxu0 0.0
      %1116 = vmatprep.subr.mxu0 0.0
      %1117 = vmatpush1.xpose.msra.mxu0 0.0
      %1118 = vmatprep.subr.mxu0 0.0
      %1119 = vmatpush1.xpose.msra.mxu0 0.0
      %1120 = vmatprep.subr.mxu0 0.0
      %1121 = vmatpush1.xpose.msra.mxu0 0.0
      %1122 = vmatprep.subr.mxu0 0.0
      %1123 = vmatpush1.xpose.msra.mxu0 0.0
      %1124 = vmatprep.subr.mxu0 0.0
      %1125 = vmatpush1.xpose.msra.mxu0 0.0
      %1126 = vmatprep.subr.mxu0 0.0
      %1127 = vmatpush1.xpose.msra.mxu0 0.0
      %1128 = vmatprep.subr.mxu0 0.0
      %1129 = vmatpush1.xpose.msra.mxu0 0.0
      %1130 = vmatprep.subr.mxu0 0.0
      %1131 = vmatpush1.xpose.msra.mxu0 0.0
      %1132 = vmatprep.subr.mxu0 0.0
      %1133 = vmatpush1.xpose.msra.mxu0 0.0
      %1134 = vmatprep.subr.mxu0 0.0
      %1135 = vmatpush1.xpose.msra.mxu0 0.0
      %1136 = vmatprep.subr.mxu0 0.0
      %1137 = vmatpush1.xpose.msra.mxu0 0.0
      %1138 = vmatprep.mubr.f32.mxu0 0.0
      %1139 = vmatmul.mubr.f32.gmra.mrb[0].mxu0 %v1070
      %v1140 = vpop.f32.mrb[0].mxu0
      %v1141 = vadd.f32 0.0, %v1140
      %v1142 = vpop.f32.mrb[0].mxu0
      %1143 = vdwg.mxu0
      %1145 = vrot.lane.b32.xlu0 %v1060, 96
      %v1146 = vpop.permute.xlu0 %1145
      %v1147 = vsel %vm908, %v1060, 0
      %v1149 = vsel %vm908, %v1146, 0
      %1151 = vmatprep.subr.mxu0 0.0
      %1152 = vmatpush1.xpose.msra.mxu0 %v1149
      %1153 = vmatprep.subr.mxu0 0.0
      %1154 = vmatpush1.xpose.msra.mxu0 0.0
      %1155 = vmatprep.subr.mxu0 0.0
      %1156 = vmatpush1.xpose.msra.mxu0 0.0
      %1157 = vmatprep.subr.mxu0 0.0
      %1158 = vmatpush1.xpose.msra.mxu0 0.0
      %1159 = vmatprep.subr.mxu0 0.0
      %1160 = vmatpush1.xpose.msra.mxu0 0.0
      %1161 = vmatprep.subr.mxu0 0.0
      %1162 = vmatpush1.xpose.msra.mxu0 0.0
      %1163 = vmatprep.subr.mxu0 0.0
      %1164 = vmatpush1.xpose.msra.mxu0 0.0
      %1165 = vmatprep.subr.mxu0 0.0
      %1166 = vmatpush1.xpose.msra.mxu0 0.0
      %1167 = vmatprep.subr.mxu0 0.0
      %1168 = vmatpush1.xpose.msra.mxu0 0.0
      %1169 = vmatprep.subr.mxu0 0.0
      %1170 = vmatpush1.xpose.msra.mxu0 0.0
      %1171 = vmatprep.subr.mxu0 0.0
      %1172 = vmatpush1.xpose.msra.mxu0 0.0
      %1173 = vmatprep.subr.mxu0 0.0
      %1174 = vmatpush1.xpose.msra.mxu0 0.0
      %1175 = vmatprep.subr.mxu0 0.0
      %1176 = vmatpush1.xpose.msra.mxu0 0.0
      %1177 = vmatprep.subr.mxu0 0.0
      %1178 = vmatpush1.xpose.msra.mxu0 0.0
      %1179 = vmatprep.subr.mxu0 0.0
      %1180 = vmatpush1.xpose.msra.mxu0 0.0
      %1181 = vmatprep.subr.mxu0 0.0
      %1182 = vmatpush1.xpose.msra.mxu0 0.0
      %1183 = vmatprep.subr.mxu0 0.0
      %1184 = vmatpush1.xpose.msra.mxu0 0.0
      %1185 = vmatprep.subr.mxu0 0.0
      %1186 = vmatpush1.xpose.msra.mxu0 0.0
      %1187 = vmatprep.subr.mxu0 0.0
      %1188 = vmatpush1.xpose.msra.mxu0 0.0
      %1189 = vmatprep.subr.mxu0 0.0
      %1190 = vmatpush1.xpose.msra.mxu0 0.0
      %1191 = vmatprep.subr.mxu0 0.0
      %1192 = vmatpush1.xpose.msra.mxu0 0.0
      %1193 = vmatprep.subr.mxu0 0.0
      %1194 = vmatpush1.xpose.msra.mxu0 0.0
      %1195 = vmatprep.subr.mxu0 0.0
      %1196 = vmatpush1.xpose.msra.mxu0 0.0
      %1197 = vmatprep.subr.mxu0 0.0
      %1198 = vmatpush1.xpose.msra.mxu0 0.0
      %1199 = vmatprep.subr.mxu0 0.0
      %1200 = vmatpush1.xpose.msra.mxu0 0.0
      %1201 = vmatprep.subr.mxu0 0.0
      %1202 = vmatpush1.xpose.msra.mxu0 0.0
      %1203 = vmatprep.subr.mxu0 0.0
      %1204 = vmatpush1.xpose.msra.mxu0 0.0
      %1205 = vmatprep.subr.mxu0 0.0
      %1206 = vmatpush1.xpose.msra.mxu0 0.0
      %1207 = vmatprep.subr.mxu0 0.0
      %1208 = vmatpush1.xpose.msra.mxu0 0.0
      %1209 = vmatprep.subr.mxu0 0.0
      %1210 = vmatpush1.xpose.msra.mxu0 0.0
      %1211 = vmatprep.subr.mxu0 0.0
      %1212 = vmatpush1.xpose.msra.mxu0 0.0
      %1213 = vmatprep.subr.mxu0 0.0
      %1214 = vmatpush1.xpose.msra.mxu0 0.0
      %1215 = vmatprep.mubr.f32.mxu0 0.0
      %1216 = vmatmul.mubr.f32.gmra.mrb[0].mxu0 %v1147
      %v1217 = vpop.f32.mrb[0].mxu0
      %v1218 = vadd.f32 0.0, %v1217
      %v1219 = vpop.f32.mrb[0].mxu0
      %1220 = vdwg.mxu0
      %v1221 = vsel %vm908, %v1141, -inf
      %1222 = vmax.xlane.f32.xlu0 %v1221
      %v1223 = vpop.xlane.xlu0 %1222
      %v1224 = vsel %vm908, %v1218, -inf
      %1225 = vmax.xlane.f32.xlu0 %v1224
      %v1226 = vpop.xlane.xlu0 %1225
      %v1227 = vsub.f32 %v1141, %v1223
      %v1228 = vsub.f32 %v1218, %v1226
      %v1229 = vmul.f32 %v1227, 1.442695
      %v1230 = vpow.pop %v1229
      %v1231 = vmul.f32 %v1228, 1.442695
      %v1232 = vpow.pop %v1231
      %v1233 = vsel %vm908, %v1230, 0.0
      %1234 = vadd.xlane.f32.xlu0 %v1233
      %v1235 = vpop.xlane.xlu0 %1234
      %v1236 = vsel %vm908, %v1232, 0.0
      %1237 = vadd.xlane.f32.xlu0 %v1236
      %v1238 = vpop.xlane.xlu0 %1237
      %v1239 = vrcp.pop %v1235
      %v1240 = vrcp.pop %v1238
      %v1241 = vmul.f32 %v1230, %v1239
      %v1242 = vmul.f32 %v1232, %v1240
      %1243 = vrot.lane.b32.xlu0 %v1057, 64
      %v1244 = vpop.permute.xlu0 %1243
      %v1247 = vsel %vm908, %v1241, 0
      %1249 = vmatprep.subr.mxu0 0.0
      %1250 = vmatpush1.msra.mxu0 %v1244
      %1251 = vmatprep.subr.mxu0 0.0
      %1252 = vmatpush1.msra.mxu0 0.0
      %1253 = vmatprep.subr.mxu0 0.0
      %1254 = vmatpush1.msra.mxu0 0.0
      %1255 = vmatprep.subr.mxu0 0.0
      %1256 = vmatpush1.msra.mxu0 0.0
      %1257 = vmatprep.subr.mxu0 0.0
      %1258 = vmatpush1.msra.mxu0 0.0
      %1259 = vmatprep.subr.mxu0 0.0
      %1260 = vmatpush1.msra.mxu0 0.0
      %1261 = vmatprep.subr.mxu0 0.0
      %1262 = vmatpush1.msra.mxu0 0.0
      %1263 = vmatprep.subr.mxu0 0.0
      %1264 = vmatpush1.msra.mxu0 0.0
      %1265 = vmatprep.subr.mxu0 0.0
      %1266 = vmatpush1.msra.mxu0 0.0
      %1267 = vmatprep.subr.mxu0 0.0
      %1268 = vmatpush1.msra.mxu0 0.0
      %1269 = vmatprep.subr.mxu0 0.0
      %1270 = vmatpush1.msra.mxu0 0.0
      %1271 = vmatprep.subr.mxu0 0.0
      %1272 = vmatpush1.msra.mxu0 0.0
      %1273 = vmatprep.subr.mxu0 0.0
      %1274 = vmatpush1.msra.mxu0 0.0
      %1275 = vmatprep.subr.mxu0 0.0
      %1276 = vmatpush1.msra.mxu0 0.0
      %1277 = vmatprep.subr.mxu0 0.0
      %1278 = vmatpush1.msra.mxu0 0.0
      %1279 = vmatprep.subr.mxu0 0.0
      %1280 = vmatpush1.msra.mxu0 0.0
      %1281 = vmatprep.subr.mxu0 0.0
      %1282 = vmatpush1.msra.mxu0 0.0
      %1283 = vmatprep.subr.mxu0 0.0
      %1284 = vmatpush1.msra.mxu0 0.0
      %1285 = vmatprep.subr.mxu0 0.0
      %1286 = vmatpush1.msra.mxu0 0.0
      %1287 = vmatprep.subr.mxu0 0.0
      %1288 = vmatpush1.msra.mxu0 0.0
      %1289 = vmatprep.subr.mxu0 0.0
      %1290 = vmatpush1.msra.mxu0 0.0
      %1291 = vmatprep.subr.mxu0 0.0
      %1292 = vmatpush1.msra.mxu0 0.0
      %1293 = vmatprep.subr.mxu0 0.0
      %1294 = vmatpush1.msra.mxu0 0.0
      %1295 = vmatprep.subr.mxu0 0.0
      %1296 = vmatpush1.msra.mxu0 0.0
      %1297 = vmatprep.subr.mxu0 0.0
      %1298 = vmatpush1.msra.mxu0 0.0
      %1299 = vmatprep.subr.mxu0 0.0
      %1300 = vmatpush1.msra.mxu0 0.0
      %1301 = vmatprep.subr.mxu0 0.0
      %1302 = vmatpush1.msra.mxu0 0.0
      %1303 = vmatprep.subr.mxu0 0.0
      %1304 = vmatpush1.msra.mxu0 0.0
      %1305 = vmatprep.subr.mxu0 0.0
      %1306 = vmatpush1.msra.mxu0 0.0
      %1307 = vmatprep.subr.mxu0 0.0
      %1308 = vmatpush1.msra.mxu0 0.0
      %1309 = vmatprep.subr.mxu0 0.0
      %1310 = vmatpush1.msra.mxu0 0.0
      %1311 = vmatprep.subr.mxu0 0.0
      %1312 = vmatpush1.msra.mxu0 0.0
      %1313 = vmatprep.mubr.f32.mxu0 0.0
      %1314 = vmatmul.mubr.f32.gmra.mrb[0].mxu0 %v1247
      %v1315 = vpop.f32.mrb[0].mxu0
      %v1316 = vadd.f32 0.0, %v1315
      %v1317 = vpop.f32.mrb[0].mxu0
      %1318 = vdwg.mxu0
      %1319 = vrot.lane.b32.xlu0 %v1060, 64
      %v1320 = vpop.permute.xlu0 %1319
      %v1323 = vsel %vm908, %v1242, 0
      %1325 = vmatprep.subr.mxu0 0.0
      %1326 = vmatpush1.msra.mxu0 %v1320
      %1327 = vmatprep.subr.mxu0 0.0
      %1328 = vmatpush1.msra.mxu0 0.0
      %1329 = vmatprep.subr.mxu0 0.0
      %1330 = vmatpush1.msra.mxu0 0.0
      %1331 = vmatprep.subr.mxu0 0.0
      %1332 = vmatpush1.msra.mxu0 0.0
      %1333 = vmatprep.subr.mxu0 0.0
      %1334 = vmatpush1.msra.mxu0 0.0
      %1335 = vmatprep.subr.mxu0 0.0
      %1336 = vmatpush1.msra.mxu0 0.0
      %1337 = vmatprep.subr.mxu0 0.0
      %1338 = vmatpush1.msra.mxu0 0.0
      %1339 = vmatprep.subr.mxu0 0.0
      %1340 = vmatpush1.msra.mxu0 0.0
      %1341 = vmatprep.subr.mxu0 0.0
      %1342 = vmatpush1.msra.mxu0 0.0
      %1343 = vmatprep.subr.mxu0 0.0
      %1344 = vmatpush1.msra.mxu0 0.0
      %1345 = vmatprep.subr.mxu0 0.0
      %1346 = vmatpush1.msra.mxu0 0.0
      %1347 = vmatprep.subr.mxu0 0.0
      %1348 = vmatpush1.msra.mxu0 0.0
      %1349 = vmatprep.subr.mxu0 0.0
      %1350 = vmatpush1.msra.mxu0 0.0
      %1351 = vmatprep.subr.mxu0 0.0
      %1352 = vmatpush1.msra.mxu0 0.0
      %1353 = vmatprep.subr.mxu0 0.0
      %1354 = vmatpush1.msra.mxu0 0.0
      %1355 = vmatprep.subr.mxu0 0.0
      %1356 = vmatpush1.msra.mxu0 0.0
      %1357 = vmatprep.subr.mxu0 0.0
      %1358 = vmatpush1.msra.mxu0 0.0
      %1359 = vmatprep.subr.mxu0 0.0
      %1360 = vmatpush1.msra.mxu0 0.0
      %1361 = vmatprep.subr.mxu0 0.0
      %1362 = vmatpush1.msra.mxu0 0.0
      %1363 = vmatprep.subr.mxu0 0.0
      %1364 = vmatpush1.msra.mxu0 0.0
      %1365 = vmatprep.subr.mxu0 0.0
      %1366 = vmatpush1.msra.mxu0 0.0
      %1367 = vmatprep.subr.mxu0 0.0
      %1368 = vmatpush1.msra.mxu0 0.0
      %1369 = vmatprep.subr.mxu0 0.0
      %1370 = vmatpush1.msra.mxu0 0.0
      %1371 = vmatprep.subr.mxu0 0.0
      %1372 = vmatpush1.msra.mxu0 0.0
      %1373 = vmatprep.subr.mxu0 0.0
      %1374 = vmatpush1.msra.mxu0 0.0
      %1375 = vmatprep.subr.mxu0 0.0
      %1376 = vmatpush1.msra.mxu0 0.0
      %1377 = vmatprep.subr.mxu0 0.0
      %1378 = vmatpush1.msra.mxu0 0.0
      %1379 = vmatprep.subr.mxu0 0.0
      %1380 = vmatpush1.msra.mxu0 0.0
      %1381 = vmatprep.subr.mxu0 0.0
      %1382 = vmatpush1.msra.mxu0 0.0
      %1383 = vmatprep.subr.mxu0 0.0
      %1384 = vmatpush1.msra.mxu0 0.0
      %1385 = vmatprep.subr.mxu0 0.0
      %1386 = vmatpush1.msra.mxu0 0.0
      %1387 = vmatprep.subr.mxu0 0.0
      %1388 = vmatpush1.msra.mxu0 0.0
      %1389 = vmatprep.mubr.f32.mxu0 0.0
      %1390 = vmatmul.mubr.f32.gmra.mrb[0].mxu0 %v1323
      %v1391 = vpop.f32.mrb[0].mxu0
      %v1392 = vadd.f32 0.0, %v1391
      %v1393 = vpop.f32.mrb[0].mxu0
      %1394 = vdwg.mxu0
      %1395 = vrot.lane.b32.xlu0 %v1057, 120
      %v1396 = vpop.permute.xlu0 %1395
      %1397 = vrot.lane.b32.xlu0 %v1057, 88
      %v1398 = vpop.permute.xlu0 %1397
      %v1399 = vsel %vm908, %v1396, 0
      %v1401 = vsel %vm908, %v1398, 0
      %1403 = vmatprep.subr.mxu0 0.0
      %1404 = vmatpush1.xpose.msra.mxu0 %v1401
      %1405 = vmatprep.subr.mxu0 0.0
      %1406 = vmatpush1.xpose.msra.mxu0 0.0
      %1407 = vmatprep.subr.mxu0 0.0
      %1408 = vmatpush1.xpose.msra.mxu0 0.0
      %1409 = vmatprep.subr.mxu0 0.0
      %1410 = vmatpush1.xpose.msra.mxu0 0.0
      %1411 = vmatprep.subr.mxu0 0.0
      %1412 = vmatpush1.xpose.msra.mxu0 0.0
      %1413 = vmatprep.subr.mxu0 0.0
      %1414 = vmatpush1.xpose.msra.mxu0 0.0
      %1415 = vmatprep.subr.mxu0 0.0
      %1416 = vmatpush1.xpose.msra.mxu0 0.0
      %1417 = vmatprep.subr.mxu0 0.0
      %1418 = vmatpush1.xpose.msra.mxu0 0.0
      %1419 = vmatprep.subr.mxu0 0.0
      %1420 = vmatpush1.xpose.msra.mxu0 0.0
      %1421 = vmatprep.subr.mxu0 0.0
      %1422 = vmatpush1.xpose.msra.mxu0 0.0
      %1423 = vmatprep.subr.mxu0 0.0
      %1424 = vmatpush1.xpose.msra.mxu0 0.0
      %1425 = vmatprep.subr.mxu0 0.0
      %1426 = vmatpush1.xpose.msra.mxu0 0.0
      %1427 = vmatprep.subr.mxu0 0.0
      %1428 = vmatpush1.xpose.msra.mxu0 0.0
      %1429 = vmatprep.subr.mxu0 0.0
      %1430 = vmatpush1.xpose.msra.mxu0 0.0
      %1431 = vmatprep.subr.mxu0 0.0
      %1432 = vmatpush1.xpose.msra.mxu0 0.0
      %1433 = vmatprep.subr.mxu0 0.0
      %1434 = vmatpush1.xpose.msra.mxu0 0.0
      %1435 = vmatprep.subr.mxu0 0.0
      %1436 = vmatpush1.xpose.msra.mxu0 0.0
      %1437 = vmatprep.subr.mxu0 0.0
      %1438 = vmatpush1.xpose.msra.mxu0 0.0
      %1439 = vmatprep.subr.mxu0 0.0
      %1440 = vmatpush1.xpose.msra.mxu0 0.0
      %1441 = vmatprep.subr.mxu0 0.0
      %1442 = vmatpush1.xpose.msra.mxu0 0.0
      %1443 = vmatprep.subr.mxu0 0.0
      %1444 = vmatpush1.xpose.msra.mxu0 0.0
      %1445 = vmatprep.subr.mxu0 0.0
      %1446 = vmatpush1.xpose.msra.mxu0 0.0
      %1447 = vmatprep.subr.mxu0 0.0
      %1448 = vmatpush1.xpose.msra.mxu0 0.0
      %1449 = vmatprep.subr.mxu0 0.0
      %1450 = vmatpush1.xpose.msra.mxu0 0.0
      %1451 = vmatprep.subr.mxu0 0.0
      %1452 = vmatpush1.xpose.msra.mxu0 0.0
      %1453 = vmatprep.subr.mxu0 0.0
      %1454 = vmatpush1.xpose.msra.mxu0 0.0
      %1455 = vmatprep.subr.mxu0 0.0
      %1456 = vmatpush1.xpose.msra.mxu0 0.0
      %1457 = vmatprep.subr.mxu0 0.0
      %1458 = vmatpush1.xpose.msra.mxu0 0.0
      %1459 = vmatprep.subr.mxu0 0.0
      %1460 = vmatpush1.xpose.msra.mxu0 0.0
      %1461 = vmatprep.subr.mxu0 0.0
      %1462 = vmatpush1.xpose.msra.mxu0 0.0
      %1463 = vmatprep.subr.mxu0 0.0
      %1464 = vmatpush1.xpose.msra.mxu0 0.0
      %1465 = vmatprep.subr.mxu0 0.0
      %1466 = vmatpush1.xpose.msra.mxu0 0.0
      %1467 = vmatprep.mubr.f32.mxu0 0.0
      %1468 = vmatmul.mubr.f32.gmra.mrb[0].mxu0 %v1399
      %v1469 = vpop.f32.mrb[0].mxu0
      %v1470 = vadd.f32 0.0, %v1469
      %v1471 = vpop.f32.mrb[0].mxu0
      %1472 = vdwg.mxu0
      %1473 = vrot.lane.b32.xlu0 %v1060, 120
      %v1474 = vpop.permute.xlu0 %1473
      %1475 = vrot.lane.b32.xlu0 %v1060, 88
      %v1476 = vpop.permute.xlu0 %1475
      %v1477 = vsel %vm908, %v1474, 0
      %v1479 = vsel %vm908, %v1476, 0
      %1481 = vmatprep.subr.mxu0 0.0
      %1482 = vmatpush1.xpose.msra.mxu0 %v1479
      %1483 = vmatprep.subr.mxu0 0.0
      %1484 = vmatpush1.xpose.msra.mxu0 0.0
      %1485 = vmatprep.subr.mxu0 0.0
      %1486 = vmatpush1.xpose.msra.mxu0 0.0
      %1487 = vmatprep.subr.mxu0 0.0
      %1488 = vmatpush1.xpose.msra.mxu0 0.0
      %1489 = vmatprep.subr.mxu0 0.0
      %1490 = vmatpush1.xpose.msra.mxu0 0.0
      %1491 = vmatprep.subr.mxu0 0.0
      %1492 = vmatpush1.xpose.msra.mxu0 0.0
      %1493 = vmatprep.subr.mxu0 0.0
      %1494 = vmatpush1.xpose.msra.mxu0 0.0
      %1495 = vmatprep.subr.mxu0 0.0
      %1496 = vmatpush1.xpose.msra.mxu0 0.0
      %1497 = vmatprep.subr.mxu0 0.0
      %1498 = vmatpush1.xpose.msra.mxu0 0.0
      %1499 = vmatprep.subr.mxu0 0.0
      %1500 = vmatpush1.xpose.msra.mxu0 0.0
      %1501 = vmatprep.subr.mxu0 0.0
      %1502 = vmatpush1.xpose.msra.mxu0 0.0
      %1503 = vmatprep.subr.mxu0 0.0
      %1504 = vmatpush1.xpose.msra.mxu0 0.0
      %1505 = vmatprep.subr.mxu0 0.0
      %1506 = vmatpush1.xpose.msra.mxu0 0.0
      %1507 = vmatprep.subr.mxu0 0.0
      %1508 = vmatpush1.xpose.msra.mxu0 0.0
      %1509 = vmatprep.subr.mxu0 0.0
      %1510 = vmatpush1.xpose.msra.mxu0 0.0
      %1511 = vmatprep.subr.mxu0 0.0
      %1512 = vmatpush1.xpose.msra.mxu0 0.0
      %1513 = vmatprep.subr.mxu0 0.0
      %1514 = vmatpush1.xpose.msra.mxu0 0.0
      %1515 = vmatprep.subr.mxu0 0.0
      %1516 = vmatpush1.xpose.msra.mxu0 0.0
      %1517 = vmatprep.subr.mxu0 0.0
      %1518 = vmatpush1.xpose.msra.mxu0 0.0
      %1519 = vmatprep.subr.mxu0 0.0
      %1520 = vmatpush1.xpose.msra.mxu0 0.0
      %1521 = vmatprep.subr.mxu0 0.0
      %1522 = vmatpush1.xpose.msra.mxu0 0.0
      %1523 = vmatprep.subr.mxu0 0.0
      %1524 = vmatpush1.xpose.msra.mxu0 0.0
      %1525 = vmatprep.subr.mxu0 0.0
      %1526 = vmatpush1.xpose.msra.mxu0 0.0
      %1527 = vmatprep.subr.mxu0 0.0
      %1528 = vmatpush1.xpose.msra.mxu0 0.0
      %1529 = vmatprep.subr.mxu0 0.0
      %1530 = vmatpush1.xpose.msra.mxu0 0.0
      %1531 = vmatprep.subr.mxu0 0.0
      %1532 = vmatpush1.xpose.msra.mxu0 0.0
      %1533 = vmatprep.subr.mxu0 0.0
      %1534 = vmatpush1.xpose.msra.mxu0 0.0
      %1535 = vmatprep.subr.mxu0 0.0
      %1536 = vmatpush1.xpose.msra.mxu0 0.0
      %1537 = vmatprep.subr.mxu0 0.0
      %1538 = vmatpush1.xpose.msra.mxu0 0.0
      %1539 = vmatprep.subr.mxu0 0.0
      %1540 = vmatpush1.xpose.msra.mxu0 0.0
      %1541 = vmatprep.subr.mxu0 0.0
      %1542 = vmatpush1.xpose.msra.mxu0 0.0
      %1543 = vmatprep.subr.mxu0 0.0
      %1544 = vmatpush1.xpose.msra.mxu0 0.0
      %1545 = vmatprep.mubr.f32.mxu0 0.0
      %1546 = vmatmul.mubr.f32.gmra.mrb[0].mxu0 %v1477
      %v1547 = vpop.f32.mrb[0].mxu0
      %v1548 = vadd.f32 0.0, %v1547
      %v1549 = vpop.f32.mrb[0].mxu0
      %1550 = vdwg.mxu0
      %v1551 = vsel %vm908, %v1470, -inf
      %1552 = vmax.xlane.f32.xlu0 %v1551
      %v1553 = vpop.xlane.xlu0 %1552
      %v1554 = vsel %vm908, %v1548, -inf
      %1555 = vmax.xlane.f32.xlu0 %v1554
      %v1556 = vpop.xlane.xlu0 %1555
      %v1557 = vsub.f32 %v1470, %v1553
      %v1558 = vsub.f32 %v1548, %v1556
      %v1559 = vmul.f32 %v1557, 1.442695
      %v1560 = vpow.pop %v1559
      %v1561 = vmul.f32 %v1558, 1.442695
      %v1562 = vpow.pop %v1561
      %v1563 = vsel %vm908, %v1560, 0.0
      %1564 = vadd.xlane.f32.xlu0 %v1563
      %v1565 = vpop.xlane.xlu0 %1564
      %v1566 = vsel %vm908, %v1562, 0.0
      %1567 = vadd.xlane.f32.xlu0 %v1566
      %v1568 = vpop.xlane.xlu0 %1567
      %v1569 = vrcp.pop %v1565
      %v1570 = vrcp.pop %v1568
      %v1571 = vmul.f32 %v1560, %v1569
      %v1572 = vmul.f32 %v1562, %v1570
      %1573 = vrot.lane.b32.xlu0 %v1057, 56
      %v1574 = vpop.permute.xlu0 %1573
      %v1577 = vsel %vm908, %v1571, 0
      %1579 = vmatprep.subr.mxu0 0.0
      %1580 = vmatpush1.msra.mxu0 %v1574
      %1581 = vmatprep.subr.mxu0 0.0
      %1582 = vmatpush1.msra.mxu0 0.0
      %1583 = vmatprep.subr.mxu0 0.0
      %1584 = vmatpush1.msra.mxu0 0.0
      %1585 = vmatprep.subr.mxu0 0.0
      %1586 = vmatpush1.msra.mxu0 0.0
      %1587 = vmatprep.subr.mxu0 0.0
      %1588 = vmatpush1.msra.mxu0 0.0
      %1589 = vmatprep.subr.mxu0 0.0
      %1590 = vmatpush1.msra.mxu0 0.0
      %1591 = vmatprep.subr.mxu0 0.0
      %1592 = vmatpush1.msra.mxu0 0.0
      %1593 = vmatprep.subr.mxu0 0.0
      %1594 = vmatpush1.msra.mxu0 0.0
      %1595 = vmatprep.subr.mxu0 0.0
      %1596 = vmatpush1.msra.mxu0 0.0
      %1597 = vmatprep.subr.mxu0 0.0
      %1598 = vmatpush1.msra.mxu0 0.0
      %1599 = vmatprep.subr.mxu0 0.0
      %1600 = vmatpush1.msra.mxu0 0.0
      %1601 = vmatprep.subr.mxu0 0.0
      %1602 = vmatpush1.msra.mxu0 0.0
      %1603 = vmatprep.subr.mxu0 0.0
      %1604 = vmatpush1.msra.mxu0 0.0
      %1605 = vmatprep.subr.mxu0 0.0
      %1606 = vmatpush1.msra.mxu0 0.0
      %1607 = vmatprep.subr.mxu0 0.0
      %1608 = vmatpush1.msra.mxu0 0.0
      %1609 = vmatprep.subr.mxu0 0.0
      %1610 = vmatpush1.msra.mxu0 0.0
      %1611 = vmatprep.subr.mxu0 0.0
      %1612 = vmatpush1.msra.mxu0 0.0
      %1613 = vmatprep.subr.mxu0 0.0
      %1614 = vmatpush1.msra.mxu0 0.0
      %1615 = vmatprep.subr.mxu0 0.0
      %1616 = vmatpush1.msra.mxu0 0.0
      %1617 = vmatprep.subr.mxu0 0.0
      %1618 = vmatpush1.msra.mxu0 0.0
      %1619 = vmatprep.subr.mxu0 0.0
      %1620 = vmatpush1.msra.mxu0 0.0
      %1621 = vmatprep.subr.mxu0 0.0
      %1622 = vmatpush1.msra.mxu0 0.0
      %1623 = vmatprep.subr.mxu0 0.0
      %1624 = vmatpush1.msra.mxu0 0.0
      %1625 = vmatprep.subr.mxu0 0.0
      %1626 = vmatpush1.msra.mxu0 0.0
      %1627 = vmatprep.subr.mxu0 0.0
      %1628 = vmatpush1.msra.mxu0 0.0
      %1629 = vmatprep.subr.mxu0 0.0
      %1630 = vmatpush1.msra.mxu0 0.0
      %1631 = vmatprep.subr.mxu0 0.0
      %1632 = vmatpush1.msra.mxu0 0.0
      %1633 = vmatprep.subr.mxu0 0.0
      %1634 = vmatpush1.msra.mxu0 0.0
      %1635 = vmatprep.subr.mxu0 0.0
      %1636 = vmatpush1.msra.mxu0 0.0
      %1637 = vmatprep.subr.mxu0 0.0
      %1638 = vmatpush1.msra.mxu0 0.0
      %1639 = vmatprep.subr.mxu0 0.0
      %1640 = vmatpush1.msra.mxu0 0.0
      %1641 = vmatprep.subr.mxu0 0.0
      %1642 = vmatpush1.msra.mxu0 0.0
      %1643 = vmatprep.mubr.f32.mxu0 0.0
      %1644 = vmatmul.mubr.f32.gmra.mrb[0].mxu0 %v1577
      %v1645 = vpop.f32.mrb[0].mxu0
      %v1646 = vadd.f32 0.0, %v1645
      %v1647 = vpop.f32.mrb[0].mxu0
      %1648 = vdwg.mxu0
      %1649 = vrot.lane.b32.xlu0 %v1060, 56
      %v1650 = vpop.permute.xlu0 %1649
      %v1653 = vsel %vm908, %v1572, 0
      %1655 = vmatprep.subr.mxu0 0.0
      %1656 = vmatpush1.msra.mxu0 %v1650
      %1657 = vmatprep.subr.mxu0 0.0
      %1658 = vmatpush1.msra.mxu0 0.0
      %1659 = vmatprep.subr.mxu0 0.0
      %1660 = vmatpush1.msra.mxu0 0.0
      %1661 = vmatprep.subr.mxu0 0.0
      %1662 = vmatpush1.msra.mxu0 0.0
      %1663 = vmatprep.subr.mxu0 0.0
      %1664 = vmatpush1.msra.mxu0 0.0
      %1665 = vmatprep.subr.mxu0 0.0
      %1666 = vmatpush1.msra.mxu0 0.0
      %1667 = vmatprep.subr.mxu0 0.0
      %1668 = vmatpush1.msra.mxu0 0.0
      %1669 = vmatprep.subr.mxu0 0.0
      %1670 = vmatpush1.msra.mxu0 0.0
      %1671 = vmatprep.subr.mxu0 0.0
      %1672 = vmatpush1.msra.mxu0 0.0
      %1673 = vmatprep.subr.mxu0 0.0
      %1674 = vmatpush1.msra.mxu0 0.0
      %1675 = vmatprep.subr.mxu0 0.0
      %1676 = vmatpush1.msra.mxu0 0.0
      %1677 = vmatprep.subr.mxu0 0.0
      %1678 = vmatpush1.msra.mxu0 0.0
      %1679 = vmatprep.subr.mxu0 0.0
      %1680 = vmatpush1.msra.mxu0 0.0
      %1681 = vmatprep.subr.mxu0 0.0
      %1682 = vmatpush1.msra.mxu0 0.0
      %1683 = vmatprep.subr.mxu0 0.0
      %1684 = vmatpush1.msra.mxu0 0.0
      %1685 = vmatprep.subr.mxu0 0.0
      %1686 = vmatpush1.msra.mxu0 0.0
      %1687 = vmatprep.subr.mxu0 0.0
      %1688 = vmatpush1.msra.mxu0 0.0
      %1689 = vmatprep.subr.mxu0 0.0
      %1690 = vmatpush1.msra.mxu0 0.0
      %1691 = vmatprep.subr.mxu0 0.0
      %1692 = vmatpush1.msra.mxu0 0.0
      %1693 = vmatprep.subr.mxu0 0.0
      %1694 = vmatpush1.msra.mxu0 0.0
      %1695 = vmatprep.subr.mxu0 0.0
      %1696 = vmatpush1.msra.mxu0 0.0
      %1697 = vmatprep.subr.mxu0 0.0
      %1698 = vmatpush1.msra.mxu0 0.0
      %1699 = vmatprep.subr.mxu0 0.0
      %1700 = vmatpush1.msra.mxu0 0.0
      %1701 = vmatprep.subr.mxu0 0.0
      %1702 = vmatpush1.msra.mxu0 0.0
      %1703 = vmatprep.subr.mxu0 0.0
      %1704 = vmatpush1.msra.mxu0 0.0
      %1705 = vmatprep.subr.mxu0 0.0
      %1706 = vmatpush1.msra.mxu0 0.0
      %1707 = vmatprep.subr.mxu0 0.0
      %1708 = vmatpush1.msra.mxu0 0.0
      %1709 = vmatprep.subr.mxu0 0.0
      %1710 = vmatpush1.msra.mxu0 0.0
      %1711 = vmatprep.subr.mxu0 0.0
      %1712 = vmatpush1.msra.mxu0 0.0
      %1713 = vmatprep.subr.mxu0 0.0
      %1714 = vmatpush1.msra.mxu0 0.0
      %1715 = vmatprep.subr.mxu0 0.0
      %1716 = vmatpush1.msra.mxu0 0.0
      %1717 = vmatprep.subr.mxu0 0.0
      %1718 = vmatpush1.msra.mxu0 0.0
      %1719 = vmatprep.mubr.f32.mxu0 0.0
      %1720 = vmatmul.mubr.f32.gmra.mrb[0].mxu0 %v1653
      %v1721 = vpop.f32.mrb[0].mxu0
      %v1722 = vadd.f32 0.0, %v1721
      %v1723 = vpop.f32.mrb[0].mxu0
      %1724 = vdwg.mxu0
      %v1726 = vsel %vm908, %v1646, 0
      %v1729 = vsel %vm908, %v1722, 0
      %1731 = vmatprep.subr.mxu0 0.0
      %1732 = vmatpush1.msra.mxu0 %v1064
      %1733 = vmatprep.subr.mxu0 0.0
      %1734 = vmatpush1.msra.mxu0 0.0
      %1735 = vmatprep.subr.mxu0 0.0
      %1736 = vmatpush1.msra.mxu0 0.0
      %1737 = vmatprep.subr.mxu0 0.0
      %1738 = vmatpush1.msra.mxu0 0.0
      %1739 = vmatprep.subr.mxu0 0.0
      %1740 = vmatpush1.msra.mxu0 0.0
      %1741 = vmatprep.subr.mxu0 0.0
      %1742 = vmatpush1.msra.mxu0 0.0
      %1743 = vmatprep.subr.mxu0 0.0
      %1744 = vmatpush1.msra.mxu0 0.0
      %1745 = vmatprep.subr.mxu0 0.0
      %1746 = vmatpush1.msra.mxu0 0.0
      %1747 = vmatprep.subr.mxu0 0.0
      %1748 = vmatpush1.msra.mxu0 0.0
      %1749 = vmatprep.subr.mxu0 0.0
      %1750 = vmatpush1.msra.mxu0 0.0
      %1751 = vmatprep.subr.mxu0 0.0
      %1752 = vmatpush1.msra.mxu0 0.0
      %1753 = vmatprep.subr.mxu0 0.0
      %1754 = vmatpush1.msra.mxu0 0.0
      %1755 = vmatprep.subr.mxu0 0.0
      %1756 = vmatpush1.msra.mxu0 0.0
      %1757 = vmatprep.subr.mxu0 0.0
      %1758 = vmatpush1.msra.mxu0 0.0
      %1759 = vmatprep.subr.mxu0 0.0
      %1760 = vmatpush1.msra.mxu0 0.0
      %1761 = vmatprep.subr.mxu0 0.0
      %1762 = vmatpush1.msra.mxu0 0.0
      %1763 = vmatprep.subr.mxu0 0.0
      %1764 = vmatpush1.msra.mxu0 0.0
      %1765 = vmatprep.subr.mxu0 0.0
      %1766 = vmatpush1.msra.mxu0 0.0
      %1767 = vmatprep.subr.mxu0 0.0
      %1768 = vmatpush1.msra.mxu0 0.0
      %1769 = vmatprep.subr.mxu0 0.0
      %1770 = vmatpush1.msra.mxu0 0.0
      %1771 = vmatprep.subr.mxu0 0.0
      %1772 = vmatpush1.msra.mxu0 0.0
      %1773 = vmatprep.subr.mxu0 0.0
      %1774 = vmatpush1.msra.mxu0 0.0
      %1775 = vmatprep.subr.mxu0 0.0
      %1776 = vmatpush1.msra.mxu0 0.0
      %1777 = vmatprep.subr.mxu0 0.0
      %1778 = vmatpush1.msra.mxu0 0.0
      %1779 = vmatprep.subr.mxu0 0.0
      %1780 = vmatpush1.msra.mxu0 0.0
      %1781 = vmatprep.subr.mxu0 0.0
      %1782 = vmatpush1.msra.mxu0 0.0
      %1783 = vmatprep.subr.mxu0 0.0
      %1784 = vmatpush1.msra.mxu0 0.0
      %1785 = vmatprep.subr.mxu0 0.0
      %1786 = vmatpush1.msra.mxu0 0.0
      %1787 = vmatprep.subr.mxu0 0.0
      %1788 = vmatpush1.msra.mxu0 0.0
      %1789 = vmatprep.subr.mxu0 0.0
      %1790 = vmatpush1.msra.mxu0 0.0
      %1791 = vmatprep.subr.mxu0 0.0
      %1792 = vmatpush1.msra.mxu0 0.0
      %1793 = vmatprep.subr.mxu0 0.0
      %1794 = vmatpush1.msra.mxu0 0.0
      %1795 = vmatprep.mubr.f32.mxu0 0.0
      %1796 = vmatmul.mubr.f32.gmra.mrb[0].mxu0 %v1726
      %v1797 = vpop.f32.mrb[0].mxu0
      %v1798 = vadd.f32 0.0, %v1797
      %v1799 = vpop.f32.mrb[0].mxu0
      %1800 = vmatprep.mubr.f32.mxu0 0.0
      %1801 = vmatmul.mubr.f32.gmra.mrb[0].mxu0 %v1729
      %v1802 = vpop.f32.mrb[0].mxu0
      %v1803 = vadd.f32 0.0, %v1802
      %v1804 = vpop.f32.mrb[0].mxu0
      %1805 = vdwg.mxu0
      %v1807 = vsel %vm908, %v1316, 0
      %v1810 = vsel %vm908, %v1392, 0
      %1812 = vmatprep.subr.mxu0 0.0
      %1813 = vmatpush1.msra.mxu0 %v1063
      %1814 = vmatprep.subr.mxu0 0.0
      %1815 = vmatpush1.msra.mxu0 0.0
      %1816 = vmatprep.subr.mxu0 0.0
      %1817 = vmatpush1.msra.mxu0 0.0
      %1818 = vmatprep.subr.mxu0 0.0
      %1819 = vmatpush1.msra.mxu0 0.0
      %1820 = vmatprep.subr.mxu0 0.0
      %1821 = vmatpush1.msra.mxu0 0.0
      %1822 = vmatprep.subr.mxu0 0.0
      %1823 = vmatpush1.msra.mxu0 0.0
      %1824 = vmatprep.subr.mxu0 0.0
      %1825 = vmatpush1.msra.mxu0 0.0
      %1826 = vmatprep.subr.mxu0 0.0
      %1827 = vmatpush1.msra.mxu0 0.0
      %1828 = vmatprep.subr.mxu0 0.0
      %1829 = vmatpush1.msra.mxu0 0.0
      %1830 = vmatprep.subr.mxu0 0.0
      %1831 = vmatpush1.msra.mxu0 0.0
      %1832 = vmatprep.subr.mxu0 0.0
      %1833 = vmatpush1.msra.mxu0 0.0
      %1834 = vmatprep.subr.mxu0 0.0
      %1835 = vmatpush1.msra.mxu0 0.0
      %1836 = vmatprep.subr.mxu0 0.0
      %1837 = vmatpush1.msra.mxu0 0.0
      %1838 = vmatprep.subr.mxu0 0.0
      %1839 = vmatpush1.msra.mxu0 0.0
      %1840 = vmatprep.subr.mxu0 0.0
      %1841 = vmatpush1.msra.mxu0 0.0
      %1842 = vmatprep.subr.mxu0 0.0
      %1843 = vmatpush1.msra.mxu0 0.0
      %1844 = vmatprep.subr.mxu0 0.0
      %1845 = vmatpush1.msra.mxu0 0.0
      %1846 = vmatprep.subr.mxu0 0.0
      %1847 = vmatpush1.msra.mxu0 0.0
      %1848 = vmatprep.subr.mxu0 0.0
      %1849 = vmatpush1.msra.mxu0 0.0
      %1850 = vmatprep.subr.mxu0 0.0
      %1851 = vmatpush1.msra.mxu0 0.0
      %1852 = vmatprep.subr.mxu0 0.0
      %1853 = vmatpush1.msra.mxu0 0.0
      %1854 = vmatprep.subr.mxu0 0.0
      %1855 = vmatpush1.msra.mxu0 0.0
      %1856 = vmatprep.subr.mxu0 0.0
      %1857 = vmatpush1.msra.mxu0 0.0
      %1858 = vmatprep.subr.mxu0 0.0
      %1859 = vmatpush1.msra.mxu0 0.0
      %1860 = vmatprep.subr.mxu0 0.0
      %1861 = vmatpush1.msra.mxu0 0.0
      %1862 = vmatprep.subr.mxu0 0.0
      %1863 = vmatpush1.msra.mxu0 0.0
      %1864 = vmatprep.subr.mxu0 0.0
      %1865 = vmatpush1.msra.mxu0 0.0
      %1866 = vmatprep.subr.mxu0 0.0
      %1867 = vmatpush1.msra.mxu0 0.0
      %1868 = vmatprep.subr.mxu0 0.0
      %1869 = vmatpush1.msra.mxu0 0.0
      %1870 = vmatprep.subr.mxu0 0.0
      %1871 = vmatpush1.msra.mxu0 0.0
      %1872 = vmatprep.subr.mxu0 0.0
      %1873 = vmatpush1.msra.mxu0 0.0
      %1874 = vmatprep.subr.mxu0 0.0
      %1875 = vmatpush1.msra.mxu0 0.0
      %1876 = vmatprep.mubr.f32.mxu0 0.0
      %1877 = vmatmul.mubr.f32.gmra.mrb[0].mxu0 %v1807
      %v1878 = vpop.f32.mrb[0].mxu0
      %v1879 = vadd.f32 %v1798, %v1878
      %v1880 = vpop.f32.mrb[0].mxu0
      %1881 = vmatprep.mubr.f32.mxu0 0.0
      %1882 = vmatmul.mubr.f32.gmra.mrb[0].mxu0 %v1810
      %v1883 = vpop.f32.mrb[0].mxu0
      %v1884 = vadd.f32 %v1803, %v1883
      %v1885 = vpop.f32.mrb[0].mxu0
      %1886 = vdwg.mxu0
      %1887 = vrot.lane.b32.xlu0 %v1057, 112
      %v1888 = vpop.permute.xlu0 %1887
      %1889 = vrot.lane.b32.xlu0 %v1057, 80
      %v1890 = vpop.permute.xlu0 %1889
      %v1891 = vsel %vm908, %v1888, 0
      %v1893 = vsel %vm908, %v1890, 0
      %1895 = vmatprep.subr.mxu0 0.0
      %1896 = vmatpush1.xpose.msra.mxu0 %v1893
      %1897 = vmatprep.subr.mxu0 0.0
      %1898 = vmatpush1.xpose.msra.mxu0 0.0
      %1899 = vmatprep.subr.mxu0 0.0
      %1900 = vmatpush1.xpose.msra.mxu0 0.0
      %1901 = vmatprep.subr.mxu0 0.0
      %1902 = vmatpush1.xpose.msra.mxu0 0.0
      %1903 = vmatprep.subr.mxu0 0.0
      %1904 = vmatpush1.xpose.msra.mxu0 0.0
      %1905 = vmatprep.subr.mxu0 0.0
      %1906 = vmatpush1.xpose.msra.mxu0 0.0
      %1907 = vmatprep.subr.mxu0 0.0
      %1908 = vmatpush1.xpose.msra.mxu0 0.0
      %1909 = vmatprep.subr.mxu0 0.0
      %1910 = vmatpush1.xpose.msra.mxu0 0.0
      %1911 = vmatprep.subr.mxu0 0.0
      %1912 = vmatpush1.xpose.msra.mxu0 0.0
      %1913 = vmatprep.subr.mxu0 0.0
      %1914 = vmatpush1.xpose.msra.mxu0 0.0
      %1915 = vmatprep.subr.mxu0 0.0
      %1916 = vmatpush1.xpose.msra.mxu0 0.0
      %1917 = vmatprep.subr.mxu0 0.0
      %1918 = vmatpush1.xpose.msra.mxu0 0.0
      %1919 = vmatprep.subr.mxu0 0.0
      %1920 = vmatpush1.xpose.msra.mxu0 0.0
      %1921 = vmatprep.subr.mxu0 0.0
      %1922 = vmatpush1.xpose.msra.mxu0 0.0
      %1923 = vmatprep.subr.mxu0 0.0
      %1924 = vmatpush1.xpose.msra.mxu0 0.0
      %1925 = vmatprep.subr.mxu0 0.0
      %1926 = vmatpush1.xpose.msra.mxu0 0.0
      %1927 = vmatprep.subr.mxu0 0.0
      %1928 = vmatpush1.xpose.msra.mxu0 0.0
      %1929 = vmatprep.subr.mxu0 0.0
      %1930 = vmatpush1.xpose.msra.mxu0 0.0
      %1931 = vmatprep.subr.mxu0 0.0
      %1932 = vmatpush1.xpose.msra.mxu0 0.0
      %1933 = vmatprep.subr.mxu0 0.0
      %1934 = vmatpush1.xpose.msra.mxu0 0.0
      %1935 = vmatprep.subr.mxu0 0.0
      %1936 = vmatpush1.xpose.msra.mxu0 0.0
      %1937 = vmatprep.subr.mxu0 0.0
      %1938 = vmatpush1.xpose.msra.mxu0 0.0
      %1939 = vmatprep.subr.mxu0 0.0
      %1940 = vmatpush1.xpose.msra.mxu0 0.0
      %1941 = vmatprep.subr.mxu0 0.0
      %1942 = vmatpush1.xpose.msra.mxu0 0.0
      %1943 = vmatprep.subr.mxu0 0.0
      %1944 = vmatpush1.xpose.msra.mxu0 0.0
      %1945 = vmatprep.subr.mxu0 0.0
      %1946 = vmatpush1.xpose.msra.mxu0 0.0
      %1947 = vmatprep.subr.mxu0 0.0
      %1948 = vmatpush1.xpose.msra.mxu0 0.0
      %1949 = vmatprep.subr.mxu0 0.0
      %1950 = vmatpush1.xpose.msra.mxu0 0.0
      %1951 = vmatprep.subr.mxu0 0.0
      %1952 = vmatpush1.xpose.msra.mxu0 0.0
      %1953 = vmatprep.subr.mxu0 0.0
      %1954 = vmatpush1.xpose.msra.mxu0 0.0
      %1955 = vmatprep.subr.mxu0 0.0
      %1956 = vmatpush1.xpose.msra.mxu0 0.0
      %1957 = vmatprep.subr.mxu0 0.0
      %1958 = vmatpush1.xpose.msra.mxu0 0.0
      %1959 = vmatprep.mubr.f32.mxu0 0.0
      %1960 = vmatmul.mubr.f32.gmra.mrb[0].mxu0 %v1891
      %v1961 = vpop.f32.mrb[0].mxu0
      %v1962 = vadd.f32 0.0, %v1961
      %v1963 = vpop.f32.mrb[0].mxu0
      %1964 = vdwg.mxu0
      %1965 = vrot.lane.b32.xlu0 %v1060, 112
      %v1966 = vpop.permute.xlu0 %1965
      %1967 = vrot.lane.b32.xlu0 %v1060, 80
      %v1968 = vpop.permute.xlu0 %1967
      %v1969 = vsel %vm908, %v1966, 0
      %v1971 = vsel %vm908, %v1968, 0
      %1973 = vmatprep.subr.mxu0 0.0
      %1974 = vmatpush1.xpose.msra.mxu0 %v1971
      %1975 = vmatprep.subr.mxu0 0.0
      %1976 = vmatpush1.xpose.msra.mxu0 0.0
      %1977 = vmatprep.subr.mxu0 0.0
      %1978 = vmatpush1.xpose.msra.mxu0 0.0
      %1979 = vmatprep.subr.mxu0 0.0
      %1980 = vmatpush1.xpose.msra.mxu0 0.0
      %1981 = vmatprep.subr.mxu0 0.0
      %1982 = vmatpush1.xpose.msra.mxu0 0.0
      %1983 = vmatprep.subr.mxu0 0.0
      %1984 = vmatpush1.xpose.msra.mxu0 0.0
      %1985 = vmatprep.subr.mxu0 0.0
      %1986 = vmatpush1.xpose.msra.mxu0 0.0
      %1987 = vmatprep.subr.mxu0 0.0
      %1988 = vmatpush1.xpose.msra.mxu0 0.0
      %1989 = vmatprep.subr.mxu0 0.0
      %1990 = vmatpush1.xpose.msra.mxu0 0.0
      %1991 = vmatprep.subr.mxu0 0.0
      %1992 = vmatpush1.xpose.msra.mxu0 0.0
      %1993 = vmatprep.subr.mxu0 0.0
      %1994 = vmatpush1.xpose.msra.mxu0 0.0
      %1995 = vmatprep.subr.mxu0 0.0
      %1996 = vmatpush1.xpose.msra.mxu0 0.0
      %1997 = vmatprep.subr.mxu0 0.0
      %1998 = vmatpush1.xpose.msra.mxu0 0.0
      %1999 = vmatprep.subr.mxu0 0.0
      %2000 = vmatpush1.xpose.msra.mxu0 0.0
      %2001 = vmatprep.subr.mxu0 0.0
      %2002 = vmatpush1.xpose.msra.mxu0 0.0
      %2003 = vmatprep.subr.mxu0 0.0
      %2004 = vmatpush1.xpose.msra.mxu0 0.0
      %2005 = vmatprep.subr.mxu0 0.0
      %2006 = vmatpush1.xpose.msra.mxu0 0.0
      %2007 = vmatprep.subr.mxu0 0.0
      %2008 = vmatpush1.xpose.msra.mxu0 0.0
      %2009 = vmatprep.subr.mxu0 0.0
      %2010 = vmatpush1.xpose.msra.mxu0 0.0
      %2011 = vmatprep.subr.mxu0 0.0
      %2012 = vmatpush1.xpose.msra.mxu0 0.0
      %2013 = vmatprep.subr.mxu0 0.0
      %2014 = vmatpush1.xpose.msra.mxu0 0.0
      %2015 = vmatprep.subr.mxu0 0.0
      %2016 = vmatpush1.xpose.msra.mxu0 0.0
      %2017 = vmatprep.subr.mxu0 0.0
      %2018 = vmatpush1.xpose.msra.mxu0 0.0
      %2019 = vmatprep.subr.mxu0 0.0
      %2020 = vmatpush1.xpose.msra.mxu0 0.0
      %2021 = vmatprep.subr.mxu0 0.0
      %2022 = vmatpush1.xpose.msra.mxu0 0.0
      %2023 = vmatprep.subr.mxu0 0.0
      %2024 = vmatpush1.xpose.msra.mxu0 0.0
      %2025 = vmatprep.subr.mxu0 0.0
      %2026 = vmatpush1.xpose.msra.mxu0 0.0
      %2027 = vmatprep.subr.mxu0 0.0
      %2028 = vmatpush1.xpose.msra.mxu0 0.0
      %2029 = vmatprep.subr.mxu0 0.0
      %2030 = vmatpush1.xpose.msra.mxu0 0.0
      %2031 = vmatprep.subr.mxu0 0.0
      %2032 = vmatpush1.xpose.msra.mxu0 0.0
      %2033 = vmatprep.subr.mxu0 0.0
      %2034 = vmatpush1.xpose.msra.mxu0 0.0
      %2035 = vmatprep.subr.mxu0 0.0
      %2036 = vmatpush1.xpose.msra.mxu0 0.0
      %2037 = vmatprep.mubr.f32.mxu0 0.0
      %2038 = vmatmul.mubr.f32.gmra.mrb[0].mxu0 %v1969
      %v2039 = vpop.f32.mrb[0].mxu0
      %v2040 = vadd.f32 0.0, %v2039
      %v2041 = vpop.f32.mrb[0].mxu0
      %2042 = vdwg.mxu0
      %v2043 = vsel %vm908, %v1962, -inf
      %2044 = vmax.xlane.f32.xlu0 %v2043
      %v2045 = vpop.xlane.xlu0 %2044
      %v2046 = vsel %vm908, %v2040, -inf
      %2047 = vmax.xlane.f32.xlu0 %v2046
      %v2048 = vpop.xlane.xlu0 %2047
      %v2049 = vsub.f32 %v1962, %v2045
      %v2050 = vsub.f32 %v2040, %v2048
      %v2051 = vmul.f32 %v2049, 1.442695
      %v2052 = vpow.pop %v2051
      %v2053 = vmul.f32 %v2050, 1.442695
      %v2054 = vpow.pop %v2053
      %v2055 = vsel %vm908, %v2052, 0.0
      %2056 = vadd.xlane.f32.xlu0 %v2055
      %v2057 = vpop.xlane.xlu0 %2056
      %v2058 = vsel %vm908, %v2054, 0.0
      %2059 = vadd.xlane.f32.xlu0 %v2058
      %v2060 = vpop.xlane.xlu0 %2059
      %v2061 = vrcp.pop %v2057
      %v2062 = vrcp.pop %v2060
      %v2063 = vmul.f32 %v2052, %v2061
      %v2064 = vmul.f32 %v2054, %v2062
      %2065 = vrot.lane.b32.xlu0 %v1057, 48
      %v2066 = vpop.permute.xlu0 %2065
      %v2069 = vsel %vm908, %v2063, 0
      %2071 = vmatprep.subr.mxu0 0.0
      %2072 = vmatpush1.msra.mxu0 %v2066
      %2073 = vmatprep.subr.mxu0 0.0
      %2074 = vmatpush1.msra.mxu0 0.0
      %2075 = vmatprep.subr.mxu0 0.0
      %2076 = vmatpush1.msra.mxu0 0.0
      %2077 = vmatprep.subr.mxu0 0.0
      %2078 = vmatpush1.msra.mxu0 0.0
      %2079 = vmatprep.subr.mxu0 0.0
      %2080 = vmatpush1.msra.mxu0 0.0
      %2081 = vmatprep.subr.mxu0 0.0
      %2082 = vmatpush1.msra.mxu0 0.0
      %2083 = vmatprep.subr.mxu0 0.0
      %2084 = vmatpush1.msra.mxu0 0.0
      %2085 = vmatprep.subr.mxu0 0.0
      %2086 = vmatpush1.msra.mxu0 0.0
      %2087 = vmatprep.subr.mxu0 0.0
      %2088 = vmatpush1.msra.mxu0 0.0
      %2089 = vmatprep.subr.mxu0 0.0
      %2090 = vmatpush1.msra.mxu0 0.0
      %2091 = vmatprep.subr.mxu0 0.0
      %2092 = vmatpush1.msra.mxu0 0.0
      %2093 = vmatprep.subr.mxu0 0.0
      %2094 = vmatpush1.msra.mxu0 0.0
      %2095 = vmatprep.subr.mxu0 0.0
      %2096 = vmatpush1.msra.mxu0 0.0
      %2097 = vmatprep.subr.mxu0 0.0
      %2098 = vmatpush1.msra.mxu0 0.0
      %2099 = vmatprep.subr.mxu0 0.0
      %2100 = vmatpush1.msra.mxu0 0.0
      %2101 = vmatprep.subr.mxu0 0.0
      %2102 = vmatpush1.msra.mxu0 0.0
      %2103 = vmatprep.subr.mxu0 0.0
      %2104 = vmatpush1.msra.mxu0 0.0
      %2105 = vmatprep.subr.mxu0 0.0
      %2106 = vmatpush1.msra.mxu0 0.0
      %2107 = vmatprep.subr.mxu0 0.0
      %2108 = vmatpush1.msra.mxu0 0.0
      %2109 = vmatprep.subr.mxu0 0.0
      %2110 = vmatpush1.msra.mxu0 0.0
      %2111 = vmatprep.subr.mxu0 0.0
      %2112 = vmatpush1.msra.mxu0 0.0
      %2113 = vmatprep.subr.mxu0 0.0
      %2114 = vmatpush1.msra.mxu0 0.0
      %2115 = vmatprep.subr.mxu0 0.0
      %2116 = vmatpush1.msra.mxu0 0.0
      %2117 = vmatprep.subr.mxu0 0.0
      %2118 = vmatpush1.msra.mxu0 0.0
      %2119 = vmatprep.subr.mxu0 0.0
      %2120 = vmatpush1.msra.mxu0 0.0
      %2121 = vmatprep.subr.mxu0 0.0
      %2122 = vmatpush1.msra.mxu0 0.0
      %2123 = vmatprep.subr.mxu0 0.0
      %2124 = vmatpush1.msra.mxu0 0.0
      %2125 = vmatprep.subr.mxu0 0.0
      %2126 = vmatpush1.msra.mxu0 0.0
      %2127 = vmatprep.subr.mxu0 0.0
      %2128 = vmatpush1.msra.mxu0 0.0
      %2129 = vmatprep.subr.mxu0 0.0
      %2130 = vmatpush1.msra.mxu0 0.0
      %2131 = vmatprep.subr.mxu0 0.0
      %2132 = vmatpush1.msra.mxu0 0.0
      %2133 = vmatprep.subr.mxu0 0.0
      %2134 = vmatpush1.msra.mxu0 0.0
      %2135 = vmatprep.mubr.f32.mxu0 0.0
      %2136 = vmatmul.mubr.f32.gmra.mrb[0].mxu0 %v2069
      %v2137 = vpop.f32.mrb[0].mxu0
      %v2138 = vadd.f32 0.0, %v2137
      %v2139 = vpop.f32.mrb[0].mxu0
      %2140 = vdwg.mxu0
      %2141 = vrot.lane.b32.xlu0 %v1060, 48
      %v2142 = vpop.permute.xlu0 %2141
      %v2145 = vsel %vm908, %v2064, 0
      %2147 = vmatprep.subr.mxu0 0.0
      %2148 = vmatpush1.msra.mxu0 %v2142
      %2149 = vmatprep.subr.mxu0 0.0
      %2150 = vmatpush1.msra.mxu0 0.0
      %2151 = vmatprep.subr.mxu0 0.0
      %2152 = vmatpush1.msra.mxu0 0.0
      %2153 = vmatprep.subr.mxu0 0.0
      %2154 = vmatpush1.msra.mxu0 0.0
      %2155 = vmatprep.subr.mxu0 0.0
      %2156 = vmatpush1.msra.mxu0 0.0
      %2157 = vmatprep.subr.mxu0 0.0
      %2158 = vmatpush1.msra.mxu0 0.0
      %2159 = vmatprep.subr.mxu0 0.0
      %2160 = vmatpush1.msra.mxu0 0.0
      %2161 = vmatprep.subr.mxu0 0.0
      %2162 = vmatpush1.msra.mxu0 0.0
      %2163 = vmatprep.subr.mxu0 0.0
      %2164 = vmatpush1.msra.mxu0 0.0
      %2165 = vmatprep.subr.mxu0 0.0
      %2166 = vmatpush1.msra.mxu0 0.0
      %2167 = vmatprep.subr.mxu0 0.0
      %2168 = vmatpush1.msra.mxu0 0.0
      %2169 = vmatprep.subr.mxu0 0.0
      %2170 = vmatpush1.msra.mxu0 0.0
      %2171 = vmatprep.subr.mxu0 0.0
      %2172 = vmatpush1.msra.mxu0 0.0
      %2173 = vmatprep.subr.mxu0 0.0
      %2174 = vmatpush1.msra.mxu0 0.0
      %2175 = vmatprep.subr.mxu0 0.0
      %2176 = vmatpush1.msra.mxu0 0.0
      %2177 = vmatprep.subr.mxu0 0.0
      %2178 = vmatpush1.msra.mxu0 0.0
      %2179 = vmatprep.subr.mxu0 0.0
      %2180 = vmatpush1.msra.mxu0 0.0
      %2181 = vmatprep.subr.mxu0 0.0
      %2182 = vmatpush1.msra.mxu0 0.0
      %2183 = vmatprep.subr.mxu0 0.0
      %2184 = vmatpush1.msra.mxu0 0.0
      %2185 = vmatprep.subr.mxu0 0.0
      %2186 = vmatpush1.msra.mxu0 0.0
      %2187 = vmatprep.subr.mxu0 0.0
      %2188 = vmatpush1.msra.mxu0 0.0
      %2189 = vmatprep.subr.mxu0 0.0
      %2190 = vmatpush1.msra.mxu0 0.0
      %2191 = vmatprep.subr.mxu0 0.0
      %2192 = vmatpush1.msra.mxu0 0.0
      %2193 = vmatprep.subr.mxu0 0.0
      %2194 = vmatpush1.msra.mxu0 0.0
      %2195 = vmatprep.subr.mxu0 0.0
      %2196 = vmatpush1.msra.mxu0 0.0
      %2197 = vmatprep.subr.mxu0 0.0
      %2198 = vmatpush1.msra.mxu0 0.0
      %2199 = vmatprep.subr.mxu0 0.0
      %2200 = vmatpush1.msra.mxu0 0.0
      %2201 = vmatprep.subr.mxu0 0.0
      %2202 = vmatpush1.msra.mxu0 0.0
      %2203 = vmatprep.subr.mxu0 0.0
      %2204 = vmatpush1.msra.mxu0 0.0
      %2205 = vmatprep.subr.mxu0 0.0
      %2206 = vmatpush1.msra.mxu0 0.0
      %2207 = vmatprep.subr.mxu0 0.0
      %2208 = vmatpush1.msra.mxu0 0.0
      %2209 = vmatprep.subr.mxu0 0.0
      %2210 = vmatpush1.msra.mxu0 0.0
      %2211 = vmatprep.mubr.f32.mxu0 0.0
      %2212 = vmatmul.mubr.f32.gmra.mrb[0].mxu0 %v2145
      %v2213 = vpop.f32.mrb[0].mxu0
      %v2214 = vadd.f32 0.0, %v2213
      %v2215 = vpop.f32.mrb[0].mxu0
      %2216 = vdwg.mxu0
      %v2218 = vsel %vm908, %v2138, 0
      %v2221 = vsel %vm908, %v2214, 0
      %2223 = vmatprep.subr.mxu0 0.0
      %2224 = vmatpush1.msra.mxu0 %v1065
      %2225 = vmatprep.subr.mxu0 0.0
      %2226 = vmatpush1.msra.mxu0 0.0
      %2227 = vmatprep.subr.mxu0 0.0
      %2228 = vmatpush1.msra.mxu0 0.0
      %2229 = vmatprep.subr.mxu0 0.0
      %2230 = vmatpush1.msra.mxu0 0.0
      %2231 = vmatprep.subr.mxu0 0.0
      %2232 = vmatpush1.msra.mxu0 0.0
      %2233 = vmatprep.subr.mxu0 0.0
      %2234 = vmatpush1.msra.mxu0 0.0
      %2235 = vmatprep.subr.mxu0 0.0
      %2236 = vmatpush1.msra.mxu0 0.0
      %2237 = vmatprep.subr.mxu0 0.0
      %2238 = vmatpush1.msra.mxu0 0.0
      %2239 = vmatprep.subr.mxu0 0.0
      %2240 = vmatpush1.msra.mxu0 0.0
      %2241 = vmatprep.subr.mxu0 0.0
      %2242 = vmatpush1.msra.mxu0 0.0
      %2243 = vmatprep.subr.mxu0 0.0
      %2244 = vmatpush1.msra.mxu0 0.0
      %2245 = vmatprep.subr.mxu0 0.0
      %2246 = vmatpush1.msra.mxu0 0.0
      %2247 = vmatprep.subr.mxu0 0.0
      %2248 = vmatpush1.msra.mxu0 0.0
      %2249 = vmatprep.subr.mxu0 0.0
      %2250 = vmatpush1.msra.mxu0 0.0
      %2251 = vmatprep.subr.mxu0 0.0
      %2252 = vmatpush1.msra.mxu0 0.0
      %2253 = vmatprep.subr.mxu0 0.0
      %2254 = vmatpush1.msra.mxu0 0.0
      %2255 = vmatprep.subr.mxu0 0.0
      %2256 = vmatpush1.msra.mxu0 0.0
      %2257 = vmatprep.subr.mxu0 0.0
      %2258 = vmatpush1.msra.mxu0 0.0
      %2259 = vmatprep.subr.mxu0 0.0
      %2260 = vmatpush1.msra.mxu0 0.0
      %2261 = vmatprep.subr.mxu0 0.0
      %2262 = vmatpush1.msra.mxu0 0.0
      %2263 = vmatprep.subr.mxu0 0.0
      %2264 = vmatpush1.msra.mxu0 0.0
      %2265 = vmatprep.subr.mxu0 0.0
      %2266 = vmatpush1.msra.mxu0 0.0
      %2267 = vmatprep.subr.mxu0 0.0
      %2268 = vmatpush1.msra.mxu0 0.0
      %2269 = vmatprep.subr.mxu0 0.0
      %2270 = vmatpush1.msra.mxu0 0.0
      %2271 = vmatprep.subr.mxu0 0.0
      %2272 = vmatpush1.msra.mxu0 0.0
      %2273 = vmatprep.subr.mxu0 0.0
      %2274 = vmatpush1.msra.mxu0 0.0
      %2275 = vmatprep.subr.mxu0 0.0
      %2276 = vmatpush1.msra.mxu0 0.0
      %2277 = vmatprep.subr.mxu0 0.0
      %2278 = vmatpush1.msra.mxu0 0.0
      %2279 = vmatprep.subr.mxu0 0.0
      %2280 = vmatpush1.msra.mxu0 0.0
      %2281 = vmatprep.subr.mxu0 0.0
      %2282 = vmatpush1.msra.mxu0 0.0
      %2283 = vmatprep.subr.mxu0 0.0
      %2284 = vmatpush1.msra.mxu0 0.0
      %2285 = vmatprep.subr.mxu0 0.0
      %2286 = vmatpush1.msra.mxu0 0.0
      %2287 = vmatprep.mubr.f32.mxu0 0.0
      %2288 = vmatmul.mubr.f32.gmra.mrb[0].mxu0 %v2218
      %v2289 = vpop.f32.mrb[0].mxu0
      %v2290 = vadd.f32 0.0, %v2289
      %v2291 = vpop.f32.mrb[0].mxu0
      %2292 = vmatprep.mubr.f32.mxu0 0.0
      %2293 = vmatmul.mubr.f32.gmra.mrb[0].mxu0 %v2221
      %v2294 = vpop.f32.mrb[0].mxu0
      %v2295 = vadd.f32 0.0, %v2294
      %v2296 = vpop.f32.mrb[0].mxu0
      %2297 = vdwg.mxu0
      %v2298 = vadd.f32 %v1879, %v2290
      %v2299 = vadd.f32 %v1884, %v2295
      %2300 = vrot.lane.b32.xlu0 %v1057, 104
      %v2301 = vpop.permute.xlu0 %2300
      %2302 = vrot.lane.b32.xlu0 %v1057, 72
      %v2303 = vpop.permute.xlu0 %2302
      %v2304 = vsel %vm908, %v2301, 0
      %v2306 = vsel %vm908, %v2303, 0
      %2308 = vmatprep.subr.mxu0 0.0
      %2309 = vmatpush1.xpose.msra.mxu0 %v2306
      %2310 = vmatprep.subr.mxu0 0.0
      %2311 = vmatpush1.xpose.msra.mxu0 0.0
      %2312 = vmatprep.subr.mxu0 0.0
      %2313 = vmatpush1.xpose.msra.mxu0 0.0
      %2314 = vmatprep.subr.mxu0 0.0
      %2315 = vmatpush1.xpose.msra.mxu0 0.0
      %2316 = vmatprep.subr.mxu0 0.0
      %2317 = vmatpush1.xpose.msra.mxu0 0.0
      %2318 = vmatprep.subr.mxu0 0.0
      %2319 = vmatpush1.xpose.msra.mxu0 0.0
      %2320 = vmatprep.subr.mxu0 0.0
      %2321 = vmatpush1.xpose.msra.mxu0 0.0
      %2322 = vmatprep.subr.mxu0 0.0
      %2323 = vmatpush1.xpose.msra.mxu0 0.0
      %2324 = vmatprep.subr.mxu0 0.0
      %2325 = vmatpush1.xpose.msra.mxu0 0.0
      %2326 = vmatprep.subr.mxu0 0.0
      %2327 = vmatpush1.xpose.msra.mxu0 0.0
      %2328 = vmatprep.subr.mxu0 0.0
      %2329 = vmatpush1.xpose.msra.mxu0 0.0
      %2330 = vmatprep.subr.mxu0 0.0
      %2331 = vmatpush1.xpose.msra.mxu0 0.0
      %2332 = vmatprep.subr.mxu0 0.0
      %2333 = vmatpush1.xpose.msra.mxu0 0.0
      %2334 = vmatprep.subr.mxu0 0.0
      %2335 = vmatpush1.xpose.msra.mxu0 0.0
      %2336 = vmatprep.subr.mxu0 0.0
      %2337 = vmatpush1.xpose.msra.mxu0 0.0
      %2338 = vmatprep.subr.mxu0 0.0
      %2339 = vmatpush1.xpose.msra.mxu0 0.0
      %2340 = vmatprep.subr.mxu0 0.0
      %2341 = vmatpush1.xpose.msra.mxu0 0.0
      %2342 = vmatprep.subr.mxu0 0.0
      %2343 = vmatpush1.xpose.msra.mxu0 0.0
      %2344 = vmatprep.subr.mxu0 0.0
      %2345 = vmatpush1.xpose.msra.mxu0 0.0
      %2346 = vmatprep.subr.mxu0 0.0
      %2347 = vmatpush1.xpose.msra.mxu0 0.0
      %2348 = vmatprep.subr.mxu0 0.0
      %2349 = vmatpush1.xpose.msra.mxu0 0.0
      %2350 = vmatprep.subr.mxu0 0.0
      %2351 = vmatpush1.xpose.msra.mxu0 0.0
      %2352 = vmatprep.subr.mxu0 0.0
      %2353 = vmatpush1.xpose.msra.mxu0 0.0
      %2354 = vmatprep.subr.mxu0 0.0
      %2355 = vmatpush1.xpose.msra.mxu0 0.0
      %2356 = vmatprep.subr.mxu0 0.0
      %2357 = vmatpush1.xpose.msra.mxu0 0.0
      %2358 = vmatprep.subr.mxu0 0.0
      %2359 = vmatpush1.xpose.msra.mxu0 0.0
      %2360 = vmatprep.subr.mxu0 0.0
      %2361 = vmatpush1.xpose.msra.mxu0 0.0
      %2362 = vmatprep.subr.mxu0 0.0
      %2363 = vmatpush1.xpose.msra.mxu0 0.0
      %2364 = vmatprep.subr.mxu0 0.0
      %2365 = vmatpush1.xpose.msra.mxu0 0.0
      %2366 = vmatprep.subr.mxu0 0.0
      %2367 = vmatpush1.xpose.msra.mxu0 0.0
      %2368 = vmatprep.subr.mxu0 0.0
      %2369 = vmatpush1.xpose.msra.mxu0 0.0
      %2370 = vmatprep.subr.mxu0 0.0
      %2371 = vmatpush1.xpose.msra.mxu0 0.0
      %2372 = vmatprep.mubr.f32.mxu0 0.0
      %2373 = vmatmul.mubr.f32.gmra.mrb[0].mxu0 %v2304
      %v2374 = vpop.f32.mrb[0].mxu0
      %v2375 = vadd.f32 0.0, %v2374
      %v2376 = vpop.f32.mrb[0].mxu0
      %2377 = vdwg.mxu0
      %2378 = vrot.lane.b32.xlu0 %v1060, 104
      %v2379 = vpop.permute.xlu0 %2378
      %2380 = vrot.lane.b32.xlu0 %v1060, 72
      %v2381 = vpop.permute.xlu0 %2380
      %v2382 = vsel %vm908, %v2379, 0
      %v2384 = vsel %vm908, %v2381, 0
      %2386 = vmatprep.subr.mxu0 0.0
      %2387 = vmatpush1.xpose.msra.mxu0 %v2384
      %2388 = vmatprep.subr.mxu0 0.0
      %2389 = vmatpush1.xpose.msra.mxu0 0.0
      %2390 = vmatprep.subr.mxu0 0.0
      %2391 = vmatpush1.xpose.msra.mxu0 0.0
      %2392 = vmatprep.subr.mxu0 0.0
      %2393 = vmatpush1.xpose.msra.mxu0 0.0
      %2394 = vmatprep.subr.mxu0 0.0
      %2395 = vmatpush1.xpose.msra.mxu0 0.0
      %2396 = vmatprep.subr.mxu0 0.0
      %2397 = vmatpush1.xpose.msra.mxu0 0.0
      %2398 = vmatprep.subr.mxu0 0.0
      %2399 = vmatpush1.xpose.msra.mxu0 0.0
      %2400 = vmatprep.subr.mxu0 0.0
      %2401 = vmatpush1.xpose.msra.mxu0 0.0
      %2402 = vmatprep.subr.mxu0 0.0
      %2403 = vmatpush1.xpose.msra.mxu0 0.0
      %2404 = vmatprep.subr.mxu0 0.0
      %2405 = vmatpush1.xpose.msra.mxu0 0.0
      %2406 = vmatprep.subr.mxu0 0.0
      %2407 = vmatpush1.xpose.msra.mxu0 0.0
      %2408 = vmatprep.subr.mxu0 0.0
      %2409 = vmatpush1.xpose.msra.mxu0 0.0
      %2410 = vmatprep.subr.mxu0 0.0
      %2411 = vmatpush1.xpose.msra.mxu0 0.0
      %2412 = vmatprep.subr.mxu0 0.0
      %2413 = vmatpush1.xpose.msra.mxu0 0.0
      %2414 = vmatprep.subr.mxu0 0.0
      %2415 = vmatpush1.xpose.msra.mxu0 0.0
      %2416 = vmatprep.subr.mxu0 0.0
      %2417 = vmatpush1.xpose.msra.mxu0 0.0
      %2418 = vmatprep.subr.mxu0 0.0
      %2419 = vmatpush1.xpose.msra.mxu0 0.0
      %2420 = vmatprep.subr.mxu0 0.0
      %2421 = vmatpush1.xpose.msra.mxu0 0.0
      %2422 = vmatprep.subr.mxu0 0.0
      %2423 = vmatpush1.xpose.msra.mxu0 0.0
      %2424 = vmatprep.subr.mxu0 0.0
      %2425 = vmatpush1.xpose.msra.mxu0 0.0
      %2426 = vmatprep.subr.mxu0 0.0
      %2427 = vmatpush1.xpose.msra.mxu0 0.0
      %2428 = vmatprep.subr.mxu0 0.0
      %2429 = vmatpush1.xpose.msra.mxu0 0.0
      %2430 = vmatprep.subr.mxu0 0.0
      %2431 = vmatpush1.xpose.msra.mxu0 0.0
      %2432 = vmatprep.subr.mxu0 0.0
      %2433 = vmatpush1.xpose.msra.mxu0 0.0
      %2434 = vmatprep.subr.mxu0 0.0
      %2435 = vmatpush1.xpose.msra.mxu0 0.0
      %2436 = vmatprep.subr.mxu0 0.0
      %2437 = vmatpush1.xpose.msra.mxu0 0.0
      %2438 = vmatprep.subr.mxu0 0.0
      %2439 = vmatpush1.xpose.msra.mxu0 0.0
      %2440 = vmatprep.subr.mxu0 0.0
      %2441 = vmatpush1.xpose.msra.mxu0 0.0
      %2442 = vmatprep.subr.mxu0 0.0
      %2443 = vmatpush1.xpose.msra.mxu0 0.0
      %2444 = vmatprep.subr.mxu0 0.0
      %2445 = vmatpush1.xpose.msra.mxu0 0.0
      %2446 = vmatprep.subr.mxu0 0.0
      %2447 = vmatpush1.xpose.msra.mxu0 0.0
      %2448 = vmatprep.subr.mxu0 0.0
      %2449 = vmatpush1.xpose.msra.mxu0 0.0
      %2450 = vmatprep.mubr.f32.mxu0 0.0
      %2451 = vmatmul.mubr.f32.gmra.mrb[0].mxu0 %v2382
      %v2452 = vpop.f32.mrb[0].mxu0
      %v2453 = vadd.f32 0.0, %v2452
      %v2454 = vpop.f32.mrb[0].mxu0
      %2455 = vdwg.mxu0
      %v2456 = vsel %vm908, %v2375, -inf
      %2457 = vmax.xlane.f32.xlu0 %v2456
      %v2458 = vpop.xlane.xlu0 %2457
      %v2459 = vsel %vm908, %v2453, -inf
      %2460 = vmax.xlane.f32.xlu0 %v2459
      %v2461 = vpop.xlane.xlu0 %2460
      %v2462 = vsub.f32 %v2375, %v2458
      %v2463 = vsub.f32 %v2453, %v2461
      %v2464 = vmul.f32 %v2462, 1.442695
      %v2465 = vpow.pop %v2464
      %v2466 = vmul.f32 %v2463, 1.442695
      %v2467 = vpow.pop %v2466
      %v2468 = vsel %vm908, %v2465, 0.0
      %2469 = vadd.xlane.f32.xlu0 %v2468
      %v2470 = vpop.xlane.xlu0 %2469
      %v2471 = vsel %vm908, %v2467, 0.0
      %2472 = vadd.xlane.f32.xlu0 %v2471
      %v2473 = vpop.xlane.xlu0 %2472
      %v2474 = vrcp.pop %v2470
      %v2475 = vrcp.pop %v2473
      %v2476 = vmul.f32 %v2465, %v2474
      %v2477 = vmul.f32 %v2467, %v2475
      %2478 = vrot.lane.b32.xlu0 %v1057, 40
      %v2479 = vpop.permute.xlu0 %2478
      %v2482 = vsel %vm908, %v2476, 0
      %2484 = vmatprep.subr.mxu0 0.0
      %2485 = vmatpush1.msra.mxu0 %v2479
      %2486 = vmatprep.subr.mxu0 0.0
      %2487 = vmatpush1.msra.mxu0 0.0
      %2488 = vmatprep.subr.mxu0 0.0
      %2489 = vmatpush1.msra.mxu0 0.0
      %2490 = vmatprep.subr.mxu0 0.0
      %2491 = vmatpush1.msra.mxu0 0.0
      %2492 = vmatprep.subr.mxu0 0.0
      %2493 = vmatpush1.msra.mxu0 0.0
      %2494 = vmatprep.subr.mxu0 0.0
      %2495 = vmatpush1.msra.mxu0 0.0
      %2496 = vmatprep.subr.mxu0 0.0
      %2497 = vmatpush1.msra.mxu0 0.0
      %2498 = vmatprep.subr.mxu0 0.0
      %2499 = vmatpush1.msra.mxu0 0.0
      %2500 = vmatprep.subr.mxu0 0.0
      %2501 = vmatpush1.msra.mxu0 0.0
      %2502 = vmatprep.subr.mxu0 0.0
      %2503 = vmatpush1.msra.mxu0 0.0
      %2504 = vmatprep.subr.mxu0 0.0
      %2505 = vmatpush1.msra.mxu0 0.0
      %2506 = vmatprep.subr.mxu0 0.0
      %2507 = vmatpush1.msra.mxu0 0.0
      %2508 = vmatprep.subr.mxu0 0.0
      %2509 = vmatpush1.msra.mxu0 0.0
      %2510 = vmatprep.subr.mxu0 0.0
      %2511 = vmatpush1.msra.mxu0 0.0
      %2512 = vmatprep.subr.mxu0 0.0
      %2513 = vmatpush1.msra.mxu0 0.0
      %2514 = vmatprep.subr.mxu0 0.0
      %2515 = vmatpush1.msra.mxu0 0.0
      %2516 = vmatprep.subr.mxu0 0.0
      %2517 = vmatpush1.msra.mxu0 0.0
      %2518 = vmatprep.subr.mxu0 0.0
      %2519 = vmatpush1.msra.mxu0 0.0
      %2520 = vmatprep.subr.mxu0 0.0
      %2521 = vmatpush1.msra.mxu0 0.0
      %2522 = vmatprep.subr.mxu0 0.0
      %2523 = vmatpush1.msra.mxu0 0.0
      %2524 = vmatprep.subr.mxu0 0.0
      %2525 = vmatpush1.msra.mxu0 0.0
      %2526 = vmatprep.subr.mxu0 0.0
      %2527 = vmatpush1.msra.mxu0 0.0
      %2528 = vmatprep.subr.mxu0 0.0
      %2529 = vmatpush1.msra.mxu0 0.0
      %2530 = vmatprep.subr.mxu0 0.0
      %2531 = vmatpush1.msra.mxu0 0.0
      %2532 = vmatprep.subr.mxu0 0.0
      %2533 = vmatpush1.msra.mxu0 0.0
      %2534 = vmatprep.subr.mxu0 0.0
      %2535 = vmatpush1.msra.mxu0 0.0
      %2536 = vmatprep.subr.mxu0 0.0
      %2537 = vmatpush1.msra.mxu0 0.0
      %2538 = vmatprep.subr.mxu0 0.0
      %2539 = vmatpush1.msra.mxu0 0.0
      %2540 = vmatprep.subr.mxu0 0.0
      %2541 = vmatpush1.msra.mxu0 0.0
      %2542 = vmatprep.subr.mxu0 0.0
      %2543 = vmatpush1.msra.mxu0 0.0
      %2544 = vmatprep.subr.mxu0 0.0
      %2545 = vmatpush1.msra.mxu0 0.0
      %2546 = vmatprep.subr.mxu0 0.0
      %2547 = vmatpush1.msra.mxu0 0.0
      %2548 = vmatprep.mubr.f32.mxu0 0.0
      %2549 = vmatmul.mubr.f32.gmra.mrb[0].mxu0 %v2482
      %v2550 = vpop.f32.mrb[0].mxu0
      %v2551 = vadd.f32 0.0, %v2550
      %v2552 = vpop.f32.mrb[0].mxu0
      %2553 = vdwg.mxu0
      %2554 = vrot.lane.b32.xlu0 %v1060, 40
      %v2555 = vpop.permute.xlu0 %2554
      %v2558 = vsel %vm908, %v2477, 0
      %2560 = vmatprep.subr.mxu0 0.0
      %2561 = vmatpush1.msra.mxu0 %v2555
      %2562 = vmatprep.subr.mxu0 0.0
      %2563 = vmatpush1.msra.mxu0 0.0
      %2564 = vmatprep.subr.mxu0 0.0
      %2565 = vmatpush1.msra.mxu0 0.0
      %2566 = vmatprep.subr.mxu0 0.0
      %2567 = vmatpush1.msra.mxu0 0.0
      %2568 = vmatprep.subr.mxu0 0.0
      %2569 = vmatpush1.msra.mxu0 0.0
      %2570 = vmatprep.subr.mxu0 0.0
      %2571 = vmatpush1.msra.mxu0 0.0
      %2572 = vmatprep.subr.mxu0 0.0
      %2573 = vmatpush1.msra.mxu0 0.0
      %2574 = vmatprep.subr.mxu0 0.0
      %2575 = vmatpush1.msra.mxu0 0.0
      %2576 = vmatprep.subr.mxu0 0.0
      %2577 = vmatpush1.msra.mxu0 0.0
      %2578 = vmatprep.subr.mxu0 0.0
      %2579 = vmatpush1.msra.mxu0 0.0
      %2580 = vmatprep.subr.mxu0 0.0
      %2581 = vmatpush1.msra.mxu0 0.0
      %2582 = vmatprep.subr.mxu0 0.0
      %2583 = vmatpush1.msra.mxu0 0.0
      %2584 = vmatprep.subr.mxu0 0.0
      %2585 = vmatpush1.msra.mxu0 0.0
      %2586 = vmatprep.subr.mxu0 0.0
      %2587 = vmatpush1.msra.mxu0 0.0
      %2588 = vmatprep.subr.mxu0 0.0
      %2589 = vmatpush1.msra.mxu0 0.0
      %2590 = vmatprep.subr.mxu0 0.0
      %2591 = vmatpush1.msra.mxu0 0.0
      %2592 = vmatprep.subr.mxu0 0.0
      %2593 = vmatpush1.msra.mxu0 0.0
      %2594 = vmatprep.subr.mxu0 0.0
      %2595 = vmatpush1.msra.mxu0 0.0
      %2596 = vmatprep.subr.mxu0 0.0
      %2597 = vmatpush1.msra.mxu0 0.0
      %2598 = vmatprep.subr.mxu0 0.0
      %2599 = vmatpush1.msra.mxu0 0.0
      %2600 = vmatprep.subr.mxu0 0.0
      %2601 = vmatpush1.msra.mxu0 0.0
      %2602 = vmatprep.subr.mxu0 0.0
      %2603 = vmatpush1.msra.mxu0 0.0
      %2604 = vmatprep.subr.mxu0 0.0
      %2605 = vmatpush1.msra.mxu0 0.0
      %2606 = vmatprep.subr.mxu0 0.0
      %2607 = vmatpush1.msra.mxu0 0.0
      %2608 = vmatprep.subr.mxu0 0.0
      %2609 = vmatpush1.msra.mxu0 0.0
      %2610 = vmatprep.subr.mxu0 0.0
      %2611 = vmatpush1.msra.mxu0 0.0
      %2612 = vmatprep.subr.mxu0 0.0
      %2613 = vmatpush1.msra.mxu0 0.0
      %2614 = vmatprep.subr.mxu0 0.0
      %2615 = vmatpush1.msra.mxu0 0.0
      %2616 = vmatprep.subr.mxu0 0.0
      %2617 = vmatpush1.msra.mxu0 0.0
      %2618 = vmatprep.subr.mxu0 0.0
      %2619 = vmatpush1.msra.mxu0 0.0
      %2620 = vmatprep.subr.mxu0 0.0
      %2621 = vmatpush1.msra.mxu0 0.0
      %2622 = vmatprep.subr.mxu0 0.0
      %2623 = vmatpush1.msra.mxu0 0.0
      %2624 = vmatprep.mubr.f32.mxu0 0.0
      %2625 = vmatmul.mubr.f32.gmra.mrb[0].mxu0 %v2558
      %v2626 = vpop.f32.mrb[0].mxu0
      %v2627 = vadd.f32 0.0, %v2626
      %v2628 = vpop.f32.mrb[0].mxu0
      %2629 = vdwg.mxu0
      %v2631 = vsel %vm908, %v2551, 0
      %v2634 = vsel %vm908, %v2627, 0
      %2636 = vmatprep.subr.mxu0 0.0
      %2637 = vmatpush1.msra.mxu0 %v1066
      %2638 = vmatprep.subr.mxu0 0.0
      %2639 = vmatpush1.msra.mxu0 0.0
      %2640 = vmatprep.subr.mxu0 0.0
      %2641 = vmatpush1.msra.mxu0 0.0
      %2642 = vmatprep.subr.mxu0 0.0
      %2643 = vmatpush1.msra.mxu0 0.0
      %2644 = vmatprep.subr.mxu0 0.0
      %2645 = vmatpush1.msra.mxu0 0.0
      %2646 = vmatprep.subr.mxu0 0.0
      %2647 = vmatpush1.msra.mxu0 0.0
      %2648 = vmatprep.subr.mxu0 0.0
      %2649 = vmatpush1.msra.mxu0 0.0
      %2650 = vmatprep.subr.mxu0 0.0
      %2651 = vmatpush1.msra.mxu0 0.0
      %2652 = vmatprep.subr.mxu0 0.0
      %2653 = vmatpush1.msra.mxu0 0.0
      %2654 = vmatprep.subr.mxu0 0.0
      %2655 = vmatpush1.msra.mxu0 0.0
      %2656 = vmatprep.subr.mxu0 0.0
      %2657 = vmatpush1.msra.mxu0 0.0
      %2658 = vmatprep.subr.mxu0 0.0
      %2659 = vmatpush1.msra.mxu0 0.0
      %2660 = vmatprep.subr.mxu0 0.0
      %2661 = vmatpush1.msra.mxu0 0.0
      %2662 = vmatprep.subr.mxu0 0.0
      %2663 = vmatpush1.msra.mxu0 0.0
      %2664 = vmatprep.subr.mxu0 0.0
      %2665 = vmatpush1.msra.mxu0 0.0
      %2666 = vmatprep.subr.mxu0 0.0
      %2667 = vmatpush1.msra.mxu0 0.0
      %2668 = vmatprep.subr.mxu0 0.0
      %2669 = vmatpush1.msra.mxu0 0.0
      %2670 = vmatprep.subr.mxu0 0.0
      %2671 = vmatpush1.msra.mxu0 0.0
      %2672 = vmatprep.subr.mxu0 0.0
      %2673 = vmatpush1.msra.mxu0 0.0
      %2674 = vmatprep.subr.mxu0 0.0
      %2675 = vmatpush1.msra.mxu0 0.0
      %2676 = vmatprep.subr.mxu0 0.0
      %2677 = vmatpush1.msra.mxu0 0.0
      %2678 = vmatprep.subr.mxu0 0.0
      %2679 = vmatpush1.msra.mxu0 0.0
      %2680 = vmatprep.subr.mxu0 0.0
      %2681 = vmatpush1.msra.mxu0 0.0
      %2682 = vmatprep.subr.mxu0 0.0
      %2683 = vmatpush1.msra.mxu0 0.0
      %2684 = vmatprep.subr.mxu0 0.0
      %2685 = vmatpush1.msra.mxu0 0.0
      %2686 = vmatprep.subr.mxu0 0.0
      %2687 = vmatpush1.msra.mxu0 0.0
      %2688 = vmatprep.subr.mxu0 0.0
      %2689 = vmatpush1.msra.mxu0 0.0
      %2690 = vmatprep.subr.mxu0 0.0
      %2691 = vmatpush1.msra.mxu0 0.0
      %2692 = vmatprep.subr.mxu0 0.0
      %2693 = vmatpush1.msra.mxu0 0.0
      %2694 = vmatprep.subr.mxu0 0.0
      %2695 = vmatpush1.msra.mxu0 0.0
      %2696 = vmatprep.subr.mxu0 0.0
      %2697 = vmatpush1.msra.mxu0 0.0
      %2698 = vmatprep.subr.mxu0 0.0
      %2699 = vmatpush1.msra.mxu0 0.0
      %2700 = vmatprep.mubr.f32.mxu0 0.0
      %2701 = vmatmul.mubr.f32.gmra.mrb[0].mxu0 %v2631
      %v2702 = vpop.f32.mrb[0].mxu0
      %v2703 = vadd.f32 0.0, %v2702
      %v2704 = vpop.f32.mrb[0].mxu0
      %2705 = vmatprep.mubr.f32.mxu0 0.0
      %2706 = vmatmul.mubr.f32.gmra.mrb[0].mxu0 %v2634
      %v2707 = vpop.f32.mrb[0].mxu0
      %v2708 = vadd.f32 0.0, %v2707
      %v2709 = vpop.f32.mrb[0].mxu0
      %2710 = vdwg.mxu0
      %v2711 = vadd.f32 %v2298, %v2703
      %v2712 = vadd.f32 %v2299, %v2708
      %v2713 = vld [vmem:[%s867] sm:$0x1]
      %v2715 = vlaneseq
      %v2716 = vshrl.u32 %v2715, 7
      %v2717 = vsub.s32 0, %v2716
      %v2718 = vrot.slane %v2713, %v2717
      %v2720 = vadd.f32 %v2711, %v2718
      %v2721 = vadd.f32 %v2712, %v2718
      %v2722 = vadd.f32 %v992, %v2720
      %v2723 = vadd.f32 %v993, %v2721
      %v2724 = vld [vmem:[%s870] sm:$0x1]
      %v2725 = vld [vmem:[%s873] sm:$0x1]
      %v2726 = vsel %vm1018, %v2722, 0.0
      %2727 = vadd.xlane.f32.xlu0 %v2726
      %v2728 = vpop.xlane.xlu0 %2727
      %v2729 = vsel %vm1018, %v2723, 0.0
      %2730 = vadd.xlane.f32.xlu0 %v2729
      %v2731 = vpop.xlane.xlu0 %2730
      %v2732 = vrcp.pop 32.0
      %v2733 = vmul.f32 %v2728, %v2732
      %v2734 = vmul.f32 %v2731, %v2732
      %v2735 = vsub.f32 %v2722, %v2733
      %v2736 = vsub.f32 %v2723, %v2734
      %v2737 = vmul.f32 %v2735, %v2735
      %v2738 = vmul.f32 %v2736, %v2736
      %v2739 = vsel %vm1018, %v2737, 0.0
      %2740 = vadd.xlane.f32.xlu0 %v2739
      %v2741 = vpop.xlane.xlu0 %2740
      %v2742 = vsel %vm1018, %v2738, 0.0
      %2743 = vadd.xlane.f32.xlu0 %v2742
      %v2744 = vpop.xlane.xlu0 %2743
      %v2745 = vmul.f32 %v2741, %v2732
      %v2746 = vmul.f32 %v2744, %v2732
      %v2747 = vadd.f32 %v2745, 1e-05
      %v2748 = vadd.f32 %v2746, 1e-05
      %v2749 = vrsqrt.pop %v2747
      %v2750 = vrsqrt.pop %v2748
      %v2751 = vmul.f32 %v2735, %v2749
      %v2752 = vmul.f32 %v2736, %v2750
      %v2754 = vlaneseq
      %v2755 = vshrl.u32 %v2754, 7
      %v2756 = vsub.s32 0, %v2755
      %v2757 = vrot.slane %v2724, %v2756
      %v2759 = vmul.f32 %v2751, %v2757
      %v2760 = vmul.f32 %v2752, %v2757
      %v2762 = vlaneseq
      %v2763 = vshrl.u32 %v2762, 7
      %v2764 = vsub.s32 0, %v2763
      %v2765 = vrot.slane %v2725, %v2764
      %v2767 = vadd.f32 %v2759, %v2765
      %v2768 = vadd.f32 %v2760, %v2765
      %v2769 = vpack.c.bf16 %v2768, %v2767
      %v2770 = vld [vmem:[%s878] sm:$0xff]
      %v2771 = vld [vmem:[%s878 + $0x8] sm:$0xff]
      %v2772 = vld [vmem:[%s878 + $0x10] sm:$0xff]
      %v2773 = vld [vmem:[%s878 + $0x18] sm:$0xff]
      %v2774 = vld [vmem:[%s878 + $0x20] sm:$0xff]
      %v2775 = vld [vmem:[%s878 + $0x28] sm:$0xff]
      %v2776 = vld [vmem:[%s878 + $0x30] sm:$0xff]
      %v2777 = vld [vmem:[%s878 + $0x38] sm:$0xff]
      %v2778 = vld [vmem:[%s878 + $0x40] sm:$0xff]
      %v2779 = vld [vmem:[%s878 + $0x48] sm:$0xff]
      %v2780 = vld [vmem:[%s878 + $0x50] sm:$0xff]
      %v2781 = vld [vmem:[%s878 + $0x58] sm:$0xff]
      %v2782 = vld [vmem:[%s878 + $0x60] sm:$0xff]
      %v2783 = vld [vmem:[%s878 + $0x68] sm:$0xff]
      %v2784 = vld [vmem:[%s878 + $0x70] sm:$0xff]
      %v2785 = vld [vmem:[%s878 + $0x78] sm:$0xff]
      %v2786 = vld [vmem:[%s878 + $0x80] sm:$0xff]
      %v2787 = vld [vmem:[%s878 + $0x88] sm:$0xff]
      %v2788 = vld [vmem:[%s878 + $0x90] sm:$0xff]
      %v2789 = vld [vmem:[%s878 + $0x98] sm:$0xff]
      %v2790 = vld [vmem:[%s878 + $0xa0] sm:$0xff]
      %v2791 = vld [vmem:[%s878 + $0xa8] sm:$0xff]
      %v2792 = vld [vmem:[%s878 + $0xb0] sm:$0xff]
      %v2793 = vld [vmem:[%s878 + $0xb8] sm:$0xff]
      %v2794 = vld [vmem:[%s878 + $0xc0] sm:$0xff]
      %v2795 = vld [vmem:[%s878 + $0xc8] sm:$0xff]
      %v2796 = vld [vmem:[%s878 + $0xd0] sm:$0xff]
      %v2797 = vld [vmem:[%s878 + $0xd8] sm:$0xff]
      %v2798 = vld [vmem:[%s878 + $0xe0] sm:$0xff]
      %v2799 = vld [vmem:[%s878 + $0xe8] sm:$0xff]
      %v2800 = vld [vmem:[%s878 + $0xf0] sm:$0xff]
      %v2801 = vld [vmem:[%s878 + $0xf8] sm:$0xff]
      %v2802 = vld [vmem:[%s882] sm:$0xff]
      %v2803 = vld [vmem:[%s882 + $0x8] sm:$0xff]
      %v2806 = vlaneseq
      %v2807 = vshrl.u32 %v2806, 7
      %v2808 = vsub.s32 0, %v2807
      %v2809 = vrot.slane %v2802, %v2808
      %v2810 = vlaneseq
      %v2811 = vshrl.u32 %v2810, 7
      %v2812 = vsub.s32 1, %v2811
      %v2813 = vrot.slane %v2802, %v2812
      %v2814 = vlaneseq
      %v2815 = vshrl.u32 %v2814, 7
      %v2816 = vsub.s32 2, %v2815
      %v2817 = vrot.slane %v2802, %v2816
      %v2818 = vlaneseq
      %v2819 = vshrl.u32 %v2818, 7
      %v2820 = vsub.s32 3, %v2819
      %v2821 = vrot.slane %v2802, %v2820
      %v2822 = vlaneseq
      %v2823 = vshrl.u32 %v2822, 7
      %v2824 = vsub.s32 4, %v2823
      %v2825 = vrot.slane %v2802, %v2824
      %v2826 = vlaneseq
      %v2827 = vshrl.u32 %v2826, 7
      %v2828 = vsub.s32 5, %v2827
      %v2829 = vrot.slane %v2802, %v2828
      %v2830 = vlaneseq
      %v2831 = vshrl.u32 %v2830, 7
      %v2832 = vsub.s32 6, %v2831
      %v2833 = vrot.slane %v2802, %v2832
      %v2834 = vlaneseq
      %v2835 = vshrl.u32 %v2834, 7
      %v2836 = vsub.s32 7, %v2835
      %v2837 = vrot.slane %v2802, %v2836
      %v2838 = vlaneseq
      %v2839 = vshrl.u32 %v2838, 7
      %v2840 = vsub.s32 0, %v2839
      %v2841 = vrot.slane %v2803, %v2840
      %v2842 = vlaneseq
      %v2843 = vshrl.u32 %v2842, 7
      %v2844 = vsub.s32 1, %v2843
      %v2845 = vrot.slane %v2803, %v2844
      %v2846 = vlaneseq
      %v2847 = vshrl.u32 %v2846, 7
      %v2848 = vsub.s32 2, %v2847
      %v2849 = vrot.slane %v2803, %v2848
      %v2850 = vlaneseq
      %v2851 = vshrl.u32 %v2850, 7
      %v2852 = vsub.s32 3, %v2851
      %v2853 = vrot.slane %v2803, %v2852
      %v2854 = vlaneseq
      %v2855 = vshrl.u32 %v2854, 7
      %v2856 = vsub.s32 4, %v2855
      %v2857 = vrot.slane %v2803, %v2856
      %v2858 = vlaneseq
      %v2859 = vshrl.u32 %v2858, 7
      %v2860 = vsub.s32 5, %v2859
      %v2861 = vrot.slane %v2803, %v2860
      %v2862 = vlaneseq
      %v2863 = vshrl.u32 %v2862, 7
      %v2864 = vsub.s32 6, %v2863
      %v2865 = vrot.slane %v2803, %v2864
      %v2866 = vlaneseq
      %v2867 = vshrl.u32 %v2866, 7
      %v2868 = vsub.s32 7, %v2867
      %v2869 = vrot.slane %v2803, %v2868
      %v2918 = vunpack.c.l.b16 %v2770
      %v2919 = vunpack.c.h.b16 %v2770
      %v2920 = vunpack.c.l.b16 %v2771
      %v2921 = vunpack.c.h.b16 %v2771
      %v2922 = vunpack.c.l.b16 %v2772
      %v2923 = vunpack.c.h.b16 %v2772
      %v2924 = vunpack.c.l.b16 %v2773
      %v2925 = vunpack.c.h.b16 %v2773
      %v2926 = vunpack.c.l.b16 %v2774
      %v2927 = vunpack.c.h.b16 %v2774
      %v2928 = vunpack.c.l.b16 %v2775
      %v2929 = vunpack.c.h.b16 %v2775
      %v2930 = vunpack.c.l.b16 %v2776
      %v2931 = vunpack.c.h.b16 %v2776
      %v2932 = vunpack.c.l.b16 %v2777
      %v2933 = vunpack.c.h.b16 %v2777
      %v2934 = vunpack.c.l.b16 %v2778
      %v2935 = vunpack.c.h.b16 %v2778
      %v2936 = vunpack.c.l.b16 %v2779
      %v2937 = vunpack.c.h.b16 %v2779
      %v2938 = vunpack.c.l.b16 %v2780
      %v2939 = vunpack.c.h.b16 %v2780
      %v2940 = vunpack.c.l.b16 %v2781
      %v2941 = vunpack.c.h.b16 %v2781
      %v2942 = vunpack.c.l.b16 %v2782
      %v2943 = vunpack.c.h.b16 %v2782
      %v2944 = vunpack.c.l.b16 %v2783
      %v2945 = vunpack.c.h.b16 %v2783
      %v2946 = vunpack.c.l.b16 %v2784
      %v2947 = vunpack.c.h.b16 %v2784
      %v2948 = vunpack.c.l.b16 %v2785
      %v2949 = vunpack.c.h.b16 %v2785
      %v2950 = vunpack.c.l.b16 %v2786
      %v2951 = vunpack.c.h.b16 %v2786
      %v2952 = vunpack.c.l.b16 %v2787
      %v2953 = vunpack.c.h.b16 %v2787
      %v2954 = vunpack.c.l.b16 %v2788
      %v2955 = vunpack.c.h.b16 %v2788
      %v2956 = vunpack.c.l.b16 %v2789
      %v2957 = vunpack.c.h.b16 %v2789
      %v2958 = vunpack.c.l.b16 %v2790
      %v2959 = vunpack.c.h.b16 %v2790
      %v2960 = vunpack.c.l.b16 %v2791
      %v2961 = vunpack.c.h.b16 %v2791
      %v2962 = vunpack.c.l.b16 %v2792
      %v2963 = vunpack.c.h.b16 %v2792
      %v2964 = vunpack.c.l.b16 %v2793
      %v2965 = vunpack.c.h.b16 %v2793
      %v2966 = vunpack.c.l.b16 %v2794
      %v2967 = vunpack.c.h.b16 %v2794
      %v2968 = vunpack.c.l.b16 %v2795
      %v2969 = vunpack.c.h.b16 %v2795
      %v2970 = vunpack.c.l.b16 %v2796
      %v2971 = vunpack.c.h.b16 %v2796
      %v2972 = vunpack.c.l.b16 %v2797
      %v2973 = vunpack.c.h.b16 %v2797
      %v2974 = vunpack.c.l.b16 %v2798
      %v2975 = vunpack.c.h.b16 %v2798
      %v2976 = vunpack.c.l.b16 %v2799
      %v2977 = vunpack.c.h.b16 %v2799
      %v2978 = vunpack.c.l.b16 %v2800
      %v2979 = vunpack.c.h.b16 %v2800
      %v2980 = vunpack.c.l.b16 %v2801
      %v2981 = vunpack.c.h.b16 %v2801
      %v2982 = vpack.c.b16 %v2934, %v2918
      %v2983 = vpack.c.b16 %v2935, %v2919
      %v2984 = vpack.c.b16 %v2936, %v2920
      %v2985 = vpack.c.b16 %v2937, %v2921
      %v2986 = vpack.c.b16 %v2938, %v2922
      %v2987 = vpack.c.b16 %v2939, %v2923
      %v2988 = vpack.c.b16 %v2940, %v2924
      %v2989 = vpack.c.b16 %v2941, %v2925
      %v2990 = vpack.c.b16 %v2942, %v2926
      %v2991 = vpack.c.b16 %v2943, %v2927
      %v2992 = vpack.c.b16 %v2944, %v2928
      %v2993 = vpack.c.b16 %v2945, %v2929
      %v2994 = vpack.c.b16 %v2946, %v2930
      %v2995 = vpack.c.b16 %v2947, %v2931
      %v2996 = vpack.c.b16 %v2948, %v2932
      %v2997 = vpack.c.b16 %v2949, %v2933
      %v2998 = vpack.c.b16 %v2966, %v2950
      %v2999 = vpack.c.b16 %v2967, %v2951
      %v3000 = vpack.c.b16 %v2968, %v2952
      %v3001 = vpack.c.b16 %v2969, %v2953
      %v3002 = vpack.c.b16 %v2970, %v2954
      %v3003 = vpack.c.b16 %v2971, %v2955
      %v3004 = vpack.c.b16 %v2972, %v2956
      %v3005 = vpack.c.b16 %v2973, %v2957
      %v3006 = vpack.c.b16 %v2974, %v2958
      %v3007 = vpack.c.b16 %v2975, %v2959
      %v3008 = vpack.c.b16 %v2976, %v2960
      %v3009 = vpack.c.b16 %v2977, %v2961
      %v3010 = vpack.c.b16 %v2978, %v2962
      %v3011 = vpack.c.b16 %v2979, %v2963
      %v3012 = vpack.c.b16 %v2980, %v2964
      %v3013 = vpack.c.b16 %v2981, %v2965
      %v3047 = vsel %vm1018, %v2769, 0
      %3049 = vmatprep.subr.bf16.mxu0 %v2983
      %3050 = vmatpush1.bf16.msra.mxu0 %v2982
      %3051 = vmatprep.subr.bf16.mxu0 %v2999
      %3052 = vmatpush1.bf16.msra.mxu0 %v2998
      %3053 = vmatprep.subr.bf16.mxu0 0
      %3054 = vmatpush1.bf16.msra.mxu0 0
      %3055 = vmatprep.subr.bf16.mxu0 0
      %3056 = vmatpush1.bf16.msra.mxu0 0
      %3057 = vmatprep.subr.bf16.mxu0 0
      %3058 = vmatpush1.bf16.msra.mxu0 0
      %3059 = vmatprep.subr.bf16.mxu0 0
      %3060 = vmatpush1.bf16.msra.mxu0 0
      %3061 = vmatprep.subr.bf16.mxu0 0
      %3062 = vmatpush1.bf16.msra.mxu0 0
      %3063 = vmatprep.subr.bf16.mxu0 0
      %3064 = vmatpush1.bf16.msra.mxu0 0
      %3065 = vmatprep.subr.bf16.mxu0 0
      %3066 = vmatpush1.bf16.msra.mxu0 0
      %3067 = vmatprep.subr.bf16.mxu0 0
      %3068 = vmatpush1.bf16.msra.mxu0 0
      %3069 = vmatprep.subr.bf16.mxu0 0
      %3070 = vmatpush1.bf16.msra.mxu0 0
      %3071 = vmatprep.subr.bf16.mxu0 0
      %3072 = vmatpush1.bf16.msra.mxu0 0
      %3073 = vmatprep.subr.bf16.mxu0 0
      %3074 = vmatpush1.bf16.msra.mxu0 0
      %3075 = vmatprep.subr.bf16.mxu0 0
      %3076 = vmatpush1.bf16.msra.mxu0 0
      %3077 = vmatprep.subr.bf16.mxu0 0
      %3078 = vmatpush1.bf16.msra.mxu0 0
      %3079 = vmatprep.subr.bf16.mxu0 0
      %3080 = vmatpush1.bf16.msra.mxu0 0
      %3081 = vmatprep.mubr.bf16.mxu0 0
      %3082 = vmatmul.mubr.bf16.gmra.mrb[0].mxu0 %v3047
      %v3083 = vpop.f32.mrb[0].mxu0
      %v3084 = vadd.f32 %v2809, %v3083
      %v3085 = vpop.f32.mrb[0].mxu0
      %v3086 = vadd.f32 %v2813, %v3085
      %v3087 = vpop.f32.mrb[0].mxu0
      %v3088 = vadd.f32 %v2809, %v3087
      %v3089 = vpop.f32.mrb[0].mxu0
      %v3090 = vadd.f32 %v2813, %v3089
      %3091 = vdwg.mxu0
      %3092 = vmatprep.subr.bf16.mxu0 %v2985
      %3093 = vmatpush1.bf16.msra.mxu0 %v2984
      %3094 = vmatprep.subr.bf16.mxu0 %v3001
      %3095 = vmatpush1.bf16.msra.mxu0 %v3000
      %3096 = vmatprep.subr.bf16.mxu0 0
      %3097 = vmatpush1.bf16.msra.mxu0 0
      %3098 = vmatprep.subr.bf16.mxu0 0
      %3099 = vmatpush1.bf16.msra.mxu0 0
      %3100 = vmatprep.subr.bf16.mxu0 0
      %3101 = vmatpush1.bf16.msra.mxu0 0
      %3102 = vmatprep.subr.bf16.mxu0 0
      %3103 = vmatpush1.bf16.msra.mxu0 0
      %3104 = vmatprep.subr.bf16.mxu0 0
      %3105 = vmatpush1.bf16.msra.mxu0 0
      %3106 = vmatprep.subr.bf16.mxu0 0
      %3107 = vmatpush1.bf16.msra.mxu0 0
      %3108 = vmatprep.subr.bf16.mxu0 0
      %3109 = vmatpush1.bf16.msra.mxu0 0
      %3110 = vmatprep.subr.bf16.mxu0 0
      %3111 = vmatpush1.bf16.msra.mxu0 0
      %3112 = vmatprep.subr.bf16.mxu0 0
      %3113 = vmatpush1.bf16.msra.mxu0 0
      %3114 = vmatprep.subr.bf16.mxu0 0
      %3115 = vmatpush1.bf16.msra.mxu0 0
      %3116 = vmatprep.subr.bf16.mxu0 0
      %3117 = vmatpush1.bf16.msra.mxu0 0
      %3118 = vmatprep.subr.bf16.mxu0 0
      %3119 = vmatpush1.bf16.msra.mxu0 0
      %3120 = vmatprep.subr.bf16.mxu0 0
      %3121 = vmatpush1.bf16.msra.mxu0 0
      %3122 = vmatprep.subr.bf16.mxu0 0
      %3123 = vmatpush1.bf16.msra.mxu0 0
      %3124 = vmatprep.mubr.bf16.mxu0 0
      %3125 = vmatmul.mubr.bf16.gmra.mrb[0].mxu0 %v3047
      %v3126 = vpop.f32.mrb[0].mxu0
      %v3127 = vadd.f32 %v2817, %v3126
      %v3128 = vpop.f32.mrb[0].mxu0
      %v3129 = vadd.f32 %v2821, %v3128
      %v3130 = vpop.f32.mrb[0].mxu0
      %v3131 = vadd.f32 %v2817, %v3130
      %v3132 = vpop.f32.mrb[0].mxu0
      %v3133 = vadd.f32 %v2821, %v3132
      %3134 = vdwg.mxu0
      %3135 = vmatprep.subr.bf16.mxu0 %v2987
      %3136 = vmatpush1.bf16.msra.mxu0 %v2986
      %3137 = vmatprep.subr.bf16.mxu0 %v3003
      %3138 = vmatpush1.bf16.msra.mxu0 %v3002
      %3139 = vmatprep.subr.bf16.mxu0 0
      %3140 = vmatpush1.bf16.msra.mxu0 0
      %3141 = vmatprep.subr.bf16.mxu0 0
      %3142 = vmatpush1.bf16.msra.mxu0 0
      %3143 = vmatprep.subr.bf16.mxu0 0
      %3144 = vmatpush1.bf16.msra.mxu0 0
      %3145 = vmatprep.subr.bf16.mxu0 0
      %3146 = vmatpush1.bf16.msra.mxu0 0
      %3147 = vmatprep.subr.bf16.mxu0 0
      %3148 = vmatpush1.bf16.msra.mxu0 0
      %3149 = vmatprep.subr.bf16.mxu0 0
      %3150 = vmatpush1.bf16.msra.mxu0 0
      %3151 = vmatprep.subr.bf16.mxu0 0
      %3152 = vmatpush1.bf16.msra.mxu0 0
      %3153 = vmatprep.subr.bf16.mxu0 0
      %3154 = vmatpush1.bf16.msra.mxu0 0
      %3155 = vmatprep.subr.bf16.mxu0 0
      %3156 = vmatpush1.bf16.msra.mxu0 0
      %3157 = vmatprep.subr.bf16.mxu0 0
      %3158 = vmatpush1.bf16.msra.mxu0 0
      %3159 = vmatprep.subr.bf16.mxu0 0
      %3160 = vmatpush1.bf16.msra.mxu0 0
      %3161 = vmatprep.subr.bf16.mxu0 0
      %3162 = vmatpush1.bf16.msra.mxu0 0
      %3163 = vmatprep.subr.bf16.mxu0 0
      %3164 = vmatpush1.bf16.msra.mxu0 0
      %3165 = vmatprep.subr.bf16.mxu0 0
      %3166 = vmatpush1.bf16.msra.mxu0 0
      %3167 = vmatprep.mubr.bf16.mxu0 0
      %3168 = vmatmul.mubr.bf16.gmra.mrb[0].mxu0 %v3047
      %v3169 = vpop.f32.mrb[0].mxu0
      %v3170 = vadd.f32 %v2825, %v3169
      %v3171 = vpop.f32.mrb[0].mxu0
      %v3172 = vadd.f32 %v2829, %v3171
      %v3173 = vpop.f32.mrb[0].mxu0
      %v3174 = vadd.f32 %v2825, %v3173
      %v3175 = vpop.f32.mrb[0].mxu0
      %v3176 = vadd.f32 %v2829, %v3175
      %3177 = vdwg.mxu0
      %3178 = vmatprep.subr.bf16.mxu0 %v2989
      %3179 = vmatpush1.bf16.msra.mxu0 %v2988
      %3180 = vmatprep.subr.bf16.mxu0 %v3005
      %3181 = vmatpush1.bf16.msra.mxu0 %v3004
      %3182 = vmatprep.subr.bf16.mxu0 0
      %3183 = vmatpush1.bf16.msra.mxu0 0
      %3184 = vmatprep.subr.bf16.mxu0 0
      %3185 = vmatpush1.bf16.msra.mxu0 0
      %3186 = vmatprep.subr.bf16.mxu0 0
      %3187 = vmatpush1.bf16.msra.mxu0 0
      %3188 = vmatprep.subr.bf16.mxu0 0
      %3189 = vmatpush1.bf16.msra.mxu0 0
      %3190 = vmatprep.subr.bf16.mxu0 0
      %3191 = vmatpush1.bf16.msra.mxu0 0
      %3192 = vmatprep.subr.bf16.mxu0 0
      %3193 = vmatpush1.bf16.msra.mxu0 0
      %3194 = vmatprep.subr.bf16.mxu0 0
      %3195 = vmatpush1.bf16.msra.mxu0 0
      %3196 = vmatprep.subr.bf16.mxu0 0
      %3197 = vmatpush1.bf16.msra.mxu0 0
      %3198 = vmatprep.subr.bf16.mxu0 0
      %3199 = vmatpush1.bf16.msra.mxu0 0
      %3200 = vmatprep.subr.bf16.mxu0 0
      %3201 = vmatpush1.bf16.msra.mxu0 0
      %3202 = vmatprep.subr.bf16.mxu0 0
      %3203 = vmatpush1.bf16.msra.mxu0 0
      %3204 = vmatprep.subr.bf16.mxu0 0
      %3205 = vmatpush1.bf16.msra.mxu0 0
      %3206 = vmatprep.subr.bf16.mxu0 0
      %3207 = vmatpush1.bf16.msra.mxu0 0
      %3208 = vmatprep.subr.bf16.mxu0 0
      %3209 = vmatpush1.bf16.msra.mxu0 0
      %3210 = vmatprep.mubr.bf16.mxu0 0
      %3211 = vmatmul.mubr.bf16.gmra.mrb[0].mxu0 %v3047
      %v3212 = vpop.f32.mrb[0].mxu0
      %v3213 = vadd.f32 %v2833, %v3212
      %v3214 = vpop.f32.mrb[0].mxu0
      %v3215 = vadd.f32 %v2837, %v3214
      %v3216 = vpop.f32.mrb[0].mxu0
      %v3217 = vadd.f32 %v2833, %v3216
      %v3218 = vpop.f32.mrb[0].mxu0
      %v3219 = vadd.f32 %v2837, %v3218
      %3220 = vdwg.mxu0
      %3221 = vmatprep.subr.bf16.mxu0 %v2991
      %3222 = vmatpush1.bf16.msra.mxu0 %v2990
      %3223 = vmatprep.subr.bf16.mxu0 %v3007
      %3224 = vmatpush1.bf16.msra.mxu0 %v3006
      %3225 = vmatprep.subr.bf16.mxu0 0
      %3226 = vmatpush1.bf16.msra.mxu0 0
      %3227 = vmatprep.subr.bf16.mxu0 0
      %3228 = vmatpush1.bf16.msra.mxu0 0
      %3229 = vmatprep.subr.bf16.mxu0 0
      %3230 = vmatpush1.bf16.msra.mxu0 0
      %3231 = vmatprep.subr.bf16.mxu0 0
      %3232 = vmatpush1.bf16.msra.mxu0 0
      %3233 = vmatprep.subr.bf16.mxu0 0
      %3234 = vmatpush1.bf16.msra.mxu0 0
      %3235 = vmatprep.subr.bf16.mxu0 0
      %3236 = vmatpush1.bf16.msra.mxu0 0
      %3237 = vmatprep.subr.bf16.mxu0 0
      %3238 = vmatpush1.bf16.msra.mxu0 0
      %3239 = vmatprep.subr.bf16.mxu0 0
      %3240 = vmatpush1.bf16.msra.mxu0 0
      %3241 = vmatprep.subr.bf16.mxu0 0
      %3242 = vmatpush1.bf16.msra.mxu0 0
      %3243 = vmatprep.subr.bf16.mxu0 0
      %3244 = vmatpush1.bf16.msra.mxu0 0
      %3245 = vmatprep.subr.bf16.mxu0 0
      %3246 = vmatpush1.bf16.msra.mxu0 0
      %3247 = vmatprep.subr.bf16.mxu0 0
      %3248 = vmatpush1.bf16.msra.mxu0 0
      %3249 = vmatprep.subr.bf16.mxu0 0
      %3250 = vmatpush1.bf16.msra.mxu0 0
      %3251 = vmatprep.subr.bf16.mxu0 0
      %3252 = vmatpush1.bf16.msra.mxu0 0
      %3253 = vmatprep.mubr.bf16.mxu0 0
      %3254 = vmatmul.mubr.bf16.gmra.mrb[0].mxu0 %v3047
      %v3255 = vpop.f32.mrb[0].mxu0
      %v3256 = vadd.f32 %v2841, %v3255
      %v3257 = vpop.f32.mrb[0].mxu0
      %v3258 = vadd.f32 %v2845, %v3257
      %v3259 = vpop.f32.mrb[0].mxu0
      %v3260 = vadd.f32 %v2841, %v3259
      %v3261 = vpop.f32.mrb[0].mxu0
      %v3262 = vadd.f32 %v2845, %v3261
      %3263 = vdwg.mxu0
      %3264 = vmatprep.subr.bf16.mxu0 %v2993
      %3265 = vmatpush1.bf16.msra.mxu0 %v2992
      %3266 = vmatprep.subr.bf16.mxu0 %v3009
      %3267 = vmatpush1.bf16.msra.mxu0 %v3008
      %3268 = vmatprep.subr.bf16.mxu0 0
      %3269 = vmatpush1.bf16.msra.mxu0 0
      %3270 = vmatprep.subr.bf16.mxu0 0
      %3271 = vmatpush1.bf16.msra.mxu0 0
      %3272 = vmatprep.subr.bf16.mxu0 0
      %3273 = vmatpush1.bf16.msra.mxu0 0
      %3274 = vmatprep.subr.bf16.mxu0 0
      %3275 = vmatpush1.bf16.msra.mxu0 0
      %3276 = vmatprep.subr.bf16.mxu0 0
      %3277 = vmatpush1.bf16.msra.mxu0 0
      %3278 = vmatprep.subr.bf16.mxu0 0
      %3279 = vmatpush1.bf16.msra.mxu0 0
      %3280 = vmatprep.subr.bf16.mxu0 0
      %3281 = vmatpush1.bf16.msra.mxu0 0
      %3282 = vmatprep.subr.bf16.mxu0 0
      %3283 = vmatpush1.bf16.msra.mxu0 0
      %3284 = vmatprep.subr.bf16.mxu0 0
      %3285 = vmatpush1.bf16.msra.mxu0 0
      %3286 = vmatprep.subr.bf16.mxu0 0
      %3287 = vmatpush1.bf16.msra.mxu0 0
      %3288 = vmatprep.subr.bf16.mxu0 0
      %3289 = vmatpush1.bf16.msra.mxu0 0
      %3290 = vmatprep.subr.bf16.mxu0 0
      %3291 = vmatpush1.bf16.msra.mxu0 0
      %3292 = vmatprep.subr.bf16.mxu0 0
      %3293 = vmatpush1.bf16.msra.mxu0 0
      %3294 = vmatprep.subr.bf16.mxu0 0
      %3295 = vmatpush1.bf16.msra.mxu0 0
      %3296 = vmatprep.mubr.bf16.mxu0 0
      %3297 = vmatmul.mubr.bf16.gmra.mrb[0].mxu0 %v3047
      %v3298 = vpop.f32.mrb[0].mxu0
      %v3299 = vadd.f32 %v2849, %v3298
      %v3300 = vpop.f32.mrb[0].mxu0
      %v3301 = vadd.f32 %v2853, %v3300
      %v3302 = vpop.f32.mrb[0].mxu0
      %v3303 = vadd.f32 %v2849, %v3302
      %v3304 = vpop.f32.mrb[0].mxu0
      %v3305 = vadd.f32 %v2853, %v3304
      %3306 = vdwg.mxu0
      %3307 = vmatprep.subr.bf16.mxu0 %v2995
      %3308 = vmatpush1.bf16.msra.mxu0 %v2994
      %3309 = vmatprep.subr.bf16.mxu0 %v3011
      %3310 = vmatpush1.bf16.msra.mxu0 %v3010
      %3311 = vmatprep.subr.bf16.mxu0 0
      %3312 = vmatpush1.bf16.msra.mxu0 0
      %3313 = vmatprep.subr.bf16.mxu0 0
      %3314 = vmatpush1.bf16.msra.mxu0 0
      %3315 = vmatprep.subr.bf16.mxu0 0
      %3316 = vmatpush1.bf16.msra.mxu0 0
      %3317 = vmatprep.subr.bf16.mxu0 0
      %3318 = vmatpush1.bf16.msra.mxu0 0
      %3319 = vmatprep.subr.bf16.mxu0 0
      %3320 = vmatpush1.bf16.msra.mxu0 0
      %3321 = vmatprep.subr.bf16.mxu0 0
      %3322 = vmatpush1.bf16.msra.mxu0 0
      %3323 = vmatprep.subr.bf16.mxu0 0
      %3324 = vmatpush1.bf16.msra.mxu0 0
      %3325 = vmatprep.subr.bf16.mxu0 0
      %3326 = vmatpush1.bf16.msra.mxu0 0
      %3327 = vmatprep.subr.bf16.mxu0 0
      %3328 = vmatpush1.bf16.msra.mxu0 0
      %3329 = vmatprep.subr.bf16.mxu0 0
      %3330 = vmatpush1.bf16.msra.mxu0 0
      %3331 = vmatprep.subr.bf16.mxu0 0
      %3332 = vmatpush1.bf16.msra.mxu0 0
      %3333 = vmatprep.subr.bf16.mxu0 0
      %3334 = vmatpush1.bf16.msra.mxu0 0
      %3335 = vmatprep.subr.bf16.mxu0 0
      %3336 = vmatpush1.bf16.msra.mxu0 0
      %3337 = vmatprep.subr.bf16.mxu0 0
      %3338 = vmatpush1.bf16.msra.mxu0 0
      %3339 = vmatprep.mubr.bf16.mxu0 0
      %3340 = vmatmul.mubr.bf16.gmra.mrb[0].mxu0 %v3047
      %v3341 = vpop.f32.mrb[0].mxu0
      %v3342 = vadd.f32 %v2857, %v3341
      %v3343 = vpop.f32.mrb[0].mxu0
      %v3344 = vadd.f32 %v2861, %v3343
      %v3345 = vpop.f32.mrb[0].mxu0
      %v3346 = vadd.f32 %v2857, %v3345
      %v3347 = vpop.f32.mrb[0].mxu0
      %v3348 = vadd.f32 %v2861, %v3347
      %3349 = vdwg.mxu0
      %3350 = vmatprep.subr.bf16.mxu0 %v2997
      %3351 = vmatpush1.bf16.msra.mxu0 %v2996
      %3352 = vmatprep.subr.bf16.mxu0 %v3013
      %3353 = vmatpush1.bf16.msra.mxu0 %v3012
      %3354 = vmatprep.subr.bf16.mxu0 0
      %3355 = vmatpush1.bf16.msra.mxu0 0
      %3356 = vmatprep.subr.bf16.mxu0 0
      %3357 = vmatpush1.bf16.msra.mxu0 0
      %3358 = vmatprep.subr.bf16.mxu0 0
      %3359 = vmatpush1.bf16.msra.mxu0 0
      %3360 = vmatprep.subr.bf16.mxu0 0
      %3361 = vmatpush1.bf16.msra.mxu0 0
      %3362 = vmatprep.subr.bf16.mxu0 0
      %3363 = vmatpush1.bf16.msra.mxu0 0
      %3364 = vmatprep.subr.bf16.mxu0 0
      %3365 = vmatpush1.bf16.msra.mxu0 0
      %3366 = vmatprep.subr.bf16.mxu0 0
      %3367 = vmatpush1.bf16.msra.mxu0 0
      %3368 = vmatprep.subr.bf16.mxu0 0
      %3369 = vmatpush1.bf16.msra.mxu0 0
      %3370 = vmatprep.subr.bf16.mxu0 0
      %3371 = vmatpush1.bf16.msra.mxu0 0
      %3372 = vmatprep.subr.bf16.mxu0 0
      %3373 = vmatpush1.bf16.msra.mxu0 0
      %3374 = vmatprep.subr.bf16.mxu0 0
      %3375 = vmatpush1.bf16.msra.mxu0 0
      %3376 = vmatprep.subr.bf16.mxu0 0
      %3377 = vmatpush1.bf16.msra.mxu0 0
      %3378 = vmatprep.subr.bf16.mxu0 0
      %3379 = vmatpush1.bf16.msra.mxu0 0
      %3380 = vmatprep.subr.bf16.mxu0 0
      %3381 = vmatpush1.bf16.msra.mxu0 0
      %3382 = vmatprep.mubr.bf16.mxu0 0
      %3383 = vmatmul.mubr.bf16.gmra.mrb[0].mxu0 %v3047
      %v3384 = vpop.f32.mrb[0].mxu0
      %v3385 = vadd.f32 %v2865, %v3384
      %v3386 = vpop.f32.mrb[0].mxu0
      %v3387 = vadd.f32 %v2869, %v3386
      %v3388 = vpop.f32.mrb[0].mxu0
      %v3389 = vadd.f32 %v2865, %v3388
      %v3390 = vpop.f32.mrb[0].mxu0
      %v3391 = vadd.f32 %v2869, %v3390
      %3392 = vdwg.mxu0
      %v3393 = vmax.f32 %v3084, 0.0
      %v3394 = vmax.f32 %v3086, 0.0
      %v3395 = vmax.f32 %v3127, 0.0
      %v3396 = vmax.f32 %v3129, 0.0
      %v3397 = vmax.f32 %v3170, 0.0
      %v3398 = vmax.f32 %v3172, 0.0
      %v3399 = vmax.f32 %v3213, 0.0
      %v3400 = vmax.f32 %v3215, 0.0
      %v3401 = vmax.f32 %v3256, 0.0
      %v3402 = vmax.f32 %v3258, 0.0
      %v3403 = vmax.f32 %v3299, 0.0
      %v3404 = vmax.f32 %v3301, 0.0
      %v3405 = vmax.f32 %v3342, 0.0
      %v3406 = vmax.f32 %v3344, 0.0
      %v3407 = vmax.f32 %v3385, 0.0
      %v3408 = vmax.f32 %v3387, 0.0
      %v3409 = vmax.f32 %v3088, 0.0
      %v3410 = vmax.f32 %v3090, 0.0
      %v3411 = vmax.f32 %v3131, 0.0
      %v3412 = vmax.f32 %v3133, 0.0
      %v3413 = vmax.f32 %v3174, 0.0
      %v3414 = vmax.f32 %v3176, 0.0
      %v3415 = vmax.f32 %v3217, 0.0
      %v3416 = vmax.f32 %v3219, 0.0
      %v3417 = vmax.f32 %v3260, 0.0
      %v3418 = vmax.f32 %v3262, 0.0
      %v3419 = vmax.f32 %v3303, 0.0
      %v3420 = vmax.f32 %v3305, 0.0
      %v3421 = vmax.f32 %v3346, 0.0
      %v3422 = vmax.f32 %v3348, 0.0
      %v3423 = vmax.f32 %v3389, 0.0
      %v3424 = vmax.f32 %v3391, 0.0
      %v3425 = vpack.c.bf16 %v3409, %v3393
      %v3426 = vpack.c.bf16 %v3410, %v3394
      %v3427 = vpack.c.bf16 %v3411, %v3395
      %v3428 = vpack.c.bf16 %v3412, %v3396
      %v3429 = vpack.c.bf16 %v3413, %v3397
      %v3430 = vpack.c.bf16 %v3414, %v3398
      %v3431 = vpack.c.bf16 %v3415, %v3399
      %v3432 = vpack.c.bf16 %v3416, %v3400
      %v3433 = vpack.c.bf16 %v3417, %v3401
      %v3434 = vpack.c.bf16 %v3418, %v3402
      %v3435 = vpack.c.bf16 %v3419, %v3403
      %v3436 = vpack.c.bf16 %v3420, %v3404
      %v3437 = vpack.c.bf16 %v3421, %v3405
      %v3438 = vpack.c.bf16 %v3422, %v3406
      %v3439 = vpack.c.bf16 %v3423, %v3407
      %v3440 = vpack.c.bf16 %v3424, %v3408
      %v3441 = vld [vmem:[%s887] sm:$0xf]
      %v3442 = vld [vmem:[%s887 + $0x4] sm:$0xf]
      %v3443 = vld [vmem:[%s887 + $0x8] sm:$0xf]
      %v3444 = vld [vmem:[%s887 + $0xc] sm:$0xf]
      %v3445 = vld [vmem:[%s887 + $0x10] sm:$0xf]
      %v3446 = vld [vmem:[%s887 + $0x14] sm:$0xf]
      %v3447 = vld [vmem:[%s887 + $0x18] sm:$0xf]
      %v3448 = vld [vmem:[%s887 + $0x1c] sm:$0xf]
      %v3449 = vld [vmem:[%s887 + $0x20] sm:$0xf]
      %v3450 = vld [vmem:[%s887 + $0x24] sm:$0xf]
      %v3451 = vld [vmem:[%s887 + $0x28] sm:$0xf]
      %v3452 = vld [vmem:[%s887 + $0x2c] sm:$0xf]
      %v3453 = vld [vmem:[%s887 + $0x30] sm:$0xf]
      %v3454 = vld [vmem:[%s887 + $0x34] sm:$0xf]
      %v3455 = vld [vmem:[%s887 + $0x38] sm:$0xf]
      %v3456 = vld [vmem:[%s887 + $0x3c] sm:$0xf]
      %v3457 = vld [vmem:[%s887 + $0x40] sm:$0xf]
      %v3458 = vld [vmem:[%s887 + $0x44] sm:$0xf]
      %v3459 = vld [vmem:[%s887 + $0x48] sm:$0xf]
      %v3460 = vld [vmem:[%s887 + $0x4c] sm:$0xf]
      %v3461 = vld [vmem:[%s887 + $0x50] sm:$0xf]
      %v3462 = vld [vmem:[%s887 + $0x54] sm:$0xf]
      %v3463 = vld [vmem:[%s887 + $0x58] sm:$0xf]
      %v3464 = vld [vmem:[%s887 + $0x5c] sm:$0xf]
      %v3465 = vld [vmem:[%s887 + $0x60] sm:$0xf]
      %v3466 = vld [vmem:[%s887 + $0x64] sm:$0xf]
      %v3467 = vld [vmem:[%s887 + $0x68] sm:$0xf]
      %v3468 = vld [vmem:[%s887 + $0x6c] sm:$0xf]
      %v3469 = vld [vmem:[%s887 + $0x70] sm:$0xf]
      %v3470 = vld [vmem:[%s887 + $0x74] sm:$0xf]
      %v3471 = vld [vmem:[%s887 + $0x78] sm:$0xf]
      %v3472 = vld [vmem:[%s887 + $0x7c] sm:$0xf]
      %v3473 = vld [vmem:[%s887 + $0x80] sm:$0xf]
      %v3474 = vld [vmem:[%s887 + $0x84] sm:$0xf]
      %v3475 = vld [vmem:[%s887 + $0x88] sm:$0xf]
      %v3476 = vld [vmem:[%s887 + $0x8c] sm:$0xf]
      %v3477 = vld [vmem:[%s887 + $0x90] sm:$0xf]
      %v3478 = vld [vmem:[%s887 + $0x94] sm:$0xf]
      %v3479 = vld [vmem:[%s887 + $0x98] sm:$0xf]
      %v3480 = vld [vmem:[%s887 + $0x9c] sm:$0xf]
      %v3481 = vld [vmem:[%s887 + $0xa0] sm:$0xf]
      %v3482 = vld [vmem:[%s887 + $0xa4] sm:$0xf]
      %v3483 = vld [vmem:[%s887 + $0xa8] sm:$0xf]
      %v3484 = vld [vmem:[%s887 + $0xac] sm:$0xf]
      %v3485 = vld [vmem:[%s887 + $0xb0] sm:$0xf]
      %v3486 = vld [vmem:[%s887 + $0xb4] sm:$0xf]
      %v3487 = vld [vmem:[%s887 + $0xb8] sm:$0xf]
      %v3488 = vld [vmem:[%s887 + $0xbc] sm:$0xf]
      %v3489 = vld [vmem:[%s887 + $0xc0] sm:$0xf]
      %v3490 = vld [vmem:[%s887 + $0xc4] sm:$0xf]
      %v3491 = vld [vmem:[%s887 + $0xc8] sm:$0xf]
      %v3492 = vld [vmem:[%s887 + $0xcc] sm:$0xf]
      %v3493 = vld [vmem:[%s887 + $0xd0] sm:$0xf]
      %v3494 = vld [vmem:[%s887 + $0xd4] sm:$0xf]
      %v3495 = vld [vmem:[%s887 + $0xd8] sm:$0xf]
      %v3496 = vld [vmem:[%s887 + $0xdc] sm:$0xf]
      %v3497 = vld [vmem:[%s887 + $0xe0] sm:$0xf]
      %v3498 = vld [vmem:[%s887 + $0xe4] sm:$0xf]
      %v3499 = vld [vmem:[%s887 + $0xe8] sm:$0xf]
      %v3500 = vld [vmem:[%s887 + $0xec] sm:$0xf]
      %v3501 = vld [vmem:[%s887 + $0xf0] sm:$0xf]
      %v3502 = vld [vmem:[%s887 + $0xf4] sm:$0xf]
      %v3503 = vld [vmem:[%s887 + $0xf8] sm:$0xf]
      %v3504 = vld [vmem:[%s887 + $0xfc] sm:$0xf]
      %v3505 = vld [vmem:[%s887 + $0x100] sm:$0xf]
      %v3506 = vld [vmem:[%s887 + $0x104] sm:$0xf]
      %v3507 = vld [vmem:[%s887 + $0x108] sm:$0xf]
      %v3508 = vld [vmem:[%s887 + $0x10c] sm:$0xf]
      %v3509 = vld [vmem:[%s887 + $0x110] sm:$0xf]
      %v3510 = vld [vmem:[%s887 + $0x114] sm:$0xf]
      %v3511 = vld [vmem:[%s887 + $0x118] sm:$0xf]
      %v3512 = vld [vmem:[%s887 + $0x11c] sm:$0xf]
      %v3513 = vld [vmem:[%s887 + $0x120] sm:$0xf]
      %v3514 = vld [vmem:[%s887 + $0x124] sm:$0xf]
      %v3515 = vld [vmem:[%s887 + $0x128] sm:$0xf]
      %v3516 = vld [vmem:[%s887 + $0x12c] sm:$0xf]
      %v3517 = vld [vmem:[%s887 + $0x130] sm:$0xf]
      %v3518 = vld [vmem:[%s887 + $0x134] sm:$0xf]
      %v3519 = vld [vmem:[%s887 + $0x138] sm:$0xf]
      %v3520 = vld [vmem:[%s887 + $0x13c] sm:$0xf]
      %v3521 = vld [vmem:[%s887 + $0x140] sm:$0xf]
      %v3522 = vld [vmem:[%s887 + $0x144] sm:$0xf]
      %v3523 = vld [vmem:[%s887 + $0x148] sm:$0xf]
      %v3524 = vld [vmem:[%s887 + $0x14c] sm:$0xf]
      %v3525 = vld [vmem:[%s887 + $0x150] sm:$0xf]
      %v3526 = vld [vmem:[%s887 + $0x154] sm:$0xf]
      %v3527 = vld [vmem:[%s887 + $0x158] sm:$0xf]
      %v3528 = vld [vmem:[%s887 + $0x15c] sm:$0xf]
      %v3529 = vld [vmem:[%s887 + $0x160] sm:$0xf]
      %v3530 = vld [vmem:[%s887 + $0x164] sm:$0xf]
      %v3531 = vld [vmem:[%s887 + $0x168] sm:$0xf]
      %v3532 = vld [vmem:[%s887 + $0x16c] sm:$0xf]
      %v3533 = vld [vmem:[%s887 + $0x170] sm:$0xf]
      %v3534 = vld [vmem:[%s887 + $0x174] sm:$0xf]
      %v3535 = vld [vmem:[%s887 + $0x178] sm:$0xf]
      %v3536 = vld [vmem:[%s887 + $0x17c] sm:$0xf]
      %v3537 = vld [vmem:[%s887 + $0x180] sm:$0xf]
      %v3538 = vld [vmem:[%s887 + $0x184] sm:$0xf]
      %v3539 = vld [vmem:[%s887 + $0x188] sm:$0xf]
      %v3540 = vld [vmem:[%s887 + $0x18c] sm:$0xf]
      %v3541 = vld [vmem:[%s887 + $0x190] sm:$0xf]
      %v3542 = vld [vmem:[%s887 + $0x194] sm:$0xf]
      %v3543 = vld [vmem:[%s887 + $0x198] sm:$0xf]
      %v3544 = vld [vmem:[%s887 + $0x19c] sm:$0xf]
      %v3545 = vld [vmem:[%s887 + $0x1a0] sm:$0xf]
      %v3546 = vld [vmem:[%s887 + $0x1a4] sm:$0xf]
      %v3547 = vld [vmem:[%s887 + $0x1a8] sm:$0xf]
      %v3548 = vld [vmem:[%s887 + $0x1ac] sm:$0xf]
      %v3549 = vld [vmem:[%s887 + $0x1b0] sm:$0xf]
      %v3550 = vld [vmem:[%s887 + $0x1b4] sm:$0xf]
      %v3551 = vld [vmem:[%s887 + $0x1b8] sm:$0xf]
      %v3552 = vld [vmem:[%s887 + $0x1bc] sm:$0xf]
      %v3553 = vld [vmem:[%s887 + $0x1c0] sm:$0xf]
      %v3554 = vld [vmem:[%s887 + $0x1c4] sm:$0xf]
      %v3555 = vld [vmem:[%s887 + $0x1c8] sm:$0xf]
      %v3556 = vld [vmem:[%s887 + $0x1cc] sm:$0xf]
      %v3557 = vld [vmem:[%s887 + $0x1d0] sm:$0xf]
      %v3558 = vld [vmem:[%s887 + $0x1d4] sm:$0xf]
      %v3559 = vld [vmem:[%s887 + $0x1d8] sm:$0xf]
      %v3560 = vld [vmem:[%s887 + $0x1dc] sm:$0xf]
      %v3561 = vld [vmem:[%s887 + $0x1e0] sm:$0xf]
      %v3562 = vld [vmem:[%s887 + $0x1e4] sm:$0xf]
      %v3563 = vld [vmem:[%s887 + $0x1e8] sm:$0xf]
      %v3564 = vld [vmem:[%s887 + $0x1ec] sm:$0xf]
      %v3565 = vld [vmem:[%s887 + $0x1f0] sm:$0xf]
      %v3566 = vld [vmem:[%s887 + $0x1f4] sm:$0xf]
      %v3567 = vld [vmem:[%s887 + $0x1f8] sm:$0xf]
      %v3568 = vld [vmem:[%s887 + $0x1fc] sm:$0xf]
      %v3569 = vld [vmem:[%s887 + $0x200] sm:$0xf]
      %v3570 = vld [vmem:[%s887 + $0x204] sm:$0xf]
      %v3571 = vld [vmem:[%s887 + $0x208] sm:$0xf]
      %v3572 = vld [vmem:[%s887 + $0x20c] sm:$0xf]
      %v3573 = vld [vmem:[%s887 + $0x210] sm:$0xf]
      %v3574 = vld [vmem:[%s887 + $0x214] sm:$0xf]
      %v3575 = vld [vmem:[%s887 + $0x218] sm:$0xf]
      %v3576 = vld [vmem:[%s887 + $0x21c] sm:$0xf]
      %v3577 = vld [vmem:[%s887 + $0x220] sm:$0xf]
      %v3578 = vld [vmem:[%s887 + $0x224] sm:$0xf]
      %v3579 = vld [vmem:[%s887 + $0x228] sm:$0xf]
      %v3580 = vld [vmem:[%s887 + $0x22c] sm:$0xf]
      %v3581 = vld [vmem:[%s887 + $0x230] sm:$0xf]
      %v3582 = vld [vmem:[%s887 + $0x234] sm:$0xf]
      %v3583 = vld [vmem:[%s887 + $0x238] sm:$0xf]
      %v3584 = vld [vmem:[%s887 + $0x23c] sm:$0xf]
      %v3585 = vld [vmem:[%s887 + $0x240] sm:$0xf]
      %v3586 = vld [vmem:[%s887 + $0x244] sm:$0xf]
      %v3587 = vld [vmem:[%s887 + $0x248] sm:$0xf]
      %v3588 = vld [vmem:[%s887 + $0x24c] sm:$0xf]
      %v3589 = vld [vmem:[%s887 + $0x250] sm:$0xf]
      %v3590 = vld [vmem:[%s887 + $0x254] sm:$0xf]
      %v3591 = vld [vmem:[%s887 + $0x258] sm:$0xf]
      %v3592 = vld [vmem:[%s887 + $0x25c] sm:$0xf]
      %v3593 = vld [vmem:[%s887 + $0x260] sm:$0xf]
      %v3594 = vld [vmem:[%s887 + $0x264] sm:$0xf]
      %v3595 = vld [vmem:[%s887 + $0x268] sm:$0xf]
      %v3596 = vld [vmem:[%s887 + $0x26c] sm:$0xf]
      %v3597 = vld [vmem:[%s887 + $0x270] sm:$0xf]
      %v3598 = vld [vmem:[%s887 + $0x274] sm:$0xf]
      %v3599 = vld [vmem:[%s887 + $0x278] sm:$0xf]
      %v3600 = vld [vmem:[%s887 + $0x27c] sm:$0xf]
      %v3601 = vld [vmem:[%s887 + $0x280] sm:$0xf]
      %v3602 = vld [vmem:[%s887 + $0x284] sm:$0xf]
      %v3603 = vld [vmem:[%s887 + $0x288] sm:$0xf]
      %v3604 = vld [vmem:[%s887 + $0x28c] sm:$0xf]
      %v3605 = vld [vmem:[%s887 + $0x290] sm:$0xf]
      %v3606 = vld [vmem:[%s887 + $0x294] sm:$0xf]
      %v3607 = vld [vmem:[%s887 + $0x298] sm:$0xf]
      %v3608 = vld [vmem:[%s887 + $0x29c] sm:$0xf]
      %v3609 = vld [vmem:[%s887 + $0x2a0] sm:$0xf]
      %v3610 = vld [vmem:[%s887 + $0x2a4] sm:$0xf]
      %v3611 = vld [vmem:[%s887 + $0x2a8] sm:$0xf]
      %v3612 = vld [vmem:[%s887 + $0x2ac] sm:$0xf]
      %v3613 = vld [vmem:[%s887 + $0x2b0] sm:$0xf]
      %v3614 = vld [vmem:[%s887 + $0x2b4] sm:$0xf]
      %v3615 = vld [vmem:[%s887 + $0x2b8] sm:$0xf]
      %v3616 = vld [vmem:[%s887 + $0x2bc] sm:$0xf]
      %v3617 = vld [vmem:[%s887 + $0x2c0] sm:$0xf]
      %v3618 = vld [vmem:[%s887 + $0x2c4] sm:$0xf]
      %v3619 = vld [vmem:[%s887 + $0x2c8] sm:$0xf]
      %v3620 = vld [vmem:[%s887 + $0x2cc] sm:$0xf]
      %v3621 = vld [vmem:[%s887 + $0x2d0] sm:$0xf]
      %v3622 = vld [vmem:[%s887 + $0x2d4] sm:$0xf]
      %v3623 = vld [vmem:[%s887 + $0x2d8] sm:$0xf]
      %v3624 = vld [vmem:[%s887 + $0x2dc] sm:$0xf]
      %v3625 = vld [vmem:[%s887 + $0x2e0] sm:$0xf]
      %v3626 = vld [vmem:[%s887 + $0x2e4] sm:$0xf]
      %v3627 = vld [vmem:[%s887 + $0x2e8] sm:$0xf]
      %v3628 = vld [vmem:[%s887 + $0x2ec] sm:$0xf]
      %v3629 = vld [vmem:[%s887 + $0x2f0] sm:$0xf]
      %v3630 = vld [vmem:[%s887 + $0x2f4] sm:$0xf]
      %v3631 = vld [vmem:[%s887 + $0x2f8] sm:$0xf]
      %v3632 = vld [vmem:[%s887 + $0x2fc] sm:$0xf]
      %v3633 = vld [vmem:[%s887 + $0x300] sm:$0xf]
      %v3634 = vld [vmem:[%s887 + $0x304] sm:$0xf]
      %v3635 = vld [vmem:[%s887 + $0x308] sm:$0xf]
      %v3636 = vld [vmem:[%s887 + $0x30c] sm:$0xf]
      %v3637 = vld [vmem:[%s887 + $0x310] sm:$0xf]
      %v3638 = vld [vmem:[%s887 + $0x314] sm:$0xf]
      %v3639 = vld [vmem:[%s887 + $0x318] sm:$0xf]
      %v3640 = vld [vmem:[%s887 + $0x31c] sm:$0xf]
      %v3641 = vld [vmem:[%s887 + $0x320] sm:$0xf]
      %v3642 = vld [vmem:[%s887 + $0x324] sm:$0xf]
      %v3643 = vld [vmem:[%s887 + $0x328] sm:$0xf]
      %v3644 = vld [vmem:[%s887 + $0x32c] sm:$0xf]
      %v3645 = vld [vmem:[%s887 + $0x330] sm:$0xf]
      %v3646 = vld [vmem:[%s887 + $0x334] sm:$0xf]
      %v3647 = vld [vmem:[%s887 + $0x338] sm:$0xf]
      %v3648 = vld [vmem:[%s887 + $0x33c] sm:$0xf]
      %v3649 = vld [vmem:[%s887 + $0x340] sm:$0xf]
      %v3650 = vld [vmem:[%s887 + $0x344] sm:$0xf]
      %v3651 = vld [vmem:[%s887 + $0x348] sm:$0xf]
      %v3652 = vld [vmem:[%s887 + $0x34c] sm:$0xf]
      %v3653 = vld [vmem:[%s887 + $0x350] sm:$0xf]
      %v3654 = vld [vmem:[%s887 + $0x354] sm:$0xf]
      %v3655 = vld [vmem:[%s887 + $0x358] sm:$0xf]
      %v3656 = vld [vmem:[%s887 + $0x35c] sm:$0xf]
      %v3657 = vld [vmem:[%s887 + $0x360] sm:$0xf]
      %v3658 = vld [vmem:[%s887 + $0x364] sm:$0xf]
      %v3659 = vld [vmem:[%s887 + $0x368] sm:$0xf]
      %v3660 = vld [vmem:[%s887 + $0x36c] sm:$0xf]
      %v3661 = vld [vmem:[%s887 + $0x370] sm:$0xf]
      %v3662 = vld [vmem:[%s887 + $0x374] sm:$0xf]
      %v3663 = vld [vmem:[%s887 + $0x378] sm:$0xf]
      %v3664 = vld [vmem:[%s887 + $0x37c] sm:$0xf]
      %v3665 = vld [vmem:[%s887 + $0x380] sm:$0xf]
      %v3666 = vld [vmem:[%s887 + $0x384] sm:$0xf]
      %v3667 = vld [vmem:[%s887 + $0x388] sm:$0xf]
      %v3668 = vld [vmem:[%s887 + $0x38c] sm:$0xf]
      %v3669 = vld [vmem:[%s887 + $0x390] sm:$0xf]
      %v3670 = vld [vmem:[%s887 + $0x394] sm:$0xf]
      %v3671 = vld [vmem:[%s887 + $0x398] sm:$0xf]
      %v3672 = vld [vmem:[%s887 + $0x39c] sm:$0xf]
      %v3673 = vld [vmem:[%s887 + $0x3a0] sm:$0xf]
      %v3674 = vld [vmem:[%s887 + $0x3a4] sm:$0xf]
      %v3675 = vld [vmem:[%s887 + $0x3a8] sm:$0xf]
      %v3676 = vld [vmem:[%s887 + $0x3ac] sm:$0xf]
      %v3677 = vld [vmem:[%s887 + $0x3b0] sm:$0xf]
      %v3678 = vld [vmem:[%s887 + $0x3b4] sm:$0xf]
      %v3679 = vld [vmem:[%s887 + $0x3b8] sm:$0xf]
      %v3680 = vld [vmem:[%s887 + $0x3bc] sm:$0xf]
      %v3681 = vld [vmem:[%s887 + $0x3c0] sm:$0xf]
      %v3682 = vld [vmem:[%s887 + $0x3c4] sm:$0xf]
      %v3683 = vld [vmem:[%s887 + $0x3c8] sm:$0xf]
      %v3684 = vld [vmem:[%s887 + $0x3cc] sm:$0xf]
      %v3685 = vld [vmem:[%s887 + $0x3d0] sm:$0xf]
      %v3686 = vld [vmem:[%s887 + $0x3d4] sm:$0xf]
      %v3687 = vld [vmem:[%s887 + $0x3d8] sm:$0xf]
      %v3688 = vld [vmem:[%s887 + $0x3dc] sm:$0xf]
      %v3689 = vld [vmem:[%s887 + $0x3e0] sm:$0xf]
      %v3690 = vld [vmem:[%s887 + $0x3e4] sm:$0xf]
      %v3691 = vld [vmem:[%s887 + $0x3e8] sm:$0xf]
      %v3692 = vld [vmem:[%s887 + $0x3ec] sm:$0xf]
      %v3693 = vld [vmem:[%s887 + $0x3f0] sm:$0xf]
      %v3694 = vld [vmem:[%s887 + $0x3f4] sm:$0xf]
      %v3695 = vld [vmem:[%s887 + $0x3f8] sm:$0xf]
      %v3696 = vld [vmem:[%s887 + $0x3fc] sm:$0xf]
      %v3697 = vld [vmem:[%s890] sm:$0x1]
      %v3699 = vlaneseq
      %v3700 = vshrl.u32 %v3699, 7
      %v3701 = vsub.s32 0, %v3700
      %v3702 = vrot.slane %v3697, %v3701
      %v3960 = vunpack.c.l.b16 %v3441
      %v3961 = vunpack.c.l.b16 %v3442
      %v3962 = vunpack.c.l.b16 %v3443
      %v3963 = vunpack.c.l.b16 %v3444
      %v3964 = vunpack.c.l.b16 %v3445
      %v3965 = vunpack.c.l.b16 %v3446
      %v3966 = vunpack.c.l.b16 %v3447
      %v3967 = vunpack.c.l.b16 %v3448
      %v3968 = vunpack.c.l.b16 %v3449
      %v3969 = vunpack.c.l.b16 %v3450
      %v3970 = vunpack.c.l.b16 %v3451
      %v3971 = vunpack.c.l.b16 %v3452
      %v3972 = vunpack.c.l.b16 %v3453
      %v3973 = vunpack.c.l.b16 %v3454
      %v3974 = vunpack.c.l.b16 %v3455
      %v3975 = vunpack.c.l.b16 %v3456
      %v3976 = vunpack.c.l.b16 %v3457
      %v3977 = vunpack.c.l.b16 %v3458
      %v3978 = vunpack.c.l.b16 %v3459
      %v3979 = vunpack.c.l.b16 %v3460
      %v3980 = vunpack.c.l.b16 %v3461
      %v3981 = vunpack.c.l.b16 %v3462
      %v3982 = vunpack.c.l.b16 %v3463
      %v3983 = vunpack.c.l.b16 %v3464
      %v3984 = vunpack.c.l.b16 %v3465
      %v3985 = vunpack.c.l.b16 %v3466
      %v3986 = vunpack.c.l.b16 %v3467
      %v3987 = vunpack.c.l.b16 %v3468
      %v3988 = vunpack.c.l.b16 %v3469
      %v3989 = vunpack.c.l.b16 %v3470
      %v3990 = vunpack.c.l.b16 %v3471
      %v3991 = vunpack.c.l.b16 %v3472
      %v3992 = vunpack.c.l.b16 %v3473
      %v3993 = vunpack.c.l.b16 %v3474
      %v3994 = vunpack.c.l.b16 %v3475
      %v3995 = vunpack.c.l.b16 %v3476
      %v3996 = vunpack.c.l.b16 %v3477
      %v3997 = vunpack.c.l.b16 %v3478
      %v3998 = vunpack.c.l.b16 %v3479
      %v3999 = vunpack.c.l.b16 %v3480
      %v4000 = vunpack.c.l.b16 %v3481
      %v4001 = vunpack.c.l.b16 %v3482
      %v4002 = vunpack.c.l.b16 %v3483
      %v4003 = vunpack.c.l.b16 %v3484
      %v4004 = vunpack.c.l.b16 %v3485
      %v4005 = vunpack.c.l.b16 %v3486
      %v4006 = vunpack.c.l.b16 %v3487
      %v4007 = vunpack.c.l.b16 %v3488
      %v4008 = vunpack.c.l.b16 %v3489
      %v4009 = vunpack.c.l.b16 %v3490
      %v4010 = vunpack.c.l.b16 %v3491
      %v4011 = vunpack.c.l.b16 %v3492
      %v4012 = vunpack.c.l.b16 %v3493
      %v4013 = vunpack.c.l.b16 %v3494
      %v4014 = vunpack.c.l.b16 %v3495
      %v4015 = vunpack.c.l.b16 %v3496
      %v4016 = vunpack.c.l.b16 %v3497
      %v4017 = vunpack.c.l.b16 %v3498
      %v4018 = vunpack.c.l.b16 %v3499
      %v4019 = vunpack.c.l.b16 %v3500
      %v4020 = vunpack.c.l.b16 %v3501
      %v4021 = vunpack.c.l.b16 %v3502
      %v4022 = vunpack.c.l.b16 %v3503
      %v4023 = vunpack.c.l.b16 %v3504
      %v4024 = vunpack.c.l.b16 %v3505
      %v4025 = vunpack.c.l.b16 %v3506
      %v4026 = vunpack.c.l.b16 %v3507
      %v4027 = vunpack.c.l.b16 %v3508
      %v4028 = vunpack.c.l.b16 %v3509
      %v4029 = vunpack.c.l.b16 %v3510
      %v4030 = vunpack.c.l.b16 %v3511
      %v4031 = vunpack.c.l.b16 %v3512
      %v4032 = vunpack.c.l.b16 %v3513
      %v4033 = vunpack.c.l.b16 %v3514
      %v4034 = vunpack.c.l.b16 %v3515
      %v4035 = vunpack.c.l.b16 %v3516
      %v4036 = vunpack.c.l.b16 %v3517
      %v4037 = vunpack.c.l.b16 %v3518
      %v4038 = vunpack.c.l.b16 %v3519
      %v4039 = vunpack.c.l.b16 %v3520
      %v4040 = vunpack.c.l.b16 %v3521
      %v4041 = vunpack.c.l.b16 %v3522
      %v4042 = vunpack.c.l.b16 %v3523
      %v4043 = vunpack.c.l.b16 %v3524
      %v4044 = vunpack.c.l.b16 %v3525
      %v4045 = vunpack.c.l.b16 %v3526
      %v4046 = vunpack.c.l.b16 %v3527
      %v4047 = vunpack.c.l.b16 %v3528
      %v4048 = vunpack.c.l.b16 %v3529
      %v4049 = vunpack.c.l.b16 %v3530
      %v4050 = vunpack.c.l.b16 %v3531
      %v4051 = vunpack.c.l.b16 %v3532
      %v4052 = vunpack.c.l.b16 %v3533
      %v4053 = vunpack.c.l.b16 %v3534
      %v4054 = vunpack.c.l.b16 %v3535
      %v4055 = vunpack.c.l.b16 %v3536
      %v4056 = vunpack.c.l.b16 %v3537
      %v4057 = vunpack.c.l.b16 %v3538
      %v4058 = vunpack.c.l.b16 %v3539
      %v4059 = vunpack.c.l.b16 %v3540
      %v4060 = vunpack.c.l.b16 %v3541
      %v4061 = vunpack.c.l.b16 %v3542
      %v4062 = vunpack.c.l.b16 %v3543
      %v4063 = vunpack.c.l.b16 %v3544
      %v4064 = vunpack.c.l.b16 %v3545
      %v4065 = vunpack.c.l.b16 %v3546
      %v4066 = vunpack.c.l.b16 %v3547
      %v4067 = vunpack.c.l.b16 %v3548
      %v4068 = vunpack.c.l.b16 %v3549
      %v4069 = vunpack.c.l.b16 %v3550
      %v4070 = vunpack.c.l.b16 %v3551
      %v4071 = vunpack.c.l.b16 %v3552
      %v4072 = vunpack.c.l.b16 %v3553
      %v4073 = vunpack.c.l.b16 %v3554
      %v4074 = vunpack.c.l.b16 %v3555
      %v4075 = vunpack.c.l.b16 %v3556
      %v4076 = vunpack.c.l.b16 %v3557
      %v4077 = vunpack.c.l.b16 %v3558
      %v4078 = vunpack.c.l.b16 %v3559
      %v4079 = vunpack.c.l.b16 %v3560
      %v4080 = vunpack.c.l.b16 %v3561
      %v4081 = vunpack.c.l.b16 %v3562
      %v4082 = vunpack.c.l.b16 %v3563
      %v4083 = vunpack.c.l.b16 %v3564
      %v4084 = vunpack.c.l.b16 %v3565
      %v4085 = vunpack.c.l.b16 %v3566
      %v4086 = vunpack.c.l.b16 %v3567
      %v4087 = vunpack.c.l.b16 %v3568
      %v4088 = vunpack.c.l.b16 %v3569
      %v4089 = vunpack.c.l.b16 %v3570
      %v4090 = vunpack.c.l.b16 %v3571
      %v4091 = vunpack.c.l.b16 %v3572
      %v4092 = vunpack.c.l.b16 %v3573
      %v4093 = vunpack.c.l.b16 %v3574
      %v4094 = vunpack.c.l.b16 %v3575
      %v4095 = vunpack.c.l.b16 %v3576
      %v4096 = vunpack.c.l.b16 %v3577
      %v4097 = vunpack.c.l.b16 %v3578
      %v4098 = vunpack.c.l.b16 %v3579
      %v4099 = vunpack.c.l.b16 %v3580
      %v4100 = vunpack.c.l.b16 %v3581
      %v4101 = vunpack.c.l.b16 %v3582
      %v4102 = vunpack.c.l.b16 %v3583
      %v4103 = vunpack.c.l.b16 %v3584
      %v4104 = vunpack.c.l.b16 %v3585
      %v4105 = vunpack.c.l.b16 %v3586
      %v4106 = vunpack.c.l.b16 %v3587
      %v4107 = vunpack.c.l.b16 %v3588
      %v4108 = vunpack.c.l.b16 %v3589
      %v4109 = vunpack.c.l.b16 %v3590
      %v4110 = vunpack.c.l.b16 %v3591
      %v4111 = vunpack.c.l.b16 %v3592
      %v4112 = vunpack.c.l.b16 %v3593
      %v4113 = vunpack.c.l.b16 %v3594
      %v4114 = vunpack.c.l.b16 %v3595
      %v4115 = vunpack.c.l.b16 %v3596
      %v4116 = vunpack.c.l.b16 %v3597
      %v4117 = vunpack.c.l.b16 %v3598
      %v4118 = vunpack.c.l.b16 %v3599
      %v4119 = vunpack.c.l.b16 %v3600
      %v4120 = vunpack.c.l.b16 %v3601
      %v4121 = vunpack.c.l.b16 %v3602
      %v4122 = vunpack.c.l.b16 %v3603
      %v4123 = vunpack.c.l.b16 %v3604
      %v4124 = vunpack.c.l.b16 %v3605
      %v4125 = vunpack.c.l.b16 %v3606
      %v4126 = vunpack.c.l.b16 %v3607
      %v4127 = vunpack.c.l.b16 %v3608
      %v4128 = vunpack.c.l.b16 %v3609
      %v4129 = vunpack.c.l.b16 %v3610
      %v4130 = vunpack.c.l.b16 %v3611
      %v4131 = vunpack.c.l.b16 %v3612
      %v4132 = vunpack.c.l.b16 %v3613
      %v4133 = vunpack.c.l.b16 %v3614
      %v4134 = vunpack.c.l.b16 %v3615
      %v4135 = vunpack.c.l.b16 %v3616
      %v4136 = vunpack.c.l.b16 %v3617
      %v4137 = vunpack.c.l.b16 %v3618
      %v4138 = vunpack.c.l.b16 %v3619
      %v4139 = vunpack.c.l.b16 %v3620
      %v4140 = vunpack.c.l.b16 %v3621
      %v4141 = vunpack.c.l.b16 %v3622
      %v4142 = vunpack.c.l.b16 %v3623
      %v4143 = vunpack.c.l.b16 %v3624
      %v4144 = vunpack.c.l.b16 %v3625
      %v4145 = vunpack.c.l.b16 %v3626
      %v4146 = vunpack.c.l.b16 %v3627
      %v4147 = vunpack.c.l.b16 %v3628
      %v4148 = vunpack.c.l.b16 %v3629
      %v4149 = vunpack.c.l.b16 %v3630
      %v4150 = vunpack.c.l.b16 %v3631
      %v4151 = vunpack.c.l.b16 %v3632
      %v4152 = vunpack.c.l.b16 %v3633
      %v4153 = vunpack.c.l.b16 %v3634
      %v4154 = vunpack.c.l.b16 %v3635
      %v4155 = vunpack.c.l.b16 %v3636
      %v4156 = vunpack.c.l.b16 %v3637
      %v4157 = vunpack.c.l.b16 %v3638
      %v4158 = vunpack.c.l.b16 %v3639
      %v4159 = vunpack.c.l.b16 %v3640
      %v4160 = vunpack.c.l.b16 %v3641
      %v4161 = vunpack.c.l.b16 %v3642
      %v4162 = vunpack.c.l.b16 %v3643
      %v4163 = vunpack.c.l.b16 %v3644
      %v4164 = vunpack.c.l.b16 %v3645
      %v4165 = vunpack.c.l.b16 %v3646
      %v4166 = vunpack.c.l.b16 %v3647
      %v4167 = vunpack.c.l.b16 %v3648
      %v4168 = vunpack.c.l.b16 %v3649
      %v4169 = vunpack.c.l.b16 %v3650
      %v4170 = vunpack.c.l.b16 %v3651
      %v4171 = vunpack.c.l.b16 %v3652
      %v4172 = vunpack.c.l.b16 %v3653
      %v4173 = vunpack.c.l.b16 %v3654
      %v4174 = vunpack.c.l.b16 %v3655
      %v4175 = vunpack.c.l.b16 %v3656
      %v4176 = vunpack.c.l.b16 %v3657
      %v4177 = vunpack.c.l.b16 %v3658
      %v4178 = vunpack.c.l.b16 %v3659
      %v4179 = vunpack.c.l.b16 %v3660
      %v4180 = vunpack.c.l.b16 %v3661
      %v4181 = vunpack.c.l.b16 %v3662
      %v4182 = vunpack.c.l.b16 %v3663
      %v4183 = vunpack.c.l.b16 %v3664
      %v4184 = vunpack.c.l.b16 %v3665
      %v4185 = vunpack.c.l.b16 %v3666
      %v4186 = vunpack.c.l.b16 %v3667
      %v4187 = vunpack.c.l.b16 %v3668
      %v4188 = vunpack.c.l.b16 %v3669
      %v4189 = vunpack.c.l.b16 %v3670
      %v4190 = vunpack.c.l.b16 %v3671
      %v4191 = vunpack.c.l.b16 %v3672
      %v4192 = vunpack.c.l.b16 %v3673
      %v4193 = vunpack.c.l.b16 %v3674
      %v4194 = vunpack.c.l.b16 %v3675
      %v4195 = vunpack.c.l.b16 %v3676
      %v4196 = vunpack.c.l.b16 %v3677
      %v4197 = vunpack.c.l.b16 %v3678
      %v4198 = vunpack.c.l.b16 %v3679
      %v4199 = vunpack.c.l.b16 %v3680
      %v4200 = vunpack.c.l.b16 %v3681
      %v4201 = vunpack.c.l.b16 %v3682
      %v4202 = vunpack.c.l.b16 %v3683
      %v4203 = vunpack.c.l.b16 %v3684
      %v4204 = vunpack.c.l.b16 %v3685
      %v4205 = vunpack.c.l.b16 %v3686
      %v4206 = vunpack.c.l.b16 %v3687
      %v4207 = vunpack.c.l.b16 %v3688
      %v4208 = vunpack.c.l.b16 %v3689
      %v4209 = vunpack.c.l.b16 %v3690
      %v4210 = vunpack.c.l.b16 %v3691
      %v4211 = vunpack.c.l.b16 %v3692
      %v4212 = vunpack.c.l.b16 %v3693
      %v4213 = vunpack.c.l.b16 %v3694
      %v4214 = vunpack.c.l.b16 %v3695
      %v4215 = vunpack.c.l.b16 %v3696
      %v4216 = vpack.c.b16 %v3961, %v3960
      %v4217 = vpack.c.b16 %v3963, %v3962
      %v4218 = vpack.c.b16 %v3965, %v3964
      %v4219 = vpack.c.b16 %v3967, %v3966
      %v4220 = vpack.c.b16 %v3969, %v3968
      %v4221 = vpack.c.b16 %v3971, %v3970
      %v4222 = vpack.c.b16 %v3973, %v3972
      %v4223 = vpack.c.b16 %v3975, %v3974
      %v4224 = vpack.c.b16 %v3977, %v3976
      %v4225 = vpack.c.b16 %v3979, %v3978
      %v4226 = vpack.c.b16 %v3981, %v3980
      %v4227 = vpack.c.b16 %v3983, %v3982
      %v4228 = vpack.c.b16 %v3985, %v3984
      %v4229 = vpack.c.b16 %v3987, %v3986
      %v4230 = vpack.c.b16 %v3989, %v3988
      %v4231 = vpack.c.b16 %v3991, %v3990
      %v4232 = vpack.c.b16 %v3993, %v3992
      %v4233 = vpack.c.b16 %v3995, %v3994
      %v4234 = vpack.c.b16 %v3997, %v3996
      %v4235 = vpack.c.b16 %v3999, %v3998
      %v4236 = vpack.c.b16 %v4001, %v4000
      %v4237 = vpack.c.b16 %v4003, %v4002
      %v4238 = vpack.c.b16 %v4005, %v4004
      %v4239 = vpack.c.b16 %v4007, %v4006
      %v4240 = vpack.c.b16 %v4009, %v4008
      %v4241 = vpack.c.b16 %v4011, %v4010
      %v4242 = vpack.c.b16 %v4013, %v4012
      %v4243 = vpack.c.b16 %v4015, %v4014
      %v4244 = vpack.c.b16 %v4017, %v4016
      %v4245 = vpack.c.b16 %v4019, %v4018
      %v4246 = vpack.c.b16 %v4021, %v4020
      %v4247 = vpack.c.b16 %v4023, %v4022
      %v4248 = vpack.c.b16 %v4025, %v4024
      %v4249 = vpack.c.b16 %v4027, %v4026
      %v4250 = vpack.c.b16 %v4029, %v4028
      %v4251 = vpack.c.b16 %v4031, %v4030
      %v4252 = vpack.c.b16 %v4033, %v4032
      %v4253 = vpack.c.b16 %v4035, %v4034
      %v4254 = vpack.c.b16 %v4037, %v4036
      %v4255 = vpack.c.b16 %v4039, %v4038
      %v4256 = vpack.c.b16 %v4041, %v4040
      %v4257 = vpack.c.b16 %v4043, %v4042
      %v4258 = vpack.c.b16 %v4045, %v4044
      %v4259 = vpack.c.b16 %v4047, %v4046
      %v4260 = vpack.c.b16 %v4049, %v4048
      %v4261 = vpack.c.b16 %v4051, %v4050
      %v4262 = vpack.c.b16 %v4053, %v4052
      %v4263 = vpack.c.b16 %v4055, %v4054
      %v4264 = vpack.c.b16 %v4057, %v4056
      %v4265 = vpack.c.b16 %v4059, %v4058
      %v4266 = vpack.c.b16 %v4061, %v4060
      %v4267 = vpack.c.b16 %v4063, %v4062
      %v4268 = vpack.c.b16 %v4065, %v4064
      %v4269 = vpack.c.b16 %v4067, %v4066
      %v4270 = vpack.c.b16 %v4069, %v4068
      %v4271 = vpack.c.b16 %v4071, %v4070
      %v4272 = vpack.c.b16 %v4073, %v4072
      %v4273 = vpack.c.b16 %v4075, %v4074
      %v4274 = vpack.c.b16 %v4077, %v4076
      %v4275 = vpack.c.b16 %v4079, %v4078
      %v4276 = vpack.c.b16 %v4081, %v4080
      %v4277 = vpack.c.b16 %v4083, %v4082
      %v4278 = vpack.c.b16 %v4085, %v4084
      %v4279 = vpack.c.b16 %v4087, %v4086
      %v4280 = vpack.c.b16 %v4089, %v4088
      %v4281 = vpack.c.b16 %v4091, %v4090
      %v4282 = vpack.c.b16 %v4093, %v4092
      %v4283 = vpack.c.b16 %v4095, %v4094
      %v4284 = vpack.c.b16 %v4097, %v4096
      %v4285 = vpack.c.b16 %v4099, %v4098
      %v4286 = vpack.c.b16 %v4101, %v4100
      %v4287 = vpack.c.b16 %v4103, %v4102
      %v4288 = vpack.c.b16 %v4105, %v4104
      %v4289 = vpack.c.b16 %v4107, %v4106
      %v4290 = vpack.c.b16 %v4109, %v4108
      %v4291 = vpack.c.b16 %v4111, %v4110
      %v4292 = vpack.c.b16 %v4113, %v4112
      %v4293 = vpack.c.b16 %v4115, %v4114
      %v4294 = vpack.c.b16 %v4117, %v4116
      %v4295 = vpack.c.b16 %v4119, %v4118
      %v4296 = vpack.c.b16 %v4121, %v4120
      %v4297 = vpack.c.b16 %v4123, %v4122
      %v4298 = vpack.c.b16 %v4125, %v4124
      %v4299 = vpack.c.b16 %v4127, %v4126
      %v4300 = vpack.c.b16 %v4129, %v4128
      %v4301 = vpack.c.b16 %v4131, %v4130
      %v4302 = vpack.c.b16 %v4133, %v4132
      %v4303 = vpack.c.b16 %v4135, %v4134
      %v4304 = vpack.c.b16 %v4137, %v4136
      %v4305 = vpack.c.b16 %v4139, %v4138
      %v4306 = vpack.c.b16 %v4141, %v4140
      %v4307 = vpack.c.b16 %v4143, %v4142
      %v4308 = vpack.c.b16 %v4145, %v4144
      %v4309 = vpack.c.b16 %v4147, %v4146
      %v4310 = vpack.c.b16 %v4149, %v4148
      %v4311 = vpack.c.b16 %v4151, %v4150
      %v4312 = vpack.c.b16 %v4153, %v4152
      %v4313 = vpack.c.b16 %v4155, %v4154
      %v4314 = vpack.c.b16 %v4157, %v4156
      %v4315 = vpack.c.b16 %v4159, %v4158
      %v4316 = vpack.c.b16 %v4161, %v4160
      %v4317 = vpack.c.b16 %v4163, %v4162
      %v4318 = vpack.c.b16 %v4165, %v4164
      %v4319 = vpack.c.b16 %v4167, %v4166
      %v4320 = vpack.c.b16 %v4169, %v4168
      %v4321 = vpack.c.b16 %v4171, %v4170
      %v4322 = vpack.c.b16 %v4173, %v4172
      %v4323 = vpack.c.b16 %v4175, %v4174
      %v4324 = vpack.c.b16 %v4177, %v4176
      %v4325 = vpack.c.b16 %v4179, %v4178
      %v4326 = vpack.c.b16 %v4181, %v4180
      %v4327 = vpack.c.b16 %v4183, %v4182
      %v4328 = vpack.c.b16 %v4185, %v4184
      %v4329 = vpack.c.b16 %v4187, %v4186
      %v4330 = vpack.c.b16 %v4189, %v4188
      %v4331 = vpack.c.b16 %v4191, %v4190
      %v4332 = vpack.c.b16 %v4193, %v4192
      %v4333 = vpack.c.b16 %v4195, %v4194
      %v4334 = vpack.c.b16 %v4197, %v4196
      %v4335 = vpack.c.b16 %v4199, %v4198
      %v4336 = vpack.c.b16 %v4201, %v4200
      %v4337 = vpack.c.b16 %v4203, %v4202
      %v4338 = vpack.c.b16 %v4205, %v4204
      %v4339 = vpack.c.b16 %v4207, %v4206
      %v4340 = vpack.c.b16 %v4209, %v4208
      %v4341 = vpack.c.b16 %v4211, %v4210
      %v4342 = vpack.c.b16 %v4213, %v4212
      %v4343 = vpack.c.b16 %v4215, %v4214
      %4472 = vmatprep.subr.bf16.mxu0 0
      %4473 = vmatpush1.bf16.msra.mxu0 %v4216
      %4474 = vmatprep.subr.bf16.mxu0 0
      %4475 = vmatpush1.bf16.msra.mxu0 %v4217
      %4476 = vmatprep.subr.bf16.mxu0 0
      %4477 = vmatpush1.bf16.msra.mxu0 %v4218
      %4478 = vmatprep.subr.bf16.mxu0 0
      %4479 = vmatpush1.bf16.msra.mxu0 %v4219
      %4480 = vmatprep.subr.bf16.mxu0 0
      %4481 = vmatpush1.bf16.msra.mxu0 %v4220
      %4482 = vmatprep.subr.bf16.mxu0 0
      %4483 = vmatpush1.bf16.msra.mxu0 %v4221
      %4484 = vmatprep.subr.bf16.mxu0 0
      %4485 = vmatpush1.bf16.msra.mxu0 %v4222
      %4486 = vmatprep.subr.bf16.mxu0 0
      %4487 = vmatpush1.bf16.msra.mxu0 %v4223
      %4488 = vmatprep.subr.bf16.mxu0 0
      %4489 = vmatpush1.bf16.msra.mxu0 %v4224
      %4490 = vmatprep.subr.bf16.mxu0 0
      %4491 = vmatpush1.bf16.msra.mxu0 %v4225
      %4492 = vmatprep.subr.bf16.mxu0 0
      %4493 = vmatpush1.bf16.msra.mxu0 %v4226
      %4494 = vmatprep.subr.bf16.mxu0 0
      %4495 = vmatpush1.bf16.msra.mxu0 %v4227
      %4496 = vmatprep.subr.bf16.mxu0 0
      %4497 = vmatpush1.bf16.msra.mxu0 %v4228
      %4498 = vmatprep.subr.bf16.mxu0 0
      %4499 = vmatpush1.bf16.msra.mxu0 %v4229
      %4500 = vmatprep.subr.bf16.mxu0 0
      %4501 = vmatpush1.bf16.msra.mxu0 %v4230
      %4502 = vmatprep.subr.bf16.mxu0 0
      %4503 = vmatpush1.bf16.msra.mxu0 %v4231
      %4504 = vmatprep.mubr.bf16.mxu0 %v3426
      %4505 = vmatmul.mubr.bf16.gmra.mrb[0].mxu0 %v3425
      %v4506 = vpop.f32.mrb[0].mxu0
      %v4507 = vadd.f32 %v3702, %v4506
      %v4508 = vpop.f32.mrb[0].mxu0
      %v4509 = vpop.f32.mrb[0].mxu0
      %v4510 = vadd.f32 %v3702, %v4509
      %v4511 = vpop.f32.mrb[0].mxu0
      %4512 = vdwg.mxu0
      %4513 = vmatprep.subr.bf16.mxu0 0
      %4514 = vmatpush1.bf16.msra.mxu0 %v4232
      %4515 = vmatprep.subr.bf16.mxu0 0
      %4516 = vmatpush1.bf16.msra.mxu0 %v4233
      %4517 = vmatprep.subr.bf16.mxu0 0
      %4518 = vmatpush1.bf16.msra.mxu0 %v4234
      %4519 = vmatprep.subr.bf16.mxu0 0
      %4520 = vmatpush1.bf16.msra.mxu0 %v4235
      %4521 = vmatprep.subr.bf16.mxu0 0
      %4522 = vmatpush1.bf16.msra.mxu0 %v4236
      %4523 = vmatprep.subr.bf16.mxu0 0
      %4524 = vmatpush1.bf16.msra.mxu0 %v4237
      %4525 = vmatprep.subr.bf16.mxu0 0
      %4526 = vmatpush1.bf16.msra.mxu0 %v4238
      %4527 = vmatprep.subr.bf16.mxu0 0
      %4528 = vmatpush1.bf16.msra.mxu0 %v4239
      %4529 = vmatprep.subr.bf16.mxu0 0
      %4530 = vmatpush1.bf16.msra.mxu0 %v4240
      %4531 = vmatprep.subr.bf16.mxu0 0
      %4532 = vmatpush1.bf16.msra.mxu0 %v4241
      %4533 = vmatprep.subr.bf16.mxu0 0
      %4534 = vmatpush1.bf16.msra.mxu0 %v4242
      %4535 = vmatprep.subr.bf16.mxu0 0
      %4536 = vmatpush1.bf16.msra.mxu0 %v4243
      %4537 = vmatprep.subr.bf16.mxu0 0
      %4538 = vmatpush1.bf16.msra.mxu0 %v4244
      %4539 = vmatprep.subr.bf16.mxu0 0
      %4540 = vmatpush1.bf16.msra.mxu0 %v4245
      %4541 = vmatprep.subr.bf16.mxu0 0
      %4542 = vmatpush1.bf16.msra.mxu0 %v4246
      %4543 = vmatprep.subr.bf16.mxu0 0
      %4544 = vmatpush1.bf16.msra.mxu0 %v4247
      %4545 = vmatprep.mubr.bf16.mxu0 %v3428
      %4546 = vmatmul.mubr.bf16.gmra.mrb[0].mxu0 %v3427
      %v4547 = vpop.f32.mrb[0].mxu0
      %v4548 = vadd.f32 %v4507, %v4547
      %v4549 = vpop.f32.mrb[0].mxu0
      %v4550 = vpop.f32.mrb[0].mxu0
      %v4551 = vadd.f32 %v4510, %v4550
      %v4552 = vpop.f32.mrb[0].mxu0
      %4553 = vdwg.mxu0
      %4554 = vmatprep.subr.bf16.mxu0 0
      %4555 = vmatpush1.bf16.msra.mxu0 %v4248
      %4556 = vmatprep.subr.bf16.mxu0 0
      %4557 = vmatpush1.bf16.msra.mxu0 %v4249
      %4558 = vmatprep.subr.bf16.mxu0 0
      %4559 = vmatpush1.bf16.msra.mxu0 %v4250
      %4560 = vmatprep.subr.bf16.mxu0 0
      %4561 = vmatpush1.bf16.msra.mxu0 %v4251
      %4562 = vmatprep.subr.bf16.mxu0 0
      %4563 = vmatpush1.bf16.msra.mxu0 %v4252
      %4564 = vmatprep.subr.bf16.mxu0 0
      %4565 = vmatpush1.bf16.msra.mxu0 %v4253
      %4566 = vmatprep.subr.bf16.mxu0 0
      %4567 = vmatpush1.bf16.msra.mxu0 %v4254
      %4568 = vmatprep.subr.bf16.mxu0 0
      %4569 = vmatpush1.bf16.msra.mxu0 %v4255
      %4570 = vmatprep.subr.bf16.mxu0 0
      %4571 = vmatpush1.bf16.msra.mxu0 %v4256
      %4572 = vmatprep.subr.bf16.mxu0 0
      %4573 = vmatpush1.bf16.msra.mxu0 %v4257
      %4574 = vmatprep.subr.bf16.mxu0 0
      %4575 = vmatpush1.bf16.msra.mxu0 %v4258
      %4576 = vmatprep.subr.bf16.mxu0 0
      %4577 = vmatpush1.bf16.msra.mxu0 %v4259
      %4578 = vmatprep.subr.bf16.mxu0 0
      %4579 = vmatpush1.bf16.msra.mxu0 %v4260
      %4580 = vmatprep.subr.bf16.mxu0 0
      %4581 = vmatpush1.bf16.msra.mxu0 %v4261
      %4582 = vmatprep.subr.bf16.mxu0 0
      %4583 = vmatpush1.bf16.msra.mxu0 %v4262
      %4584 = vmatprep.subr.bf16.mxu0 0
      %4585 = vmatpush1.bf16.msra.mxu0 %v4263
      %4586 = vmatprep.mubr.bf16.mxu0 %v3430
      %4587 = vmatmul.mubr.bf16.gmra.mrb[0].mxu0 %v3429
      %v4588 = vpop.f32.mrb[0].mxu0
      %v4589 = vadd.f32 %v4548, %v4588
      %v4590 = vpop.f32.mrb[0].mxu0
      %v4591 = vpop.f32.mrb[0].mxu0
      %v4592 = vadd.f32 %v4551, %v4591
      %v4593 = vpop.f32.mrb[0].mxu0
      %4594 = vdwg.mxu0
      %4595 = vmatprep.subr.bf16.mxu0 0
      %4596 = vmatpush1.bf16.msra.mxu0 %v4264
      %4597 = vmatprep.subr.bf16.mxu0 0
      %4598 = vmatpush1.bf16.msra.mxu0 %v4265
      %4599 = vmatprep.subr.bf16.mxu0 0
      %4600 = vmatpush1.bf16.msra.mxu0 %v4266
      %4601 = vmatprep.subr.bf16.mxu0 0
      %4602 = vmatpush1.bf16.msra.mxu0 %v4267
      %4603 = vmatprep.subr.bf16.mxu0 0
      %4604 = vmatpush1.bf16.msra.mxu0 %v4268
      %4605 = vmatprep.subr.bf16.mxu0 0
      %4606 = vmatpush1.bf16.msra.mxu0 %v4269
      %4607 = vmatprep.subr.bf16.mxu0 0
      %4608 = vmatpush1.bf16.msra.mxu0 %v4270
      %4609 = vmatprep.subr.bf16.mxu0 0
      %4610 = vmatpush1.bf16.msra.mxu0 %v4271
      %4611 = vmatprep.subr.bf16.mxu0 0
      %4612 = vmatpush1.bf16.msra.mxu0 %v4272
      %4613 = vmatprep.subr.bf16.mxu0 0
      %4614 = vmatpush1.bf16.msra.mxu0 %v4273
      %4615 = vmatprep.subr.bf16.mxu0 0
      %4616 = vmatpush1.bf16.msra.mxu0 %v4274
      %4617 = vmatprep.subr.bf16.mxu0 0
      %4618 = vmatpush1.bf16.msra.mxu0 %v4275
      %4619 = vmatprep.subr.bf16.mxu0 0
      %4620 = vmatpush1.bf16.msra.mxu0 %v4276
      %4621 = vmatprep.subr.bf16.mxu0 0
      %4622 = vmatpush1.bf16.msra.mxu0 %v4277
      %4623 = vmatprep.subr.bf16.mxu0 0
      %4624 = vmatpush1.bf16.msra.mxu0 %v4278
      %4625 = vmatprep.subr.bf16.mxu0 0
      %4626 = vmatpush1.bf16.msra.mxu0 %v4279
      %4627 = vmatprep.mubr.bf16.mxu0 %v3432
      %4628 = vmatmul.mubr.bf16.gmra.mrb[0].mxu0 %v3431
      %v4629 = vpop.f32.mrb[0].mxu0
      %v4630 = vadd.f32 %v4589, %v4629
      %v4631 = vpop.f32.mrb[0].mxu0
      %v4632 = vpop.f32.mrb[0].mxu0
      %v4633 = vadd.f32 %v4592, %v4632
      %v4634 = vpop.f32.mrb[0].mxu0
      %4635 = vdwg.mxu0
      %4636 = vmatprep.subr.bf16.mxu0 0
      %4637 = vmatpush1.bf16.msra.mxu0 %v4280
      %4638 = vmatprep.subr.bf16.mxu0 0
      %4639 = vmatpush1.bf16.msra.mxu0 %v4281
      %4640 = vmatprep.subr.bf16.mxu0 0
      %4641 = vmatpush1.bf16.msra.mxu0 %v4282
      %4642 = vmatprep.subr.bf16.mxu0 0
      %4643 = vmatpush1.bf16.msra.mxu0 %v4283
      %4644 = vmatprep.subr.bf16.mxu0 0
      %4645 = vmatpush1.bf16.msra.mxu0 %v4284
      %4646 = vmatprep.subr.bf16.mxu0 0
      %4647 = vmatpush1.bf16.msra.mxu0 %v4285
      %4648 = vmatprep.subr.bf16.mxu0 0
      %4649 = vmatpush1.bf16.msra.mxu0 %v4286
      %4650 = vmatprep.subr.bf16.mxu0 0
      %4651 = vmatpush1.bf16.msra.mxu0 %v4287
      %4652 = vmatprep.subr.bf16.mxu0 0
      %4653 = vmatpush1.bf16.msra.mxu0 %v4288
      %4654 = vmatprep.subr.bf16.mxu0 0
      %4655 = vmatpush1.bf16.msra.mxu0 %v4289
      %4656 = vmatprep.subr.bf16.mxu0 0
      %4657 = vmatpush1.bf16.msra.mxu0 %v4290
      %4658 = vmatprep.subr.bf16.mxu0 0
      %4659 = vmatpush1.bf16.msra.mxu0 %v4291
      %4660 = vmatprep.subr.bf16.mxu0 0
      %4661 = vmatpush1.bf16.msra.mxu0 %v4292
      %4662 = vmatprep.subr.bf16.mxu0 0
      %4663 = vmatpush1.bf16.msra.mxu0 %v4293
      %4664 = vmatprep.subr.bf16.mxu0 0
      %4665 = vmatpush1.bf16.msra.mxu0 %v4294
      %4666 = vmatprep.subr.bf16.mxu0 0
      %4667 = vmatpush1.bf16.msra.mxu0 %v4295
      %4668 = vmatprep.mubr.bf16.mxu0 %v3434
      %4669 = vmatmul.mubr.bf16.gmra.mrb[0].mxu0 %v3433
      %v4670 = vpop.f32.mrb[0].mxu0
      %v4671 = vadd.f32 %v4630, %v4670
      %v4672 = vpop.f32.mrb[0].mxu0
      %v4673 = vpop.f32.mrb[0].mxu0
      %v4674 = vadd.f32 %v4633, %v4673
      %v4675 = vpop.f32.mrb[0].mxu0
      %4676 = vdwg.mxu0
      %4677 = vmatprep.subr.bf16.mxu0 0
      %4678 = vmatpush1.bf16.msra.mxu0 %v4296
      %4679 = vmatprep.subr.bf16.mxu0 0
      %4680 = vmatpush1.bf16.msra.mxu0 %v4297
      %4681 = vmatprep.subr.bf16.mxu0 0
      %4682 = vmatpush1.bf16.msra.mxu0 %v4298
      %4683 = vmatprep.subr.bf16.mxu0 0
      %4684 = vmatpush1.bf16.msra.mxu0 %v4299
      %4685 = vmatprep.subr.bf16.mxu0 0
      %4686 = vmatpush1.bf16.msra.mxu0 %v4300
      %4687 = vmatprep.subr.bf16.mxu0 0
      %4688 = vmatpush1.bf16.msra.mxu0 %v4301
      %4689 = vmatprep.subr.bf16.mxu0 0
      %4690 = vmatpush1.bf16.msra.mxu0 %v4302
      %4691 = vmatprep.subr.bf16.mxu0 0
      %4692 = vmatpush1.bf16.msra.mxu0 %v4303
      %4693 = vmatprep.subr.bf16.mxu0 0
      %4694 = vmatpush1.bf16.msra.mxu0 %v4304
      %4695 = vmatprep.subr.bf16.mxu0 0
      %4696 = vmatpush1.bf16.msra.mxu0 %v4305
      %4697 = vmatprep.subr.bf16.mxu0 0
      %4698 = vmatpush1.bf16.msra.mxu0 %v4306
      %4699 = vmatprep.subr.bf16.mxu0 0
      %4700 = vmatpush1.bf16.msra.mxu0 %v4307
      %4701 = vmatprep.subr.bf16.mxu0 0
      %4702 = vmatpush1.bf16.msra.mxu0 %v4308
      %4703 = vmatprep.subr.bf16.mxu0 0
      %4704 = vmatpush1.bf16.msra.mxu0 %v4309
      %4705 = vmatprep.subr.bf16.mxu0 0
      %4706 = vmatpush1.bf16.msra.mxu0 %v4310
      %4707 = vmatprep.subr.bf16.mxu0 0
      %4708 = vmatpush1.bf16.msra.mxu0 %v4311
      %4709 = vmatprep.mubr.bf16.mxu0 %v3436
      %4710 = vmatmul.mubr.bf16.gmra.mrb[0].mxu0 %v3435
      %v4711 = vpop.f32.mrb[0].mxu0
      %v4712 = vadd.f32 %v4671, %v4711
      %v4713 = vpop.f32.mrb[0].mxu0
      %v4714 = vpop.f32.mrb[0].mxu0
      %v4715 = vadd.f32 %v4674, %v4714
      %v4716 = vpop.f32.mrb[0].mxu0
      %4717 = vdwg.mxu0
      %4718 = vmatprep.subr.bf16.mxu0 0
      %4719 = vmatpush1.bf16.msra.mxu0 %v4312
      %4720 = vmatprep.subr.bf16.mxu0 0
      %4721 = vmatpush1.bf16.msra.mxu0 %v4313
      %4722 = vmatprep.subr.bf16.mxu0 0
      %4723 = vmatpush1.bf16.msra.mxu0 %v4314
      %4724 = vmatprep.subr.bf16.mxu0 0
      %4725 = vmatpush1.bf16.msra.mxu0 %v4315
      %4726 = vmatprep.subr.bf16.mxu0 0
      %4727 = vmatpush1.bf16.msra.mxu0 %v4316
      %4728 = vmatprep.subr.bf16.mxu0 0
      %4729 = vmatpush1.bf16.msra.mxu0 %v4317
      %4730 = vmatprep.subr.bf16.mxu0 0
      %4731 = vmatpush1.bf16.msra.mxu0 %v4318
      %4732 = vmatprep.subr.bf16.mxu0 0
      %4733 = vmatpush1.bf16.msra.mxu0 %v4319
      %4734 = vmatprep.subr.bf16.mxu0 0
      %4735 = vmatpush1.bf16.msra.mxu0 %v4320
      %4736 = vmatprep.subr.bf16.mxu0 0
      %4737 = vmatpush1.bf16.msra.mxu0 %v4321
      %4738 = vmatprep.subr.bf16.mxu0 0
      %4739 = vmatpush1.bf16.msra.mxu0 %v4322
      %4740 = vmatprep.subr.bf16.mxu0 0
      %4741 = vmatpush1.bf16.msra.mxu0 %v4323
      %4742 = vmatprep.subr.bf16.mxu0 0
      %4743 = vmatpush1.bf16.msra.mxu0 %v4324
      %4744 = vmatprep.subr.bf16.mxu0 0
      %4745 = vmatpush1.bf16.msra.mxu0 %v4325
      %4746 = vmatprep.subr.bf16.mxu0 0
      %4747 = vmatpush1.bf16.msra.mxu0 %v4326
      %4748 = vmatprep.subr.bf16.mxu0 0
      %4749 = vmatpush1.bf16.msra.mxu0 %v4327
      %4750 = vmatprep.mubr.bf16.mxu0 %v3438
      %4751 = vmatmul.mubr.bf16.gmra.mrb[0].mxu0 %v3437
      %v4752 = vpop.f32.mrb[0].mxu0
      %v4753 = vadd.f32 %v4712, %v4752
      %v4754 = vpop.f32.mrb[0].mxu0
      %v4755 = vpop.f32.mrb[0].mxu0
      %v4756 = vadd.f32 %v4715, %v4755
      %v4757 = vpop.f32.mrb[0].mxu0
      %4758 = vdwg.mxu0
      %4759 = vmatprep.subr.bf16.mxu0 0
      %4760 = vmatpush1.bf16.msra.mxu0 %v4328
      %4761 = vmatprep.subr.bf16.mxu0 0
      %4762 = vmatpush1.bf16.msra.mxu0 %v4329
      %4763 = vmatprep.subr.bf16.mxu0 0
      %4764 = vmatpush1.bf16.msra.mxu0 %v4330
      %4765 = vmatprep.subr.bf16.mxu0 0
      %4766 = vmatpush1.bf16.msra.mxu0 %v4331
      %4767 = vmatprep.subr.bf16.mxu0 0
      %4768 = vmatpush1.bf16.msra.mxu0 %v4332
      %4769 = vmatprep.subr.bf16.mxu0 0
      %4770 = vmatpush1.bf16.msra.mxu0 %v4333
      %4771 = vmatprep.subr.bf16.mxu0 0
      %4772 = vmatpush1.bf16.msra.mxu0 %v4334
      %4773 = vmatprep.subr.bf16.mxu0 0
      %4774 = vmatpush1.bf16.msra.mxu0 %v4335
      %4775 = vmatprep.subr.bf16.mxu0 0
      %4776 = vmatpush1.bf16.msra.mxu0 %v4336
      %4777 = vmatprep.subr.bf16.mxu0 0
      %4778 = vmatpush1.bf16.msra.mxu0 %v4337
      %4779 = vmatprep.subr.bf16.mxu0 0
      %4780 = vmatpush1.bf16.msra.mxu0 %v4338
      %4781 = vmatprep.subr.bf16.mxu0 0
      %4782 = vmatpush1.bf16.msra.mxu0 %v4339
      %4783 = vmatprep.subr.bf16.mxu0 0
      %4784 = vmatpush1.bf16.msra.mxu0 %v4340
      %4785 = vmatprep.subr.bf16.mxu0 0
      %4786 = vmatpush1.bf16.msra.mxu0 %v4341
      %4787 = vmatprep.subr.bf16.mxu0 0
      %4788 = vmatpush1.bf16.msra.mxu0 %v4342
      %4789 = vmatprep.subr.bf16.mxu0 0
      %4790 = vmatpush1.bf16.msra.mxu0 %v4343
      %4791 = vmatprep.mubr.bf16.mxu0 %v3440
      %4792 = vmatmul.mubr.bf16.gmra.mrb[0].mxu0 %v3439
      %v4793 = vpop.f32.mrb[0].mxu0
      %v4794 = vadd.f32 %v4753, %v4793
      %v4795 = vpop.f32.mrb[0].mxu0
      %v4796 = vpop.f32.mrb[0].mxu0
      %v4797 = vadd.f32 %v4756, %v4796
      %v4798 = vpop.f32.mrb[0].mxu0
      %4799 = vdwg.mxu0
      %v4800 = vadd.f32 %v2767, %v4794
      %v4801 = vadd.f32 %v2768, %v4797
      %v4802 = vld [vmem:[%s893] sm:$0x1]
      %v4803 = vld [vmem:[%s896] sm:$0x1]
      %v4804 = vsel %vm1018, %v4800, 0.0
      %4805 = vadd.xlane.f32.xlu0 %v4804
      %v4806 = vpop.xlane.xlu0 %4805
      %v4807 = vsel %vm1018, %v4801, 0.0
      %4808 = vadd.xlane.f32.xlu0 %v4807
      %v4809 = vpop.xlane.xlu0 %4808
      %v4810 = vmul.f32 %v4806, %v2732
      %v4811 = vmul.f32 %v4809, %v2732
      %v4812 = vsub.f32 %v4800, %v4810
      %v4813 = vsub.f32 %v4801, %v4811
      %v4814 = vmul.f32 %v4812, %v4812
      %v4815 = vmul.f32 %v4813, %v4813
      %v4816 = vsel %vm1018, %v4814, 0.0
      %4817 = vadd.xlane.f32.xlu0 %v4816
      %v4818 = vpop.xlane.xlu0 %4817
      %v4819 = vsel %vm1018, %v4815, 0.0
      %4820 = vadd.xlane.f32.xlu0 %v4819
      %v4821 = vpop.xlane.xlu0 %4820
      %v4822 = vmul.f32 %v4818, %v2732
      %v4823 = vmul.f32 %v4821, %v2732
      %v4824 = vadd.f32 %v4822, 1e-05
      %v4825 = vadd.f32 %v4823, 1e-05
      %v4826 = vrsqrt.pop %v4824
      %v4827 = vrsqrt.pop %v4825
      %v4828 = vmul.f32 %v4812, %v4826
      %v4829 = vmul.f32 %v4813, %v4827
      %v4831 = vlaneseq
      %v4832 = vshrl.u32 %v4831, 7
      %v4833 = vsub.s32 0, %v4832
      %v4834 = vrot.slane %v4802, %v4833
      %v4836 = vmul.f32 %v4828, %v4834
      %v4837 = vmul.f32 %v4829, %v4834
      %v4839 = vlaneseq
      %v4840 = vshrl.u32 %v4839, 7
      %v4841 = vsub.s32 0, %v4840
      %v4842 = vrot.slane %v4803, %v4841
      %v4844 = vadd.f32 %v4836, %v4842
      %v4845 = vadd.f32 %v4837, %v4842
      %p4846 = scmp.eq.s32.totalorder %s35, 0
      // Predicated region
      $region109: #{double_encoder_transformer.1} parent=107 // pred_check
        %p4847 = pneg %p4846
      $region110: #{double_encoder_transformer.1} parent=107 // pred_check_branch
        %4849 = sbr.rel (%p4847) target = $region112
      $region111: #{double_encoder_transformer.1} parent=107 // pred_region
        %v4852 = vrot.slane %v4845, 7
        %vm4855 = vcmask 261127
        %4856 = vst.msk [vmem:[#allocation2 - $0x7] sm:$0x80] %vm4855, %v4844
        %vm4857 = vcmask 253952
        %4858 = vst.msk [vmem:[#allocation2 + $0x1] sm:$0x1] %vm4857, %v4852
        %vm4859 = vcmask 1024
        %4860 = vst.msk [vmem:[%s22] sm:$0x3] %vm4859, 0.0
      $region112: #{double_encoder_transformer.1} parent=107 // pred_fallthru
        _
      %p4861 = scmp.eq.s32.totalorder %s35, 1
      // Predicated region
      $region113: #{double_encoder_transformer.1} parent=107 // pred_check
        %p4862 = pneg %p4861
      $region114: #{double_encoder_transformer.1} parent=107 // pred_check_branch
        %4864 = sbr.rel (%p4862) target = $region116
      $region115: #{double_encoder_transformer.1} parent=107 // pred_region
        %v4865 = vld [vmem:[%s16] sm:$0xff]
        %v4866 = vld [vmem:[%s16 + $0x8] sm:$0xff]
        %v4867 = vld [vmem:[%s16 + $0x10] sm:$0xff]
        %v4868 = vld [vmem:[%s16 + $0x18] sm:$0xff]
        %v4869 = vld [vmem:[%s17] sm:$0x1]
        %v4870 = vld [vmem:[#allocation2] sm:$0x3]
        %v4872 = vlaneseq
        %v4873 = vshrl.u32 %v4872, 7
        %v4874 = vsub.s32 0, %v4873
        %v4875 = vrot.slane %v4869, %v4874
        %v4878 = vsel %vm1018, %v4870, 0
        %4880 = vmatprep.subr.mxu0 0.0
        %4881 = vmatpush1.msra.mxu0 %v4865
        %4882 = vmatprep.subr.mxu0 0.0
        %4883 = vmatpush1.msra.mxu0 %v4866
        %4884 = vmatprep.subr.mxu0 0.0
        %4885 = vmatpush1.msra.mxu0 %v4867
        %4886 = vmatprep.subr.mxu0 0.0
        %4887 = vmatpush1.msra.mxu0 %v4868
        %4888 = vmatprep.subr.mxu0 0.0
        %4889 = vmatpush1.msra.mxu0 0.0
        %4890 = vmatprep.subr.mxu0 0.0
        %4891 = vmatpush1.msra.mxu0 0.0
        %4892 = vmatprep.subr.mxu0 0.0
        %4893 = vmatpush1.msra.mxu0 0.0
        %4894 = vmatprep.subr.mxu0 0.0
        %4895 = vmatpush1.msra.mxu0 0.0
        %4896 = vmatprep.subr.mxu0 0.0
        %4897 = vmatpush1.msra.mxu0 0.0
        %4898 = vmatprep.subr.mxu0 0.0
        %4899 = vmatpush1.msra.mxu0 0.0
        %4900 = vmatprep.subr.mxu0 0.0
        %4901 = vmatpush1.msra.mxu0 0.0
        %4902 = vmatprep.subr.mxu0 0.0
        %4903 = vmatpush1.msra.mxu0 0.0
        %4904 = vmatprep.subr.mxu0 0.0
        %4905 = vmatpush1.msra.mxu0 0.0
        %4906 = vmatprep.subr.mxu0 0.0
        %4907 = vmatpush1.msra.mxu0 0.0
        %4908 = vmatprep.subr.mxu0 0.0
        %4909 = vmatpush1.msra.mxu0 0.0
        %4910 = vmatprep.subr.mxu0 0.0
        %4911 = vmatpush1.msra.mxu0 0.0
        %4912 = vmatprep.subr.mxu0 0.0
        %4913 = vmatpush1.msra.mxu0 0.0
        %4914 = vmatprep.subr.mxu0 0.0
        %4915 = vmatpush1.msra.mxu0 0.0
        %4916 = vmatprep.subr.mxu0 0.0
        %4917 = vmatpush1.msra.mxu0 0.0
        %4918 = vmatprep.subr.mxu0 0.0
        %4919 = vmatpush1.msra.mxu0 0.0
        %4920 = vmatprep.subr.mxu0 0.0
        %4921 = vmatpush1.msra.mxu0 0.0
        %4922 = vmatprep.subr.mxu0 0.0
        %4923 = vmatpush1.msra.mxu0 0.0
        %4924 = vmatprep.subr.mxu0 0.0
        %4925 = vmatpush1.msra.mxu0 0.0
        %4926 = vmatprep.subr.mxu0 0.0
        %4927 = vmatpush1.msra.mxu0 0.0
        %4928 = vmatprep.subr.mxu0 0.0
        %4929 = vmatpush1.msra.mxu0 0.0
        %4930 = vmatprep.subr.mxu0 0.0
        %4931 = vmatpush1.msra.mxu0 0.0
        %4932 = vmatprep.subr.mxu0 0.0
        %4933 = vmatpush1.msra.mxu0 0.0
        %4934 = vmatprep.subr.mxu0 0.0
        %4935 = vmatpush1.msra.mxu0 0.0
        %4936 = vmatprep.subr.mxu0 0.0
        %4937 = vmatpush1.msra.mxu0 0.0
        %4938 = vmatprep.subr.mxu0 0.0
        %4939 = vmatpush1.msra.mxu0 0.0
        %4940 = vmatprep.subr.mxu0 0.0
        %4941 = vmatpush1.msra.mxu0 0.0
        %4942 = vmatprep.subr.mxu0 0.0
        %4943 = vmatpush1.msra.mxu0 0.0
        %4944 = vmatprep.mubr.f32.mxu0 0.0
        %4945 = vmatmul.mubr.f32.gmra.mrb[0].mxu0 %v4878
        %v4946 = vpop.f32.mrb[0].mxu0
        %v4947 = vadd.f32 %v4875, %v4946
        %v4948 = vpop.f32.mrb[0].mxu0
        %4949 = vdwg.mxu0
        %4954 = vrot.lane.b32.xlu0 %v4865, 96
        %v4955 = vpop.permute.xlu0 %4954
        %4956 = vrot.lane.b32.xlu0 %v4866, 96
        %v4957 = vpop.permute.xlu0 %4956
        %4958 = vrot.lane.b32.xlu0 %v4867, 96
        %v4959 = vpop.permute.xlu0 %4958
        %4960 = vrot.lane.b32.xlu0 %v4868, 96
        %v4961 = vpop.permute.xlu0 %4960
        %4966 = vrot.lane.b32.xlu0 %v4875, 96
        %v4967 = vpop.permute.xlu0 %4966
        %v4970 = vsel %vm1018, %v4844, 0
        %v4973 = vsel %vm1018, %v4845, 0
        %4975 = vmatprep.subr.mxu0 0.0
        %4976 = vmatpush1.msra.mxu0 %v4955
        %4977 = vmatprep.subr.mxu0 0.0
        %4978 = vmatpush1.msra.mxu0 %v4957
        %4979 = vmatprep.subr.mxu0 0.0
        %4980 = vmatpush1.msra.mxu0 %v4959
        %4981 = vmatprep.subr.mxu0 0.0
        %4982 = vmatpush1.msra.mxu0 %v4961
        %4983 = vmatprep.subr.mxu0 0.0
        %4984 = vmatpush1.msra.mxu0 0.0
        %4985 = vmatprep.subr.mxu0 0.0
        %4986 = vmatpush1.msra.mxu0 0.0
        %4987 = vmatprep.subr.mxu0 0.0
        %4988 = vmatpush1.msra.mxu0 0.0
        %4989 = vmatprep.subr.mxu0 0.0
        %4990 = vmatpush1.msra.mxu0 0.0
        %4991 = vmatprep.subr.mxu0 0.0
        %4992 = vmatpush1.msra.mxu0 0.0
        %4993 = vmatprep.subr.mxu0 0.0
        %4994 = vmatpush1.msra.mxu0 0.0
        %4995 = vmatprep.subr.mxu0 0.0
        %4996 = vmatpush1.msra.mxu0 0.0
        %4997 = vmatprep.subr.mxu0 0.0
        %4998 = vmatpush1.msra.mxu0 0.0
        %4999 = vmatprep.subr.mxu0 0.0
        %5000 = vmatpush1.msra.mxu0 0.0
        %5001 = vmatprep.subr.mxu0 0.0
        %5002 = vmatpush1.msra.mxu0 0.0
        %5003 = vmatprep.subr.mxu0 0.0
        %5004 = vmatpush1.msra.mxu0 0.0
        %5005 = vmatprep.subr.mxu0 0.0
        %5006 = vmatpush1.msra.mxu0 0.0
        %5007 = vmatprep.subr.mxu0 0.0
        %5008 = vmatpush1.msra.mxu0 0.0
        %5009 = vmatprep.subr.mxu0 0.0
        %5010 = vmatpush1.msra.mxu0 0.0
        %5011 = vmatprep.subr.mxu0 0.0
        %5012 = vmatpush1.msra.mxu0 0.0
        %5013 = vmatprep.subr.mxu0 0.0
        %5014 = vmatpush1.msra.mxu0 0.0
        %5015 = vmatprep.subr.mxu0 0.0
        %5016 = vmatpush1.msra.mxu0 0.0
        %5017 = vmatprep.subr.mxu0 0.0
        %5018 = vmatpush1.msra.mxu0 0.0
        %5019 = vmatprep.subr.mxu0 0.0
        %5020 = vmatpush1.msra.mxu0 0.0
        %5021 = vmatprep.subr.mxu0 0.0
        %5022 = vmatpush1.msra.mxu0 0.0
        %5023 = vmatprep.subr.mxu0 0.0
        %5024 = vmatpush1.msra.mxu0 0.0
        %5025 = vmatprep.subr.mxu0 0.0
        %5026 = vmatpush1.msra.mxu0 0.0
        %5027 = vmatprep.subr.mxu0 0.0
        %5028 = vmatpush1.msra.mxu0 0.0
        %5029 = vmatprep.subr.mxu0 0.0
        %5030 = vmatpush1.msra.mxu0 0.0
        %5031 = vmatprep.subr.mxu0 0.0
        %5032 = vmatpush1.msra.mxu0 0.0
        %5033 = vmatprep.subr.mxu0 0.0
        %5034 = vmatpush1.msra.mxu0 0.0
        %5035 = vmatprep.subr.mxu0 0.0
        %5036 = vmatpush1.msra.mxu0 0.0
        %5037 = vmatprep.subr.mxu0 0.0
        %5038 = vmatpush1.msra.mxu0 0.0
        %5039 = vmatprep.mubr.f32.mxu0 0.0
        %5040 = vmatmul.mubr.f32.gmra.mrb[0].mxu0 %v4970
        %v5041 = vpop.f32.mrb[0].mxu0
        %v5042 = vadd.f32 %v4967, %v5041
        %v5043 = vpop.f32.mrb[0].mxu0
        %5044 = vmatprep.mubr.f32.mxu0 0.0
        %5045 = vmatmul.mubr.f32.gmra.mrb[0].mxu0 %v4973
        %v5046 = vpop.f32.mrb[0].mxu0
        %v5047 = vadd.f32 %v4967, %v5046
        %v5048 = vpop.f32.mrb[0].mxu0
        %5049 = vdwg.mxu0
        %v5050 = vld [vmem:[%s18] sm:$0xff]
        %v5051 = vld [vmem:[%s18 + $0x8] sm:$0xff]
        %v5052 = vld [vmem:[%s18 + $0x10] sm:$0xff]
        %v5053 = vld [vmem:[%s18 + $0x18] sm:$0xff]
        %v5056 = vunpack.c.l.s4 1966171168
        %v5057 = vunpack.c.0.s8 %v5056
        %v5058 = vlaneseq
        %v5059 = vshrl.u32 %v5058, 7
        %v5060 = vsub.s32 %v5057, %v5059
        %v5061 = vrot.slane %v4947, %v5060
        %v5062 = vcombine.high %v5061, %v5061
        %v5064 = vunpack.c.l.s4 1966171168
        %v5065 = vunpack.c.0.s8 %v5064
        %v5066 = vlaneseq
        %v5067 = vshrl.u32 %v5066, 7
        %v5068 = vsub.s32 %v5065, %v5067
        %v5069 = vrot.slane %v5061, %v5068
        %v5071 = vunpack.c.l.s4 1966171168
        %v5072 = vunpack.c.0.s8 %v5071
        %v5073 = vlaneseq
        %v5074 = vshrl.u32 %v5073, 7
        %v5075 = vsub.s32 %v5072, %v5074
        %v5076 = vrot.slane %v5062, %v5075
        %v5077 = vsel %vm908, %v5069, 0
        %v5080 = vsel %vm908, %v5042, 0
        %5082 = vmatprep.subr.mxu0 0.0
        %5083 = vmatpush1.xpose.msra.mxu0 %v5080
        %5084 = vmatprep.subr.mxu0 0.0
        %5085 = vmatpush1.xpose.msra.mxu0 0.0
        %5086 = vmatprep.subr.mxu0 0.0
        %5087 = vmatpush1.xpose.msra.mxu0 0.0
        %5088 = vmatprep.subr.mxu0 0.0
        %5089 = vmatpush1.xpose.msra.mxu0 0.0
        %5090 = vmatprep.subr.mxu0 0.0
        %5091 = vmatpush1.xpose.msra.mxu0 0.0
        %5092 = vmatprep.subr.mxu0 0.0
        %5093 = vmatpush1.xpose.msra.mxu0 0.0
        %5094 = vmatprep.subr.mxu0 0.0
        %5095 = vmatpush1.xpose.msra.mxu0 0.0
        %5096 = vmatprep.subr.mxu0 0.0
        %5097 = vmatpush1.xpose.msra.mxu0 0.0
        %5098 = vmatprep.subr.mxu0 0.0
        %5099 = vmatpush1.xpose.msra.mxu0 0.0
        %5100 = vmatprep.subr.mxu0 0.0
        %5101 = vmatpush1.xpose.msra.mxu0 0.0
        %5102 = vmatprep.subr.mxu0 0.0
        %5103 = vmatpush1.xpose.msra.mxu0 0.0
        %5104 = vmatprep.subr.mxu0 0.0
        %5105 = vmatpush1.xpose.msra.mxu0 0.0
        %5106 = vmatprep.subr.mxu0 0.0
        %5107 = vmatpush1.xpose.msra.mxu0 0.0
        %5108 = vmatprep.subr.mxu0 0.0
        %5109 = vmatpush1.xpose.msra.mxu0 0.0
        %5110 = vmatprep.subr.mxu0 0.0
        %5111 = vmatpush1.xpose.msra.mxu0 0.0
        %5112 = vmatprep.subr.mxu0 0.0
        %5113 = vmatpush1.xpose.msra.mxu0 0.0
        %5114 = vmatprep.subr.mxu0 0.0
        %5115 = vmatpush1.xpose.msra.mxu0 0.0
        %5116 = vmatprep.subr.mxu0 0.0
        %5117 = vmatpush1.xpose.msra.mxu0 0.0
        %5118 = vmatprep.subr.mxu0 0.0
        %5119 = vmatpush1.xpose.msra.mxu0 0.0
        %5120 = vmatprep.subr.mxu0 0.0
        %5121 = vmatpush1.xpose.msra.mxu0 0.0
        %5122 = vmatprep.subr.mxu0 0.0
        %5123 = vmatpush1.xpose.msra.mxu0 0.0
        %5124 = vmatprep.subr.mxu0 0.0
        %5125 = vmatpush1.xpose.msra.mxu0 0.0
        %5126 = vmatprep.subr.mxu0 0.0
        %5127 = vmatpush1.xpose.msra.mxu0 0.0
        %5128 = vmatprep.subr.mxu0 0.0
        %5129 = vmatpush1.xpose.msra.mxu0 0.0
        %5130 = vmatprep.subr.mxu0 0.0
        %5131 = vmatpush1.xpose.msra.mxu0 0.0
        %5132 = vmatprep.subr.mxu0 0.0
        %5133 = vmatpush1.xpose.msra.mxu0 0.0
        %5134 = vmatprep.subr.mxu0 0.0
        %5135 = vmatpush1.xpose.msra.mxu0 0.0
        %5136 = vmatprep.subr.mxu0 0.0
        %5137 = vmatpush1.xpose.msra.mxu0 0.0
        %5138 = vmatprep.subr.mxu0 0.0
        %5139 = vmatpush1.xpose.msra.mxu0 0.0
        %5140 = vmatprep.subr.mxu0 0.0
        %5141 = vmatpush1.xpose.msra.mxu0 0.0
        %5142 = vmatprep.subr.mxu0 0.0
        %5143 = vmatpush1.xpose.msra.mxu0 0.0
        %5144 = vmatprep.subr.mxu0 0.0
        %5145 = vmatpush1.xpose.msra.mxu0 0.0
        %5146 = vmatprep.mubr.f32.mxu0 0.0
        %5147 = vmatmul.mubr.f32.gmra.mrb[0].mxu0 %v5077
        %v5148 = vpop.f32.mrb[0].mxu0
        %v5149 = vadd.f32 0.0, %v5148
        %v5150 = vpop.f32.mrb[0].mxu0
        %5151 = vdwg.mxu0
        %v5152 = vsel %vm908, %v5076, 0
        %v5155 = vsel %vm908, %v5047, 0
        %5157 = vmatprep.subr.mxu0 0.0
        %5158 = vmatpush1.xpose.msra.mxu0 %v5155
        %5159 = vmatprep.subr.mxu0 0.0
        %5160 = vmatpush1.xpose.msra.mxu0 0.0
        %5161 = vmatprep.subr.mxu0 0.0
        %5162 = vmatpush1.xpose.msra.mxu0 0.0
        %5163 = vmatprep.subr.mxu0 0.0
        %5164 = vmatpush1.xpose.msra.mxu0 0.0
        %5165 = vmatprep.subr.mxu0 0.0
        %5166 = vmatpush1.xpose.msra.mxu0 0.0
        %5167 = vmatprep.subr.mxu0 0.0
        %5168 = vmatpush1.xpose.msra.mxu0 0.0
        %5169 = vmatprep.subr.mxu0 0.0
        %5170 = vmatpush1.xpose.msra.mxu0 0.0
        %5171 = vmatprep.subr.mxu0 0.0
        %5172 = vmatpush1.xpose.msra.mxu0 0.0
        %5173 = vmatprep.subr.mxu0 0.0
        %5174 = vmatpush1.xpose.msra.mxu0 0.0
        %5175 = vmatprep.subr.mxu0 0.0
        %5176 = vmatpush1.xpose.msra.mxu0 0.0
        %5177 = vmatprep.subr.mxu0 0.0
        %5178 = vmatpush1.xpose.msra.mxu0 0.0
        %5179 = vmatprep.subr.mxu0 0.0
        %5180 = vmatpush1.xpose.msra.mxu0 0.0
        %5181 = vmatprep.subr.mxu0 0.0
        %5182 = vmatpush1.xpose.msra.mxu0 0.0
        %5183 = vmatprep.subr.mxu0 0.0
        %5184 = vmatpush1.xpose.msra.mxu0 0.0
        %5185 = vmatprep.subr.mxu0 0.0
        %5186 = vmatpush1.xpose.msra.mxu0 0.0
        %5187 = vmatprep.subr.mxu0 0.0
        %5188 = vmatpush1.xpose.msra.mxu0 0.0
        %5189 = vmatprep.subr.mxu0 0.0
        %5190 = vmatpush1.xpose.msra.mxu0 0.0
        %5191 = vmatprep.subr.mxu0 0.0
        %5192 = vmatpush1.xpose.msra.mxu0 0.0
        %5193 = vmatprep.subr.mxu0 0.0
        %5194 = vmatpush1.xpose.msra.mxu0 0.0
        %5195 = vmatprep.subr.mxu0 0.0
        %5196 = vmatpush1.xpose.msra.mxu0 0.0
        %5197 = vmatprep.subr.mxu0 0.0
        %5198 = vmatpush1.xpose.msra.mxu0 0.0
        %5199 = vmatprep.subr.mxu0 0.0
        %5200 = vmatpush1.xpose.msra.mxu0 0.0
        %5201 = vmatprep.subr.mxu0 0.0
        %5202 = vmatpush1.xpose.msra.mxu0 0.0
        %5203 = vmatprep.subr.mxu0 0.0
        %5204 = vmatpush1.xpose.msra.mxu0 0.0
        %5205 = vmatprep.subr.mxu0 0.0
        %5206 = vmatpush1.xpose.msra.mxu0 0.0
        %5207 = vmatprep.subr.mxu0 0.0
        %5208 = vmatpush1.xpose.msra.mxu0 0.0
        %5209 = vmatprep.subr.mxu0 0.0
        %5210 = vmatpush1.xpose.msra.mxu0 0.0
        %5211 = vmatprep.subr.mxu0 0.0
        %5212 = vmatpush1.xpose.msra.mxu0 0.0
        %5213 = vmatprep.subr.mxu0 0.0
        %5214 = vmatpush1.xpose.msra.mxu0 0.0
        %5215 = vmatprep.subr.mxu0 0.0
        %5216 = vmatpush1.xpose.msra.mxu0 0.0
        %5217 = vmatprep.subr.mxu0 0.0
        %5218 = vmatpush1.xpose.msra.mxu0 0.0
        %5219 = vmatprep.subr.mxu0 0.0
        %5220 = vmatpush1.xpose.msra.mxu0 0.0
        %5221 = vmatprep.mubr.f32.mxu0 0.0
        %5222 = vmatmul.mubr.f32.gmra.mrb[0].mxu0 %v5152
        %v5223 = vpop.f32.mrb[0].mxu0
        %v5224 = vadd.f32 0.0, %v5223
        %v5225 = vpop.f32.mrb[0].mxu0
        %5226 = vdwg.mxu0
        %vm5227 = vcmask 57344
        %v5228 = vsel %vm5227, %v5149, -inf
        %5229 = vmax.xlane.f32.xlu0 %v5228
        %v5230 = vpop.xlane.xlu0 %5229
        %v5231 = vsel %vm5227, %v5224, -inf
        %5232 = vmax.xlane.f32.xlu0 %v5231
        %v5233 = vpop.xlane.xlu0 %5232
        %v5234 = vsub.f32 %v5149, %v5230
        %v5235 = vsub.f32 %v5224, %v5233
        %v5236 = vmul.f32 %v5234, 1.442695
        %v5237 = vpow.pop %v5236
        %v5238 = vmul.f32 %v5235, 1.442695
        %v5239 = vpow.pop %v5238
        %v5240 = vsel %vm5227, %v5237, 0.0
        %5241 = vadd.xlane.f32.xlu0 %v5240
        %v5242 = vpop.xlane.xlu0 %5241
        %v5243 = vsel %vm5227, %v5239, 0.0
        %5244 = vadd.xlane.f32.xlu0 %v5243
        %v5245 = vpop.xlane.xlu0 %5244
        %v5246 = vrcp.pop %v5242
        %v5247 = vrcp.pop %v5245
        %v5248 = vmul.f32 %v5237, %v5246
        %v5249 = vmul.f32 %v5239, %v5247
        %5250 = vrot.lane.b32.xlu0 %v5042, 96
        %v5251 = vpop.permute.xlu0 %5250
        %v5254 = vsel %vm908, %v5248, 0
        %5256 = vmatprep.subr.mxu0 0.0
        %5257 = vmatpush1.msra.mxu0 %v5251
        %5258 = vmatprep.subr.mxu0 0.0
        %5259 = vmatpush1.msra.mxu0 0.0
        %5260 = vmatprep.subr.mxu0 0.0
        %5261 = vmatpush1.msra.mxu0 0.0
        %5262 = vmatprep.subr.mxu0 0.0
        %5263 = vmatpush1.msra.mxu0 0.0
        %5264 = vmatprep.subr.mxu0 0.0
        %5265 = vmatpush1.msra.mxu0 0.0
        %5266 = vmatprep.subr.mxu0 0.0
        %5267 = vmatpush1.msra.mxu0 0.0
        %5268 = vmatprep.subr.mxu0 0.0
        %5269 = vmatpush1.msra.mxu0 0.0
        %5270 = vmatprep.subr.mxu0 0.0
        %5271 = vmatpush1.msra.mxu0 0.0
        %5272 = vmatprep.subr.mxu0 0.0
        %5273 = vmatpush1.msra.mxu0 0.0
        %5274 = vmatprep.subr.mxu0 0.0
        %5275 = vmatpush1.msra.mxu0 0.0
        %5276 = vmatprep.subr.mxu0 0.0
        %5277 = vmatpush1.msra.mxu0 0.0
        %5278 = vmatprep.subr.mxu0 0.0
        %5279 = vmatpush1.msra.mxu0 0.0
        %5280 = vmatprep.subr.mxu0 0.0
        %5281 = vmatpush1.msra.mxu0 0.0
        %5282 = vmatprep.subr.mxu0 0.0
        %5283 = vmatpush1.msra.mxu0 0.0
        %5284 = vmatprep.subr.mxu0 0.0
        %5285 = vmatpush1.msra.mxu0 0.0
        %5286 = vmatprep.subr.mxu0 0.0
        %5287 = vmatpush1.msra.mxu0 0.0
        %5288 = vmatprep.subr.mxu0 0.0
        %5289 = vmatpush1.msra.mxu0 0.0
        %5290 = vmatprep.subr.mxu0 0.0
        %5291 = vmatpush1.msra.mxu0 0.0
        %5292 = vmatprep.subr.mxu0 0.0
        %5293 = vmatpush1.msra.mxu0 0.0
        %5294 = vmatprep.subr.mxu0 0.0
        %5295 = vmatpush1.msra.mxu0 0.0
        %5296 = vmatprep.subr.mxu0 0.0
        %5297 = vmatpush1.msra.mxu0 0.0
        %5298 = vmatprep.subr.mxu0 0.0
        %5299 = vmatpush1.msra.mxu0 0.0
        %5300 = vmatprep.subr.mxu0 0.0
        %5301 = vmatpush1.msra.mxu0 0.0
        %5302 = vmatprep.subr.mxu0 0.0
        %5303 = vmatpush1.msra.mxu0 0.0
        %5304 = vmatprep.subr.mxu0 0.0
        %5305 = vmatpush1.msra.mxu0 0.0
        %5306 = vmatprep.subr.mxu0 0.0
        %5307 = vmatpush1.msra.mxu0 0.0
        %5308 = vmatprep.subr.mxu0 0.0
        %5309 = vmatpush1.msra.mxu0 0.0
        %5310 = vmatprep.subr.mxu0 0.0
        %5311 = vmatpush1.msra.mxu0 0.0
        %5312 = vmatprep.subr.mxu0 0.0
        %5313 = vmatpush1.msra.mxu0 0.0
        %5314 = vmatprep.subr.mxu0 0.0
        %5315 = vmatpush1.msra.mxu0 0.0
        %5316 = vmatprep.subr.mxu0 0.0
        %5317 = vmatpush1.msra.mxu0 0.0
        %5318 = vmatprep.subr.mxu0 0.0
        %5319 = vmatpush1.msra.mxu0 0.0
        %5320 = vmatprep.mubr.f32.mxu0 0.0
        %5321 = vmatmul.mubr.f32.gmra.mrb[0].mxu0 %v5254
        %v5322 = vpop.f32.mrb[0].mxu0
        %v5323 = vadd.f32 0.0, %v5322
        %v5324 = vpop.f32.mrb[0].mxu0
        %5325 = vdwg.mxu0
        %5326 = vrot.lane.b32.xlu0 %v5047, 96
        %v5327 = vpop.permute.xlu0 %5326
        %v5330 = vsel %vm908, %v5249, 0
        %5332 = vmatprep.subr.mxu0 0.0
        %5333 = vmatpush1.msra.mxu0 %v5327
        %5334 = vmatprep.subr.mxu0 0.0
        %5335 = vmatpush1.msra.mxu0 0.0
        %5336 = vmatprep.subr.mxu0 0.0
        %5337 = vmatpush1.msra.mxu0 0.0
        %5338 = vmatprep.subr.mxu0 0.0
        %5339 = vmatpush1.msra.mxu0 0.0
        %5340 = vmatprep.subr.mxu0 0.0
        %5341 = vmatpush1.msra.mxu0 0.0
        %5342 = vmatprep.subr.mxu0 0.0
        %5343 = vmatpush1.msra.mxu0 0.0
        %5344 = vmatprep.subr.mxu0 0.0
        %5345 = vmatpush1.msra.mxu0 0.0
        %5346 = vmatprep.subr.mxu0 0.0
        %5347 = vmatpush1.msra.mxu0 0.0
        %5348 = vmatprep.subr.mxu0 0.0
        %5349 = vmatpush1.msra.mxu0 0.0
        %5350 = vmatprep.subr.mxu0 0.0
        %5351 = vmatpush1.msra.mxu0 0.0
        %5352 = vmatprep.subr.mxu0 0.0
        %5353 = vmatpush1.msra.mxu0 0.0
        %5354 = vmatprep.subr.mxu0 0.0
        %5355 = vmatpush1.msra.mxu0 0.0
        %5356 = vmatprep.subr.mxu0 0.0
        %5357 = vmatpush1.msra.mxu0 0.0
        %5358 = vmatprep.subr.mxu0 0.0
        %5359 = vmatpush1.msra.mxu0 0.0
        %5360 = vmatprep.subr.mxu0 0.0
        %5361 = vmatpush1.msra.mxu0 0.0
        %5362 = vmatprep.subr.mxu0 0.0
        %5363 = vmatpush1.msra.mxu0 0.0
        %5364 = vmatprep.subr.mxu0 0.0
        %5365 = vmatpush1.msra.mxu0 0.0
        %5366 = vmatprep.subr.mxu0 0.0
        %5367 = vmatpush1.msra.mxu0 0.0
        %5368 = vmatprep.subr.mxu0 0.0
        %5369 = vmatpush1.msra.mxu0 0.0
        %5370 = vmatprep.subr.mxu0 0.0
        %5371 = vmatpush1.msra.mxu0 0.0
        %5372 = vmatprep.subr.mxu0 0.0
        %5373 = vmatpush1.msra.mxu0 0.0
        %5374 = vmatprep.subr.mxu0 0.0
        %5375 = vmatpush1.msra.mxu0 0.0
        %5376 = vmatprep.subr.mxu0 0.0
        %5377 = vmatpush1.msra.mxu0 0.0
        %5378 = vmatprep.subr.mxu0 0.0
        %5379 = vmatpush1.msra.mxu0 0.0
        %5380 = vmatprep.subr.mxu0 0.0
        %5381 = vmatpush1.msra.mxu0 0.0
        %5382 = vmatprep.subr.mxu0 0.0
        %5383 = vmatpush1.msra.mxu0 0.0
        %5384 = vmatprep.subr.mxu0 0.0
        %5385 = vmatpush1.msra.mxu0 0.0
        %5386 = vmatprep.subr.mxu0 0.0
        %5387 = vmatpush1.msra.mxu0 0.0
        %5388 = vmatprep.subr.mxu0 0.0
        %5389 = vmatpush1.msra.mxu0 0.0
        %5390 = vmatprep.subr.mxu0 0.0
        %5391 = vmatpush1.msra.mxu0 0.0
        %5392 = vmatprep.subr.mxu0 0.0
        %5393 = vmatpush1.msra.mxu0 0.0
        %5394 = vmatprep.subr.mxu0 0.0
        %5395 = vmatpush1.msra.mxu0 0.0
        %5396 = vmatprep.mubr.f32.mxu0 0.0
        %5397 = vmatmul.mubr.f32.gmra.mrb[0].mxu0 %v5330
        %v5398 = vpop.f32.mrb[0].mxu0
        %v5399 = vadd.f32 0.0, %v5398
        %v5400 = vpop.f32.mrb[0].mxu0
        %5401 = vdwg.mxu0
        %v5402 = vlaneseq
        %v5403 = vshrl.u32 %v5402, 7
        %v5404 = vsub.s32 0, %v5403
        %v5405 = vrot.slane %v5069, %v5404
        %5406 = vrot.lane.b32.xlu0 %v5405, 120
        %v5407 = vpop.permute.xlu0 %5406
        %5408 = vrot.lane.b32.xlu0 %v5042, 120
        %v5409 = vpop.permute.xlu0 %5408
        %v5410 = vsel %vm908, %v5407, 0
        %v5412 = vsel %vm908, %v5409, 0
        %5414 = vmatprep.subr.mxu0 0.0
        %5415 = vmatpush1.xpose.msra.mxu0 %v5412
        %5416 = vmatprep.subr.mxu0 0.0
        %5417 = vmatpush1.xpose.msra.mxu0 0.0
        %5418 = vmatprep.subr.mxu0 0.0
        %5419 = vmatpush1.xpose.msra.mxu0 0.0
        %5420 = vmatprep.subr.mxu0 0.0
        %5421 = vmatpush1.xpose.msra.mxu0 0.0
        %5422 = vmatprep.subr.mxu0 0.0
        %5423 = vmatpush1.xpose.msra.mxu0 0.0
        %5424 = vmatprep.subr.mxu0 0.0
        %5425 = vmatpush1.xpose.msra.mxu0 0.0
        %5426 = vmatprep.subr.mxu0 0.0
        %5427 = vmatpush1.xpose.msra.mxu0 0.0
        %5428 = vmatprep.subr.mxu0 0.0
        %5429 = vmatpush1.xpose.msra.mxu0 0.0
        %5430 = vmatprep.subr.mxu0 0.0
        %5431 = vmatpush1.xpose.msra.mxu0 0.0
        %5432 = vmatprep.subr.mxu0 0.0
        %5433 = vmatpush1.xpose.msra.mxu0 0.0
        %5434 = vmatprep.subr.mxu0 0.0
        %5435 = vmatpush1.xpose.msra.mxu0 0.0
        %5436 = vmatprep.subr.mxu0 0.0
        %5437 = vmatpush1.xpose.msra.mxu0 0.0
        %5438 = vmatprep.subr.mxu0 0.0
        %5439 = vmatpush1.xpose.msra.mxu0 0.0
        %5440 = vmatprep.subr.mxu0 0.0
        %5441 = vmatpush1.xpose.msra.mxu0 0.0
        %5442 = vmatprep.subr.mxu0 0.0
        %5443 = vmatpush1.xpose.msra.mxu0 0.0
        %5444 = vmatprep.subr.mxu0 0.0
        %5445 = vmatpush1.xpose.msra.mxu0 0.0
        %5446 = vmatprep.subr.mxu0 0.0
        %5447 = vmatpush1.xpose.msra.mxu0 0.0
        %5448 = vmatprep.subr.mxu0 0.0
        %5449 = vmatpush1.xpose.msra.mxu0 0.0
        %5450 = vmatprep.subr.mxu0 0.0
        %5451 = vmatpush1.xpose.msra.mxu0 0.0
        %5452 = vmatprep.subr.mxu0 0.0
        %5453 = vmatpush1.xpose.msra.mxu0 0.0
        %5454 = vmatprep.subr.mxu0 0.0
        %5455 = vmatpush1.xpose.msra.mxu0 0.0
        %5456 = vmatprep.subr.mxu0 0.0
        %5457 = vmatpush1.xpose.msra.mxu0 0.0
        %5458 = vmatprep.subr.mxu0 0.0
        %5459 = vmatpush1.xpose.msra.mxu0 0.0
        %5460 = vmatprep.subr.mxu0 0.0
        %5461 = vmatpush1.xpose.msra.mxu0 0.0
        %5462 = vmatprep.subr.mxu0 0.0
        %5463 = vmatpush1.xpose.msra.mxu0 0.0
        %5464 = vmatprep.subr.mxu0 0.0
        %5465 = vmatpush1.xpose.msra.mxu0 0.0
        %5466 = vmatprep.subr.mxu0 0.0
        %5467 = vmatpush1.xpose.msra.mxu0 0.0
        %5468 = vmatprep.subr.mxu0 0.0
        %5469 = vmatpush1.xpose.msra.mxu0 0.0
        %5470 = vmatprep.subr.mxu0 0.0
        %5471 = vmatpush1.xpose.msra.mxu0 0.0
        %5472 = vmatprep.subr.mxu0 0.0
        %5473 = vmatpush1.xpose.msra.mxu0 0.0
        %5474 = vmatprep.subr.mxu0 0.0
        %5475 = vmatpush1.xpose.msra.mxu0 0.0
        %5476 = vmatprep.subr.mxu0 0.0
        %5477 = vmatpush1.xpose.msra.mxu0 0.0
        %5478 = vmatprep.mubr.f32.mxu0 0.0
        %5479 = vmatmul.mubr.f32.gmra.mrb[0].mxu0 %v5410
        %v5480 = vpop.f32.mrb[0].mxu0
        %v5481 = vadd.f32 0.0, %v5480
        %v5482 = vpop.f32.mrb[0].mxu0
        %5483 = vdwg.mxu0
        %v5484 = vlaneseq
        %v5485 = vshrl.u32 %v5484, 7
        %v5486 = vsub.s32 0, %v5485
        %v5487 = vrot.slane %v5076, %v5486
        %5488 = vrot.lane.b32.xlu0 %v5487, 120
        %v5489 = vpop.permute.xlu0 %5488
        %5490 = vrot.lane.b32.xlu0 %v5047, 120
        %v5491 = vpop.permute.xlu0 %5490
        %v5492 = vsel %vm908, %v5489, 0
        %v5494 = vsel %vm908, %v5491, 0
        %5496 = vmatprep.subr.mxu0 0.0
        %5497 = vmatpush1.xpose.msra.mxu0 %v5494
        %5498 = vmatprep.subr.mxu0 0.0
        %5499 = vmatpush1.xpose.msra.mxu0 0.0
        %5500 = vmatprep.subr.mxu0 0.0
        %5501 = vmatpush1.xpose.msra.mxu0 0.0
        %5502 = vmatprep.subr.mxu0 0.0
        %5503 = vmatpush1.xpose.msra.mxu0 0.0
        %5504 = vmatprep.subr.mxu0 0.0
        %5505 = vmatpush1.xpose.msra.mxu0 0.0
        %5506 = vmatprep.subr.mxu0 0.0
        %5507 = vmatpush1.xpose.msra.mxu0 0.0
        %5508 = vmatprep.subr.mxu0 0.0
        %5509 = vmatpush1.xpose.msra.mxu0 0.0
        %5510 = vmatprep.subr.mxu0 0.0
        %5511 = vmatpush1.xpose.msra.mxu0 0.0
        %5512 = vmatprep.subr.mxu0 0.0
        %5513 = vmatpush1.xpose.msra.mxu0 0.0
        %5514 = vmatprep.subr.mxu0 0.0
        %5515 = vmatpush1.xpose.msra.mxu0 0.0
        %5516 = vmatprep.subr.mxu0 0.0
        %5517 = vmatpush1.xpose.msra.mxu0 0.0
        %5518 = vmatprep.subr.mxu0 0.0
        %5519 = vmatpush1.xpose.msra.mxu0 0.0
        %5520 = vmatprep.subr.mxu0 0.0
        %5521 = vmatpush1.xpose.msra.mxu0 0.0
        %5522 = vmatprep.subr.mxu0 0.0
        %5523 = vmatpush1.xpose.msra.mxu0 0.0
        %5524 = vmatprep.subr.mxu0 0.0
        %5525 = vmatpush1.xpose.msra.mxu0 0.0
        %5526 = vmatprep.subr.mxu0 0.0
        %5527 = vmatpush1.xpose.msra.mxu0 0.0
        %5528 = vmatprep.subr.mxu0 0.0
        %5529 = vmatpush1.xpose.msra.mxu0 0.0
        %5530 = vmatprep.subr.mxu0 0.0
        %5531 = vmatpush1.xpose.msra.mxu0 0.0
        %5532 = vmatprep.subr.mxu0 0.0
        %5533 = vmatpush1.xpose.msra.mxu0 0.0
        %5534 = vmatprep.subr.mxu0 0.0
        %5535 = vmatpush1.xpose.msra.mxu0 0.0
        %5536 = vmatprep.subr.mxu0 0.0
        %5537 = vmatpush1.xpose.msra.mxu0 0.0
        %5538 = vmatprep.subr.mxu0 0.0
        %5539 = vmatpush1.xpose.msra.mxu0 0.0
        %5540 = vmatprep.subr.mxu0 0.0
        %5541 = vmatpush1.xpose.msra.mxu0 0.0
        %5542 = vmatprep.subr.mxu0 0.0
        %5543 = vmatpush1.xpose.msra.mxu0 0.0
        %5544 = vmatprep.subr.mxu0 0.0
        %5545 = vmatpush1.xpose.msra.mxu0 0.0
        %5546 = vmatprep.subr.mxu0 0.0
        %5547 = vmatpush1.xpose.msra.mxu0 0.0
        %5548 = vmatprep.subr.mxu0 0.0
        %5549 = vmatpush1.xpose.msra.mxu0 0.0
        %5550 = vmatprep.subr.mxu0 0.0
        %5551 = vmatpush1.xpose.msra.mxu0 0.0
        %5552 = vmatprep.subr.mxu0 0.0
        %5553 = vmatpush1.xpose.msra.mxu0 0.0
        %5554 = vmatprep.subr.mxu0 0.0
        %5555 = vmatpush1.xpose.msra.mxu0 0.0
        %5556 = vmatprep.subr.mxu0 0.0
        %5557 = vmatpush1.xpose.msra.mxu0 0.0
        %5558 = vmatprep.subr.mxu0 0.0
        %5559 = vmatpush1.xpose.msra.mxu0 0.0
        %5560 = vmatprep.mubr.f32.mxu0 0.0
        %5561 = vmatmul.mubr.f32.gmra.mrb[0].mxu0 %v5492
        %v5562 = vpop.f32.mrb[0].mxu0
        %v5563 = vadd.f32 0.0, %v5562
        %v5564 = vpop.f32.mrb[0].mxu0
        %5565 = vdwg.mxu0
        %v5566 = vsel %vm5227, %v5481, -inf
        %5567 = vmax.xlane.f32.xlu0 %v5566
        %v5568 = vpop.xlane.xlu0 %5567
        %v5569 = vsel %vm5227, %v5563, -inf
        %5570 = vmax.xlane.f32.xlu0 %v5569
        %v5571 = vpop.xlane.xlu0 %5570
        %v5572 = vsub.f32 %v5481, %v5568
        %v5573 = vsub.f32 %v5563, %v5571
        %v5574 = vmul.f32 %v5572, 1.442695
        %v5575 = vpow.pop %v5574
        %v5576 = vmul.f32 %v5573, 1.442695
        %v5577 = vpow.pop %v5576
        %v5578 = vsel %vm5227, %v5575, 0.0
        %5579 = vadd.xlane.f32.xlu0 %v5578
        %v5580 = vpop.xlane.xlu0 %5579
        %v5581 = vsel %vm5227, %v5577, 0.0
        %5582 = vadd.xlane.f32.xlu0 %v5581
        %v5583 = vpop.xlane.xlu0 %5582
        %v5584 = vrcp.pop %v5580
        %v5585 = vrcp.pop %v5583
        %v5586 = vmul.f32 %v5575, %v5584
        %v5587 = vmul.f32 %v5577, %v5585
        %5588 = vrot.lane.b32.xlu0 %v5042, 88
        %v5589 = vpop.permute.xlu0 %5588
        %v5592 = vsel %vm908, %v5586, 0
        %5594 = vmatprep.subr.mxu0 0.0
        %5595 = vmatpush1.msra.mxu0 %v5589
        %5596 = vmatprep.subr.mxu0 0.0
        %5597 = vmatpush1.msra.mxu0 0.0
        %5598 = vmatprep.subr.mxu0 0.0
        %5599 = vmatpush1.msra.mxu0 0.0
        %5600 = vmatprep.subr.mxu0 0.0
        %5601 = vmatpush1.msra.mxu0 0.0
        %5602 = vmatprep.subr.mxu0 0.0
        %5603 = vmatpush1.msra.mxu0 0.0
        %5604 = vmatprep.subr.mxu0 0.0
        %5605 = vmatpush1.msra.mxu0 0.0
        %5606 = vmatprep.subr.mxu0 0.0
        %5607 = vmatpush1.msra.mxu0 0.0
        %5608 = vmatprep.subr.mxu0 0.0
        %5609 = vmatpush1.msra.mxu0 0.0
        %5610 = vmatprep.subr.mxu0 0.0
        %5611 = vmatpush1.msra.mxu0 0.0
        %5612 = vmatprep.subr.mxu0 0.0
        %5613 = vmatpush1.msra.mxu0 0.0
        %5614 = vmatprep.subr.mxu0 0.0
        %5615 = vmatpush1.msra.mxu0 0.0
        %5616 = vmatprep.subr.mxu0 0.0
        %5617 = vmatpush1.msra.mxu0 0.0
        %5618 = vmatprep.subr.mxu0 0.0
        %5619 = vmatpush1.msra.mxu0 0.0
        %5620 = vmatprep.subr.mxu0 0.0
        %5621 = vmatpush1.msra.mxu0 0.0
        %5622 = vmatprep.subr.mxu0 0.0
        %5623 = vmatpush1.msra.mxu0 0.0
        %5624 = vmatprep.subr.mxu0 0.0
        %5625 = vmatpush1.msra.mxu0 0.0
        %5626 = vmatprep.subr.mxu0 0.0
        %5627 = vmatpush1.msra.mxu0 0.0
        %5628 = vmatprep.subr.mxu0 0.0
        %5629 = vmatpush1.msra.mxu0 0.0
        %5630 = vmatprep.subr.mxu0 0.0
        %5631 = vmatpush1.msra.mxu0 0.0
        %5632 = vmatprep.subr.mxu0 0.0
        %5633 = vmatpush1.msra.mxu0 0.0
        %5634 = vmatprep.subr.mxu0 0.0
        %5635 = vmatpush1.msra.mxu0 0.0
        %5636 = vmatprep.subr.mxu0 0.0
        %5637 = vmatpush1.msra.mxu0 0.0
        %5638 = vmatprep.subr.mxu0 0.0
        %5639 = vmatpush1.msra.mxu0 0.0
        %5640 = vmatprep.subr.mxu0 0.0
        %5641 = vmatpush1.msra.mxu0 0.0
        %5642 = vmatprep.subr.mxu0 0.0
        %5643 = vmatpush1.msra.mxu0 0.0
        %5644 = vmatprep.subr.mxu0 0.0
        %5645 = vmatpush1.msra.mxu0 0.0
        %5646 = vmatprep.subr.mxu0 0.0
        %5647 = vmatpush1.msra.mxu0 0.0
        %5648 = vmatprep.subr.mxu0 0.0
        %5649 = vmatpush1.msra.mxu0 0.0
        %5650 = vmatprep.subr.mxu0 0.0
        %5651 = vmatpush1.msra.mxu0 0.0
        %5652 = vmatprep.subr.mxu0 0.0
        %5653 = vmatpush1.msra.mxu0 0.0
        %5654 = vmatprep.subr.mxu0 0.0
        %5655 = vmatpush1.msra.mxu0 0.0
        %5656 = vmatprep.subr.mxu0 0.0
        %5657 = vmatpush1.msra.mxu0 0.0
        %5658 = vmatprep.mubr.f32.mxu0 0.0
        %5659 = vmatmul.mubr.f32.gmra.mrb[0].mxu0 %v5592
        %v5660 = vpop.f32.mrb[0].mxu0
        %v5661 = vadd.f32 0.0, %v5660
        %v5662 = vpop.f32.mrb[0].mxu0
        %5663 = vdwg.mxu0
        %5664 = vrot.lane.b32.xlu0 %v5047, 88
        %v5665 = vpop.permute.xlu0 %5664
        %v5668 = vsel %vm908, %v5587, 0
        %5670 = vmatprep.subr.mxu0 0.0
        %5671 = vmatpush1.msra.mxu0 %v5665
        %5672 = vmatprep.subr.mxu0 0.0
        %5673 = vmatpush1.msra.mxu0 0.0
        %5674 = vmatprep.subr.mxu0 0.0
        %5675 = vmatpush1.msra.mxu0 0.0
        %5676 = vmatprep.subr.mxu0 0.0
        %5677 = vmatpush1.msra.mxu0 0.0
        %5678 = vmatprep.subr.mxu0 0.0
        %5679 = vmatpush1.msra.mxu0 0.0
        %5680 = vmatprep.subr.mxu0 0.0
        %5681 = vmatpush1.msra.mxu0 0.0
        %5682 = vmatprep.subr.mxu0 0.0
        %5683 = vmatpush1.msra.mxu0 0.0
        %5684 = vmatprep.subr.mxu0 0.0
        %5685 = vmatpush1.msra.mxu0 0.0
        %5686 = vmatprep.subr.mxu0 0.0
        %5687 = vmatpush1.msra.mxu0 0.0
        %5688 = vmatprep.subr.mxu0 0.0
        %5689 = vmatpush1.msra.mxu0 0.0
        %5690 = vmatprep.subr.mxu0 0.0
        %5691 = vmatpush1.msra.mxu0 0.0
        %5692 = vmatprep.subr.mxu0 0.0
        %5693 = vmatpush1.msra.mxu0 0.0
        %5694 = vmatprep.subr.mxu0 0.0
        %5695 = vmatpush1.msra.mxu0 0.0
        %5696 = vmatprep.subr.mxu0 0.0
        %5697 = vmatpush1.msra.mxu0 0.0
        %5698 = vmatprep.subr.mxu0 0.0
        %5699 = vmatpush1.msra.mxu0 0.0
        %5700 = vmatprep.subr.mxu0 0.0
        %5701 = vmatpush1.msra.mxu0 0.0
        %5702 = vmatprep.subr.mxu0 0.0
        %5703 = vmatpush1.msra.mxu0 0.0
        %5704 = vmatprep.subr.mxu0 0.0
        %5705 = vmatpush1.msra.mxu0 0.0
        %5706 = vmatprep.subr.mxu0 0.0
        %5707 = vmatpush1.msra.mxu0 0.0
        %5708 = vmatprep.subr.mxu0 0.0
        %5709 = vmatpush1.msra.mxu0 0.0
        %5710 = vmatprep.subr.mxu0 0.0
        %5711 = vmatpush1.msra.mxu0 0.0
        %5712 = vmatprep.subr.mxu0 0.0
        %5713 = vmatpush1.msra.mxu0 0.0
        %5714 = vmatprep.subr.mxu0 0.0
        %5715 = vmatpush1.msra.mxu0 0.0
        %5716 = vmatprep.subr.mxu0 0.0
        %5717 = vmatpush1.msra.mxu0 0.0
        %5718 = vmatprep.subr.mxu0 0.0
        %5719 = vmatpush1.msra.mxu0 0.0
        %5720 = vmatprep.subr.mxu0 0.0
        %5721 = vmatpush1.msra.mxu0 0.0
        %5722 = vmatprep.subr.mxu0 0.0
        %5723 = vmatpush1.msra.mxu0 0.0
        %5724 = vmatprep.subr.mxu0 0.0
        %5725 = vmatpush1.msra.mxu0 0.0
        %5726 = vmatprep.subr.mxu0 0.0
        %5727 = vmatpush1.msra.mxu0 0.0
        %5728 = vmatprep.subr.mxu0 0.0
        %5729 = vmatpush1.msra.mxu0 0.0
        %5730 = vmatprep.subr.mxu0 0.0
        %5731 = vmatpush1.msra.mxu0 0.0
        %5732 = vmatprep.subr.mxu0 0.0
        %5733 = vmatpush1.msra.mxu0 0.0
        %5734 = vmatprep.mubr.f32.mxu0 0.0
        %5735 = vmatmul.mubr.f32.gmra.mrb[0].mxu0 %v5668
        %v5736 = vpop.f32.mrb[0].mxu0
        %v5737 = vadd.f32 0.0, %v5736
        %v5738 = vpop.f32.mrb[0].mxu0
        %5739 = vdwg.mxu0
        %v5742 = vrot.slane %v5737, 7
        %vm5743 = vcmask 1041409
        %v5744 = vsel %vm5743, %v5742, %v5661
        %v5745 = vsel %vm908, %v5744, 0
        %5747 = vmatprep.subr.mxu0 0.0
        %5748 = vmatpush1.msra.mxu0 %v5051
        %5749 = vmatprep.subr.mxu0 0.0
        %5750 = vmatpush1.msra.mxu0 0.0
        %5751 = vmatprep.subr.mxu0 0.0
        %5752 = vmatpush1.msra.mxu0 0.0
        %5753 = vmatprep.subr.mxu0 0.0
        %5754 = vmatpush1.msra.mxu0 0.0
        %5755 = vmatprep.subr.mxu0 0.0
        %5756 = vmatpush1.msra.mxu0 0.0
        %5757 = vmatprep.subr.mxu0 0.0
        %5758 = vmatpush1.msra.mxu0 0.0
        %5759 = vmatprep.subr.mxu0 0.0
        %5760 = vmatpush1.msra.mxu0 0.0
        %5761 = vmatprep.subr.mxu0 0.0
        %5762 = vmatpush1.msra.mxu0 0.0
        %5763 = vmatprep.subr.mxu0 0.0
        %5764 = vmatpush1.msra.mxu0 0.0
        %5765 = vmatprep.subr.mxu0 0.0
        %5766 = vmatpush1.msra.mxu0 0.0
        %5767 = vmatprep.subr.mxu0 0.0
        %5768 = vmatpush1.msra.mxu0 0.0
        %5769 = vmatprep.subr.mxu0 0.0
        %5770 = vmatpush1.msra.mxu0 0.0
        %5771 = vmatprep.subr.mxu0 0.0
        %5772 = vmatpush1.msra.mxu0 0.0
        %5773 = vmatprep.subr.mxu0 0.0
        %5774 = vmatpush1.msra.mxu0 0.0
        %5775 = vmatprep.subr.mxu0 0.0
        %5776 = vmatpush1.msra.mxu0 0.0
        %5777 = vmatprep.subr.mxu0 0.0
        %5778 = vmatpush1.msra.mxu0 0.0
        %5779 = vmatprep.subr.mxu0 0.0
        %5780 = vmatpush1.msra.mxu0 0.0
        %5781 = vmatprep.subr.mxu0 0.0
        %5782 = vmatpush1.msra.mxu0 0.0
        %5783 = vmatprep.subr.mxu0 0.0
        %5784 = vmatpush1.msra.mxu0 0.0
        %5785 = vmatprep.subr.mxu0 0.0
        %5786 = vmatpush1.msra.mxu0 0.0
        %5787 = vmatprep.subr.mxu0 0.0
        %5788 = vmatpush1.msra.mxu0 0.0
        %5789 = vmatprep.subr.mxu0 0.0
        %5790 = vmatpush1.msra.mxu0 0.0
        %5791 = vmatprep.subr.mxu0 0.0
        %5792 = vmatpush1.msra.mxu0 0.0
        %5793 = vmatprep.subr.mxu0 0.0
        %5794 = vmatpush1.msra.mxu0 0.0
        %5795 = vmatprep.subr.mxu0 0.0
        %5796 = vmatpush1.msra.mxu0 0.0
        %5797 = vmatprep.subr.mxu0 0.0
        %5798 = vmatpush1.msra.mxu0 0.0
        %5799 = vmatprep.subr.mxu0 0.0
        %5800 = vmatpush1.msra.mxu0 0.0
        %5801 = vmatprep.subr.mxu0 0.0
        %5802 = vmatpush1.msra.mxu0 0.0
        %5803 = vmatprep.subr.mxu0 0.0
        %5804 = vmatpush1.msra.mxu0 0.0
        %5805 = vmatprep.subr.mxu0 0.0
        %5806 = vmatpush1.msra.mxu0 0.0
        %5807 = vmatprep.subr.mxu0 0.0
        %5808 = vmatpush1.msra.mxu0 0.0
        %5809 = vmatprep.subr.mxu0 0.0
        %5810 = vmatpush1.msra.mxu0 0.0
        %5811 = vmatprep.mubr.f32.mxu0 0.0
        %5812 = vmatmul.mubr.f32.gmra.mrb[0].mxu0 %v5745
        %v5813 = vpop.f32.mrb[0].mxu0
        %v5814 = vadd.f32 0.0, %v5813
        %v5815 = vpop.f32.mrb[0].mxu0
        %5816 = vdwg.mxu0
        %v5819 = vrot.slane %v5399, 7
        %v5820 = vsel %vm5743, %v5819, %v5323
        %v5821 = vsel %vm908, %v5820, 0
        %5823 = vmatprep.subr.mxu0 0.0
        %5824 = vmatpush1.msra.mxu0 %v5050
        %5825 = vmatprep.subr.mxu0 0.0
        %5826 = vmatpush1.msra.mxu0 0.0
        %5827 = vmatprep.subr.mxu0 0.0
        %5828 = vmatpush1.msra.mxu0 0.0
        %5829 = vmatprep.subr.mxu0 0.0
        %5830 = vmatpush1.msra.mxu0 0.0
        %5831 = vmatprep.subr.mxu0 0.0
        %5832 = vmatpush1.msra.mxu0 0.0
        %5833 = vmatprep.subr.mxu0 0.0
        %5834 = vmatpush1.msra.mxu0 0.0
        %5835 = vmatprep.subr.mxu0 0.0
        %5836 = vmatpush1.msra.mxu0 0.0
        %5837 = vmatprep.subr.mxu0 0.0
        %5838 = vmatpush1.msra.mxu0 0.0
        %5839 = vmatprep.subr.mxu0 0.0
        %5840 = vmatpush1.msra.mxu0 0.0
        %5841 = vmatprep.subr.mxu0 0.0
        %5842 = vmatpush1.msra.mxu0 0.0
        %5843 = vmatprep.subr.mxu0 0.0
        %5844 = vmatpush1.msra.mxu0 0.0
        %5845 = vmatprep.subr.mxu0 0.0
        %5846 = vmatpush1.msra.mxu0 0.0
        %5847 = vmatprep.subr.mxu0 0.0
        %5848 = vmatpush1.msra.mxu0 0.0
        %5849 = vmatprep.subr.mxu0 0.0
        %5850 = vmatpush1.msra.mxu0 0.0
        %5851 = vmatprep.subr.mxu0 0.0
        %5852 = vmatpush1.msra.mxu0 0.0
        %5853 = vmatprep.subr.mxu0 0.0
        %5854 = vmatpush1.msra.mxu0 0.0
        %5855 = vmatprep.subr.mxu0 0.0
        %5856 = vmatpush1.msra.mxu0 0.0
        %5857 = vmatprep.subr.mxu0 0.0
        %5858 = vmatpush1.msra.mxu0 0.0
        %5859 = vmatprep.subr.mxu0 0.0
        %5860 = vmatpush1.msra.mxu0 0.0
        %5861 = vmatprep.subr.mxu0 0.0
        %5862 = vmatpush1.msra.mxu0 0.0
        %5863 = vmatprep.subr.mxu0 0.0
        %5864 = vmatpush1.msra.mxu0 0.0
        %5865 = vmatprep.subr.mxu0 0.0
        %5866 = vmatpush1.msra.mxu0 0.0
        %5867 = vmatprep.subr.mxu0 0.0
        %5868 = vmatpush1.msra.mxu0 0.0
        %5869 = vmatprep.subr.mxu0 0.0
        %5870 = vmatpush1.msra.mxu0 0.0
        %5871 = vmatprep.subr.mxu0 0.0
        %5872 = vmatpush1.msra.mxu0 0.0
        %5873 = vmatprep.subr.mxu0 0.0
        %5874 = vmatpush1.msra.mxu0 0.0
        %5875 = vmatprep.subr.mxu0 0.0
        %5876 = vmatpush1.msra.mxu0 0.0
        %5877 = vmatprep.subr.mxu0 0.0
        %5878 = vmatpush1.msra.mxu0 0.0
        %5879 = vmatprep.subr.mxu0 0.0
        %5880 = vmatpush1.msra.mxu0 0.0
        %5881 = vmatprep.subr.mxu0 0.0
        %5882 = vmatpush1.msra.mxu0 0.0
        %5883 = vmatprep.subr.mxu0 0.0
        %5884 = vmatpush1.msra.mxu0 0.0
        %5885 = vmatprep.subr.mxu0 0.0
        %5886 = vmatpush1.msra.mxu0 0.0
        %5887 = vmatprep.mubr.f32.mxu0 0.0
        %5888 = vmatmul.mubr.f32.gmra.mrb[0].mxu0 %v5821
        %v5889 = vpop.f32.mrb[0].mxu0
        %v5890 = vadd.f32 %v5814, %v5889
        %v5891 = vpop.f32.mrb[0].mxu0
        %5892 = vdwg.mxu0
        %5893 = vrot.lane.b32.xlu0 %v5405, 112
        %v5894 = vpop.permute.xlu0 %5893
        %5895 = vrot.lane.b32.xlu0 %v5042, 112
        %v5896 = vpop.permute.xlu0 %5895
        %v5897 = vsel %vm908, %v5894, 0
        %v5899 = vsel %vm908, %v5896, 0
        %5901 = vmatprep.subr.mxu0 0.0
        %5902 = vmatpush1.xpose.msra.mxu0 %v5899
        %5903 = vmatprep.subr.mxu0 0.0
        %5904 = vmatpush1.xpose.msra.mxu0 0.0
        %5905 = vmatprep.subr.mxu0 0.0
        %5906 = vmatpush1.xpose.msra.mxu0 0.0
        %5907 = vmatprep.subr.mxu0 0.0
        %5908 = vmatpush1.xpose.msra.mxu0 0.0
        %5909 = vmatprep.subr.mxu0 0.0
        %5910 = vmatpush1.xpose.msra.mxu0 0.0
        %5911 = vmatprep.subr.mxu0 0.0
        %5912 = vmatpush1.xpose.msra.mxu0 0.0
        %5913 = vmatprep.subr.mxu0 0.0
        %5914 = vmatpush1.xpose.msra.mxu0 0.0
        %5915 = vmatprep.subr.mxu0 0.0
        %5916 = vmatpush1.xpose.msra.mxu0 0.0
        %5917 = vmatprep.subr.mxu0 0.0
        %5918 = vmatpush1.xpose.msra.mxu0 0.0
        %5919 = vmatprep.subr.mxu0 0.0
        %5920 = vmatpush1.xpose.msra.mxu0 0.0
        %5921 = vmatprep.subr.mxu0 0.0
        %5922 = vmatpush1.xpose.msra.mxu0 0.0
        %5923 = vmatprep.subr.mxu0 0.0
        %5924 = vmatpush1.xpose.msra.mxu0 0.0
        %5925 = vmatprep.subr.mxu0 0.0
        %5926 = vmatpush1.xpose.msra.mxu0 0.0
        %5927 = vmatprep.subr.mxu0 0.0
        %5928 = vmatpush1.xpose.msra.mxu0 0.0
        %5929 = vmatprep.subr.mxu0 0.0
        %5930 = vmatpush1.xpose.msra.mxu0 0.0
        %5931 = vmatprep.subr.mxu0 0.0
        %5932 = vmatpush1.xpose.msra.mxu0 0.0
        %5933 = vmatprep.subr.mxu0 0.0
        %5934 = vmatpush1.xpose.msra.mxu0 0.0
        %5935 = vmatprep.subr.mxu0 0.0
        %5936 = vmatpush1.xpose.msra.mxu0 0.0
        %5937 = vmatprep.subr.mxu0 0.0
        %5938 = vmatpush1.xpose.msra.mxu0 0.0
        %5939 = vmatprep.subr.mxu0 0.0
        %5940 = vmatpush1.xpose.msra.mxu0 0.0
        %5941 = vmatprep.subr.mxu0 0.0
        %5942 = vmatpush1.xpose.msra.mxu0 0.0
        %5943 = vmatprep.subr.mxu0 0.0
        %5944 = vmatpush1.xpose.msra.mxu0 0.0
        %5945 = vmatprep.subr.mxu0 0.0
        %5946 = vmatpush1.xpose.msra.mxu0 0.0
        %5947 = vmatprep.subr.mxu0 0.0
        %5948 = vmatpush1.xpose.msra.mxu0 0.0
        %5949 = vmatprep.subr.mxu0 0.0
        %5950 = vmatpush1.xpose.msra.mxu0 0.0
        %5951 = vmatprep.subr.mxu0 0.0
        %5952 = vmatpush1.xpose.msra.mxu0 0.0
        %5953 = vmatprep.subr.mxu0 0.0
        %5954 = vmatpush1.xpose.msra.mxu0 0.0
        %5955 = vmatprep.subr.mxu0 0.0
        %5956 = vmatpush1.xpose.msra.mxu0 0.0
        %5957 = vmatprep.subr.mxu0 0.0
        %5958 = vmatpush1.xpose.msra.mxu0 0.0
        %5959 = vmatprep.subr.mxu0 0.0
        %5960 = vmatpush1.xpose.msra.mxu0 0.0
        %5961 = vmatprep.subr.mxu0 0.0
        %5962 = vmatpush1.xpose.msra.mxu0 0.0
        %5963 = vmatprep.subr.mxu0 0.0
        %5964 = vmatpush1.xpose.msra.mxu0 0.0
        %5965 = vmatprep.mubr.f32.mxu0 0.0
        %5966 = vmatmul.mubr.f32.gmra.mrb[0].mxu0 %v5897
        %v5967 = vpop.f32.mrb[0].mxu0
        %v5968 = vadd.f32 0.0, %v5967
        %v5969 = vpop.f32.mrb[0].mxu0
        %5970 = vdwg.mxu0
        %5971 = vrot.lane.b32.xlu0 %v5487, 112
        %v5972 = vpop.permute.xlu0 %5971
        %5973 = vrot.lane.b32.xlu0 %v5047, 112
        %v5974 = vpop.permute.xlu0 %5973
        %v5975 = vsel %vm908, %v5972, 0
        %v5977 = vsel %vm908, %v5974, 0
        %5979 = vmatprep.subr.mxu0 0.0
        %5980 = vmatpush1.xpose.msra.mxu0 %v5977
        %5981 = vmatprep.subr.mxu0 0.0
        %5982 = vmatpush1.xpose.msra.mxu0 0.0
        %5983 = vmatprep.subr.mxu0 0.0
        %5984 = vmatpush1.xpose.msra.mxu0 0.0
        %5985 = vmatprep.subr.mxu0 0.0
        %5986 = vmatpush1.xpose.msra.mxu0 0.0
        %5987 = vmatprep.subr.mxu0 0.0
        %5988 = vmatpush1.xpose.msra.mxu0 0.0
        %5989 = vmatprep.subr.mxu0 0.0
        %5990 = vmatpush1.xpose.msra.mxu0 0.0
        %5991 = vmatprep.subr.mxu0 0.0
        %5992 = vmatpush1.xpose.msra.mxu0 0.0
        %5993 = vmatprep.subr.mxu0 0.0
        %5994 = vmatpush1.xpose.msra.mxu0 0.0
        %5995 = vmatprep.subr.mxu0 0.0
        %5996 = vmatpush1.xpose.msra.mxu0 0.0
        %5997 = vmatprep.subr.mxu0 0.0
        %5998 = vmatpush1.xpose.msra.mxu0 0.0
        %5999 = vmatprep.subr.mxu0 0.0
        %6000 = vmatpush1.xpose.msra.mxu0 0.0
        %6001 = vmatprep.subr.mxu0 0.0
        %6002 = vmatpush1.xpose.msra.mxu0 0.0
        %6003 = vmatprep.subr.mxu0 0.0
        %6004 = vmatpush1.xpose.msra.mxu0 0.0
        %6005 = vmatprep.subr.mxu0 0.0
        %6006 = vmatpush1.xpose.msra.mxu0 0.0
        %6007 = vmatprep.subr.mxu0 0.0
        %6008 = vmatpush1.xpose.msra.mxu0 0.0
        %6009 = vmatprep.subr.mxu0 0.0
        %6010 = vmatpush1.xpose.msra.mxu0 0.0
        %6011 = vmatprep.subr.mxu0 0.0
        %6012 = vmatpush1.xpose.msra.mxu0 0.0
        %6013 = vmatprep.subr.mxu0 0.0
        %6014 = vmatpush1.xpose.msra.mxu0 0.0
        %6015 = vmatprep.subr.mxu0 0.0
        %6016 = vmatpush1.xpose.msra.mxu0 0.0
        %6017 = vmatprep.subr.mxu0 0.0
        %6018 = vmatpush1.xpose.msra.mxu0 0.0
        %6019 = vmatprep.subr.mxu0 0.0
        %6020 = vmatpush1.xpose.msra.mxu0 0.0
        %6021 = vmatprep.subr.mxu0 0.0
        %6022 = vmatpush1.xpose.msra.mxu0 0.0
        %6023 = vmatprep.subr.mxu0 0.0
        %6024 = vmatpush1.xpose.msra.mxu0 0.0
        %6025 = vmatprep.subr.mxu0 0.0
        %6026 = vmatpush1.xpose.msra.mxu0 0.0
        %6027 = vmatprep.subr.mxu0 0.0
        %6028 = vmatpush1.xpose.msra.mxu0 0.0
        %6029 = vmatprep.subr.mxu0 0.0
        %6030 = vmatpush1.xpose.msra.mxu0 0.0
        %6031 = vmatprep.subr.mxu0 0.0
        %6032 = vmatpush1.xpose.msra.mxu0 0.0
        %6033 = vmatprep.subr.mxu0 0.0
        %6034 = vmatpush1.xpose.msra.mxu0 0.0
        %6035 = vmatprep.subr.mxu0 0.0
        %6036 = vmatpush1.xpose.msra.mxu0 0.0
        %6037 = vmatprep.subr.mxu0 0.0
        %6038 = vmatpush1.xpose.msra.mxu0 0.0
        %6039 = vmatprep.subr.mxu0 0.0
        %6040 = vmatpush1.xpose.msra.mxu0 0.0
        %6041 = vmatprep.subr.mxu0 0.0
        %6042 = vmatpush1.xpose.msra.mxu0 0.0
        %6043 = vmatprep.mubr.f32.mxu0 0.0
        %6044 = vmatmul.mubr.f32.gmra.mrb[0].mxu0 %v5975
        %v6045 = vpop.f32.mrb[0].mxu0
        %v6046 = vadd.f32 0.0, %v6045
        %v6047 = vpop.f32.mrb[0].mxu0
        %6048 = vdwg.mxu0
        %v6049 = vsel %vm5227, %v5968, -inf
        %6050 = vmax.xlane.f32.xlu0 %v6049
        %v6051 = vpop.xlane.xlu0 %6050
        %v6052 = vsel %vm5227, %v6046, -inf
        %6053 = vmax.xlane.f32.xlu0 %v6052
        %v6054 = vpop.xlane.xlu0 %6053
        %v6055 = vsub.f32 %v5968, %v6051
        %v6056 = vsub.f32 %v6046, %v6054
        %v6057 = vmul.f32 %v6055, 1.442695
        %v6058 = vpow.pop %v6057
        %v6059 = vmul.f32 %v6056, 1.442695
        %v6060 = vpow.pop %v6059
        %v6061 = vsel %vm5227, %v6058, 0.0
        %6062 = vadd.xlane.f32.xlu0 %v6061
        %v6063 = vpop.xlane.xlu0 %6062
        %v6064 = vsel %vm5227, %v6060, 0.0
        %6065 = vadd.xlane.f32.xlu0 %v6064
        %v6066 = vpop.xlane.xlu0 %6065
        %v6067 = vrcp.pop %v6063
        %v6068 = vrcp.pop %v6066
        %v6069 = vmul.f32 %v6058, %v6067
        %v6070 = vmul.f32 %v6060, %v6068
        %6071 = vrot.lane.b32.xlu0 %v5042, 80
        %v6072 = vpop.permute.xlu0 %6071
        %v6075 = vsel %vm908, %v6069, 0
        %6077 = vmatprep.subr.mxu0 0.0
        %6078 = vmatpush1.msra.mxu0 %v6072
        %6079 = vmatprep.subr.mxu0 0.0
        %6080 = vmatpush1.msra.mxu0 0.0
        %6081 = vmatprep.subr.mxu0 0.0
        %6082 = vmatpush1.msra.mxu0 0.0
        %6083 = vmatprep.subr.mxu0 0.0
        %6084 = vmatpush1.msra.mxu0 0.0
        %6085 = vmatprep.subr.mxu0 0.0
        %6086 = vmatpush1.msra.mxu0 0.0
        %6087 = vmatprep.subr.mxu0 0.0
        %6088 = vmatpush1.msra.mxu0 0.0
        %6089 = vmatprep.subr.mxu0 0.0
        %6090 = vmatpush1.msra.mxu0 0.0
        %6091 = vmatprep.subr.mxu0 0.0
        %6092 = vmatpush1.msra.mxu0 0.0
        %6093 = vmatprep.subr.mxu0 0.0
        %6094 = vmatpush1.msra.mxu0 0.0
        %6095 = vmatprep.subr.mxu0 0.0
        %6096 = vmatpush1.msra.mxu0 0.0
        %6097 = vmatprep.subr.mxu0 0.0
        %6098 = vmatpush1.msra.mxu0 0.0
        %6099 = vmatprep.subr.mxu0 0.0
        %6100 = vmatpush1.msra.mxu0 0.0
        %6101 = vmatprep.subr.mxu0 0.0
        %6102 = vmatpush1.msra.mxu0 0.0
        %6103 = vmatprep.subr.mxu0 0.0
        %6104 = vmatpush1.msra.mxu0 0.0
        %6105 = vmatprep.subr.mxu0 0.0
        %6106 = vmatpush1.msra.mxu0 0.0
        %6107 = vmatprep.subr.mxu0 0.0
        %6108 = vmatpush1.msra.mxu0 0.0
        %6109 = vmatprep.subr.mxu0 0.0
        %6110 = vmatpush1.msra.mxu0 0.0
        %6111 = vmatprep.subr.mxu0 0.0
        %6112 = vmatpush1.msra.mxu0 0.0
        %6113 = vmatprep.subr.mxu0 0.0
        %6114 = vmatpush1.msra.mxu0 0.0
        %6115 = vmatprep.subr.mxu0 0.0
        %6116 = vmatpush1.msra.mxu0 0.0
        %6117 = vmatprep.subr.mxu0 0.0
        %6118 = vmatpush1.msra.mxu0 0.0
        %6119 = vmatprep.subr.mxu0 0.0
        %6120 = vmatpush1.msra.mxu0 0.0
        %6121 = vmatprep.subr.mxu0 0.0
        %6122 = vmatpush1.msra.mxu0 0.0
        %6123 = vmatprep.subr.mxu0 0.0
        %6124 = vmatpush1.msra.mxu0 0.0
        %6125 = vmatprep.subr.mxu0 0.0
        %6126 = vmatpush1.msra.mxu0 0.0
        %6127 = vmatprep.subr.mxu0 0.0
        %6128 = vmatpush1.msra.mxu0 0.0
        %6129 = vmatprep.subr.mxu0 0.0
        %6130 = vmatpush1.msra.mxu0 0.0
        %6131 = vmatprep.subr.mxu0 0.0
        %6132 = vmatpush1.msra.mxu0 0.0
        %6133 = vmatprep.subr.mxu0 0.0
        %6134 = vmatpush1.msra.mxu0 0.0
        %6135 = vmatprep.subr.mxu0 0.0
        %6136 = vmatpush1.msra.mxu0 0.0
        %6137 = vmatprep.subr.mxu0 0.0
        %6138 = vmatpush1.msra.mxu0 0.0
        %6139 = vmatprep.subr.mxu0 0.0
        %6140 = vmatpush1.msra.mxu0 0.0
        %6141 = vmatprep.mubr.f32.mxu0 0.0
        %6142 = vmatmul.mubr.f32.gmra.mrb[0].mxu0 %v6075
        %v6143 = vpop.f32.mrb[0].mxu0
        %v6144 = vadd.f32 0.0, %v6143
        %v6145 = vpop.f32.mrb[0].mxu0
        %6146 = vdwg.mxu0
        %6147 = vrot.lane.b32.xlu0 %v5047, 80
        %v6148 = vpop.permute.xlu0 %6147
        %v6151 = vsel %vm908, %v6070, 0
        %6153 = vmatprep.subr.mxu0 0.0
        %6154 = vmatpush1.msra.mxu0 %v6148
        %6155 = vmatprep.subr.mxu0 0.0
        %6156 = vmatpush1.msra.mxu0 0.0
        %6157 = vmatprep.subr.mxu0 0.0
        %6158 = vmatpush1.msra.mxu0 0.0
        %6159 = vmatprep.subr.mxu0 0.0
        %6160 = vmatpush1.msra.mxu0 0.0
        %6161 = vmatprep.subr.mxu0 0.0
        %6162 = vmatpush1.msra.mxu0 0.0
        %6163 = vmatprep.subr.mxu0 0.0
        %6164 = vmatpush1.msra.mxu0 0.0
        %6165 = vmatprep.subr.mxu0 0.0
        %6166 = vmatpush1.msra.mxu0 0.0
        %6167 = vmatprep.subr.mxu0 0.0
        %6168 = vmatpush1.msra.mxu0 0.0
        %6169 = vmatprep.subr.mxu0 0.0
        %6170 = vmatpush1.msra.mxu0 0.0
        %6171 = vmatprep.subr.mxu0 0.0
        %6172 = vmatpush1.msra.mxu0 0.0
        %6173 = vmatprep.subr.mxu0 0.0
        %6174 = vmatpush1.msra.mxu0 0.0
        %6175 = vmatprep.subr.mxu0 0.0
        %6176 = vmatpush1.msra.mxu0 0.0
        %6177 = vmatprep.subr.mxu0 0.0
        %6178 = vmatpush1.msra.mxu0 0.0
        %6179 = vmatprep.subr.mxu0 0.0
        %6180 = vmatpush1.msra.mxu0 0.0
        %6181 = vmatprep.subr.mxu0 0.0
        %6182 = vmatpush1.msra.mxu0 0.0
        %6183 = vmatprep.subr.mxu0 0.0
        %6184 = vmatpush1.msra.mxu0 0.0
        %6185 = vmatprep.subr.mxu0 0.0
        %6186 = vmatpush1.msra.mxu0 0.0
        %6187 = vmatprep.subr.mxu0 0.0
        %6188 = vmatpush1.msra.mxu0 0.0
        %6189 = vmatprep.subr.mxu0 0.0
        %6190 = vmatpush1.msra.mxu0 0.0
        %6191 = vmatprep.subr.mxu0 0.0
        %6192 = vmatpush1.msra.mxu0 0.0
        %6193 = vmatprep.subr.mxu0 0.0
        %6194 = vmatpush1.msra.mxu0 0.0
        %6195 = vmatprep.subr.mxu0 0.0
        %6196 = vmatpush1.msra.mxu0 0.0
        %6197 = vmatprep.subr.mxu0 0.0
        %6198 = vmatpush1.msra.mxu0 0.0
        %6199 = vmatprep.subr.mxu0 0.0
        %6200 = vmatpush1.msra.mxu0 0.0
        %6201 = vmatprep.subr.mxu0 0.0
        %6202 = vmatpush1.msra.mxu0 0.0
        %6203 = vmatprep.subr.mxu0 0.0
        %6204 = vmatpush1.msra.mxu0 0.0
        %6205 = vmatprep.subr.mxu0 0.0
        %6206 = vmatpush1.msra.mxu0 0.0
        %6207 = vmatprep.subr.mxu0 0.0
        %6208 = vmatpush1.msra.mxu0 0.0
        %6209 = vmatprep.subr.mxu0 0.0
        %6210 = vmatpush1.msra.mxu0 0.0
        %6211 = vmatprep.subr.mxu0 0.0
        %6212 = vmatpush1.msra.mxu0 0.0
        %6213 = vmatprep.subr.mxu0 0.0
        %6214 = vmatpush1.msra.mxu0 0.0
        %6215 = vmatprep.subr.mxu0 0.0
        %6216 = vmatpush1.msra.mxu0 0.0
        %6217 = vmatprep.mubr.f32.mxu0 0.0
        %6218 = vmatmul.mubr.f32.gmra.mrb[0].mxu0 %v6151
        %v6219 = vpop.f32.mrb[0].mxu0
        %v6220 = vadd.f32 0.0, %v6219
        %v6221 = vpop.f32.mrb[0].mxu0
        %6222 = vdwg.mxu0
        %v6225 = vrot.slane %v6220, 7
        %v6226 = vsel %vm5743, %v6225, %v6144
        %v6227 = vsel %vm908, %v6226, 0
        %6229 = vmatprep.subr.mxu0 0.0
        %6230 = vmatpush1.msra.mxu0 %v5052
        %6231 = vmatprep.subr.mxu0 0.0
        %6232 = vmatpush1.msra.mxu0 0.0
        %6233 = vmatprep.subr.mxu0 0.0
        %6234 = vmatpush1.msra.mxu0 0.0
        %6235 = vmatprep.subr.mxu0 0.0
        %6236 = vmatpush1.msra.mxu0 0.0
        %6237 = vmatprep.subr.mxu0 0.0
        %6238 = vmatpush1.msra.mxu0 0.0
        %6239 = vmatprep.subr.mxu0 0.0
        %6240 = vmatpush1.msra.mxu0 0.0
        %6241 = vmatprep.subr.mxu0 0.0
        %6242 = vmatpush1.msra.mxu0 0.0
        %6243 = vmatprep.subr.mxu0 0.0
        %6244 = vmatpush1.msra.mxu0 0.0
        %6245 = vmatprep.subr.mxu0 0.0
        %6246 = vmatpush1.msra.mxu0 0.0
        %6247 = vmatprep.subr.mxu0 0.0
        %6248 = vmatpush1.msra.mxu0 0.0
        %6249 = vmatprep.subr.mxu0 0.0
        %6250 = vmatpush1.msra.mxu0 0.0
        %6251 = vmatprep.subr.mxu0 0.0
        %6252 = vmatpush1.msra.mxu0 0.0
        %6253 = vmatprep.subr.mxu0 0.0
        %6254 = vmatpush1.msra.mxu0 0.0
        %6255 = vmatprep.subr.mxu0 0.0
        %6256 = vmatpush1.msra.mxu0 0.0
        %6257 = vmatprep.subr.mxu0 0.0
        %6258 = vmatpush1.msra.mxu0 0.0
        %6259 = vmatprep.subr.mxu0 0.0
        %6260 = vmatpush1.msra.mxu0 0.0
        %6261 = vmatprep.subr.mxu0 0.0
        %6262 = vmatpush1.msra.mxu0 0.0
        %6263 = vmatprep.subr.mxu0 0.0
        %6264 = vmatpush1.msra.mxu0 0.0
        %6265 = vmatprep.subr.mxu0 0.0
        %6266 = vmatpush1.msra.mxu0 0.0
        %6267 = vmatprep.subr.mxu0 0.0
        %6268 = vmatpush1.msra.mxu0 0.0
        %6269 = vmatprep.subr.mxu0 0.0
        %6270 = vmatpush1.msra.mxu0 0.0
        %6271 = vmatprep.subr.mxu0 0.0
        %6272 = vmatpush1.msra.mxu0 0.0
        %6273 = vmatprep.subr.mxu0 0.0
        %6274 = vmatpush1.msra.mxu0 0.0
        %6275 = vmatprep.subr.mxu0 0.0
        %6276 = vmatpush1.msra.mxu0 0.0
        %6277 = vmatprep.subr.mxu0 0.0
        %6278 = vmatpush1.msra.mxu0 0.0
        %6279 = vmatprep.subr.mxu0 0.0
        %6280 = vmatpush1.msra.mxu0 0.0
        %6281 = vmatprep.subr.mxu0 0.0
        %6282 = vmatpush1.msra.mxu0 0.0
        %6283 = vmatprep.subr.mxu0 0.0
        %6284 = vmatpush1.msra.mxu0 0.0
        %6285 = vmatprep.subr.mxu0 0.0
        %6286 = vmatpush1.msra.mxu0 0.0
        %6287 = vmatprep.subr.mxu0 0.0
        %6288 = vmatpush1.msra.mxu0 0.0
        %6289 = vmatprep.subr.mxu0 0.0
        %6290 = vmatpush1.msra.mxu0 0.0
        %6291 = vmatprep.subr.mxu0 0.0
        %6292 = vmatpush1.msra.mxu0 0.0
        %6293 = vmatprep.mubr.f32.mxu0 0.0
        %6294 = vmatmul.mubr.f32.gmra.mrb[0].mxu0 %v6227
        %v6295 = vpop.f32.mrb[0].mxu0
        %v6296 = vadd.f32 0.0, %v6295
        %v6297 = vpop.f32.mrb[0].mxu0
        %6298 = vdwg.mxu0
        %v6299 = vadd.f32 %v5890, %v6296
        %6300 = vrot.lane.b32.xlu0 %v5405, 104
        %v6301 = vpop.permute.xlu0 %6300
        %6302 = vrot.lane.b32.xlu0 %v5042, 104
        %v6303 = vpop.permute.xlu0 %6302
        %v6304 = vsel %vm908, %v6301, 0
        %v6306 = vsel %vm908, %v6303, 0
        %6308 = vmatprep.subr.mxu0 0.0
        %6309 = vmatpush1.xpose.msra.mxu0 %v6306
        %6310 = vmatprep.subr.mxu0 0.0
        %6311 = vmatpush1.xpose.msra.mxu0 0.0
        %6312 = vmatprep.subr.mxu0 0.0
        %6313 = vmatpush1.xpose.msra.mxu0 0.0
        %6314 = vmatprep.subr.mxu0 0.0
        %6315 = vmatpush1.xpose.msra.mxu0 0.0
        %6316 = vmatprep.subr.mxu0 0.0
        %6317 = vmatpush1.xpose.msra.mxu0 0.0
        %6318 = vmatprep.subr.mxu0 0.0
        %6319 = vmatpush1.xpose.msra.mxu0 0.0
        %6320 = vmatprep.subr.mxu0 0.0
        %6321 = vmatpush1.xpose.msra.mxu0 0.0
        %6322 = vmatprep.subr.mxu0 0.0
        %6323 = vmatpush1.xpose.msra.mxu0 0.0
        %6324 = vmatprep.subr.mxu0 0.0
        %6325 = vmatpush1.xpose.msra.mxu0 0.0
        %6326 = vmatprep.subr.mxu0 0.0
        %6327 = vmatpush1.xpose.msra.mxu0 0.0
        %6328 = vmatprep.subr.mxu0 0.0
        %6329 = vmatpush1.xpose.msra.mxu0 0.0
        %6330 = vmatprep.subr.mxu0 0.0
        %6331 = vmatpush1.xpose.msra.mxu0 0.0
        %6332 = vmatprep.subr.mxu0 0.0
        %6333 = vmatpush1.xpose.msra.mxu0 0.0
        %6334 = vmatprep.subr.mxu0 0.0
        %6335 = vmatpush1.xpose.msra.mxu0 0.0
        %6336 = vmatprep.subr.mxu0 0.0
        %6337 = vmatpush1.xpose.msra.mxu0 0.0
        %6338 = vmatprep.subr.mxu0 0.0
        %6339 = vmatpush1.xpose.msra.mxu0 0.0
        %6340 = vmatprep.subr.mxu0 0.0
        %6341 = vmatpush1.xpose.msra.mxu0 0.0
        %6342 = vmatprep.subr.mxu0 0.0
        %6343 = vmatpush1.xpose.msra.mxu0 0.0
        %6344 = vmatprep.subr.mxu0 0.0
        %6345 = vmatpush1.xpose.msra.mxu0 0.0
        %6346 = vmatprep.subr.mxu0 0.0
        %6347 = vmatpush1.xpose.msra.mxu0 0.0
        %6348 = vmatprep.subr.mxu0 0.0
        %6349 = vmatpush1.xpose.msra.mxu0 0.0
        %6350 = vmatprep.subr.mxu0 0.0
        %6351 = vmatpush1.xpose.msra.mxu0 0.0
        %6352 = vmatprep.subr.mxu0 0.0
        %6353 = vmatpush1.xpose.msra.mxu0 0.0
        %6354 = vmatprep.subr.mxu0 0.0
        %6355 = vmatpush1.xpose.msra.mxu0 0.0
        %6356 = vmatprep.subr.mxu0 0.0
        %6357 = vmatpush1.xpose.msra.mxu0 0.0
        %6358 = vmatprep.subr.mxu0 0.0
        %6359 = vmatpush1.xpose.msra.mxu0 0.0
        %6360 = vmatprep.subr.mxu0 0.0
        %6361 = vmatpush1.xpose.msra.mxu0 0.0
        %6362 = vmatprep.subr.mxu0 0.0
        %6363 = vmatpush1.xpose.msra.mxu0 0.0
        %6364 = vmatprep.subr.mxu0 0.0
        %6365 = vmatpush1.xpose.msra.mxu0 0.0
        %6366 = vmatprep.subr.mxu0 0.0
        %6367 = vmatpush1.xpose.msra.mxu0 0.0
        %6368 = vmatprep.subr.mxu0 0.0
        %6369 = vmatpush1.xpose.msra.mxu0 0.0
        %6370 = vmatprep.subr.mxu0 0.0
        %6371 = vmatpush1.xpose.msra.mxu0 0.0
        %6372 = vmatprep.mubr.f32.mxu0 0.0
        %6373 = vmatmul.mubr.f32.gmra.mrb[0].mxu0 %v6304
        %v6374 = vpop.f32.mrb[0].mxu0
        %v6375 = vadd.f32 0.0, %v6374
        %v6376 = vpop.f32.mrb[0].mxu0
        %6377 = vdwg.mxu0
        %6378 = vrot.lane.b32.xlu0 %v5487, 104
        %v6379 = vpop.permute.xlu0 %6378
        %6380 = vrot.lane.b32.xlu0 %v5047, 104
        %v6381 = vpop.permute.xlu0 %6380
        %v6382 = vsel %vm908, %v6379, 0
        %v6384 = vsel %vm908, %v6381, 0
        %6386 = vmatprep.subr.mxu0 0.0
        %6387 = vmatpush1.xpose.msra.mxu0 %v6384
        %6388 = vmatprep.subr.mxu0 0.0
        %6389 = vmatpush1.xpose.msra.mxu0 0.0
        %6390 = vmatprep.subr.mxu0 0.0
        %6391 = vmatpush1.xpose.msra.mxu0 0.0
        %6392 = vmatprep.subr.mxu0 0.0
        %6393 = vmatpush1.xpose.msra.mxu0 0.0
        %6394 = vmatprep.subr.mxu0 0.0
        %6395 = vmatpush1.xpose.msra.mxu0 0.0
        %6396 = vmatprep.subr.mxu0 0.0
        %6397 = vmatpush1.xpose.msra.mxu0 0.0
        %6398 = vmatprep.subr.mxu0 0.0
        %6399 = vmatpush1.xpose.msra.mxu0 0.0
        %6400 = vmatprep.subr.mxu0 0.0
        %6401 = vmatpush1.xpose.msra.mxu0 0.0
        %6402 = vmatprep.subr.mxu0 0.0
        %6403 = vmatpush1.xpose.msra.mxu0 0.0
        %6404 = vmatprep.subr.mxu0 0.0
        %6405 = vmatpush1.xpose.msra.mxu0 0.0
        %6406 = vmatprep.subr.mxu0 0.0
        %6407 = vmatpush1.xpose.msra.mxu0 0.0
        %6408 = vmatprep.subr.mxu0 0.0
        %6409 = vmatpush1.xpose.msra.mxu0 0.0
        %6410 = vmatprep.subr.mxu0 0.0
        %6411 = vmatpush1.xpose.msra.mxu0 0.0
        %6412 = vmatprep.subr.mxu0 0.0
        %6413 = vmatpush1.xpose.msra.mxu0 0.0
        %6414 = vmatprep.subr.mxu0 0.0
        %6415 = vmatpush1.xpose.msra.mxu0 0.0
        %6416 = vmatprep.subr.mxu0 0.0
        %6417 = vmatpush1.xpose.msra.mxu0 0.0
        %6418 = vmatprep.subr.mxu0 0.0
        %6419 = vmatpush1.xpose.msra.mxu0 0.0
        %6420 = vmatprep.subr.mxu0 0.0
        %6421 = vmatpush1.xpose.msra.mxu0 0.0
        %6422 = vmatprep.subr.mxu0 0.0
        %6423 = vmatpush1.xpose.msra.mxu0 0.0
        %6424 = vmatprep.subr.mxu0 0.0
        %6425 = vmatpush1.xpose.msra.mxu0 0.0
        %6426 = vmatprep.subr.mxu0 0.0
        %6427 = vmatpush1.xpose.msra.mxu0 0.0
        %6428 = vmatprep.subr.mxu0 0.0
        %6429 = vmatpush1.xpose.msra.mxu0 0.0
        %6430 = vmatprep.subr.mxu0 0.0
        %6431 = vmatpush1.xpose.msra.mxu0 0.0
        %6432 = vmatprep.subr.mxu0 0.0
        %6433 = vmatpush1.xpose.msra.mxu0 0.0
        %6434 = vmatprep.subr.mxu0 0.0
        %6435 = vmatpush1.xpose.msra.mxu0 0.0
        %6436 = vmatprep.subr.mxu0 0.0
        %6437 = vmatpush1.xpose.msra.mxu0 0.0
        %6438 = vmatprep.subr.mxu0 0.0
        %6439 = vmatpush1.xpose.msra.mxu0 0.0
        %6440 = vmatprep.subr.mxu0 0.0
        %6441 = vmatpush1.xpose.msra.mxu0 0.0
        %6442 = vmatprep.subr.mxu0 0.0
        %6443 = vmatpush1.xpose.msra.mxu0 0.0
        %6444 = vmatprep.subr.mxu0 0.0
        %6445 = vmatpush1.xpose.msra.mxu0 0.0
        %6446 = vmatprep.subr.mxu0 0.0
        %6447 = vmatpush1.xpose.msra.mxu0 0.0
        %6448 = vmatprep.subr.mxu0 0.0
        %6449 = vmatpush1.xpose.msra.mxu0 0.0
        %6450 = vmatprep.mubr.f32.mxu0 0.0
        %6451 = vmatmul.mubr.f32.gmra.mrb[0].mxu0 %v6382
        %v6452 = vpop.f32.mrb[0].mxu0
        %v6453 = vadd.f32 0.0, %v6452
        %v6454 = vpop.f32.mrb[0].mxu0
        %6455 = vdwg.mxu0
        %v6456 = vsel %vm5227, %v6375, -inf
        %6457 = vmax.xlane.f32.xlu0 %v6456
        %v6458 = vpop.xlane.xlu0 %6457
        %v6459 = vsel %vm5227, %v6453, -inf
        %6460 = vmax.xlane.f32.xlu0 %v6459
        %v6461 = vpop.xlane.xlu0 %6460
        %v6462 = vsub.f32 %v6375, %v6458
        %v6463 = vsub.f32 %v6453, %v6461
        %v6464 = vmul.f32 %v6462, 1.442695
        %v6465 = vpow.pop %v6464
        %v6466 = vmul.f32 %v6463, 1.442695
        %v6467 = vpow.pop %v6466
        %v6468 = vsel %vm5227, %v6465, 0.0
        %6469 = vadd.xlane.f32.xlu0 %v6468
        %v6470 = vpop.xlane.xlu0 %6469
        %v6471 = vsel %vm5227, %v6467, 0.0
        %6472 = vadd.xlane.f32.xlu0 %v6471
        %v6473 = vpop.xlane.xlu0 %6472
        %v6474 = vrcp.pop %v6470
        %v6475 = vrcp.pop %v6473
        %v6476 = vmul.f32 %v6465, %v6474
        %v6477 = vmul.f32 %v6467, %v6475
        %6478 = vrot.lane.b32.xlu0 %v5042, 72
        %v6479 = vpop.permute.xlu0 %6478
        %v6482 = vsel %vm908, %v6476, 0
        %6484 = vmatprep.subr.mxu0 0.0
        %6485 = vmatpush1.msra.mxu0 %v6479
        %6486 = vmatprep.subr.mxu0 0.0
        %6487 = vmatpush1.msra.mxu0 0.0
        %6488 = vmatprep.subr.mxu0 0.0
        %6489 = vmatpush1.msra.mxu0 0.0
        %6490 = vmatprep.subr.mxu0 0.0
        %6491 = vmatpush1.msra.mxu0 0.0
        %6492 = vmatprep.subr.mxu0 0.0
        %6493 = vmatpush1.msra.mxu0 0.0
        %6494 = vmatprep.subr.mxu0 0.0
        %6495 = vmatpush1.msra.mxu0 0.0
        %6496 = vmatprep.subr.mxu0 0.0
        %6497 = vmatpush1.msra.mxu0 0.0
        %6498 = vmatprep.subr.mxu0 0.0
        %6499 = vmatpush1.msra.mxu0 0.0
        %6500 = vmatprep.subr.mxu0 0.0
        %6501 = vmatpush1.msra.mxu0 0.0
        %6502 = vmatprep.subr.mxu0 0.0
        %6503 = vmatpush1.msra.mxu0 0.0
        %6504 = vmatprep.subr.mxu0 0.0
        %6505 = vmatpush1.msra.mxu0 0.0
        %6506 = vmatprep.subr.mxu0 0.0
        %6507 = vmatpush1.msra.mxu0 0.0
        %6508 = vmatprep.subr.mxu0 0.0
        %6509 = vmatpush1.msra.mxu0 0.0
        %6510 = vmatprep.subr.mxu0 0.0
        %6511 = vmatpush1.msra.mxu0 0.0
        %6512 = vmatprep.subr.mxu0 0.0
        %6513 = vmatpush1.msra.mxu0 0.0
        %6514 = vmatprep.subr.mxu0 0.0
        %6515 = vmatpush1.msra.mxu0 0.0
        %6516 = vmatprep.subr.mxu0 0.0
        %6517 = vmatpush1.msra.mxu0 0.0
        %6518 = vmatprep.subr.mxu0 0.0
        %6519 = vmatpush1.msra.mxu0 0.0
        %6520 = vmatprep.subr.mxu0 0.0
        %6521 = vmatpush1.msra.mxu0 0.0
        %6522 = vmatprep.subr.mxu0 0.0
        %6523 = vmatpush1.msra.mxu0 0.0
        %6524 = vmatprep.subr.mxu0 0.0
        %6525 = vmatpush1.msra.mxu0 0.0
        %6526 = vmatprep.subr.mxu0 0.0
        %6527 = vmatpush1.msra.mxu0 0.0
        %6528 = vmatprep.subr.mxu0 0.0
        %6529 = vmatpush1.msra.mxu0 0.0
        %6530 = vmatprep.subr.mxu0 0.0
        %6531 = vmatpush1.msra.mxu0 0.0
        %6532 = vmatprep.subr.mxu0 0.0
        %6533 = vmatpush1.msra.mxu0 0.0
        %6534 = vmatprep.subr.mxu0 0.0
        %6535 = vmatpush1.msra.mxu0 0.0
        %6536 = vmatprep.subr.mxu0 0.0
        %6537 = vmatpush1.msra.mxu0 0.0
        %6538 = vmatprep.subr.mxu0 0.0
        %6539 = vmatpush1.msra.mxu0 0.0
        %6540 = vmatprep.subr.mxu0 0.0
        %6541 = vmatpush1.msra.mxu0 0.0
        %6542 = vmatprep.subr.mxu0 0.0
        %6543 = vmatpush1.msra.mxu0 0.0
        %6544 = vmatprep.subr.mxu0 0.0
        %6545 = vmatpush1.msra.mxu0 0.0
        %6546 = vmatprep.subr.mxu0 0.0
        %6547 = vmatpush1.msra.mxu0 0.0
        %6548 = vmatprep.mubr.f32.mxu0 0.0
        %6549 = vmatmul.mubr.f32.gmra.mrb[0].mxu0 %v6482
        %v6550 = vpop.f32.mrb[0].mxu0
        %v6551 = vadd.f32 0.0, %v6550
        %v6552 = vpop.f32.mrb[0].mxu0
        %6553 = vdwg.mxu0
        %6554 = vrot.lane.b32.xlu0 %v5047, 72
        %v6555 = vpop.permute.xlu0 %6554
        %v6558 = vsel %vm908, %v6477, 0
        %6560 = vmatprep.subr.mxu0 0.0
        %6561 = vmatpush1.msra.mxu0 %v6555
        %6562 = vmatprep.subr.mxu0 0.0
        %6563 = vmatpush1.msra.mxu0 0.0
        %6564 = vmatprep.subr.mxu0 0.0
        %6565 = vmatpush1.msra.mxu0 0.0
        %6566 = vmatprep.subr.mxu0 0.0
        %6567 = vmatpush1.msra.mxu0 0.0
        %6568 = vmatprep.subr.mxu0 0.0
        %6569 = vmatpush1.msra.mxu0 0.0
        %6570 = vmatprep.subr.mxu0 0.0
        %6571 = vmatpush1.msra.mxu0 0.0
        %6572 = vmatprep.subr.mxu0 0.0
        %6573 = vmatpush1.msra.mxu0 0.0
        %6574 = vmatprep.subr.mxu0 0.0
        %6575 = vmatpush1.msra.mxu0 0.0
        %6576 = vmatprep.subr.mxu0 0.0
        %6577 = vmatpush1.msra.mxu0 0.0
        %6578 = vmatprep.subr.mxu0 0.0
        %6579 = vmatpush1.msra.mxu0 0.0
        %6580 = vmatprep.subr.mxu0 0.0
        %6581 = vmatpush1.msra.mxu0 0.0
        %6582 = vmatprep.subr.mxu0 0.0
        %6583 = vmatpush1.msra.mxu0 0.0
        %6584 = vmatprep.subr.mxu0 0.0
        %6585 = vmatpush1.msra.mxu0 0.0
        %6586 = vmatprep.subr.mxu0 0.0
        %6587 = vmatpush1.msra.mxu0 0.0
        %6588 = vmatprep.subr.mxu0 0.0
        %6589 = vmatpush1.msra.mxu0 0.0
        %6590 = vmatprep.subr.mxu0 0.0
        %6591 = vmatpush1.msra.mxu0 0.0
        %6592 = vmatprep.subr.mxu0 0.0
        %6593 = vmatpush1.msra.mxu0 0.0
        %6594 = vmatprep.subr.mxu0 0.0
        %6595 = vmatpush1.msra.mxu0 0.0
        %6596 = vmatprep.subr.mxu0 0.0
        %6597 = vmatpush1.msra.mxu0 0.0
        %6598 = vmatprep.subr.mxu0 0.0
        %6599 = vmatpush1.msra.mxu0 0.0
        %6600 = vmatprep.subr.mxu0 0.0
        %6601 = vmatpush1.msra.mxu0 0.0
        %6602 = vmatprep.subr.mxu0 0.0
        %6603 = vmatpush1.msra.mxu0 0.0
        %6604 = vmatprep.subr.mxu0 0.0
        %6605 = vmatpush1.msra.mxu0 0.0
        %6606 = vmatprep.subr.mxu0 0.0
        %6607 = vmatpush1.msra.mxu0 0.0
        %6608 = vmatprep.subr.mxu0 0.0
        %6609 = vmatpush1.msra.mxu0 0.0
        %6610 = vmatprep.subr.mxu0 0.0
        %6611 = vmatpush1.msra.mxu0 0.0
        %6612 = vmatprep.subr.mxu0 0.0
        %6613 = vmatpush1.msra.mxu0 0.0
        %6614 = vmatprep.subr.mxu0 0.0
        %6615 = vmatpush1.msra.mxu0 0.0
        %6616 = vmatprep.subr.mxu0 0.0
        %6617 = vmatpush1.msra.mxu0 0.0
        %6618 = vmatprep.subr.mxu0 0.0
        %6619 = vmatpush1.msra.mxu0 0.0
        %6620 = vmatprep.subr.mxu0 0.0
        %6621 = vmatpush1.msra.mxu0 0.0
        %6622 = vmatprep.subr.mxu0 0.0
        %6623 = vmatpush1.msra.mxu0 0.0
        %6624 = vmatprep.mubr.f32.mxu0 0.0
        %6625 = vmatmul.mubr.f32.gmra.mrb[0].mxu0 %v6558
        %v6626 = vpop.f32.mrb[0].mxu0
        %v6627 = vadd.f32 0.0, %v6626
        %v6628 = vpop.f32.mrb[0].mxu0
        %6629 = vdwg.mxu0
        %v6632 = vrot.slane %v6627, 7
        %v6633 = vsel %vm5743, %v6632, %v6551
        %v6634 = vsel %vm908, %v6633, 0
        %6636 = vmatprep.subr.mxu0 0.0
        %6637 = vmatpush1.msra.mxu0 %v5053
        %6638 = vmatprep.subr.mxu0 0.0
        %6639 = vmatpush1.msra.mxu0 0.0
        %6640 = vmatprep.subr.mxu0 0.0
        %6641 = vmatpush1.msra.mxu0 0.0
        %6642 = vmatprep.subr.mxu0 0.0
        %6643 = vmatpush1.msra.mxu0 0.0
        %6644 = vmatprep.subr.mxu0 0.0
        %6645 = vmatpush1.msra.mxu0 0.0
        %6646 = vmatprep.subr.mxu0 0.0
        %6647 = vmatpush1.msra.mxu0 0.0
        %6648 = vmatprep.subr.mxu0 0.0
        %6649 = vmatpush1.msra.mxu0 0.0
        %6650 = vmatprep.subr.mxu0 0.0
        %6651 = vmatpush1.msra.mxu0 0.0
        %6652 = vmatprep.subr.mxu0 0.0
        %6653 = vmatpush1.msra.mxu0 0.0
        %6654 = vmatprep.subr.mxu0 0.0
        %6655 = vmatpush1.msra.mxu0 0.0
        %6656 = vmatprep.subr.mxu0 0.0
        %6657 = vmatpush1.msra.mxu0 0.0
        %6658 = vmatprep.subr.mxu0 0.0
        %6659 = vmatpush1.msra.mxu0 0.0
        %6660 = vmatprep.subr.mxu0 0.0
        %6661 = vmatpush1.msra.mxu0 0.0
        %6662 = vmatprep.subr.mxu0 0.0
        %6663 = vmatpush1.msra.mxu0 0.0
        %6664 = vmatprep.subr.mxu0 0.0
        %6665 = vmatpush1.msra.mxu0 0.0
        %6666 = vmatprep.subr.mxu0 0.0
        %6667 = vmatpush1.msra.mxu0 0.0
        %6668 = vmatprep.subr.mxu0 0.0
        %6669 = vmatpush1.msra.mxu0 0.0
        %6670 = vmatprep.subr.mxu0 0.0
        %6671 = vmatpush1.msra.mxu0 0.0
        %6672 = vmatprep.subr.mxu0 0.0
        %6673 = vmatpush1.msra.mxu0 0.0
        %6674 = vmatprep.subr.mxu0 0.0
        %6675 = vmatpush1.msra.mxu0 0.0
        %6676 = vmatprep.subr.mxu0 0.0
        %6677 = vmatpush1.msra.mxu0 0.0
        %6678 = vmatprep.subr.mxu0 0.0
        %6679 = vmatpush1.msra.mxu0 0.0
        %6680 = vmatprep.subr.mxu0 0.0
        %6681 = vmatpush1.msra.mxu0 0.0
        %6682 = vmatprep.subr.mxu0 0.0
        %6683 = vmatpush1.msra.mxu0 0.0
        %6684 = vmatprep.subr.mxu0 0.0
        %6685 = vmatpush1.msra.mxu0 0.0
        %6686 = vmatprep.subr.mxu0 0.0
        %6687 = vmatpush1.msra.mxu0 0.0
        %6688 = vmatprep.subr.mxu0 0.0
        %6689 = vmatpush1.msra.mxu0 0.0
        %6690 = vmatprep.subr.mxu0 0.0
        %6691 = vmatpush1.msra.mxu0 0.0
        %6692 = vmatprep.subr.mxu0 0.0
        %6693 = vmatpush1.msra.mxu0 0.0
        %6694 = vmatprep.subr.mxu0 0.0
        %6695 = vmatpush1.msra.mxu0 0.0
        %6696 = vmatprep.subr.mxu0 0.0
        %6697 = vmatpush1.msra.mxu0 0.0
        %6698 = vmatprep.subr.mxu0 0.0
        %6699 = vmatpush1.msra.mxu0 0.0
        %6700 = vmatprep.mubr.f32.mxu0 0.0
        %6701 = vmatmul.mubr.f32.gmra.mrb[0].mxu0 %v6634
        %v6702 = vpop.f32.mrb[0].mxu0
        %v6703 = vadd.f32 0.0, %v6702
        %v6704 = vpop.f32.mrb[0].mxu0
        %6705 = vdwg.mxu0
        %v6706 = vadd.f32 %v6299, %v6703
        %v6707 = vld [vmem:[%s19] sm:$0x1]
        %v6709 = vlaneseq
        %v6710 = vshrl.u32 %v6709, 7
        %v6711 = vsub.s32 0, %v6710
        %v6712 = vrot.slane %v6707, %v6711
        %v6714 = vadd.f32 %v6706, %v6712
        %v6715 = vld [vmem:[%s20] sm:$0xff]
        %v6716 = vld [vmem:[%s20 + $0x8] sm:$0xff]
        %v6717 = vld [vmem:[%s20 + $0x10] sm:$0xff]
        %v6718 = vld [vmem:[%s20 + $0x18] sm:$0xff]
        %v6719 = vld [vmem:[#allocation3] sm:$0x1]
        %v6721 = vlaneseq
        %v6722 = vshrl.u32 %v6721, 7
        %v6723 = vsub.s32 0, %v6722
        %v6724 = vrot.slane %v6719, %v6723
        %v6727 = vsel %vm1018, %v6714, 0
        %6729 = vmatprep.subr.mxu0 0.0
        %6730 = vmatpush1.msra.mxu0 %v6715
        %6731 = vmatprep.subr.mxu0 0.0
        %6732 = vmatpush1.msra.mxu0 %v6716
        %6733 = vmatprep.subr.mxu0 0.0
        %6734 = vmatpush1.msra.mxu0 %v6717
        %6735 = vmatprep.subr.mxu0 0.0
        %6736 = vmatpush1.msra.mxu0 %v6718
        %6737 = vmatprep.subr.mxu0 0.0
        %6738 = vmatpush1.msra.mxu0 0.0
        %6739 = vmatprep.subr.mxu0 0.0
        %6740 = vmatpush1.msra.mxu0 0.0
        %6741 = vmatprep.subr.mxu0 0.0
        %6742 = vmatpush1.msra.mxu0 0.0
        %6743 = vmatprep.subr.mxu0 0.0
        %6744 = vmatpush1.msra.mxu0 0.0
        %6745 = vmatprep.subr.mxu0 0.0
        %6746 = vmatpush1.msra.mxu0 0.0
        %6747 = vmatprep.subr.mxu0 0.0
        %6748 = vmatpush1.msra.mxu0 0.0
        %6749 = vmatprep.subr.mxu0 0.0
        %6750 = vmatpush1.msra.mxu0 0.0
        %6751 = vmatprep.subr.mxu0 0.0
        %6752 = vmatpush1.msra.mxu0 0.0
        %6753 = vmatprep.subr.mxu0 0.0
        %6754 = vmatpush1.msra.mxu0 0.0
        %6755 = vmatprep.subr.mxu0 0.0
        %6756 = vmatpush1.msra.mxu0 0.0
        %6757 = vmatprep.subr.mxu0 0.0
        %6758 = vmatpush1.msra.mxu0 0.0
        %6759 = vmatprep.subr.mxu0 0.0
        %6760 = vmatpush1.msra.mxu0 0.0
        %6761 = vmatprep.subr.mxu0 0.0
        %6762 = vmatpush1.msra.mxu0 0.0
        %6763 = vmatprep.subr.mxu0 0.0
        %6764 = vmatpush1.msra.mxu0 0.0
        %6765 = vmatprep.subr.mxu0 0.0
        %6766 = vmatpush1.msra.mxu0 0.0
        %6767 = vmatprep.subr.mxu0 0.0
        %6768 = vmatpush1.msra.mxu0 0.0
        %6769 = vmatprep.subr.mxu0 0.0
        %6770 = vmatpush1.msra.mxu0 0.0
        %6771 = vmatprep.subr.mxu0 0.0
        %6772 = vmatpush1.msra.mxu0 0.0
        %6773 = vmatprep.subr.mxu0 0.0
        %6774 = vmatpush1.msra.mxu0 0.0
        %6775 = vmatprep.subr.mxu0 0.0
        %6776 = vmatpush1.msra.mxu0 0.0
        %6777 = vmatprep.subr.mxu0 0.0
        %6778 = vmatpush1.msra.mxu0 0.0
        %6779 = vmatprep.subr.mxu0 0.0
        %6780 = vmatpush1.msra.mxu0 0.0
        %6781 = vmatprep.subr.mxu0 0.0
        %6782 = vmatpush1.msra.mxu0 0.0
        %6783 = vmatprep.subr.mxu0 0.0
        %6784 = vmatpush1.msra.mxu0 0.0
        %6785 = vmatprep.subr.mxu0 0.0
        %6786 = vmatpush1.msra.mxu0 0.0
        %6787 = vmatprep.subr.mxu0 0.0
        %6788 = vmatpush1.msra.mxu0 0.0
        %6789 = vmatprep.subr.mxu0 0.0
        %6790 = vmatpush1.msra.mxu0 0.0
        %6791 = vmatprep.subr.mxu0 0.0
        %6792 = vmatpush1.msra.mxu0 0.0
        %6793 = vmatprep.mubr.f32.mxu0 0.0
        %6794 = vmatmul.mubr.f32.gmra.mrb[0].mxu0 %v6727
        %v6795 = vpop.f32.mrb[0].mxu0
        %v6796 = vadd.f32 %v6724, %v6795
        %v6797 = vpop.f32.mrb[0].mxu0
        %6798 = vdwg.mxu0
        %vm6799 = vcmask 1024
        %6800 = vst.msk [vmem:[%s22] sm:$0x3] %vm6799, %v6796
      $region116: #{double_encoder_transformer.1} parent=107 // pred_fallthru
        _
      // Predicated region
      $region117: #{double_encoder_transformer.1} parent=107 // pred_check
        %p6801 = pneg %p585
      $region118: #{double_encoder_transformer.1} parent=107 // pred_check_branch
        %6803 = sbr.rel (%p6801) target = $region120
      $region119: #{double_encoder_transformer.1} parent=107 // pred_region
        _
      $region120: #{double_encoder_transformer.1} parent=107 // pred_fallthru
        _
      // Predicated region
      $region121: #{double_encoder_transformer.1} parent=107 // pred_check
        %p6804 = pneg %p585
      $region122: #{double_encoder_transformer.1} parent=107 // pred_check_branch
        %6806 = sbr.rel (%p6804) target = $region124
      $region123: #{double_encoder_transformer.1} parent=107 // pred_region
        _
      $region124: #{double_encoder_transformer.1} parent=107 // pred_fallthru
        _
    $region108: #{double_encoder_transformer.1} parent=5 // pred_fallthru
      _
    %p6807 = scmp.le.s32.totalorder 2, %s30
    // Predicated region
    $region125: #{double_encoder_transformer.1} parent=5 // pred_check
      %p6808 = pneg %p6807
    $region126: #{double_encoder_transformer.1} parent=5 // pred_check_branch
      %6810 = sbr.rel (%p6808) target = $region128
    $region127: #{double_encoder_transformer.1} parent=5 // pred_region
      %s6811 = ssub.s32 %s30, 2
    $region128: #{double_encoder_transformer.1} parent=5 // pred_fallthru
      _
  $region6: #{double_encoder_transformer.1} parent=0 // loop_footer
    %s34 = sadd.s32 1, %s30
  $region7: #{double_encoder_transformer.1} parent=0 // loop_footer_branch
    %29 = sbr.rel target = $region3
  $region8: #{double_encoder_transformer.1} parent=0 // loop_exit
    _

</llo_original>
